<compile_context>
chip_gen: v7x
topology: tpu7x:2x2x1
jax: 0.10.0
libtpu: 0.0.40
codegen_flags: <defaults>
</compile_context>

<pallas_src>
import numpy as np
import jax
import jax.numpy as jnp
from jax import lax
from jax.experimental import pallas as pl
from jax.experimental.pallas import tpu as pltpu


# ---------------------------------------------------------------------------
# Kernel 1: conv1 (3->64, k=3, valid) + ReLU + 2x2/2 max pool.
# One batch element per grid step; whole image lives in VMEM.
# ---------------------------------------------------------------------------

def _conv1_relu_pool_kernel(x_ref, w_ref, b_ref, o_ref, row_buf):
    # x_ref: (64, 64, 3) f32    w_ref: (9, 3, 64) f32    b_ref: (1, 64) f32
    # o_ref: (31, 31, 64) f32   row_buf: (62, 64) f32 scratch
    bias = b_ref[...]                                           # (1, 64)

    def conv_row(y):
        # One conv output row y: accumulate the 9 shifted taps as (62,3)@(3,64) matmuls.
        acc = jnp.zeros((62, 64), jnp.float32)
        for di in range(3):
            for dj in range(3):
                lhs = x_ref[y + di, pl.ds(dj, 62), :]           # (62, 3)
                acc = acc + jnp.dot(lhs, w_ref[di * 3 + dj],
                                    preferred_element_type=jnp.float32)
        return jnp.maximum(acc + bias, 0.0)

    def body(p, carry):
        # Pool-output row p = max over conv rows (2p, 2p+1) and column pairs.
        row_buf[...] = jnp.maximum(conv_row(2 * p), conv_row(2 * p + 1))
        pooled = jnp.maximum(row_buf[pl.ds(0, 31, 2), :],
                             row_buf[pl.ds(1, 31, 2), :])       # (31, 64)
        o_ref[pl.ds(p, 1)] = pooled[None]
        return carry

    lax.fori_loop(0, 31, body, 0)


# ---------------------------------------------------------------------------
# Kernel 2: conv2 (64->16, k=5, valid) + ReLU + 2x2/2 max pool (floor).
# One batch element per grid step; im2col is fused (no HBM patch matrix).
# ---------------------------------------------------------------------------

def _conv2_relu_pool_kernel(x_ref, w_ref, b_ref, o_ref, row_buf):
    # x_ref: (31, 31, 64) f32   w_ref: (25, 64, 16) bf16   b_ref: (1, 16) f32
    # o_ref: (13, 13, 16) f32   row_buf: (27, 16) f32 scratch
    bias = b_ref[...]                                           # (1, 16)

    def conv_row(y):
        acc = jnp.zeros((27, 16), jnp.float32)
        for di in range(5):
            for dj in range(5):
                lhs = x_ref[y + di, pl.ds(dj, 27), :].astype(jnp.bfloat16)   # (27, 64)
                acc = acc + jnp.dot(lhs, w_ref[di * 5 + dj],
                                    preferred_element_type=jnp.float32)
        return jnp.maximum(acc + bias, 0.0)

    def body(p, carry):
        row_buf[...] = jnp.maximum(conv_row(2 * p), conv_row(2 * p + 1))
        pooled = jnp.maximum(row_buf[pl.ds(0, 13, 2), :],
                             row_buf[pl.ds(1, 13, 2), :])       # (13, 16)  (floor pool)
        o_ref[pl.ds(p, 1)] = pooled[None]
        return carry

    lax.fori_loop(0, 13, body, 0)


# ---------------------------------------------------------------------------
# Kernel 3: fc1 + ReLU + fc2 + ReLU + fc3, fully fused (weights resident in VMEM).
# ---------------------------------------------------------------------------

def _mlp_kernel(x_ref, w1_ref, b1_ref, w2_ref, b2_ref, w3_ref, b3_ref, o_ref):
    h = jnp.dot(x_ref[...], w1_ref[...], preferred_element_type=jnp.float32) + b1_ref[...]
    h = jnp.maximum(h, 0.0)
    h = jnp.dot(h, w2_ref[...], preferred_element_type=jnp.float32) + b2_ref[...]
    h = jnp.maximum(h, 0.0)
    h = jnp.dot(h, w3_ref[...], preferred_element_type=jnp.float32) + b3_ref[...]
    o_ref[...] = h.astype(o_ref.dtype)


# ---------------------------------------------------------------------------
# Wrappers
# ---------------------------------------------------------------------------

def conv1_relu_pool(x_nhwc, w, b):
    N = x_nhwc.shape[0]
    return pl.pallas_call(
        _conv1_relu_pool_kernel,
        out_shape=jax.ShapeDtypeStruct((N, 31, 31, 64), jnp.float32),
        grid=(N,),
        in_specs=[
            pl.BlockSpec((None, 64, 64, 3), lambda n: (n, 0, 0, 0)),
            pl.BlockSpec((9, 3, 64), lambda n: (0, 0, 0)),
            pl.BlockSpec((1, 64), lambda n: (0, 0)),
        ],
        out_specs=pl.BlockSpec((None, 31, 31, 64), lambda n: (n, 0, 0, 0)),
        scratch_shapes=[pltpu.VMEM((62, 64), jnp.float32)],
        compiler_params=pltpu.CompilerParams(dimension_semantics=("parallel",)),
    )(x_nhwc, w, b)


def conv2_relu_pool(x_nhwc, w, b):
    N = x_nhwc.shape[0]
    return pl.pallas_call(
        _conv2_relu_pool_kernel,
        out_shape=jax.ShapeDtypeStruct((N, 13, 13, 16), jnp.float32),
        grid=(N,),
        in_specs=[
            pl.BlockSpec((None, 31, 31, 64), lambda n: (n, 0, 0, 0)),
            pl.BlockSpec((25, 64, 16), lambda n: (0, 0, 0)),
            pl.BlockSpec((1, 16), lambda n: (0, 0)),
        ],
        out_specs=pl.BlockSpec((None, 13, 13, 16), lambda n: (n, 0, 0, 0)),
        scratch_shapes=[pltpu.VMEM((27, 16), jnp.float32)],
        compiler_params=pltpu.CompilerParams(dimension_semantics=("parallel",)),
    )(x_nhwc, w, b)


def mlp_fused(x, w1, b1, w2, b2, w3, b3):
    """All three FC layers in one pallas_call.  Batch tile == real batch (no 256-row pad);
    only batches > 256 get tiled (and minimally padded) over a 'parallel' grid axis."""
    M, K = x.shape
    bm = M if M <= 256 else 256
    gm = pl.cdiv(M, bm)
    Mp = gm * bm
    if Mp != M:
        x = jnp.pad(x, ((0, Mp - M), (0, 0)))
    out = pl.pallas_call(
        _mlp_kernel,
        out_shape=jax.ShapeDtypeStruct((Mp, w3.shape[1]), jnp.float32),
        grid=(gm,),
        in_specs=[
            pl.BlockSpec((bm, K), lambda i: (i, 0)),
            pl.BlockSpec(w1.shape, lambda i: (0, 0)),
            pl.BlockSpec(b1.shape, lambda i: (0, 0)),
            pl.BlockSpec(w2.shape, lambda i: (0, 0)),
            pl.BlockSpec(b2.shape, lambda i: (0, 0)),
            pl.BlockSpec(w3.shape, lambda i: (0, 0)),
            pl.BlockSpec(b3.shape, lambda i: (0, 0)),
        ],
        out_specs=pl.BlockSpec((bm, w3.shape[1]), lambda i: (i, 0)),
        compiler_params=pltpu.CompilerParams(dimension_semantics=("parallel",)),
    )(x, w1, b1, w2, b2, w3, b3)
    return out[:M]


# ---------------------------------------------------------------------------
# Parameter prep (run ONCE, outside the forward pass)
# ---------------------------------------------------------------------------

def prepare_params(params):
    """Hoisted layout work:
      - conv weights OIHW -> (KH*KW, IC, OC) taps; conv2 taps cast to bf16 for the MXU
        (accumulation stays f32 in-kernel).
      - fc weights transposed to (in, out); fc1 is additionally permuted from PyTorch's
        NCHW flatten order (c*169 + h*13 + w) to the kernel's NHWC flatten order
        ((h*13 + w)*16 + c), so the activation flatten is a free row-major reshape.
    """
    w1 = jnp.transpose(params["conv1_w"], (2, 3, 1, 0)).reshape(9, 3, 64)
    w2 = jnp.transpose(params["conv2_w"], (2, 3, 1, 0)).reshape(25, 64, 16)
    fc1 = params["fc1_w"].reshape(120, 16, 13, 13).transpose(2, 3, 1, 0).reshape(2704, 120)
    return {
        "w1": w1.astype(jnp.float32),
        "b1": params["conv1_b"].reshape(1, 64).astype(jnp.float32),
        "w2": w2.astype(jnp.bfloat16),
        "b2": params["conv2_b"].reshape(1, 16).astype(jnp.float32),
        "fc1_w": fc1.astype(jnp.float32),
        "fc1_b": params["fc1_b"].reshape(1, 120),
        "fc2_w": params["fc2_w"].T,
        "fc2_b": params["fc2_b"].reshape(1, 84),
        "fc3_w": params["fc3_w"].T,
        "fc3_b": params["fc3_b"].reshape(1, 84),
    }


# ---------------------------------------------------------------------------
# Full Net forward (3 pallas_calls total)
# ---------------------------------------------------------------------------

def net_forward(x_nchw, p):
    x = jnp.transpose(x_nchw, (0, 2, 3, 1))                 # NCHW -> NHWC (input boundary)
    x = conv1_relu_pool(x, p["w1"], p["b1"])                # (N, 31, 31, 64)
    x = conv2_relu_pool(x, p["w2"], p["b2"])                # (N, 13, 13, 16)
    # Free row-major (h, w, c) flatten; fc1's weight is pre-permuted so this matches
    # PyTorch's x.view(-1, 16*13*13) (c, h, w) flatten exactly -- no runtime transpose.
    x = x.reshape(x.shape[0], 13 * 13 * 16)
    return mlp_fused(x, p["fc1_w"], p["fc1_b"], p["fc2_w"], p["fc2_b"],
                     p["fc3_w"], p["fc3_b"])


# ---------------------------------------------------------------------------
# Reference (pure XLA) + params
# ---------------------------------------------------------------------------

def net_reference(x_nchw, params):
    dn = ("NCHW", "OIHW", "NCHW")
    y = lax.conv_general_dilated(x_nchw, params["conv1_w"], (1, 1), "VALID",
                                 dimension_numbers=dn)
    y = jax.nn.relu(y + params["conv1_b"][None, :, None, None])
    y = lax.reduce_window(y, -jnp.inf, lax.max, (1, 1, 2, 2), (1, 1, 2, 2), "VALID")
    y = lax.conv_general_dilated(y, params["conv2_w"], (1, 1), "VALID",
                                 dimension_numbers=dn)
    y = jax.nn.relu(y + params["conv2_b"][None, :, None, None])
    y = lax.reduce_window(y, -jnp.inf, lax.max, (1, 1, 2, 2), (1, 1, 2, 2), "VALID")
    y = y.reshape(y.shape[0], -1)                           # NCHW flatten: (c, h, w)
    y = jax.nn.relu(y @ params["fc1_w"].T + params["fc1_b"])
    y = jax.nn.relu(y @ params["fc2_w"].T + params["fc2_b"])
    return y @ params["fc3_w"].T + params["fc3_b"]


def init_params(key):
    """Deterministic synthetic params; PyTorch conventions (conv (OC,IC,KH,KW), linear (out,in))."""
    ks = jax.random.split(key, 10)

    def u(k, shape, fan_in):
        bound = 1.0 / np.sqrt(fan_in)
        return jax.random.uniform(k, shape, jnp.float32, -bound, bound)

    return {
        "conv1_w": u(ks[0], (64, 3, 3, 3), 3 * 3 * 3),
        "conv1_b": u(ks[1], (64,), 3 * 3 * 3),
        "conv2_w": u(ks[2], (16, 64, 5, 5), 64 * 5 * 5),
        "conv2_b": u(ks[3], (16,), 64 * 5 * 5),
        "fc1_w":   u(ks[4], (120, 16 * 13 * 13), 16 * 13 * 13),
        "fc1_b":   u(ks[5], (120,), 16 * 13 * 13),
        "fc2_w":   u(ks[6], (84, 120), 120),
        "fc2_b":   u(ks[7], (84,), 120),
        "fc3_w":   u(ks[8], (84, 84), 84),
        "fc3_b":   u(ks[9], (84,), 84),
    }


if __name__ == "__main__":
    key = jax.random.PRNGKey(0)
    k_params, k_x = jax.random.split(key)
    params = init_params(k_params)
    prepared = prepare_params(params)          # one-time layout prep, outside the forward

    # batch=2, channels=3, spatial=64 (64 is implied by fc1 = 16*13*13)
    x = jax.random.normal(k_x, (2, 3, 64, 64), dtype=jnp.float32)

    out = jax.jit(net_forward)(x, prepared)
    out = jax.block_until_ready(out)

    assert out.shape == (2, 84), out.shape
    assert bool(jnp.all(jnp.isfinite(out)))

    # Numerics check vs a pure-XLA reference of the PyTorch module
    # (loose tolerance: conv2 uses bf16 MXU inputs with f32 accumulation).
    ref = jax.block_until_ready(jax.jit(net_reference)(x, params))
    np.testing.assert_allclose(np.asarray(out), np.asarray(ref), rtol=5e-2, atol=5e-2)

    print("KERNEL_OK")
</pallas_src>

<mosaic_0001>
module attributes {stable_mosaic.version = 11 : i64} {
  func.func @_conv2_relu_pool_kernel(%arg0: i32, %arg1: memref<1x31x31x64xf32, #tpu.memory_space<vmem>>, %arg2: memref<25x64x16xbf16, #tpu.memory_space<vmem>>, %arg3: memref<1x16xf32, #tpu.memory_space<vmem>>, %arg4: memref<1x13x13x16xf32, #tpu.memory_space<vmem>>, %arg5: memref<27x16xf32, #tpu.memory_space<vmem>>) attributes {dimension_semantics = [#tpu.dimension_semantics<parallel>], iteration_bounds = array<i64: 2>, scalar_prefetch = 0 : i64, scratch_operands = 1 : i64, tpu.core_type = #tpu.core_type<tc>, window_params = [{transform_indices = @transform_0, window_bounds = array<i64: 1, 31, 31, 64>}, {pipeline_mode = #tpu.pipeline_mode<synchronous>, transform_indices = @transform_1, window_bounds = array<i64: 25, 64, 16>}, {pipeline_mode = #tpu.pipeline_mode<synchronous>, transform_indices = @transform_2, window_bounds = array<i64: 1, 16>}, {transform_indices = @transform_3, window_bounds = array<i64: 1, 13, 13, 16>}]} {
    %c0 = arith.constant 0 : index
    %c0_0 = arith.constant 0 : index
    %0 = vector.load %arg3[%c0, %c0_0] : memref<1x16xf32, #tpu.memory_space<vmem>>, vector<1x16xf32>
    %c0_i32 = arith.constant 0 : i32
    %c13_i32 = arith.constant 13 : i32
    %1 = arith.addi %c0_i32, %c13_i32 : i32
    %c1_i32 = arith.constant 1 : i32
    scf.for %arg6 = %c0_i32 to %1 step %c1_i32  : i32 {
      %c2_i32 = arith.constant 2 : i32
      %2 = arith.muli %c2_i32, %arg6 : i32
      %cst = arith.constant 0.000000e+00 : f32
      %3 = vector.broadcast %cst : f32 to vector<27x16xf32>
      %c0_i32_2 = arith.constant 0 : i32
      %4 = arith.addi %2, %c0_i32_2 : i32
      %c0_3 = arith.constant 0 : index
      %5 = arith.index_cast %4 : i32 to index
      %c0_4 = arith.constant 0 : index
      %c0_5 = arith.constant 0 : index
      %6 = vector.load %arg1[%c0_3, %5, %c0_4, %c0_5] : memref<1x31x31x64xf32, #tpu.memory_space<vmem>>, vector<1x1x27x64xf32>
      %7 = vector.shape_cast %6 : vector<1x1x27x64xf32> to vector<27x64xf32>
      %8 = arith.truncf %7 : vector<27x64xf32> to vector<27x64xbf16>
      %c0_6 = arith.constant 0 : index
      %c0_7 = arith.constant 0 : index
      %c0_8 = arith.constant 0 : index
      %9 = vector.load %arg2[%c0_6, %c0_7, %c0_8] : memref<25x64x16xbf16, #tpu.memory_space<vmem>>, vector<1x64x16xbf16>
      %10 = vector.shape_cast %9 : vector<1x64x16xbf16> to vector<64x16xbf16>
      %cst_9 = arith.constant dense<0.000000e+00> : vector<27x16xf32>
      %11 = tpu.matmul %8, %10, %cst_9 {dimension_numbers = #tpu.dot_dimension_numbers<[1], [0], [0], [1], [0, 0, 1, 1], [], []>} : vector<27x64xbf16>, vector<64x16xbf16>, vector<27x16xf32> -> vector<27x16xf32>
      %12 = arith.addf %3, %11 : vector<27x16xf32>
      %c0_i32_10 = arith.constant 0 : i32
      %13 = arith.addi %2, %c0_i32_10 : i32
      %c0_11 = arith.constant 0 : index
      %14 = arith.index_cast %13 : i32 to index
      %c1 = arith.constant 1 : index
      %c0_12 = arith.constant 0 : index
      %15 = vector.load %arg1[%c0_11, %14, %c1, %c0_12] : memref<1x31x31x64xf32, #tpu.memory_space<vmem>>, vector<1x1x27x64xf32>
      %16 = vector.shape_cast %15 : vector<1x1x27x64xf32> to vector<27x64xf32>
      %17 = arith.truncf %16 : vector<27x64xf32> to vector<27x64xbf16>
      %c1_13 = arith.constant 1 : index
      %c0_14 = arith.constant 0 : index
      %c0_15 = arith.constant 0 : index
      %18 = vector.load %arg2[%c1_13, %c0_14, %c0_15] : memref<25x64x16xbf16, #tpu.memory_space<vmem>>, vector<1x64x16xbf16>
      %19 = vector.shape_cast %18 : vector<1x64x16xbf16> to vector<64x16xbf16>
      %cst_16 = arith.constant dense<0.000000e+00> : vector<27x16xf32>
      %20 = tpu.matmul %17, %19, %cst_16 {dimension_numbers = #tpu.dot_dimension_numbers<[1], [0], [0], [1], [0, 0, 1, 1], [], []>} : vector<27x64xbf16>, vector<64x16xbf16>, vector<27x16xf32> -> vector<27x16xf32>
      %21 = arith.addf %12, %20 : vector<27x16xf32>
      %c0_i32_17 = arith.constant 0 : i32
      %22 = arith.addi %2, %c0_i32_17 : i32
      %c0_18 = arith.constant 0 : index
      %23 = arith.index_cast %22 : i32 to index
      %c2 = arith.constant 2 : index
      %c0_19 = arith.constant 0 : index
      %24 = vector.load %arg1[%c0_18, %23, %c2, %c0_19] : memref<1x31x31x64xf32, #tpu.memory_space<vmem>>, vector<1x1x27x64xf32>
      %25 = vector.shape_cast %24 : vector<1x1x27x64xf32> to vector<27x64xf32>
      %26 = arith.truncf %25 : vector<27x64xf32> to vector<27x64xbf16>
      %c2_20 = arith.constant 2 : index
      %c0_21 = arith.constant 0 : index
      %c0_22 = arith.constant 0 : index
      %27 = vector.load %arg2[%c2_20, %c0_21, %c0_22] : memref<25x64x16xbf16, #tpu.memory_space<vmem>>, vector<1x64x16xbf16>
      %28 = vector.shape_cast %27 : vector<1x64x16xbf16> to vector<64x16xbf16>
      %cst_23 = arith.constant dense<0.000000e+00> : vector<27x16xf32>
      %29 = tpu.matmul %26, %28, %cst_23 {dimension_numbers = #tpu.dot_dimension_numbers<[1], [0], [0], [1], [0, 0, 1, 1], [], []>} : vector<27x64xbf16>, vector<64x16xbf16>, vector<27x16xf32> -> vector<27x16xf32>
      %30 = arith.addf %21, %29 : vector<27x16xf32>
      %c0_i32_24 = arith.constant 0 : i32
      %31 = arith.addi %2, %c0_i32_24 : i32
      %c0_25 = arith.constant 0 : index
      %32 = arith.index_cast %31 : i32 to index
      %c3 = arith.constant 3 : index
      %c0_26 = arith.constant 0 : index
      %33 = vector.load %arg1[%c0_25, %32, %c3, %c0_26] : memref<1x31x31x64xf32, #tpu.memory_space<vmem>>, vector<1x1x27x64xf32>
      %34 = vector.shape_cast %33 : vector<1x1x27x64xf32> to vector<27x64xf32>
      %35 = arith.truncf %34 : vector<27x64xf32> to vector<27x64xbf16>
      %c3_27 = arith.constant 3 : index
      %c0_28 = arith.constant 0 : index
      %c0_29 = arith.constant 0 : index
      %36 = vector.load %arg2[%c3_27, %c0_28, %c0_29] : memref<25x64x16xbf16, #tpu.memory_space<vmem>>, vector<1x64x16xbf16>
      %37 = vector.shape_cast %36 : vector<1x64x16xbf16> to vector<64x16xbf16>
      %cst_30 = arith.constant dense<0.000000e+00> : vector<27x16xf32>
      %38 = tpu.matmul %35, %37, %cst_30 {dimension_numbers = #tpu.dot_dimension_numbers<[1], [0], [0], [1], [0, 0, 1, 1], [], []>} : vector<27x64xbf16>, vector<64x16xbf16>, vector<27x16xf32> -> vector<27x16xf32>
      %39 = arith.addf %30, %38 : vector<27x16xf32>
      %c0_i32_31 = arith.constant 0 : i32
      %40 = arith.addi %2, %c0_i32_31 : i32
      %c0_32 = arith.constant 0 : index
      %41 = arith.index_cast %40 : i32 to index
      %c4 = arith.constant 4 : index
      %c0_33 = arith.constant 0 : index
      %42 = vector.load %arg1[%c0_32, %41, %c4, %c0_33] : memref<1x31x31x64xf32, #tpu.memory_space<vmem>>, vector<1x1x27x64xf32>
      %43 = vector.shape_cast %42 : vector<1x1x27x64xf32> to vector<27x64xf32>
      %44 = arith.truncf %43 : vector<27x64xf32> to vector<27x64xbf16>
      %c4_34 = arith.constant 4 : index
      %c0_35 = arith.constant 0 : index
      %c0_36 = arith.constant 0 : index
      %45 = vector.load %arg2[%c4_34, %c0_35, %c0_36] : memref<25x64x16xbf16, #tpu.memory_space<vmem>>, vector<1x64x16xbf16>
      %46 = vector.shape_cast %45 : vector<1x64x16xbf16> to vector<64x16xbf16>
      %cst_37 = arith.constant dense<0.000000e+00> : vector<27x16xf32>
      %47 = tpu.matmul %44, %46, %cst_37 {dimension_numbers = #tpu.dot_dimension_numbers<[1], [0], [0], [1], [0, 0, 1, 1], [], []>} : vector<27x64xbf16>, vector<64x16xbf16>, vector<27x16xf32> -> vector<27x16xf32>
      %48 = arith.addf %39, %47 : vector<27x16xf32>
      %c1_i32_38 = arith.constant 1 : i32
      %49 = arith.addi %2, %c1_i32_38 : i32
      %c0_39 = arith.constant 0 : index
      %50 = arith.index_cast %49 : i32 to index
      %c0_40 = arith.constant 0 : index
      %c0_41 = arith.constant 0 : index
      %51 = vector.load %arg1[%c0_39, %50, %c0_40, %c0_41] : memref<1x31x31x64xf32, #tpu.memory_space<vmem>>, vector<1x1x27x64xf32>
      %52 = vector.shape_cast %51 : vector<1x1x27x64xf32> to vector<27x64xf32>
      %53 = arith.truncf %52 : vector<27x64xf32> to vector<27x64xbf16>
      %c5 = arith.constant 5 : index
      %c0_42 = arith.constant 0 : index
      %c0_43 = arith.constant 0 : index
      %54 = vector.load %arg2[%c5, %c0_42, %c0_43] : memref<25x64x16xbf16, #tpu.memory_space<vmem>>, vector<1x64x16xbf16>
      %55 = vector.shape_cast %54 : vector<1x64x16xbf16> to vector<64x16xbf16>
      %cst_44 = arith.constant dense<0.000000e+00> : vector<27x16xf32>
      %56 = tpu.matmul %53, %55, %cst_44 {dimension_numbers = #tpu.dot_dimension_numbers<[1], [0], [0], [1], [0, 0, 1, 1], [], []>} : vector<27x64xbf16>, vector<64x16xbf16>, vector<27x16xf32> -> vector<27x16xf32>
      %57 = arith.addf %48, %56 : vector<27x16xf32>
      %c1_i32_45 = arith.constant 1 : i32
      %58 = arith.addi %2, %c1_i32_45 : i32
      %c0_46 = arith.constant 0 : index
      %59 = arith.index_cast %58 : i32 to index
      %c1_47 = arith.constant 1 : index
      %c0_48 = arith.constant 0 : index
      %60 = vector.load %arg1[%c0_46, %59, %c1_47, %c0_48] : memref<1x31x31x64xf32, #tpu.memory_space<vmem>>, vector<1x1x27x64xf32>
      %61 = vector.shape_cast %60 : vector<1x1x27x64xf32> to vector<27x64xf32>
      %62 = arith.truncf %61 : vector<27x64xf32> to vector<27x64xbf16>
      %c6 = arith.constant 6 : index
      %c0_49 = arith.constant 0 : index
      %c0_50 = arith.constant 0 : index
      %63 = vector.load %arg2[%c6, %c0_49, %c0_50] : memref<25x64x16xbf16, #tpu.memory_space<vmem>>, vector<1x64x16xbf16>
      %64 = vector.shape_cast %63 : vector<1x64x16xbf16> to vector<64x16xbf16>
      %cst_51 = arith.constant dense<0.000000e+00> : vector<27x16xf32>
      %65 = tpu.matmul %62, %64, %cst_51 {dimension_numbers = #tpu.dot_dimension_numbers<[1], [0], [0], [1], [0, 0, 1, 1], [], []>} : vector<27x64xbf16>, vector<64x16xbf16>, vector<27x16xf32> -> vector<27x16xf32>
      %66 = arith.addf %57, %65 : vector<27x16xf32>
      %c1_i32_52 = arith.constant 1 : i32
      %67 = arith.addi %2, %c1_i32_52 : i32
      %c0_53 = arith.constant 0 : index
      %68 = arith.index_cast %67 : i32 to index
      %c2_54 = arith.constant 2 : index
      %c0_55 = arith.constant 0 : index
      %69 = vector.load %arg1[%c0_53, %68, %c2_54, %c0_55] : memref<1x31x31x64xf32, #tpu.memory_space<vmem>>, vector<1x1x27x64xf32>
      %70 = vector.shape_cast %69 : vector<1x1x27x64xf32> to vector<27x64xf32>
      %71 = arith.truncf %70 : vector<27x64xf32> to vector<27x64xbf16>
      %c7 = arith.constant 7 : index
      %c0_56 = arith.constant 0 : index
      %c0_57 = arith.constant 0 : index
      %72 = vector.load %arg2[%c7, %c0_56, %c0_57] : memref<25x64x16xbf16, #tpu.memory_space<vmem>>, vector<1x64x16xbf16>
      %73 = vector.shape_cast %72 : vector<1x64x16xbf16> to vector<64x16xbf16>
      %cst_58 = arith.constant dense<0.000000e+00> : vector<27x16xf32>
      %74 = tpu.matmul %71, %73, %cst_58 {dimension_numbers = #tpu.dot_dimension_numbers<[1], [0], [0], [1], [0, 0, 1, 1], [], []>} : vector<27x64xbf16>, vector<64x16xbf16>, vector<27x16xf32> -> vector<27x16xf32>
      %75 = arith.addf %66, %74 : vector<27x16xf32>
      %c1_i32_59 = arith.constant 1 : i32
      %76 = arith.addi %2, %c1_i32_59 : i32
      %c0_60 = arith.constant 0 : index
      %77 = arith.index_cast %76 : i32 to index
      %c3_61 = arith.constant 3 : index
      %c0_62 = arith.constant 0 : index
      %78 = vector.load %arg1[%c0_60, %77, %c3_61, %c0_62] : memref<1x31x31x64xf32, #tpu.memory_space<vmem>>, vector<1x1x27x64xf32>
      %79 = vector.shape_cast %78 : vector<1x1x27x64xf32> to vector<27x64xf32>
      %80 = arith.truncf %79 : vector<27x64xf32> to vector<27x64xbf16>
      %c8 = arith.constant 8 : index
      %c0_63 = arith.constant 0 : index
      %c0_64 = arith.constant 0 : index
      %81 = vector.load %arg2[%c8, %c0_63, %c0_64] : memref<25x64x16xbf16, #tpu.memory_space<vmem>>, vector<1x64x16xbf16>
      %82 = vector.shape_cast %81 : vector<1x64x16xbf16> to vector<64x16xbf16>
      %cst_65 = arith.constant dense<0.000000e+00> : vector<27x16xf32>
      %83 = tpu.matmul %80, %82, %cst_65 {dimension_numbers = #tpu.dot_dimension_numbers<[1], [0], [0], [1], [0, 0, 1, 1], [], []>} : vector<27x64xbf16>, vector<64x16xbf16>, vector<27x16xf32> -> vector<27x16xf32>
      %84 = arith.addf %75, %83 : vector<27x16xf32>
      %c1_i32_66 = arith.constant 1 : i32
      %85 = arith.addi %2, %c1_i32_66 : i32
      %c0_67 = arith.constant 0 : index
      %86 = arith.index_cast %85 : i32 to index
      %c4_68 = arith.constant 4 : index
      %c0_69 = arith.constant 0 : index
      %87 = vector.load %arg1[%c0_67, %86, %c4_68, %c0_69] : memref<1x31x31x64xf32, #tpu.memory_space<vmem>>, vector<1x1x27x64xf32>
      %88 = vector.shape_cast %87 : vector<1x1x27x64xf32> to vector<27x64xf32>
      %89 = arith.truncf %88 : vector<27x64xf32> to vector<27x64xbf16>
      %c9 = arith.constant 9 : index
      %c0_70 = arith.constant 0 : index
      %c0_71 = arith.constant 0 : index
      %90 = vector.load %arg2[%c9, %c0_70, %c0_71] : memref<25x64x16xbf16, #tpu.memory_space<vmem>>, vector<1x64x16xbf16>
      %91 = vector.shape_cast %90 : vector<1x64x16xbf16> to vector<64x16xbf16>
      %cst_72 = arith.constant dense<0.000000e+00> : vector<27x16xf32>
      %92 = tpu.matmul %89, %91, %cst_72 {dimension_numbers = #tpu.dot_dimension_numbers<[1], [0], [0], [1], [0, 0, 1, 1], [], []>} : vector<27x64xbf16>, vector<64x16xbf16>, vector<27x16xf32> -> vector<27x16xf32>
      %93 = arith.addf %84, %92 : vector<27x16xf32>
      %c2_i32_73 = arith.constant 2 : i32
      %94 = arith.addi %2, %c2_i32_73 : i32
      %c0_74 = arith.constant 0 : index
      %95 = arith.index_cast %94 : i32 to index
      %c0_75 = arith.constant 0 : index
      %c0_76 = arith.constant 0 : index
      %96 = vector.load %arg1[%c0_74, %95, %c0_75, %c0_76] : memref<1x31x31x64xf32, #tpu.memory_space<vmem>>, vector<1x1x27x64xf32>
      %97 = vector.shape_cast %96 : vector<1x1x27x64xf32> to vector<27x64xf32>
      %98 = arith.truncf %97 : vector<27x64xf32> to vector<27x64xbf16>
      %c10 = arith.constant 10 : index
      %c0_77 = arith.constant 0 : index
      %c0_78 = arith.constant 0 : index
      %99 = vector.load %arg2[%c10, %c0_77, %c0_78] : memref<25x64x16xbf16, #tpu.memory_space<vmem>>, vector<1x64x16xbf16>
      %100 = vector.shape_cast %99 : vector<1x64x16xbf16> to vector<64x16xbf16>
      %cst_79 = arith.constant dense<0.000000e+00> : vector<27x16xf32>
      %101 = tpu.matmul %98, %100, %cst_79 {dimension_numbers = #tpu.dot_dimension_numbers<[1], [0], [0], [1], [0, 0, 1, 1], [], []>} : vector<27x64xbf16>, vector<64x16xbf16>, vector<27x16xf32> -> vector<27x16xf32>
      %102 = arith.addf %93, %101 : vector<27x16xf32>
      %c2_i32_80 = arith.constant 2 : i32
      %103 = arith.addi %2, %c2_i32_80 : i32
      %c0_81 = arith.constant 0 : index
      %104 = arith.index_cast %103 : i32 to index
      %c1_82 = arith.constant 1 : index
      %c0_83 = arith.constant 0 : index
      %105 = vector.load %arg1[%c0_81, %104, %c1_82, %c0_83] : memref<1x31x31x64xf32, #tpu.memory_space<vmem>>, vector<1x1x27x64xf32>
      %106 = vector.shape_cast %105 : vector<1x1x27x64xf32> to vector<27x64xf32>
      %107 = arith.truncf %106 : vector<27x64xf32> to vector<27x64xbf16>
      %c11 = arith.constant 11 : index
      %c0_84 = arith.constant 0 : index
      %c0_85 = arith.constant 0 : index
      %108 = vector.load %arg2[%c11, %c0_84, %c0_85] : memref<25x64x16xbf16, #tpu.memory_space<vmem>>, vector<1x64x16xbf16>
      %109 = vector.shape_cast %108 : vector<1x64x16xbf16> to vector<64x16xbf16>
      %cst_86 = arith.constant dense<0.000000e+00> : vector<27x16xf32>
      %110 = tpu.matmul %107, %109, %cst_86 {dimension_numbers = #tpu.dot_dimension_numbers<[1], [0], [0], [1], [0, 0, 1, 1], [], []>} : vector<27x64xbf16>, vector<64x16xbf16>, vector<27x16xf32> -> vector<27x16xf32>
      %111 = arith.addf %102, %110 : vector<27x16xf32>
      %c2_i32_87 = arith.constant 2 : i32
      %112 = arith.addi %2, %c2_i32_87 : i32
      %c0_88 = arith.constant 0 : index
      %113 = arith.index_cast %112 : i32 to index
      %c2_89 = arith.constant 2 : index
      %c0_90 = arith.constant 0 : index
      %114 = vector.load %arg1[%c0_88, %113, %c2_89, %c0_90] : memref<1x31x31x64xf32, #tpu.memory_space<vmem>>, vector<1x1x27x64xf32>
      %115 = vector.shape_cast %114 : vector<1x1x27x64xf32> to vector<27x64xf32>
      %116 = arith.truncf %115 : vector<27x64xf32> to vector<27x64xbf16>
      %c12 = arith.constant 12 : index
      %c0_91 = arith.constant 0 : index
      %c0_92 = arith.constant 0 : index
      %117 = vector.load %arg2[%c12, %c0_91, %c0_92] : memref<25x64x16xbf16, #tpu.memory_space<vmem>>, vector<1x64x16xbf16>
      %118 = vector.shape_cast %117 : vector<1x64x16xbf16> to vector<64x16xbf16>
      %cst_93 = arith.constant dense<0.000000e+00> : vector<27x16xf32>
      %119 = tpu.matmul %116, %118, %cst_93 {dimension_numbers = #tpu.dot_dimension_numbers<[1], [0], [0], [1], [0, 0, 1, 1], [], []>} : vector<27x64xbf16>, vector<64x16xbf16>, vector<27x16xf32> -> vector<27x16xf32>
      %120 = arith.addf %111, %119 : vector<27x16xf32>
      %c2_i32_94 = arith.constant 2 : i32
      %121 = arith.addi %2, %c2_i32_94 : i32
      %c0_95 = arith.constant 0 : index
      %122 = arith.index_cast %121 : i32 to index
      %c3_96 = arith.constant 3 : index
      %c0_97 = arith.constant 0 : index
      %123 = vector.load %arg1[%c0_95, %122, %c3_96, %c0_97] : memref<1x31x31x64xf32, #tpu.memory_space<vmem>>, vector<1x1x27x64xf32>
      %124 = vector.shape_cast %123 : vector<1x1x27x64xf32> to vector<27x64xf32>
      %125 = arith.truncf %124 : vector<27x64xf32> to vector<27x64xbf16>
      %c13 = arith.constant 13 : index
      %c0_98 = arith.constant 0 : index
      %c0_99 = arith.constant 0 : index
      %126 = vector.load %arg2[%c13, %c0_98, %c0_99] : memref<25x64x16xbf16, #tpu.memory_space<vmem>>, vector<1x64x16xbf16>
      %127 = vector.shape_cast %126 : vector<1x64x16xbf16> to vector<64x16xbf16>
      %cst_100 = arith.constant dense<0.000000e+00> : vector<27x16xf32>
      %128 = tpu.matmul %125, %127, %cst_100 {dimension_numbers = #tpu.dot_dimension_numbers<[1], [0], [0], [1], [0, 0, 1, 1], [], []>} : vector<27x64xbf16>, vector<64x16xbf16>, vector<27x16xf32> -> vector<27x16xf32>
      %129 = arith.addf %120, %128 : vector<27x16xf32>
      %c2_i32_101 = arith.constant 2 : i32
      %130 = arith.addi %2, %c2_i32_101 : i32
      %c0_102 = arith.constant 0 : index
      %131 = arith.index_cast %130 : i32 to index
      %c4_103 = arith.constant 4 : index
      %c0_104 = arith.constant 0 : index
      %132 = vector.load %arg1[%c0_102, %131, %c4_103, %c0_104] : memref<1x31x31x64xf32, #tpu.memory_space<vmem>>, vector<1x1x27x64xf32>
      %133 = vector.shape_cast %132 : vector<1x1x27x64xf32> to vector<27x64xf32>
      %134 = arith.truncf %133 : vector<27x64xf32> to vector<27x64xbf16>
      %c14 = arith.constant 14 : index
      %c0_105 = arith.constant 0 : index
      %c0_106 = arith.constant 0 : index
      %135 = vector.load %arg2[%c14, %c0_105, %c0_106] : memref<25x64x16xbf16, #tpu.memory_space<vmem>>, vector<1x64x16xbf16>
      %136 = vector.shape_cast %135 : vector<1x64x16xbf16> to vector<64x16xbf16>
      %cst_107 = arith.constant dense<0.000000e+00> : vector<27x16xf32>
      %137 = tpu.matmul %134, %136, %cst_107 {dimension_numbers = #tpu.dot_dimension_numbers<[1], [0], [0], [1], [0, 0, 1, 1], [], []>} : vector<27x64xbf16>, vector<64x16xbf16>, vector<27x16xf32> -> vector<27x16xf32>
      %138 = arith.addf %129, %137 : vector<27x16xf32>
      %c3_i32 = arith.constant 3 : i32
      %139 = arith.addi %2, %c3_i32 : i32
      %c0_108 = arith.constant 0 : index
      %140 = arith.index_cast %139 : i32 to index
      %c0_109 = arith.constant 0 : index
      %c0_110 = arith.constant 0 : index
      %141 = vector.load %arg1[%c0_108, %140, %c0_109, %c0_110] : memref<1x31x31x64xf32, #tpu.memory_space<vmem>>, vector<1x1x27x64xf32>
      %142 = vector.shape_cast %141 : vector<1x1x27x64xf32> to vector<27x64xf32>
      %143 = arith.truncf %142 : vector<27x64xf32> to vector<27x64xbf16>
      %c15 = arith.constant 15 : index
      %c0_111 = arith.constant 0 : index
      %c0_112 = arith.constant 0 : index
      %144 = vector.load %arg2[%c15, %c0_111, %c0_112] : memref<25x64x16xbf16, #tpu.memory_space<vmem>>, vector<1x64x16xbf16>
      %145 = vector.shape_cast %144 : vector<1x64x16xbf16> to vector<64x16xbf16>
      %cst_113 = arith.constant dense<0.000000e+00> : vector<27x16xf32>
      %146 = tpu.matmul %143, %145, %cst_113 {dimension_numbers = #tpu.dot_dimension_numbers<[1], [0], [0], [1], [0, 0, 1, 1], [], []>} : vector<27x64xbf16>, vector<64x16xbf16>, vector<27x16xf32> -> vector<27x16xf32>
      %147 = arith.addf %138, %146 : vector<27x16xf32>
      %c3_i32_114 = arith.constant 3 : i32
      %148 = arith.addi %2, %c3_i32_114 : i32
      %c0_115 = arith.constant 0 : index
      %149 = arith.index_cast %148 : i32 to index
      %c1_116 = arith.constant 1 : index
      %c0_117 = arith.constant 0 : index
      %150 = vector.load %arg1[%c0_115, %149, %c1_116, %c0_117] : memref<1x31x31x64xf32, #tpu.memory_space<vmem>>, vector<1x1x27x64xf32>
      %151 = vector.shape_cast %150 : vector<1x1x27x64xf32> to vector<27x64xf32>
      %152 = arith.truncf %151 : vector<27x64xf32> to vector<27x64xbf16>
      %c16 = arith.constant 16 : index
      %c0_118 = arith.constant 0 : index
      %c0_119 = arith.constant 0 : index
      %153 = vector.load %arg2[%c16, %c0_118, %c0_119] : memref<25x64x16xbf16, #tpu.memory_space<vmem>>, vector<1x64x16xbf16>
      %154 = vector.shape_cast %153 : vector<1x64x16xbf16> to vector<64x16xbf16>
      %cst_120 = arith.constant dense<0.000000e+00> : vector<27x16xf32>
      %155 = tpu.matmul %152, %154, %cst_120 {dimension_numbers = #tpu.dot_dimension_numbers<[1], [0], [0], [1], [0, 0, 1, 1], [], []>} : vector<27x64xbf16>, vector<64x16xbf16>, vector<27x16xf32> -> vector<27x16xf32>
      %156 = arith.addf %147, %155 : vector<27x16xf32>
      %c3_i32_121 = arith.constant 3 : i32
      %157 = arith.addi %2, %c3_i32_121 : i32
      %c0_122 = arith.constant 0 : index
      %158 = arith.index_cast %157 : i32 to index
      %c2_123 = arith.constant 2 : index
      %c0_124 = arith.constant 0 : index
      %159 = vector.load %arg1[%c0_122, %158, %c2_123, %c0_124] : memref<1x31x31x64xf32, #tpu.memory_space<vmem>>, vector<1x1x27x64xf32>
      %160 = vector.shape_cast %159 : vector<1x1x27x64xf32> to vector<27x64xf32>
      %161 = arith.truncf %160 : vector<27x64xf32> to vector<27x64xbf16>
      %c17 = arith.constant 17 : index
      %c0_125 = arith.constant 0 : index
      %c0_126 = arith.constant 0 : index
      %162 = vector.load %arg2[%c17, %c0_125, %c0_126] : memref<25x64x16xbf16, #tpu.memory_space<vmem>>, vector<1x64x16xbf16>
      %163 = vector.shape_cast %162 : vector<1x64x16xbf16> to vector<64x16xbf16>
      %cst_127 = arith.constant dense<0.000000e+00> : vector<27x16xf32>
      %164 = tpu.matmul %161, %163, %cst_127 {dimension_numbers = #tpu.dot_dimension_numbers<[1], [0], [0], [1], [0, 0, 1, 1], [], []>} : vector<27x64xbf16>, vector<64x16xbf16>, vector<27x16xf32> -> vector<27x16xf32>
      %165 = arith.addf %156, %164 : vector<27x16xf32>
      %c3_i32_128 = arith.constant 3 : i32
      %166 = arith.addi %2, %c3_i32_128 : i32
      %c0_129 = arith.constant 0 : index
      %167 = arith.index_cast %166 : i32 to index
      %c3_130 = arith.constant 3 : index
      %c0_131 = arith.constant 0 : index
      %168 = vector.load %arg1[%c0_129, %167, %c3_130, %c0_131] : memref<1x31x31x64xf32, #tpu.memory_space<vmem>>, vector<1x1x27x64xf32>
      %169 = vector.shape_cast %168 : vector<1x1x27x64xf32> to vector<27x64xf32>
      %170 = arith.truncf %169 : vector<27x64xf32> to vector<27x64xbf16>
      %c18 = arith.constant 18 : index
      %c0_132 = arith.constant 0 : index
      %c0_133 = arith.constant 0 : index
      %171 = vector.load %arg2[%c18, %c0_132, %c0_133] : memref<25x64x16xbf16, #tpu.memory_space<vmem>>, vector<1x64x16xbf16>
      %172 = vector.shape_cast %171 : vector<1x64x16xbf16> to vector<64x16xbf16>
      %cst_134 = arith.constant dense<0.000000e+00> : vector<27x16xf32>
      %173 = tpu.matmul %170, %172, %cst_134 {dimension_numbers = #tpu.dot_dimension_numbers<[1], [0], [0], [1], [0, 0, 1, 1], [], []>} : vector<27x64xbf16>, vector<64x16xbf16>, vector<27x16xf32> -> vector<27x16xf32>
      %174 = arith.addf %165, %173 : vector<27x16xf32>
      %c3_i32_135 = arith.constant 3 : i32
      %175 = arith.addi %2, %c3_i32_135 : i32
      %c0_136 = arith.constant 0 : index
      %176 = arith.index_cast %175 : i32 to index
      %c4_137 = arith.constant 4 : index
      %c0_138 = arith.constant 0 : index
      %177 = vector.load %arg1[%c0_136, %176, %c4_137, %c0_138] : memref<1x31x31x64xf32, #tpu.memory_space<vmem>>, vector<1x1x27x64xf32>
      %178 = vector.shape_cast %177 : vector<1x1x27x64xf32> to vector<27x64xf32>
      %179 = arith.truncf %178 : vector<27x64xf32> to vector<27x64xbf16>
      %c19 = arith.constant 19 : index
      %c0_139 = arith.constant 0 : index
      %c0_140 = arith.constant 0 : index
      %180 = vector.load %arg2[%c19, %c0_139, %c0_140] : memref<25x64x16xbf16, #tpu.memory_space<vmem>>, vector<1x64x16xbf16>
      %181 = vector.shape_cast %180 : vector<1x64x16xbf16> to vector<64x16xbf16>
      %cst_141 = arith.constant dense<0.000000e+00> : vector<27x16xf32>
      %182 = tpu.matmul %179, %181, %cst_141 {dimension_numbers = #tpu.dot_dimension_numbers<[1], [0], [0], [1], [0, 0, 1, 1], [], []>} : vector<27x64xbf16>, vector<64x16xbf16>, vector<27x16xf32> -> vector<27x16xf32>
      %183 = arith.addf %174, %182 : vector<27x16xf32>
      %c4_i32 = arith.constant 4 : i32
      %184 = arith.addi %2, %c4_i32 : i32
      %c0_142 = arith.constant 0 : index
      %185 = arith.index_cast %184 : i32 to index
      %c0_143 = arith.constant 0 : index
      %c0_144 = arith.constant 0 : index
      %186 = vector.load %arg1[%c0_142, %185, %c0_143, %c0_144] : memref<1x31x31x64xf32, #tpu.memory_space<vmem>>, vector<1x1x27x64xf32>
      %187 = vector.shape_cast %186 : vector<1x1x27x64xf32> to vector<27x64xf32>
      %188 = arith.truncf %187 : vector<27x64xf32> to vector<27x64xbf16>
      %c20 = arith.constant 20 : index
      %c0_145 = arith.constant 0 : index
      %c0_146 = arith.constant 0 : index
      %189 = vector.load %arg2[%c20, %c0_145, %c0_146] : memref<25x64x16xbf16, #tpu.memory_space<vmem>>, vector<1x64x16xbf16>
      %190 = vector.shape_cast %189 : vector<1x64x16xbf16> to vector<64x16xbf16>
      %cst_147 = arith.constant dense<0.000000e+00> : vector<27x16xf32>
      %191 = tpu.matmul %188, %190, %cst_147 {dimension_numbers = #tpu.dot_dimension_numbers<[1], [0], [0], [1], [0, 0, 1, 1], [], []>} : vector<27x64xbf16>, vector<64x16xbf16>, vector<27x16xf32> -> vector<27x16xf32>
      %192 = arith.addf %183, %191 : vector<27x16xf32>
      %c4_i32_148 = arith.constant 4 : i32
      %193 = arith.addi %2, %c4_i32_148 : i32
      %c0_149 = arith.constant 0 : index
      %194 = arith.index_cast %193 : i32 to index
      %c1_150 = arith.constant 1 : index
      %c0_151 = arith.constant 0 : index
      %195 = vector.load %arg1[%c0_149, %194, %c1_150, %c0_151] : memref<1x31x31x64xf32, #tpu.memory_space<vmem>>, vector<1x1x27x64xf32>
      %196 = vector.shape_cast %195 : vector<1x1x27x64xf32> to vector<27x64xf32>
      %197 = arith.truncf %196 : vector<27x64xf32> to vector<27x64xbf16>
      %c21 = arith.constant 21 : index
      %c0_152 = arith.constant 0 : index
      %c0_153 = arith.constant 0 : index
      %198 = vector.load %arg2[%c21, %c0_152, %c0_153] : memref<25x64x16xbf16, #tpu.memory_space<vmem>>, vector<1x64x16xbf16>
      %199 = vector.shape_cast %198 : vector<1x64x16xbf16> to vector<64x16xbf16>
      %cst_154 = arith.constant dense<0.000000e+00> : vector<27x16xf32>
      %200 = tpu.matmul %197, %199, %cst_154 {dimension_numbers = #tpu.dot_dimension_numbers<[1], [0], [0], [1], [0, 0, 1, 1], [], []>} : vector<27x64xbf16>, vector<64x16xbf16>, vector<27x16xf32> -> vector<27x16xf32>
      %201 = arith.addf %192, %200 : vector<27x16xf32>
      %c4_i32_155 = arith.constant 4 : i32
      %202 = arith.addi %2, %c4_i32_155 : i32
      %c0_156 = arith.constant 0 : index
      %203 = arith.index_cast %202 : i32 to index
      %c2_157 = arith.constant 2 : index
      %c0_158 = arith.constant 0 : index
      %204 = vector.load %arg1[%c0_156, %203, %c2_157, %c0_158] : memref<1x31x31x64xf32, #tpu.memory_space<vmem>>, vector<1x1x27x64xf32>
      %205 = vector.shape_cast %204 : vector<1x1x27x64xf32> to vector<27x64xf32>
      %206 = arith.truncf %205 : vector<27x64xf32> to vector<27x64xbf16>
      %c22 = arith.constant 22 : index
      %c0_159 = arith.constant 0 : index
      %c0_160 = arith.constant 0 : index
      %207 = vector.load %arg2[%c22, %c0_159, %c0_160] : memref<25x64x16xbf16, #tpu.memory_space<vmem>>, vector<1x64x16xbf16>
      %208 = vector.shape_cast %207 : vector<1x64x16xbf16> to vector<64x16xbf16>
      %cst_161 = arith.constant dense<0.000000e+00> : vector<27x16xf32>
      %209 = tpu.matmul %206, %208, %cst_161 {dimension_numbers = #tpu.dot_dimension_numbers<[1], [0], [0], [1], [0, 0, 1, 1], [], []>} : vector<27x64xbf16>, vector<64x16xbf16>, vector<27x16xf32> -> vector<27x16xf32>
      %210 = arith.addf %201, %209 : vector<27x16xf32>
      %c4_i32_162 = arith.constant 4 : i32
      %211 = arith.addi %2, %c4_i32_162 : i32
      %c0_163 = arith.constant 0 : index
      %212 = arith.index_cast %211 : i32 to index
      %c3_164 = arith.constant 3 : index
      %c0_165 = arith.constant 0 : index
      %213 = vector.load %arg1[%c0_163, %212, %c3_164, %c0_165] : memref<1x31x31x64xf32, #tpu.memory_space<vmem>>, vector<1x1x27x64xf32>
      %214 = vector.shape_cast %213 : vector<1x1x27x64xf32> to vector<27x64xf32>
      %215 = arith.truncf %214 : vector<27x64xf32> to vector<27x64xbf16>
      %c23 = arith.constant 23 : index
      %c0_166 = arith.constant 0 : index
      %c0_167 = arith.constant 0 : index
      %216 = vector.load %arg2[%c23, %c0_166, %c0_167] : memref<25x64x16xbf16, #tpu.memory_space<vmem>>, vector<1x64x16xbf16>
      %217 = vector.shape_cast %216 : vector<1x64x16xbf16> to vector<64x16xbf16>
      %cst_168 = arith.constant dense<0.000000e+00> : vector<27x16xf32>
      %218 = tpu.matmul %215, %217, %cst_168 {dimension_numbers = #tpu.dot_dimension_numbers<[1], [0], [0], [1], [0, 0, 1, 1], [], []>} : vector<27x64xbf16>, vector<64x16xbf16>, vector<27x16xf32> -> vector<27x16xf32>
      %219 = arith.addf %210, %218 : vector<27x16xf32>
      %c4_i32_169 = arith.constant 4 : i32
      %220 = arith.addi %2, %c4_i32_169 : i32
      %c0_170 = arith.constant 0 : index
      %221 = arith.index_cast %220 : i32 to index
      %c4_171 = arith.constant 4 : index
      %c0_172 = arith.constant 0 : index
      %222 = vector.load %arg1[%c0_170, %221, %c4_171, %c0_172] : memref<1x31x31x64xf32, #tpu.memory_space<vmem>>, vector<1x1x27x64xf32>
      %223 = vector.shape_cast %222 : vector<1x1x27x64xf32> to vector<27x64xf32>
      %224 = arith.truncf %223 : vector<27x64xf32> to vector<27x64xbf16>
      %c24 = arith.constant 24 : index
      %c0_173 = arith.constant 0 : index
      %c0_174 = arith.constant 0 : index
      %225 = vector.load %arg2[%c24, %c0_173, %c0_174] : memref<25x64x16xbf16, #tpu.memory_space<vmem>>, vector<1x64x16xbf16>
      %226 = vector.shape_cast %225 : vector<1x64x16xbf16> to vector<64x16xbf16>
      %cst_175 = arith.constant dense<0.000000e+00> : vector<27x16xf32>
      %227 = tpu.matmul %224, %226, %cst_175 {dimension_numbers = #tpu.dot_dimension_numbers<[1], [0], [0], [1], [0, 0, 1, 1], [], []>} : vector<27x64xbf16>, vector<64x16xbf16>, vector<27x16xf32> -> vector<27x16xf32>
      %228 = arith.addf %219, %227 : vector<27x16xf32>
      %229 = vector.broadcast %0 : vector<1x16xf32> to vector<27x16xf32>
      %230 = arith.addf %228, %229 : vector<27x16xf32>
      %cst_176 = arith.constant 0.000000e+00 : f32
      %231 = vector.broadcast %cst_176 : f32 to vector<27x16xf32>
      %232 = arith.maximumf %230, %231 : vector<27x16xf32>
      %c2_i32_177 = arith.constant 2 : i32
      %233 = arith.muli %c2_i32_177, %arg6 : i32
      %c1_i32_178 = arith.constant 1 : i32
      %234 = arith.addi %233, %c1_i32_178 : i32
      %cst_179 = arith.constant 0.000000e+00 : f32
      %235 = vector.broadcast %cst_179 : f32 to vector<27x16xf32>
      %c0_i32_180 = arith.constant 0 : i32
      %236 = arith.addi %234, %c0_i32_180 : i32
      %c0_181 = arith.constant 0 : index
      %237 = arith.index_cast %236 : i32 to index
      %c0_182 = arith.constant 0 : index
      %c0_183 = arith.constant 0 : index
      %238 = vector.load %arg1[%c0_181, %237, %c0_182, %c0_183] : memref<1x31x31x64xf32, #tpu.memory_space<vmem>>, vector<1x1x27x64xf32>
      %239 = vector.shape_cast %238 : vector<1x1x27x64xf32> to vector<27x64xf32>
      %240 = arith.truncf %239 : vector<27x64xf32> to vector<27x64xbf16>
      %c0_184 = arith.constant 0 : index
      %c0_185 = arith.constant 0 : index
      %c0_186 = arith.constant 0 : index
      %241 = vector.load %arg2[%c0_184, %c0_185, %c0_186] : memref<25x64x16xbf16, #tpu.memory_space<vmem>>, vector<1x64x16xbf16>
      %242 = vector.shape_cast %241 : vector<1x64x16xbf16> to vector<64x16xbf16>
      %cst_187 = arith.constant dense<0.000000e+00> : vector<27x16xf32>
      %243 = tpu.matmul %240, %242, %cst_187 {dimension_numbers = #tpu.dot_dimension_numbers<[1], [0], [0], [1], [0, 0, 1, 1], [], []>} : vector<27x64xbf16>, vector<64x16xbf16>, vector<27x16xf32> -> vector<27x16xf32>
      %244 = arith.addf %235, %243 : vector<27x16xf32>
      %c0_i32_188 = arith.constant 0 : i32
      %245 = arith.addi %234, %c0_i32_188 : i32
      %c0_189 = arith.constant 0 : index
      %246 = arith.index_cast %245 : i32 to index
      %c1_190 = arith.constant 1 : index
      %c0_191 = arith.constant 0 : index
      %247 = vector.load %arg1[%c0_189, %246, %c1_190, %c0_191] : memref<1x31x31x64xf32, #tpu.memory_space<vmem>>, vector<1x1x27x64xf32>
      %248 = vector.shape_cast %247 : vector<1x1x27x64xf32> to vector<27x64xf32>
      %249 = arith.truncf %248 : vector<27x64xf32> to vector<27x64xbf16>
      %c1_192 = arith.constant 1 : index
      %c0_193 = arith.constant 0 : index
      %c0_194 = arith.constant 0 : index
      %250 = vector.load %arg2[%c1_192, %c0_193, %c0_194] : memref<25x64x16xbf16, #tpu.memory_space<vmem>>, vector<1x64x16xbf16>
      %251 = vector.shape_cast %250 : vector<1x64x16xbf16> to vector<64x16xbf16>
      %cst_195 = arith.constant dense<0.000000e+00> : vector<27x16xf32>
      %252 = tpu.matmul %249, %251, %cst_195 {dimension_numbers = #tpu.dot_dimension_numbers<[1], [0], [0], [1], [0, 0, 1, 1], [], []>} : vector<27x64xbf16>, vector<64x16xbf16>, vector<27x16xf32> -> vector<27x16xf32>
      %253 = arith.addf %244, %252 : vector<27x16xf32>
      %c0_i32_196 = arith.constant 0 : i32
      %254 = arith.addi %234, %c0_i32_196 : i32
      %c0_197 = arith.constant 0 : index
      %255 = arith.index_cast %254 : i32 to index
      %c2_198 = arith.constant 2 : index
      %c0_199 = arith.constant 0 : index
      %256 = vector.load %arg1[%c0_197, %255, %c2_198, %c0_199] : memref<1x31x31x64xf32, #tpu.memory_space<vmem>>, vector<1x1x27x64xf32>
      %257 = vector.shape_cast %256 : vector<1x1x27x64xf32> to vector<27x64xf32>
      %258 = arith.truncf %257 : vector<27x64xf32> to vector<27x64xbf16>
      %c2_200 = arith.constant 2 : index
      %c0_201 = arith.constant 0 : index
      %c0_202 = arith.constant 0 : index
      %259 = vector.load %arg2[%c2_200, %c0_201, %c0_202] : memref<25x64x16xbf16, #tpu.memory_space<vmem>>, vector<1x64x16xbf16>
      %260 = vector.shape_cast %259 : vector<1x64x16xbf16> to vector<64x16xbf16>
      %cst_203 = arith.constant dense<0.000000e+00> : vector<27x16xf32>
      %261 = tpu.matmul %258, %260, %cst_203 {dimension_numbers = #tpu.dot_dimension_numbers<[1], [0], [0], [1], [0, 0, 1, 1], [], []>} : vector<27x64xbf16>, vector<64x16xbf16>, vector<27x16xf32> -> vector<27x16xf32>
      %262 = arith.addf %253, %261 : vector<27x16xf32>
      %c0_i32_204 = arith.constant 0 : i32
      %263 = arith.addi %234, %c0_i32_204 : i32
      %c0_205 = arith.constant 0 : index
      %264 = arith.index_cast %263 : i32 to index
      %c3_206 = arith.constant 3 : index
      %c0_207 = arith.constant 0 : index
      %265 = vector.load %arg1[%c0_205, %264, %c3_206, %c0_207] : memref<1x31x31x64xf32, #tpu.memory_space<vmem>>, vector<1x1x27x64xf32>
      %266 = vector.shape_cast %265 : vector<1x1x27x64xf32> to vector<27x64xf32>
      %267 = arith.truncf %266 : vector<27x64xf32> to vector<27x64xbf16>
      %c3_208 = arith.constant 3 : index
      %c0_209 = arith.constant 0 : index
      %c0_210 = arith.constant 0 : index
      %268 = vector.load %arg2[%c3_208, %c0_209, %c0_210] : memref<25x64x16xbf16, #tpu.memory_space<vmem>>, vector<1x64x16xbf16>
      %269 = vector.shape_cast %268 : vector<1x64x16xbf16> to vector<64x16xbf16>
      %cst_211 = arith.constant dense<0.000000e+00> : vector<27x16xf32>
      %270 = tpu.matmul %267, %269, %cst_211 {dimension_numbers = #tpu.dot_dimension_numbers<[1], [0], [0], [1], [0, 0, 1, 1], [], []>} : vector<27x64xbf16>, vector<64x16xbf16>, vector<27x16xf32> -> vector<27x16xf32>
      %271 = arith.addf %262, %270 : vector<27x16xf32>
      %c0_i32_212 = arith.constant 0 : i32
      %272 = arith.addi %234, %c0_i32_212 : i32
      %c0_213 = arith.constant 0 : index
      %273 = arith.index_cast %272 : i32 to index
      %c4_214 = arith.constant 4 : index
      %c0_215 = arith.constant 0 : index
      %274 = vector.load %arg1[%c0_213, %273, %c4_214, %c0_215] : memref<1x31x31x64xf32, #tpu.memory_space<vmem>>, vector<1x1x27x64xf32>
      %275 = vector.shape_cast %274 : vector<1x1x27x64xf32> to vector<27x64xf32>
      %276 = arith.truncf %275 : vector<27x64xf32> to vector<27x64xbf16>
      %c4_216 = arith.constant 4 : index
      %c0_217 = arith.constant 0 : index
      %c0_218 = arith.constant 0 : index
      %277 = vector.load %arg2[%c4_216, %c0_217, %c0_218] : memref<25x64x16xbf16, #tpu.memory_space<vmem>>, vector<1x64x16xbf16>
      %278 = vector.shape_cast %277 : vector<1x64x16xbf16> to vector<64x16xbf16>
      %cst_219 = arith.constant dense<0.000000e+00> : vector<27x16xf32>
      %279 = tpu.matmul %276, %278, %cst_219 {dimension_numbers = #tpu.dot_dimension_numbers<[1], [0], [0], [1], [0, 0, 1, 1], [], []>} : vector<27x64xbf16>, vector<64x16xbf16>, vector<27x16xf32> -> vector<27x16xf32>
      %280 = arith.addf %271, %279 : vector<27x16xf32>
      %c1_i32_220 = arith.constant 1 : i32
      %281 = arith.addi %234, %c1_i32_220 : i32
      %c0_221 = arith.constant 0 : index
      %282 = arith.index_cast %281 : i32 to index
      %c0_222 = arith.constant 0 : index
      %c0_223 = arith.constant 0 : index
      %283 = vector.load %arg1[%c0_221, %282, %c0_222, %c0_223] : memref<1x31x31x64xf32, #tpu.memory_space<vmem>>, vector<1x1x27x64xf32>
      %284 = vector.shape_cast %283 : vector<1x1x27x64xf32> to vector<27x64xf32>
      %285 = arith.truncf %284 : vector<27x64xf32> to vector<27x64xbf16>
      %c5_224 = arith.constant 5 : index
      %c0_225 = arith.constant 0 : index
      %c0_226 = arith.constant 0 : index
      %286 = vector.load %arg2[%c5_224, %c0_225, %c0_226] : memref<25x64x16xbf16, #tpu.memory_space<vmem>>, vector<1x64x16xbf16>
      %287 = vector.shape_cast %286 : vector<1x64x16xbf16> to vector<64x16xbf16>
      %cst_227 = arith.constant dense<0.000000e+00> : vector<27x16xf32>
      %288 = tpu.matmul %285, %287, %cst_227 {dimension_numbers = #tpu.dot_dimension_numbers<[1], [0], [0], [1], [0, 0, 1, 1], [], []>} : vector<27x64xbf16>, vector<64x16xbf16>, vector<27x16xf32> -> vector<27x16xf32>
      %289 = arith.addf %280, %288 : vector<27x16xf32>
      %c1_i32_228 = arith.constant 1 : i32
      %290 = arith.addi %234, %c1_i32_228 : i32
      %c0_229 = arith.constant 0 : index
      %291 = arith.index_cast %290 : i32 to index
      %c1_230 = arith.constant 1 : index
      %c0_231 = arith.constant 0 : index
      %292 = vector.load %arg1[%c0_229, %291, %c1_230, %c0_231] : memref<1x31x31x64xf32, #tpu.memory_space<vmem>>, vector<1x1x27x64xf32>
      %293 = vector.shape_cast %292 : vector<1x1x27x64xf32> to vector<27x64xf32>
      %294 = arith.truncf %293 : vector<27x64xf32> to vector<27x64xbf16>
      %c6_232 = arith.constant 6 : index
      %c0_233 = arith.constant 0 : index
      %c0_234 = arith.constant 0 : index
      %295 = vector.load %arg2[%c6_232, %c0_233, %c0_234] : memref<25x64x16xbf16, #tpu.memory_space<vmem>>, vector<1x64x16xbf16>
      %296 = vector.shape_cast %295 : vector<1x64x16xbf16> to vector<64x16xbf16>
      %cst_235 = arith.constant dense<0.000000e+00> : vector<27x16xf32>
      %297 = tpu.matmul %294, %296, %cst_235 {dimension_numbers = #tpu.dot_dimension_numbers<[1], [0], [0], [1], [0, 0, 1, 1], [], []>} : vector<27x64xbf16>, vector<64x16xbf16>, vector<27x16xf32> -> vector<27x16xf32>
      %298 = arith.addf %289, %297 : vector<27x16xf32>
      %c1_i32_236 = arith.constant 1 : i32
      %299 = arith.addi %234, %c1_i32_236 : i32
      %c0_237 = arith.constant 0 : index
      %300 = arith.index_cast %299 : i32 to index
      %c2_238 = arith.constant 2 : index
      %c0_239 = arith.constant 0 : index
      %301 = vector.load %arg1[%c0_237, %300, %c2_238, %c0_239] : memref<1x31x31x64xf32, #tpu.memory_space<vmem>>, vector<1x1x27x64xf32>
      %302 = vector.shape_cast %301 : vector<1x1x27x64xf32> to vector<27x64xf32>
      %303 = arith.truncf %302 : vector<27x64xf32> to vector<27x64xbf16>
      %c7_240 = arith.constant 7 : index
      %c0_241 = arith.constant 0 : index
      %c0_242 = arith.constant 0 : index
      %304 = vector.load %arg2[%c7_240, %c0_241, %c0_242] : memref<25x64x16xbf16, #tpu.memory_space<vmem>>, vector<1x64x16xbf16>
      %305 = vector.shape_cast %304 : vector<1x64x16xbf16> to vector<64x16xbf16>
      %cst_243 = arith.constant dense<0.000000e+00> : vector<27x16xf32>
      %306 = tpu.matmul %303, %305, %cst_243 {dimension_numbers = #tpu.dot_dimension_numbers<[1], [0], [0], [1], [0, 0, 1, 1], [], []>} : vector<27x64xbf16>, vector<64x16xbf16>, vector<27x16xf32> -> vector<27x16xf32>
      %307 = arith.addf %298, %306 : vector<27x16xf32>
      %c1_i32_244 = arith.constant 1 : i32
      %308 = arith.addi %234, %c1_i32_244 : i32
      %c0_245 = arith.constant 0 : index
      %309 = arith.index_cast %308 : i32 to index
      %c3_246 = arith.constant 3 : index
      %c0_247 = arith.constant 0 : index
      %310 = vector.load %arg1[%c0_245, %309, %c3_246, %c0_247] : memref<1x31x31x64xf32, #tpu.memory_space<vmem>>, vector<1x1x27x64xf32>
      %311 = vector.shape_cast %310 : vector<1x1x27x64xf32> to vector<27x64xf32>
      %312 = arith.truncf %311 : vector<27x64xf32> to vector<27x64xbf16>
      %c8_248 = arith.constant 8 : index
      %c0_249 = arith.constant 0 : index
      %c0_250 = arith.constant 0 : index
      %313 = vector.load %arg2[%c8_248, %c0_249, %c0_250] : memref<25x64x16xbf16, #tpu.memory_space<vmem>>, vector<1x64x16xbf16>
      %314 = vector.shape_cast %313 : vector<1x64x16xbf16> to vector<64x16xbf16>
      %cst_251 = arith.constant dense<0.000000e+00> : vector<27x16xf32>
      %315 = tpu.matmul %312, %314, %cst_251 {dimension_numbers = #tpu.dot_dimension_numbers<[1], [0], [0], [1], [0, 0, 1, 1], [], []>} : vector<27x64xbf16>, vector<64x16xbf16>, vector<27x16xf32> -> vector<27x16xf32>
      %316 = arith.addf %307, %315 : vector<27x16xf32>
      %c1_i32_252 = arith.constant 1 : i32
      %317 = arith.addi %234, %c1_i32_252 : i32
      %c0_253 = arith.constant 0 : index
      %318 = arith.index_cast %317 : i32 to index
      %c4_254 = arith.constant 4 : index
      %c0_255 = arith.constant 0 : index
      %319 = vector.load %arg1[%c0_253, %318, %c4_254, %c0_255] : memref<1x31x31x64xf32, #tpu.memory_space<vmem>>, vector<1x1x27x64xf32>
      %320 = vector.shape_cast %319 : vector<1x1x27x64xf32> to vector<27x64xf32>
      %321 = arith.truncf %320 : vector<27x64xf32> to vector<27x64xbf16>
      %c9_256 = arith.constant 9 : index
      %c0_257 = arith.constant 0 : index
      %c0_258 = arith.constant 0 : index
      %322 = vector.load %arg2[%c9_256, %c0_257, %c0_258] : memref<25x64x16xbf16, #tpu.memory_space<vmem>>, vector<1x64x16xbf16>
      %323 = vector.shape_cast %322 : vector<1x64x16xbf16> to vector<64x16xbf16>
      %cst_259 = arith.constant dense<0.000000e+00> : vector<27x16xf32>
      %324 = tpu.matmul %321, %323, %cst_259 {dimension_numbers = #tpu.dot_dimension_numbers<[1], [0], [0], [1], [0, 0, 1, 1], [], []>} : vector<27x64xbf16>, vector<64x16xbf16>, vector<27x16xf32> -> vector<27x16xf32>
      %325 = arith.addf %316, %324 : vector<27x16xf32>
      %c2_i32_260 = arith.constant 2 : i32
      %326 = arith.addi %234, %c2_i32_260 : i32
      %c0_261 = arith.constant 0 : index
      %327 = arith.index_cast %326 : i32 to index
      %c0_262 = arith.constant 0 : index
      %c0_263 = arith.constant 0 : index
      %328 = vector.load %arg1[%c0_261, %327, %c0_262, %c0_263] : memref<1x31x31x64xf32, #tpu.memory_space<vmem>>, vector<1x1x27x64xf32>
      %329 = vector.shape_cast %328 : vector<1x1x27x64xf32> to vector<27x64xf32>
      %330 = arith.truncf %329 : vector<27x64xf32> to vector<27x64xbf16>
      %c10_264 = arith.constant 10 : index
      %c0_265 = arith.constant 0 : index
      %c0_266 = arith.constant 0 : index
      %331 = vector.load %arg2[%c10_264, %c0_265, %c0_266] : memref<25x64x16xbf16, #tpu.memory_space<vmem>>, vector<1x64x16xbf16>
      %332 = vector.shape_cast %331 : vector<1x64x16xbf16> to vector<64x16xbf16>
      %cst_267 = arith.constant dense<0.000000e+00> : vector<27x16xf32>
      %333 = tpu.matmul %330, %332, %cst_267 {dimension_numbers = #tpu.dot_dimension_numbers<[1], [0], [0], [1], [0, 0, 1, 1], [], []>} : vector<27x64xbf16>, vector<64x16xbf16>, vector<27x16xf32> -> vector<27x16xf32>
      %334 = arith.addf %325, %333 : vector<27x16xf32>
      %c2_i32_268 = arith.constant 2 : i32
      %335 = arith.addi %234, %c2_i32_268 : i32
      %c0_269 = arith.constant 0 : index
      %336 = arith.index_cast %335 : i32 to index
      %c1_270 = arith.constant 1 : index
      %c0_271 = arith.constant 0 : index
      %337 = vector.load %arg1[%c0_269, %336, %c1_270, %c0_271] : memref<1x31x31x64xf32, #tpu.memory_space<vmem>>, vector<1x1x27x64xf32>
      %338 = vector.shape_cast %337 : vector<1x1x27x64xf32> to vector<27x64xf32>
      %339 = arith.truncf %338 : vector<27x64xf32> to vector<27x64xbf16>
      %c11_272 = arith.constant 11 : index
      %c0_273 = arith.constant 0 : index
      %c0_274 = arith.constant 0 : index
      %340 = vector.load %arg2[%c11_272, %c0_273, %c0_274] : memref<25x64x16xbf16, #tpu.memory_space<vmem>>, vector<1x64x16xbf16>
      %341 = vector.shape_cast %340 : vector<1x64x16xbf16> to vector<64x16xbf16>
      %cst_275 = arith.constant dense<0.000000e+00> : vector<27x16xf32>
      %342 = tpu.matmul %339, %341, %cst_275 {dimension_numbers = #tpu.dot_dimension_numbers<[1], [0], [0], [1], [0, 0, 1, 1], [], []>} : vector<27x64xbf16>, vector<64x16xbf16>, vector<27x16xf32> -> vector<27x16xf32>
      %343 = arith.addf %334, %342 : vector<27x16xf32>
      %c2_i32_276 = arith.constant 2 : i32
      %344 = arith.addi %234, %c2_i32_276 : i32
      %c0_277 = arith.constant 0 : index
      %345 = arith.index_cast %344 : i32 to index
      %c2_278 = arith.constant 2 : index
      %c0_279 = arith.constant 0 : index
      %346 = vector.load %arg1[%c0_277, %345, %c2_278, %c0_279] : memref<1x31x31x64xf32, #tpu.memory_space<vmem>>, vector<1x1x27x64xf32>
      %347 = vector.shape_cast %346 : vector<1x1x27x64xf32> to vector<27x64xf32>
      %348 = arith.truncf %347 : vector<27x64xf32> to vector<27x64xbf16>
      %c12_280 = arith.constant 12 : index
      %c0_281 = arith.constant 0 : index
      %c0_282 = arith.constant 0 : index
      %349 = vector.load %arg2[%c12_280, %c0_281, %c0_282] : memref<25x64x16xbf16, #tpu.memory_space<vmem>>, vector<1x64x16xbf16>
      %350 = vector.shape_cast %349 : vector<1x64x16xbf16> to vector<64x16xbf16>
      %cst_283 = arith.constant dense<0.000000e+00> : vector<27x16xf32>
      %351 = tpu.matmul %348, %350, %cst_283 {dimension_numbers = #tpu.dot_dimension_numbers<[1], [0], [0], [1], [0, 0, 1, 1], [], []>} : vector<27x64xbf16>, vector<64x16xbf16>, vector<27x16xf32> -> vector<27x16xf32>
      %352 = arith.addf %343, %351 : vector<27x16xf32>
      %c2_i32_284 = arith.constant 2 : i32
      %353 = arith.addi %234, %c2_i32_284 : i32
      %c0_285 = arith.constant 0 : index
      %354 = arith.index_cast %353 : i32 to index
      %c3_286 = arith.constant 3 : index
      %c0_287 = arith.constant 0 : index
      %355 = vector.load %arg1[%c0_285, %354, %c3_286, %c0_287] : memref<1x31x31x64xf32, #tpu.memory_space<vmem>>, vector<1x1x27x64xf32>
      %356 = vector.shape_cast %355 : vector<1x1x27x64xf32> to vector<27x64xf32>
      %357 = arith.truncf %356 : vector<27x64xf32> to vector<27x64xbf16>
      %c13_288 = arith.constant 13 : index
      %c0_289 = arith.constant 0 : index
      %c0_290 = arith.constant 0 : index
      %358 = vector.load %arg2[%c13_288, %c0_289, %c0_290] : memref<25x64x16xbf16, #tpu.memory_space<vmem>>, vector<1x64x16xbf16>
      %359 = vector.shape_cast %358 : vector<1x64x16xbf16> to vector<64x16xbf16>
      %cst_291 = arith.constant dense<0.000000e+00> : vector<27x16xf32>
      %360 = tpu.matmul %357, %359, %cst_291 {dimension_numbers = #tpu.dot_dimension_numbers<[1], [0], [0], [1], [0, 0, 1, 1], [], []>} : vector<27x64xbf16>, vector<64x16xbf16>, vector<27x16xf32> -> vector<27x16xf32>
      %361 = arith.addf %352, %360 : vector<27x16xf32>
      %c2_i32_292 = arith.constant 2 : i32
      %362 = arith.addi %234, %c2_i32_292 : i32
      %c0_293 = arith.constant 0 : index
      %363 = arith.index_cast %362 : i32 to index
      %c4_294 = arith.constant 4 : index
      %c0_295 = arith.constant 0 : index
      %364 = vector.load %arg1[%c0_293, %363, %c4_294, %c0_295] : memref<1x31x31x64xf32, #tpu.memory_space<vmem>>, vector<1x1x27x64xf32>
      %365 = vector.shape_cast %364 : vector<1x1x27x64xf32> to vector<27x64xf32>
      %366 = arith.truncf %365 : vector<27x64xf32> to vector<27x64xbf16>
      %c14_296 = arith.constant 14 : index
      %c0_297 = arith.constant 0 : index
      %c0_298 = arith.constant 0 : index
      %367 = vector.load %arg2[%c14_296, %c0_297, %c0_298] : memref<25x64x16xbf16, #tpu.memory_space<vmem>>, vector<1x64x16xbf16>
      %368 = vector.shape_cast %367 : vector<1x64x16xbf16> to vector<64x16xbf16>
      %cst_299 = arith.constant dense<0.000000e+00> : vector<27x16xf32>
      %369 = tpu.matmul %366, %368, %cst_299 {dimension_numbers = #tpu.dot_dimension_numbers<[1], [0], [0], [1], [0, 0, 1, 1], [], []>} : vector<27x64xbf16>, vector<64x16xbf16>, vector<27x16xf32> -> vector<27x16xf32>
      %370 = arith.addf %361, %369 : vector<27x16xf32>
      %c3_i32_300 = arith.constant 3 : i32
      %371 = arith.addi %234, %c3_i32_300 : i32
      %c0_301 = arith.constant 0 : index
      %372 = arith.index_cast %371 : i32 to index
      %c0_302 = arith.constant 0 : index
      %c0_303 = arith.constant 0 : index
      %373 = vector.load %arg1[%c0_301, %372, %c0_302, %c0_303] : memref<1x31x31x64xf32, #tpu.memory_space<vmem>>, vector<1x1x27x64xf32>
      %374 = vector.shape_cast %373 : vector<1x1x27x64xf32> to vector<27x64xf32>
      %375 = arith.truncf %374 : vector<27x64xf32> to vector<27x64xbf16>
      %c15_304 = arith.constant 15 : index
      %c0_305 = arith.constant 0 : index
      %c0_306 = arith.constant 0 : index
      %376 = vector.load %arg2[%c15_304, %c0_305, %c0_306] : memref<25x64x16xbf16, #tpu.memory_space<vmem>>, vector<1x64x16xbf16>
      %377 = vector.shape_cast %376 : vector<1x64x16xbf16> to vector<64x16xbf16>
      %cst_307 = arith.constant dense<0.000000e+00> : vector<27x16xf32>
      %378 = tpu.matmul %375, %377, %cst_307 {dimension_numbers = #tpu.dot_dimension_numbers<[1], [0], [0], [1], [0, 0, 1, 1], [], []>} : vector<27x64xbf16>, vector<64x16xbf16>, vector<27x16xf32> -> vector<27x16xf32>
      %379 = arith.addf %370, %378 : vector<27x16xf32>
      %c3_i32_308 = arith.constant 3 : i32
      %380 = arith.addi %234, %c3_i32_308 : i32
      %c0_309 = arith.constant 0 : index
      %381 = arith.index_cast %380 : i32 to index
      %c1_310 = arith.constant 1 : index
      %c0_311 = arith.constant 0 : index
      %382 = vector.load %arg1[%c0_309, %381, %c1_310, %c0_311] : memref<1x31x31x64xf32, #tpu.memory_space<vmem>>, vector<1x1x27x64xf32>
      %383 = vector.shape_cast %382 : vector<1x1x27x64xf32> to vector<27x64xf32>
      %384 = arith.truncf %383 : vector<27x64xf32> to vector<27x64xbf16>
      %c16_312 = arith.constant 16 : index
      %c0_313 = arith.constant 0 : index
      %c0_314 = arith.constant 0 : index
      %385 = vector.load %arg2[%c16_312, %c0_313, %c0_314] : memref<25x64x16xbf16, #tpu.memory_space<vmem>>, vector<1x64x16xbf16>
      %386 = vector.shape_cast %385 : vector<1x64x16xbf16> to vector<64x16xbf16>
      %cst_315 = arith.constant dense<0.000000e+00> : vector<27x16xf32>
      %387 = tpu.matmul %384, %386, %cst_315 {dimension_numbers = #tpu.dot_dimension_numbers<[1], [0], [0], [1], [0, 0, 1, 1], [], []>} : vector<27x64xbf16>, vector<64x16xbf16>, vector<27x16xf32> -> vector<27x16xf32>
      %388 = arith.addf %379, %387 : vector<27x16xf32>
      %c3_i32_316 = arith.constant 3 : i32
      %389 = arith.addi %234, %c3_i32_316 : i32
      %c0_317 = arith.constant 0 : index
      %390 = arith.index_cast %389 : i32 to index
      %c2_318 = arith.constant 2 : index
      %c0_319 = arith.constant 0 : index
      %391 = vector.load %arg1[%c0_317, %390, %c2_318, %c0_319] : memref<1x31x31x64xf32, #tpu.memory_space<vmem>>, vector<1x1x27x64xf32>
      %392 = vector.shape_cast %391 : vector<1x1x27x64xf32> to vector<27x64xf32>
      %393 = arith.truncf %392 : vector<27x64xf32> to vector<27x64xbf16>
      %c17_320 = arith.constant 17 : index
      %c0_321 = arith.constant 0 : index
      %c0_322 = arith.constant 0 : index
      %394 = vector.load %arg2[%c17_320, %c0_321, %c0_322] : memref<25x64x16xbf16, #tpu.memory_space<vmem>>, vector<1x64x16xbf16>
      %395 = vector.shape_cast %394 : vector<1x64x16xbf16> to vector<64x16xbf16>
      %cst_323 = arith.constant dense<0.000000e+00> : vector<27x16xf32>
      %396 = tpu.matmul %393, %395, %cst_323 {dimension_numbers = #tpu.dot_dimension_numbers<[1], [0], [0], [1], [0, 0, 1, 1], [], []>} : vector<27x64xbf16>, vector<64x16xbf16>, vector<27x16xf32> -> vector<27x16xf32>
      %397 = arith.addf %388, %396 : vector<27x16xf32>
      %c3_i32_324 = arith.constant 3 : i32
      %398 = arith.addi %234, %c3_i32_324 : i32
      %c0_325 = arith.constant 0 : index
      %399 = arith.index_cast %398 : i32 to index
      %c3_326 = arith.constant 3 : index
      %c0_327 = arith.constant 0 : index
      %400 = vector.load %arg1[%c0_325, %399, %c3_326, %c0_327] : memref<1x31x31x64xf32, #tpu.memory_space<vmem>>, vector<1x1x27x64xf32>
      %401 = vector.shape_cast %400 : vector<1x1x27x64xf32> to vector<27x64xf32>
      %402 = arith.truncf %401 : vector<27x64xf32> to vector<27x64xbf16>
      %c18_328 = arith.constant 18 : index
      %c0_329 = arith.constant 0 : index
      %c0_330 = arith.constant 0 : index
      %403 = vector.load %arg2[%c18_328, %c0_329, %c0_330] : memref<25x64x16xbf16, #tpu.memory_space<vmem>>, vector<1x64x16xbf16>
      %404 = vector.shape_cast %403 : vector<1x64x16xbf16> to vector<64x16xbf16>
      %cst_331 = arith.constant dense<0.000000e+00> : vector<27x16xf32>
      %405 = tpu.matmul %402, %404, %cst_331 {dimension_numbers = #tpu.dot_dimension_numbers<[1], [0], [0], [1], [0, 0, 1, 1], [], []>} : vector<27x64xbf16>, vector<64x16xbf16>, vector<27x16xf32> -> vector<27x16xf32>
      %406 = arith.addf %397, %405 : vector<27x16xf32>
      %c3_i32_332 = arith.constant 3 : i32
      %407 = arith.addi %234, %c3_i32_332 : i32
      %c0_333 = arith.constant 0 : index
      %408 = arith.index_cast %407 : i32 to index
      %c4_334 = arith.constant 4 : index
      %c0_335 = arith.constant 0 : index
      %409 = vector.load %arg1[%c0_333, %408, %c4_334, %c0_335] : memref<1x31x31x64xf32, #tpu.memory_space<vmem>>, vector<1x1x27x64xf32>
      %410 = vector.shape_cast %409 : vector<1x1x27x64xf32> to vector<27x64xf32>
      %411 = arith.truncf %410 : vector<27x64xf32> to vector<27x64xbf16>
      %c19_336 = arith.constant 19 : index
      %c0_337 = arith.constant 0 : index
      %c0_338 = arith.constant 0 : index
      %412 = vector.load %arg2[%c19_336, %c0_337, %c0_338] : memref<25x64x16xbf16, #tpu.memory_space<vmem>>, vector<1x64x16xbf16>
      %413 = vector.shape_cast %412 : vector<1x64x16xbf16> to vector<64x16xbf16>
      %cst_339 = arith.constant dense<0.000000e+00> : vector<27x16xf32>
      %414 = tpu.matmul %411, %413, %cst_339 {dimension_numbers = #tpu.dot_dimension_numbers<[1], [0], [0], [1], [0, 0, 1, 1], [], []>} : vector<27x64xbf16>, vector<64x16xbf16>, vector<27x16xf32> -> vector<27x16xf32>
      %415 = arith.addf %406, %414 : vector<27x16xf32>
      %c4_i32_340 = arith.constant 4 : i32
      %416 = arith.addi %234, %c4_i32_340 : i32
      %c0_341 = arith.constant 0 : index
      %417 = arith.index_cast %416 : i32 to index
      %c0_342 = arith.constant 0 : index
      %c0_343 = arith.constant 0 : index
      %418 = vector.load %arg1[%c0_341, %417, %c0_342, %c0_343] : memref<1x31x31x64xf32, #tpu.memory_space<vmem>>, vector<1x1x27x64xf32>
      %419 = vector.shape_cast %418 : vector<1x1x27x64xf32> to vector<27x64xf32>
      %420 = arith.truncf %419 : vector<27x64xf32> to vector<27x64xbf16>
      %c20_344 = arith.constant 20 : index
      %c0_345 = arith.constant 0 : index
      %c0_346 = arith.constant 0 : index
      %421 = vector.load %arg2[%c20_344, %c0_345, %c0_346] : memref<25x64x16xbf16, #tpu.memory_space<vmem>>, vector<1x64x16xbf16>
      %422 = vector.shape_cast %421 : vector<1x64x16xbf16> to vector<64x16xbf16>
      %cst_347 = arith.constant dense<0.000000e+00> : vector<27x16xf32>
      %423 = tpu.matmul %420, %422, %cst_347 {dimension_numbers = #tpu.dot_dimension_numbers<[1], [0], [0], [1], [0, 0, 1, 1], [], []>} : vector<27x64xbf16>, vector<64x16xbf16>, vector<27x16xf32> -> vector<27x16xf32>
      %424 = arith.addf %415, %423 : vector<27x16xf32>
      %c4_i32_348 = arith.constant 4 : i32
      %425 = arith.addi %234, %c4_i32_348 : i32
      %c0_349 = arith.constant 0 : index
      %426 = arith.index_cast %425 : i32 to index
      %c1_350 = arith.constant 1 : index
      %c0_351 = arith.constant 0 : index
      %427 = vector.load %arg1[%c0_349, %426, %c1_350, %c0_351] : memref<1x31x31x64xf32, #tpu.memory_space<vmem>>, vector<1x1x27x64xf32>
      %428 = vector.shape_cast %427 : vector<1x1x27x64xf32> to vector<27x64xf32>
      %429 = arith.truncf %428 : vector<27x64xf32> to vector<27x64xbf16>
      %c21_352 = arith.constant 21 : index
      %c0_353 = arith.constant 0 : index
      %c0_354 = arith.constant 0 : index
      %430 = vector.load %arg2[%c21_352, %c0_353, %c0_354] : memref<25x64x16xbf16, #tpu.memory_space<vmem>>, vector<1x64x16xbf16>
      %431 = vector.shape_cast %430 : vector<1x64x16xbf16> to vector<64x16xbf16>
      %cst_355 = arith.constant dense<0.000000e+00> : vector<27x16xf32>
      %432 = tpu.matmul %429, %431, %cst_355 {dimension_numbers = #tpu.dot_dimension_numbers<[1], [0], [0], [1], [0, 0, 1, 1], [], []>} : vector<27x64xbf16>, vector<64x16xbf16>, vector<27x16xf32> -> vector<27x16xf32>
      %433 = arith.addf %424, %432 : vector<27x16xf32>
      %c4_i32_356 = arith.constant 4 : i32
      %434 = arith.addi %234, %c4_i32_356 : i32
      %c0_357 = arith.constant 0 : index
      %435 = arith.index_cast %434 : i32 to index
      %c2_358 = arith.constant 2 : index
      %c0_359 = arith.constant 0 : index
      %436 = vector.load %arg1[%c0_357, %435, %c2_358, %c0_359] : memref<1x31x31x64xf32, #tpu.memory_space<vmem>>, vector<1x1x27x64xf32>
      %437 = vector.shape_cast %436 : vector<1x1x27x64xf32> to vector<27x64xf32>
      %438 = arith.truncf %437 : vector<27x64xf32> to vector<27x64xbf16>
      %c22_360 = arith.constant 22 : index
      %c0_361 = arith.constant 0 : index
      %c0_362 = arith.constant 0 : index
      %439 = vector.load %arg2[%c22_360, %c0_361, %c0_362] : memref<25x64x16xbf16, #tpu.memory_space<vmem>>, vector<1x64x16xbf16>
      %440 = vector.shape_cast %439 : vector<1x64x16xbf16> to vector<64x16xbf16>
      %cst_363 = arith.constant dense<0.000000e+00> : vector<27x16xf32>
      %441 = tpu.matmul %438, %440, %cst_363 {dimension_numbers = #tpu.dot_dimension_numbers<[1], [0], [0], [1], [0, 0, 1, 1], [], []>} : vector<27x64xbf16>, vector<64x16xbf16>, vector<27x16xf32> -> vector<27x16xf32>
      %442 = arith.addf %433, %441 : vector<27x16xf32>
      %c4_i32_364 = arith.constant 4 : i32
      %443 = arith.addi %234, %c4_i32_364 : i32
      %c0_365 = arith.constant 0 : index
      %444 = arith.index_cast %443 : i32 to index
      %c3_366 = arith.constant 3 : index
      %c0_367 = arith.constant 0 : index
      %445 = vector.load %arg1[%c0_365, %444, %c3_366, %c0_367] : memref<1x31x31x64xf32, #tpu.memory_space<vmem>>, vector<1x1x27x64xf32>
      %446 = vector.shape_cast %445 : vector<1x1x27x64xf32> to vector<27x64xf32>
      %447 = arith.truncf %446 : vector<27x64xf32> to vector<27x64xbf16>
      %c23_368 = arith.constant 23 : index
      %c0_369 = arith.constant 0 : index
      %c0_370 = arith.constant 0 : index
      %448 = vector.load %arg2[%c23_368, %c0_369, %c0_370] : memref<25x64x16xbf16, #tpu.memory_space<vmem>>, vector<1x64x16xbf16>
      %449 = vector.shape_cast %448 : vector<1x64x16xbf16> to vector<64x16xbf16>
      %cst_371 = arith.constant dense<0.000000e+00> : vector<27x16xf32>
      %450 = tpu.matmul %447, %449, %cst_371 {dimension_numbers = #tpu.dot_dimension_numbers<[1], [0], [0], [1], [0, 0, 1, 1], [], []>} : vector<27x64xbf16>, vector<64x16xbf16>, vector<27x16xf32> -> vector<27x16xf32>
      %451 = arith.addf %442, %450 : vector<27x16xf32>
      %c4_i32_372 = arith.constant 4 : i32
      %452 = arith.addi %234, %c4_i32_372 : i32
      %c0_373 = arith.constant 0 : index
      %453 = arith.index_cast %452 : i32 to index
      %c4_374 = arith.constant 4 : index
      %c0_375 = arith.constant 0 : index
      %454 = vector.load %arg1[%c0_373, %453, %c4_374, %c0_375] : memref<1x31x31x64xf32, #tpu.memory_space<vmem>>, vector<1x1x27x64xf32>
      %455 = vector.shape_cast %454 : vector<1x1x27x64xf32> to vector<27x64xf32>
      %456 = arith.truncf %455 : vector<27x64xf32> to vector<27x64xbf16>
      %c24_376 = arith.constant 24 : index
      %c0_377 = arith.constant 0 : index
      %c0_378 = arith.constant 0 : index
      %457 = vector.load %arg2[%c24_376, %c0_377, %c0_378] : memref<25x64x16xbf16, #tpu.memory_space<vmem>>, vector<1x64x16xbf16>
      %458 = vector.shape_cast %457 : vector<1x64x16xbf16> to vector<64x16xbf16>
      %cst_379 = arith.constant dense<0.000000e+00> : vector<27x16xf32>
      %459 = tpu.matmul %456, %458, %cst_379 {dimension_numbers = #tpu.dot_dimension_numbers<[1], [0], [0], [1], [0, 0, 1, 1], [], []>} : vector<27x64xbf16>, vector<64x16xbf16>, vector<27x16xf32> -> vector<27x16xf32>
      %460 = arith.addf %451, %459 : vector<27x16xf32>
      %461 = vector.broadcast %0 : vector<1x16xf32> to vector<27x16xf32>
      %462 = arith.addf %460, %461 : vector<27x16xf32>
      %cst_380 = arith.constant 0.000000e+00 : f32
      %463 = vector.broadcast %cst_380 : f32 to vector<27x16xf32>
      %464 = arith.maximumf %462, %463 : vector<27x16xf32>
      %465 = arith.maximumf %232, %464 : vector<27x16xf32>
      %c0_381 = arith.constant 0 : index
      %c0_382 = arith.constant 0 : index
      %466 = vector.load %arg5[%c0_381, %c0_382] : memref<27x16xf32, #tpu.memory_space<vmem>>, vector<27x16xf32>
      tpu.vector_store %arg5[%c0_381, %c0_382], %465 {strides = array<i32>} : memref<27x16xf32, #tpu.memory_space<vmem>>, vector<27x16xf32>,
      %c0_383 = arith.constant 0 : index
      %c0_384 = arith.constant 0 : index
      %467 = tpu.strided_load %arg5[%c0_383, %c0_384] {strides = array<i32: 2, 1>} : memref<27x16xf32, #tpu.memory_space<vmem>>, vector<13x16xf32>
      %c1_385 = arith.constant 1 : index
      %c0_386 = arith.constant 0 : index
      %468 = tpu.strided_load %arg5[%c1_385, %c0_386] {strides = array<i32: 2, 1>} : memref<27x16xf32, #tpu.memory_space<vmem>>, vector<13x16xf32>
      %469 = arith.maximumf %467, %468 : vector<13x16xf32>
      %470 = vector.shape_cast %469 : vector<13x16xf32> to vector<1x13x16xf32>
      %c0_387 = arith.constant 0 : index
      %471 = arith.index_cast %arg6 : i32 to index
      %c0_388 = arith.constant 0 : index
      %c0_389 = arith.constant 0 : index
      %472 = vector.load %arg4[%c0_387, %471, %c0_388, %c0_389] : memref<1x13x13x16xf32, #tpu.memory_space<vmem>>, vector<1x1x13x16xf32>
      %473 = vector.shape_cast %472 : vector<1x1x13x16xf32> to vector<1x13x16xf32>
      %474 = vector.shape_cast %470 : vector<1x13x16xf32> to vector<1x1x13x16xf32>
      tpu.vector_store %arg4[%c0_387, %471, %c0_388, %c0_389], %474 {strides = array<i32>} : memref<1x13x13x16xf32, #tpu.memory_space<vmem>>, vector<1x1x13x16xf32>,
    }
    %c13_i32_1 = arith.constant 13 : i32
    return
  }
  func.func @transform_0(%arg0: i32) -> (i32, i32, i32, i32) {
    %c0_i32 = arith.constant 0 : i32
    %c0_i32_0 = arith.constant 0 : i32
    %c0_i32_1 = arith.constant 0 : i32
    %c0_i32_2 = arith.constant 0 : i32
    return %arg0, %c0_i32, %c0_i32_0, %c0_i32_1 : i32, i32, i32, i32
  }
  func.func @transform_1(%arg0: i32) -> (i32, i32, i32) {
    %c0_i32 = arith.constant 0 : i32
    %c0_i32_0 = arith.constant 0 : i32
    %c0_i32_1 = arith.constant 0 : i32
    %c0_i32_2 = arith.constant 0 : i32
    return %c0_i32, %c0_i32_0, %c0_i32_1 : i32, i32, i32
  }
  func.func @transform_2(%arg0: i32) -> (i32, i32) {
    %c0_i32 = arith.constant 0 : i32
    %c0_i32_0 = arith.constant 0 : i32
    %c0_i32_1 = arith.constant 0 : i32
    return %c0_i32, %c0_i32_0 : i32, i32
  }
  func.func @transform_3(%arg0: i32) -> (i32, i32, i32, i32) {
    %c0_i32 = arith.constant 0 : i32
    %c0_i32_0 = arith.constant 0 : i32
    %c0_i32_1 = arith.constant 0 : i32
    %c0_i32_2 = arith.constant 0 : i32
    return %arg0, %c0_i32, %c0_i32_0, %c0_i32_1 : i32, i32, i32, i32
  }
}

module attributes {stable_mosaic.version = 11 : i64} {
  func.func @_conv1_relu_pool_kernel(%arg0: i32, %arg1: memref<1x64x64x3xf32, #tpu.memory_space<vmem>>, %arg2: memref<9x3x64xf32, #tpu.memory_space<vmem>>, %arg3: memref<1x64xf32, #tpu.memory_space<vmem>>, %arg4: memref<1x31x31x64xf32, #tpu.memory_space<vmem>>, %arg5: memref<62x64xf32, #tpu.memory_space<vmem>>) attributes {dimension_semantics = [#tpu.dimension_semantics<parallel>], iteration_bounds = array<i64: 2>, scalar_prefetch = 0 : i64, scratch_operands = 1 : i64, tpu.core_type = #tpu.core_type<tc>, window_params = [{transform_indices = @transform_0, window_bounds = array<i64: 1, 64, 64, 3>}, {pipeline_mode = #tpu.pipeline_mode<synchronous>, transform_indices = @transform_1, window_bounds = array<i64: 9, 3, 64>}, {pipeline_mode = #tpu.pipeline_mode<synchronous>, transform_indices = @transform_2, window_bounds = array<i64: 1, 64>}, {transform_indices = @transform_3, window_bounds = array<i64: 1, 31, 31, 64>}]} {
    %c0 = arith.constant 0 : index
    %c0_0 = arith.constant 0 : index
    %0 = vector.load %arg3[%c0, %c0_0] : memref<1x64xf32, #tpu.memory_space<vmem>>, vector<1x64xf32>
    %c0_i32 = arith.constant 0 : i32
    %c31_i32 = arith.constant 31 : i32
    %1 = arith.addi %c0_i32, %c31_i32 : i32
    %c1_i32 = arith.constant 1 : i32
    scf.for %arg6 = %c0_i32 to %1 step %c1_i32  : i32 {
      %c2_i32 = arith.constant 2 : i32
      %2 = arith.muli %c2_i32, %arg6 : i32
      %cst = arith.constant 0.000000e+00 : f32
      %3 = vector.broadcast %cst : f32 to vector<62x64xf32>
      %c0_i32_2 = arith.constant 0 : i32
      %4 = arith.addi %2, %c0_i32_2 : i32
      %c0_3 = arith.constant 0 : index
      %5 = arith.index_cast %4 : i32 to index
      %c0_4 = arith.constant 0 : index
      %c0_5 = arith.constant 0 : index
      %6 = vector.load %arg1[%c0_3, %5, %c0_4, %c0_5] : memref<1x64x64x3xf32, #tpu.memory_space<vmem>>, vector<1x1x62x3xf32>
      %7 = vector.shape_cast %6 : vector<1x1x62x3xf32> to vector<62x3xf32>
      %c0_6 = arith.constant 0 : index
      %c0_7 = arith.constant 0 : index
      %c0_8 = arith.constant 0 : index
      %8 = vector.load %arg2[%c0_6, %c0_7, %c0_8] : memref<9x3x64xf32, #tpu.memory_space<vmem>>, vector<1x3x64xf32>
      %9 = vector.shape_cast %8 : vector<1x3x64xf32> to vector<3x64xf32>
      %cst_9 = arith.constant dense<0.000000e+00> : vector<62x64xf32>
      %10 = tpu.matmul %7, %9, %cst_9 {dimension_numbers = #tpu.dot_dimension_numbers<[1], [0], [0], [1], [0, 0, 1, 1], [], []>} : vector<62x3xf32>, vector<3x64xf32>, vector<62x64xf32> -> vector<62x64xf32>
      %11 = arith.addf %3, %10 : vector<62x64xf32>
      %c0_i32_10 = arith.constant 0 : i32
      %12 = arith.addi %2, %c0_i32_10 : i32
      %c0_11 = arith.constant 0 : index
      %13 = arith.index_cast %12 : i32 to index
      %c1 = arith.constant 1 : index
      %c0_12 = arith.constant 0 : index
      %14 = vector.load %arg1[%c0_11, %13, %c1, %c0_12] : memref<1x64x64x3xf32, #tpu.memory_space<vmem>>, vector<1x1x62x3xf32>
      %15 = vector.shape_cast %14 : vector<1x1x62x3xf32> to vector<62x3xf32>
      %c1_13 = arith.constant 1 : index
      %c0_14 = arith.constant 0 : index
      %c0_15 = arith.constant 0 : index
      %16 = vector.load %arg2[%c1_13, %c0_14, %c0_15] : memref<9x3x64xf32, #tpu.memory_space<vmem>>, vector<1x3x64xf32>
      %17 = vector.shape_cast %16 : vector<1x3x64xf32> to vector<3x64xf32>
      %cst_16 = arith.constant dense<0.000000e+00> : vector<62x64xf32>
      %18 = tpu.matmul %15, %17, %cst_16 {dimension_numbers = #tpu.dot_dimension_numbers<[1], [0], [0], [1], [0, 0, 1, 1], [], []>} : vector<62x3xf32>, vector<3x64xf32>, vector<62x64xf32> -> vector<62x64xf32>
      %19 = arith.addf %11, %18 : vector<62x64xf32>
      %c0_i32_17 = arith.constant 0 : i32
      %20 = arith.addi %2, %c0_i32_17 : i32
      %c0_18 = arith.constant 0 : index
      %21 = arith.index_cast %20 : i32 to index
      %c2 = arith.constant 2 : index
      %c0_19 = arith.constant 0 : index
      %22 = vector.load %arg1[%c0_18, %21, %c2, %c0_19] : memref<1x64x64x3xf32, #tpu.memory_space<vmem>>, vector<1x1x62x3xf32>
      %23 = vector.shape_cast %22 : vector<1x1x62x3xf32> to vector<62x3xf32>
      %c2_20 = arith.constant 2 : index
      %c0_21 = arith.constant 0 : index
      %c0_22 = arith.constant 0 : index
      %24 = vector.load %arg2[%c2_20, %c0_21, %c0_22] : memref<9x3x64xf32, #tpu.memory_space<vmem>>, vector<1x3x64xf32>
      %25 = vector.shape_cast %24 : vector<1x3x64xf32> to vector<3x64xf32>
      %cst_23 = arith.constant dense<0.000000e+00> : vector<62x64xf32>
      %26 = tpu.matmul %23, %25, %cst_23 {dimension_numbers = #tpu.dot_dimension_numbers<[1], [0], [0], [1], [0, 0, 1, 1], [], []>} : vector<62x3xf32>, vector<3x64xf32>, vector<62x64xf32> -> vector<62x64xf32>
      %27 = arith.addf %19, %26 : vector<62x64xf32>
      %c1_i32_24 = arith.constant 1 : i32
      %28 = arith.addi %2, %c1_i32_24 : i32
      %c0_25 = arith.constant 0 : index
      %29 = arith.index_cast %28 : i32 to index
      %c0_26 = arith.constant 0 : index
      %c0_27 = arith.constant 0 : index
      %30 = vector.load %arg1[%c0_25, %29, %c0_26, %c0_27] : memref<1x64x64x3xf32, #tpu.memory_space<vmem>>, vector<1x1x62x3xf32>
      %31 = vector.shape_cast %30 : vector<1x1x62x3xf32> to vector<62x3xf32>
      %c3 = arith.constant 3 : index
      %c0_28 = arith.constant 0 : index
      %c0_29 = arith.constant 0 : index
      %32 = vector.load %arg2[%c3, %c0_28, %c0_29] : memref<9x3x64xf32, #tpu.memory_space<vmem>>, vector<1x3x64xf32>
      %33 = vector.shape_cast %32 : vector<1x3x64xf32> to vector<3x64xf32>
      %cst_30 = arith.constant dense<0.000000e+00> : vector<62x64xf32>
      %34 = tpu.matmul %31, %33, %cst_30 {dimension_numbers = #tpu.dot_dimension_numbers<[1], [0], [0], [1], [0, 0, 1, 1], [], []>} : vector<62x3xf32>, vector<3x64xf32>, vector<62x64xf32> -> vector<62x64xf32>
      %35 = arith.addf %27, %34 : vector<62x64xf32>
      %c1_i32_31 = arith.constant 1 : i32
      %36 = arith.addi %2, %c1_i32_31 : i32
      %c0_32 = arith.constant 0 : index
      %37 = arith.index_cast %36 : i32 to index
      %c1_33 = arith.constant 1 : index
      %c0_34 = arith.constant 0 : index
      %38 = vector.load %arg1[%c0_32, %37, %c1_33, %c0_34] : memref<1x64x64x3xf32, #tpu.memory_space<vmem>>, vector<1x1x62x3xf32>
      %39 = vector.shape_cast %38 : vector<1x1x62x3xf32> to vector<62x3xf32>
      %c4 = arith.constant 4 : index
      %c0_35 = arith.constant 0 : index
      %c0_36 = arith.constant 0 : index
      %40 = vector.load %arg2[%c4, %c0_35, %c0_36] : memref<9x3x64xf32, #tpu.memory_space<vmem>>, vector<1x3x64xf32>
      %41 = vector.shape_cast %40 : vector<1x3x64xf32> to vector<3x64xf32>
      %cst_37 = arith.constant dense<0.000000e+00> : vector<62x64xf32>
      %42 = tpu.matmul %39, %41, %cst_37 {dimension_numbers = #tpu.dot_dimension_numbers<[1], [0], [0], [1], [0, 0, 1, 1], [], []>} : vector<62x3xf32>, vector<3x64xf32>, vector<62x64xf32> -> vector<62x64xf32>
      %43 = arith.addf %35, %42 : vector<62x64xf32>
      %c1_i32_38 = arith.constant 1 : i32
      %44 = arith.addi %2, %c1_i32_38 : i32
      %c0_39 = arith.constant 0 : index
      %45 = arith.index_cast %44 : i32 to index
      %c2_40 = arith.constant 2 : index
      %c0_41 = arith.constant 0 : index
      %46 = vector.load %arg1[%c0_39, %45, %c2_40, %c0_41] : memref<1x64x64x3xf32, #tpu.memory_space<vmem>>, vector<1x1x62x3xf32>
      %47 = vector.shape_cast %46 : vector<1x1x62x3xf32> to vector<62x3xf32>
      %c5 = arith.constant 5 : index
      %c0_42 = arith.constant 0 : index
      %c0_43 = arith.constant 0 : index
      %48 = vector.load %arg2[%c5, %c0_42, %c0_43] : memref<9x3x64xf32, #tpu.memory_space<vmem>>, vector<1x3x64xf32>
      %49 = vector.shape_cast %48 : vector<1x3x64xf32> to vector<3x64xf32>
      %cst_44 = arith.constant dense<0.000000e+00> : vector<62x64xf32>
      %50 = tpu.matmul %47, %49, %cst_44 {dimension_numbers = #tpu.dot_dimension_numbers<[1], [0], [0], [1], [0, 0, 1, 1], [], []>} : vector<62x3xf32>, vector<3x64xf32>, vector<62x64xf32> -> vector<62x64xf32>
      %51 = arith.addf %43, %50 : vector<62x64xf32>
      %c2_i32_45 = arith.constant 2 : i32
      %52 = arith.addi %2, %c2_i32_45 : i32
      %c0_46 = arith.constant 0 : index
      %53 = arith.index_cast %52 : i32 to index
      %c0_47 = arith.constant 0 : index
      %c0_48 = arith.constant 0 : index
      %54 = vector.load %arg1[%c0_46, %53, %c0_47, %c0_48] : memref<1x64x64x3xf32, #tpu.memory_space<vmem>>, vector<1x1x62x3xf32>
      %55 = vector.shape_cast %54 : vector<1x1x62x3xf32> to vector<62x3xf32>
      %c6 = arith.constant 6 : index
      %c0_49 = arith.constant 0 : index
      %c0_50 = arith.constant 0 : index
      %56 = vector.load %arg2[%c6, %c0_49, %c0_50] : memref<9x3x64xf32, #tpu.memory_space<vmem>>, vector<1x3x64xf32>
      %57 = vector.shape_cast %56 : vector<1x3x64xf32> to vector<3x64xf32>
      %cst_51 = arith.constant dense<0.000000e+00> : vector<62x64xf32>
      %58 = tpu.matmul %55, %57, %cst_51 {dimension_numbers = #tpu.dot_dimension_numbers<[1], [0], [0], [1], [0, 0, 1, 1], [], []>} : vector<62x3xf32>, vector<3x64xf32>, vector<62x64xf32> -> vector<62x64xf32>
      %59 = arith.addf %51, %58 : vector<62x64xf32>
      %c2_i32_52 = arith.constant 2 : i32
      %60 = arith.addi %2, %c2_i32_52 : i32
      %c0_53 = arith.constant 0 : index
      %61 = arith.index_cast %60 : i32 to index
      %c1_54 = arith.constant 1 : index
      %c0_55 = arith.constant 0 : index
      %62 = vector.load %arg1[%c0_53, %61, %c1_54, %c0_55] : memref<1x64x64x3xf32, #tpu.memory_space<vmem>>, vector<1x1x62x3xf32>
      %63 = vector.shape_cast %62 : vector<1x1x62x3xf32> to vector<62x3xf32>
      %c7 = arith.constant 7 : index
      %c0_56 = arith.constant 0 : index
      %c0_57 = arith.constant 0 : index
      %64 = vector.load %arg2[%c7, %c0_56, %c0_57] : memref<9x3x64xf32, #tpu.memory_space<vmem>>, vector<1x3x64xf32>
      %65 = vector.shape_cast %64 : vector<1x3x64xf32> to vector<3x64xf32>
      %cst_58 = arith.constant dense<0.000000e+00> : vector<62x64xf32>
      %66 = tpu.matmul %63, %65, %cst_58 {dimension_numbers = #tpu.dot_dimension_numbers<[1], [0], [0], [1], [0, 0, 1, 1], [], []>} : vector<62x3xf32>, vector<3x64xf32>, vector<62x64xf32> -> vector<62x64xf32>
      %67 = arith.addf %59, %66 : vector<62x64xf32>
      %c2_i32_59 = arith.constant 2 : i32
      %68 = arith.addi %2, %c2_i32_59 : i32
      %c0_60 = arith.constant 0 : index
      %69 = arith.index_cast %68 : i32 to index
      %c2_61 = arith.constant 2 : index
      %c0_62 = arith.constant 0 : index
      %70 = vector.load %arg1[%c0_60, %69, %c2_61, %c0_62] : memref<1x64x64x3xf32, #tpu.memory_space<vmem>>, vector<1x1x62x3xf32>
      %71 = vector.shape_cast %70 : vector<1x1x62x3xf32> to vector<62x3xf32>
      %c8 = arith.constant 8 : index
      %c0_63 = arith.constant 0 : index
      %c0_64 = arith.constant 0 : index
      %72 = vector.load %arg2[%c8, %c0_63, %c0_64] : memref<9x3x64xf32, #tpu.memory_space<vmem>>, vector<1x3x64xf32>
      %73 = vector.shape_cast %72 : vector<1x3x64xf32> to vector<3x64xf32>
      %cst_65 = arith.constant dense<0.000000e+00> : vector<62x64xf32>
      %74 = tpu.matmul %71, %73, %cst_65 {dimension_numbers = #tpu.dot_dimension_numbers<[1], [0], [0], [1], [0, 0, 1, 1], [], []>} : vector<62x3xf32>, vector<3x64xf32>, vector<62x64xf32> -> vector<62x64xf32>
      %75 = arith.addf %67, %74 : vector<62x64xf32>
      %76 = vector.broadcast %0 : vector<1x64xf32> to vector<62x64xf32>
      %77 = arith.addf %75, %76 : vector<62x64xf32>
      %cst_66 = arith.constant 0.000000e+00 : f32
      %78 = vector.broadcast %cst_66 : f32 to vector<62x64xf32>
      %79 = arith.maximumf %77, %78 : vector<62x64xf32>
      %c2_i32_67 = arith.constant 2 : i32
      %80 = arith.muli %c2_i32_67, %arg6 : i32
      %c1_i32_68 = arith.constant 1 : i32
      %81 = arith.addi %80, %c1_i32_68 : i32
      %cst_69 = arith.constant 0.000000e+00 : f32
      %82 = vector.broadcast %cst_69 : f32 to vector<62x64xf32>
      %c0_i32_70 = arith.constant 0 : i32
      %83 = arith.addi %81, %c0_i32_70 : i32
      %c0_71 = arith.constant 0 : index
      %84 = arith.index_cast %83 : i32 to index
      %c0_72 = arith.constant 0 : index
      %c0_73 = arith.constant 0 : index
      %85 = vector.load %arg1[%c0_71, %84, %c0_72, %c0_73] : memref<1x64x64x3xf32, #tpu.memory_space<vmem>>, vector<1x1x62x3xf32>
      %86 = vector.shape_cast %85 : vector<1x1x62x3xf32> to vector<62x3xf32>
      %c0_74 = arith.constant 0 : index
      %c0_75 = arith.constant 0 : index
      %c0_76 = arith.constant 0 : index
      %87 = vector.load %arg2[%c0_74, %c0_75, %c0_76] : memref<9x3x64xf32, #tpu.memory_space<vmem>>, vector<1x3x64xf32>
      %88 = vector.shape_cast %87 : vector<1x3x64xf32> to vector<3x64xf32>
      %cst_77 = arith.constant dense<0.000000e+00> : vector<62x64xf32>
      %89 = tpu.matmul %86, %88, %cst_77 {dimension_numbers = #tpu.dot_dimension_numbers<[1], [0], [0], [1], [0, 0, 1, 1], [], []>} : vector<62x3xf32>, vector<3x64xf32>, vector<62x64xf32> -> vector<62x64xf32>
      %90 = arith.addf %82, %89 : vector<62x64xf32>
      %c0_i32_78 = arith.constant 0 : i32
      %91 = arith.addi %81, %c0_i32_78 : i32
      %c0_79 = arith.constant 0 : index
      %92 = arith.index_cast %91 : i32 to index
      %c1_80 = arith.constant 1 : index
      %c0_81 = arith.constant 0 : index
      %93 = vector.load %arg1[%c0_79, %92, %c1_80, %c0_81] : memref<1x64x64x3xf32, #tpu.memory_space<vmem>>, vector<1x1x62x3xf32>
      %94 = vector.shape_cast %93 : vector<1x1x62x3xf32> to vector<62x3xf32>
      %c1_82 = arith.constant 1 : index
      %c0_83 = arith.constant 0 : index
      %c0_84 = arith.constant 0 : index
      %95 = vector.load %arg2[%c1_82, %c0_83, %c0_84] : memref<9x3x64xf32, #tpu.memory_space<vmem>>, vector<1x3x64xf32>
      %96 = vector.shape_cast %95 : vector<1x3x64xf32> to vector<3x64xf32>
      %cst_85 = arith.constant dense<0.000000e+00> : vector<62x64xf32>
      %97 = tpu.matmul %94, %96, %cst_85 {dimension_numbers = #tpu.dot_dimension_numbers<[1], [0], [0], [1], [0, 0, 1, 1], [], []>} : vector<62x3xf32>, vector<3x64xf32>, vector<62x64xf32> -> vector<62x64xf32>
      %98 = arith.addf %90, %97 : vector<62x64xf32>
      %c0_i32_86 = arith.constant 0 : i32
      %99 = arith.addi %81, %c0_i32_86 : i32
      %c0_87 = arith.constant 0 : index
      %100 = arith.index_cast %99 : i32 to index
      %c2_88 = arith.constant 2 : index
      %c0_89 = arith.constant 0 : index
      %101 = vector.load %arg1[%c0_87, %100, %c2_88, %c0_89] : memref<1x64x64x3xf32, #tpu.memory_space<vmem>>, vector<1x1x62x3xf32>
      %102 = vector.shape_cast %101 : vector<1x1x62x3xf32> to vector<62x3xf32>
      %c2_90 = arith.constant 2 : index
      %c0_91 = arith.constant 0 : index
      %c0_92 = arith.constant 0 : index
      %103 = vector.load %arg2[%c2_90, %c0_91, %c0_92] : memref<9x3x64xf32, #tpu.memory_space<vmem>>, vector<1x3x64xf32>
      %104 = vector.shape_cast %103 : vector<1x3x64xf32> to vector<3x64xf32>
      %cst_93 = arith.constant dense<0.000000e+00> : vector<62x64xf32>
      %105 = tpu.matmul %102, %104, %cst_93 {dimension_numbers = #tpu.dot_dimension_numbers<[1], [0], [0], [1], [0, 0, 1, 1], [], []>} : vector<62x3xf32>, vector<3x64xf32>, vector<62x64xf32> -> vector<62x64xf32>
      %106 = arith.addf %98, %105 : vector<62x64xf32>
      %c1_i32_94 = arith.constant 1 : i32
      %107 = arith.addi %81, %c1_i32_94 : i32
      %c0_95 = arith.constant 0 : index
      %108 = arith.index_cast %107 : i32 to index
      %c0_96 = arith.constant 0 : index
      %c0_97 = arith.constant 0 : index
      %109 = vector.load %arg1[%c0_95, %108, %c0_96, %c0_97] : memref<1x64x64x3xf32, #tpu.memory_space<vmem>>, vector<1x1x62x3xf32>
      %110 = vector.shape_cast %109 : vector<1x1x62x3xf32> to vector<62x3xf32>
      %c3_98 = arith.constant 3 : index
      %c0_99 = arith.constant 0 : index
      %c0_100 = arith.constant 0 : index
      %111 = vector.load %arg2[%c3_98, %c0_99, %c0_100] : memref<9x3x64xf32, #tpu.memory_space<vmem>>, vector<1x3x64xf32>
      %112 = vector.shape_cast %111 : vector<1x3x64xf32> to vector<3x64xf32>
      %cst_101 = arith.constant dense<0.000000e+00> : vector<62x64xf32>
      %113 = tpu.matmul %110, %112, %cst_101 {dimension_numbers = #tpu.dot_dimension_numbers<[1], [0], [0], [1], [0, 0, 1, 1], [], []>} : vector<62x3xf32>, vector<3x64xf32>, vector<62x64xf32> -> vector<62x64xf32>
      %114 = arith.addf %106, %113 : vector<62x64xf32>
      %c1_i32_102 = arith.constant 1 : i32
      %115 = arith.addi %81, %c1_i32_102 : i32
      %c0_103 = arith.constant 0 : index
      %116 = arith.index_cast %115 : i32 to index
      %c1_104 = arith.constant 1 : index
      %c0_105 = arith.constant 0 : index
      %117 = vector.load %arg1[%c0_103, %116, %c1_104, %c0_105] : memref<1x64x64x3xf32, #tpu.memory_space<vmem>>, vector<1x1x62x3xf32>
      %118 = vector.shape_cast %117 : vector<1x1x62x3xf32> to vector<62x3xf32>
      %c4_106 = arith.constant 4 : index
      %c0_107 = arith.constant 0 : index
      %c0_108 = arith.constant 0 : index
      %119 = vector.load %arg2[%c4_106, %c0_107, %c0_108] : memref<9x3x64xf32, #tpu.memory_space<vmem>>, vector<1x3x64xf32>
      %120 = vector.shape_cast %119 : vector<1x3x64xf32> to vector<3x64xf32>
      %cst_109 = arith.constant dense<0.000000e+00> : vector<62x64xf32>
      %121 = tpu.matmul %118, %120, %cst_109 {dimension_numbers = #tpu.dot_dimension_numbers<[1], [0], [0], [1], [0, 0, 1, 1], [], []>} : vector<62x3xf32>, vector<3x64xf32>, vector<62x64xf32> -> vector<62x64xf32>
      %122 = arith.addf %114, %121 : vector<62x64xf32>
      %c1_i32_110 = arith.constant 1 : i32
      %123 = arith.addi %81, %c1_i32_110 : i32
      %c0_111 = arith.constant 0 : index
      %124 = arith.index_cast %123 : i32 to index
      %c2_112 = arith.constant 2 : index
      %c0_113 = arith.constant 0 : index
      %125 = vector.load %arg1[%c0_111, %124, %c2_112, %c0_113] : memref<1x64x64x3xf32, #tpu.memory_space<vmem>>, vector<1x1x62x3xf32>
      %126 = vector.shape_cast %125 : vector<1x1x62x3xf32> to vector<62x3xf32>
      %c5_114 = arith.constant 5 : index
      %c0_115 = arith.constant 0 : index
      %c0_116 = arith.constant 0 : index
      %127 = vector.load %arg2[%c5_114, %c0_115, %c0_116] : memref<9x3x64xf32, #tpu.memory_space<vmem>>, vector<1x3x64xf32>
      %128 = vector.shape_cast %127 : vector<1x3x64xf32> to vector<3x64xf32>
      %cst_117 = arith.constant dense<0.000000e+00> : vector<62x64xf32>
      %129 = tpu.matmul %126, %128, %cst_117 {dimension_numbers = #tpu.dot_dimension_numbers<[1], [0], [0], [1], [0, 0, 1, 1], [], []>} : vector<62x3xf32>, vector<3x64xf32>, vector<62x64xf32> -> vector<62x64xf32>
      %130 = arith.addf %122, %129 : vector<62x64xf32>
      %c2_i32_118 = arith.constant 2 : i32
      %131 = arith.addi %81, %c2_i32_118 : i32
      %c0_119 = arith.constant 0 : index
      %132 = arith.index_cast %131 : i32 to index
      %c0_120 = arith.constant 0 : index
      %c0_121 = arith.constant 0 : index
      %133 = vector.load %arg1[%c0_119, %132, %c0_120, %c0_121] : memref<1x64x64x3xf32, #tpu.memory_space<vmem>>, vector<1x1x62x3xf32>
      %134 = vector.shape_cast %133 : vector<1x1x62x3xf32> to vector<62x3xf32>
      %c6_122 = arith.constant 6 : index
      %c0_123 = arith.constant 0 : index
      %c0_124 = arith.constant 0 : index
      %135 = vector.load %arg2[%c6_122, %c0_123, %c0_124] : memref<9x3x64xf32, #tpu.memory_space<vmem>>, vector<1x3x64xf32>
      %136 = vector.shape_cast %135 : vector<1x3x64xf32> to vector<3x64xf32>
      %cst_125 = arith.constant dense<0.000000e+00> : vector<62x64xf32>
      %137 = tpu.matmul %134, %136, %cst_125 {dimension_numbers = #tpu.dot_dimension_numbers<[1], [0], [0], [1], [0, 0, 1, 1], [], []>} : vector<62x3xf32>, vector<3x64xf32>, vector<62x64xf32> -> vector<62x64xf32>
      %138 = arith.addf %130, %137 : vector<62x64xf32>
      %c2_i32_126 = arith.constant 2 : i32
      %139 = arith.addi %81, %c2_i32_126 : i32
      %c0_127 = arith.constant 0 : index
      %140 = arith.index_cast %139 : i32 to index
      %c1_128 = arith.constant 1 : index
      %c0_129 = arith.constant 0 : index
      %141 = vector.load %arg1[%c0_127, %140, %c1_128, %c0_129] : memref<1x64x64x3xf32, #tpu.memory_space<vmem>>, vector<1x1x62x3xf32>
      %142 = vector.shape_cast %141 : vector<1x1x62x3xf32> to vector<62x3xf32>
      %c7_130 = arith.constant 7 : index
      %c0_131 = arith.constant 0 : index
      %c0_132 = arith.constant 0 : index
      %143 = vector.load %arg2[%c7_130, %c0_131, %c0_132] : memref<9x3x64xf32, #tpu.memory_space<vmem>>, vector<1x3x64xf32>
      %144 = vector.shape_cast %143 : vector<1x3x64xf32> to vector<3x64xf32>
      %cst_133 = arith.constant dense<0.000000e+00> : vector<62x64xf32>
      %145 = tpu.matmul %142, %144, %cst_133 {dimension_numbers = #tpu.dot_dimension_numbers<[1], [0], [0], [1], [0, 0, 1, 1], [], []>} : vector<62x3xf32>, vector<3x64xf32>, vector<62x64xf32> -> vector<62x64xf32>
      %146 = arith.addf %138, %145 : vector<62x64xf32>
      %c2_i32_134 = arith.constant 2 : i32
      %147 = arith.addi %81, %c2_i32_134 : i32
      %c0_135 = arith.constant 0 : index
      %148 = arith.index_cast %147 : i32 to index
      %c2_136 = arith.constant 2 : index
      %c0_137 = arith.constant 0 : index
      %149 = vector.load %arg1[%c0_135, %148, %c2_136, %c0_137] : memref<1x64x64x3xf32, #tpu.memory_space<vmem>>, vector<1x1x62x3xf32>
      %150 = vector.shape_cast %149 : vector<1x1x62x3xf32> to vector<62x3xf32>
      %c8_138 = arith.constant 8 : index
      %c0_139 = arith.constant 0 : index
      %c0_140 = arith.constant 0 : index
      %151 = vector.load %arg2[%c8_138, %c0_139, %c0_140] : memref<9x3x64xf32, #tpu.memory_space<vmem>>, vector<1x3x64xf32>
      %152 = vector.shape_cast %151 : vector<1x3x64xf32> to vector<3x64xf32>
      %cst_141 = arith.constant dense<0.000000e+00> : vector<62x64xf32>
      %153 = tpu.matmul %150, %152, %cst_141 {dimension_numbers = #tpu.dot_dimension_numbers<[1], [0], [0], [1], [0, 0, 1, 1], [], []>} : vector<62x3xf32>, vector<3x64xf32>, vector<62x64xf32> -> vector<62x64xf32>
      %154 = arith.addf %146, %153 : vector<62x64xf32>
      %155 = vector.broadcast %0 : vector<1x64xf32> to vector<62x64xf32>
      %156 = arith.addf %154, %155 : vector<62x64xf32>
      %cst_142 = arith.constant 0.000000e+00 : f32
      %157 = vector.broadcast %cst_142 : f32 to vector<62x64xf32>
      %158 = arith.maximumf %156, %157 : vector<62x64xf32>
      %159 = arith.maximumf %79, %158 : vector<62x64xf32>
      %c0_143 = arith.constant 0 : index
      %c0_144 = arith.constant 0 : index
      %160 = vector.load %arg5[%c0_143, %c0_144] : memref<62x64xf32, #tpu.memory_space<vmem>>, vector<62x64xf32>
      tpu.vector_store %arg5[%c0_143, %c0_144], %159 {strides = array<i32>} : memref<62x64xf32, #tpu.memory_space<vmem>>, vector<62x64xf32>,
      %c0_145 = arith.constant 0 : index
      %c0_146 = arith.constant 0 : index
      %161 = tpu.strided_load %arg5[%c0_145, %c0_146] {strides = array<i32: 2, 1>} : memref<62x64xf32, #tpu.memory_space<vmem>>, vector<31x64xf32>
      %c1_147 = arith.constant 1 : index
      %c0_148 = arith.constant 0 : index
      %162 = tpu.strided_load %arg5[%c1_147, %c0_148] {strides = array<i32: 2, 1>} : memref<62x64xf32, #tpu.memory_space<vmem>>, vector<31x64xf32>
      %163 = arith.maximumf %161, %162 : vector<31x64xf32>
      %164 = vector.shape_cast %163 : vector<31x64xf32> to vector<1x31x64xf32>
      %c0_149 = arith.constant 0 : index
      %165 = arith.index_cast %arg6 : i32 to index
      %c0_150 = arith.constant 0 : index
      %c0_151 = arith.constant 0 : index
      %166 = vector.load %arg4[%c0_149, %165, %c0_150, %c0_151] : memref<1x31x31x64xf32, #tpu.memory_space<vmem>>, vector<1x1x31x64xf32>
      %167 = vector.shape_cast %166 : vector<1x1x31x64xf32> to vector<1x31x64xf32>
      %168 = vector.shape_cast %164 : vector<1x31x64xf32> to vector<1x1x31x64xf32>
      tpu.vector_store %arg4[%c0_149, %165, %c0_150, %c0_151], %168 {strides = array<i32>} : memref<1x31x31x64xf32, #tpu.memory_space<vmem>>, vector<1x1x31x64xf32>,
    }
    %c31_i32_1 = arith.constant 31 : i32
    return
  }
  func.func @transform_0(%arg0: i32) -> (i32, i32, i32, i32) {
    %c0_i32 = arith.constant 0 : i32
    %c0_i32_0 = arith.constant 0 : i32
    %c0_i32_1 = arith.constant 0 : i32
    %c0_i32_2 = arith.constant 0 : i32
    return %arg0, %c0_i32, %c0_i32_0, %c0_i32_1 : i32, i32, i32, i32
  }
  func.func @transform_1(%arg0: i32) -> (i32, i32, i32) {
    %c0_i32 = arith.constant 0 : i32
    %c0_i32_0 = arith.constant 0 : i32
    %c0_i32_1 = arith.constant 0 : i32
    %c0_i32_2 = arith.constant 0 : i32
    return %c0_i32, %c0_i32_0, %c0_i32_1 : i32, i32, i32
  }
  func.func @transform_2(%arg0: i32) -> (i32, i32) {
    %c0_i32 = arith.constant 0 : i32
    %c0_i32_0 = arith.constant 0 : i32
    %c0_i32_1 = arith.constant 0 : i32
    return %c0_i32, %c0_i32_0 : i32, i32
  }
  func.func @transform_3(%arg0: i32) -> (i32, i32, i32, i32) {
    %c0_i32 = arith.constant 0 : i32
    %c0_i32_0 = arith.constant 0 : i32
    %c0_i32_1 = arith.constant 0 : i32
    %c0_i32_2 = arith.constant 0 : i32
    return %arg0, %c0_i32, %c0_i32_0, %c0_i32_1 : i32, i32, i32, i32
  }
}

module attributes {stable_mosaic.version = 11 : i64} {
  func.func @_mlp_kernel(%arg0: i32, %arg1: memref<2x2704xf32, #tpu.memory_space<vmem>>, %arg2: memref<2704x120xf32, #tpu.memory_space<vmem>>, %arg3: memref<1x120xf32, #tpu.memory_space<vmem>>, %arg4: memref<120x84xf32, #tpu.memory_space<vmem>>, %arg5: memref<1x84xf32, #tpu.memory_space<vmem>>, %arg6: memref<84x84xf32, #tpu.memory_space<vmem>>, %arg7: memref<1x84xf32, #tpu.memory_space<vmem>>, %arg8: memref<2x84xf32, #tpu.memory_space<vmem>>) attributes {dimension_semantics = [#tpu.dimension_semantics<parallel>], iteration_bounds = array<i64: 1>, scalar_prefetch = 0 : i64, scratch_operands = 0 : i64, tpu.core_type = #tpu.core_type<tc>, window_params = [{transform_indices = @transform_0, window_bounds = array<i64: 2, 2704>}, {pipeline_mode = #tpu.pipeline_mode<synchronous>, transform_indices = @transform_1, window_bounds = array<i64: 2704, 120>}, {pipeline_mode = #tpu.pipeline_mode<synchronous>, transform_indices = @transform_2, window_bounds = array<i64: 1, 120>}, {pipeline_mode = #tpu.pipeline_mode<synchronous>, transform_indices = @transform_3, window_bounds = array<i64: 120, 84>}, {pipeline_mode = #tpu.pipeline_mode<synchronous>, transform_indices = @transform_4, window_bounds = array<i64: 1, 84>}, {pipeline_mode = #tpu.pipeline_mode<synchronous>, transform_indices = @transform_5, window_bounds = array<i64: 84, 84>}, {pipeline_mode = #tpu.pipeline_mode<synchronous>, transform_indices = @transform_6, window_bounds = array<i64: 1, 84>}, {transform_indices = @transform_7, window_bounds = array<i64: 2, 84>}]} {
    %c0 = arith.constant 0 : index
    %c0_0 = arith.constant 0 : index
    %0 = vector.load %arg1[%c0, %c0_0] : memref<2x2704xf32, #tpu.memory_space<vmem>>, vector<2x2704xf32>
    %c0_1 = arith.constant 0 : index
    %c0_2 = arith.constant 0 : index
    %1 = vector.load %arg2[%c0_1, %c0_2] : memref<2704x120xf32, #tpu.memory_space<vmem>>, vector<2704x120xf32>
    %cst = arith.constant dense<0.000000e+00> : vector<2x120xf32>
    %2 = tpu.matmul %0, %1, %cst {dimension_numbers = #tpu.dot_dimension_numbers<[1], [0], [0], [1], [0, 0, 1, 1], [], []>} : vector<2x2704xf32>, vector<2704x120xf32>, vector<2x120xf32> -> vector<2x120xf32>
    %c0_3 = arith.constant 0 : index
    %c0_4 = arith.constant 0 : index
    %3 = vector.load %arg3[%c0_3, %c0_4] : memref<1x120xf32, #tpu.memory_space<vmem>>, vector<1x120xf32>
    %4 = vector.broadcast %3 : vector<1x120xf32> to vector<2x120xf32>
    %5 = arith.addf %2, %4 : vector<2x120xf32>
    %cst_5 = arith.constant 0.000000e+00 : f32
    %6 = vector.broadcast %cst_5 : f32 to vector<2x120xf32>
    %7 = arith.maximumf %5, %6 : vector<2x120xf32>
    %c0_6 = arith.constant 0 : index
    %c0_7 = arith.constant 0 : index
    %8 = vector.load %arg4[%c0_6, %c0_7] : memref<120x84xf32, #tpu.memory_space<vmem>>, vector<120x84xf32>
    %cst_8 = arith.constant dense<0.000000e+00> : vector<2x84xf32>
    %9 = tpu.matmul %7, %8, %cst_8 {dimension_numbers = #tpu.dot_dimension_numbers<[1], [0], [0], [1], [0, 0, 1, 1], [], []>} : vector<2x120xf32>, vector<120x84xf32>, vector<2x84xf32> -> vector<2x84xf32>
    %c0_9 = arith.constant 0 : index
    %c0_10 = arith.constant 0 : index
    %10 = vector.load %arg5[%c0_9, %c0_10] : memref<1x84xf32, #tpu.memory_space<vmem>>, vector<1x84xf32>
    %11 = vector.broadcast %10 : vector<1x84xf32> to vector<2x84xf32>
    %12 = arith.addf %9, %11 : vector<2x84xf32>
    %cst_11 = arith.constant 0.000000e+00 : f32
    %13 = vector.broadcast %cst_11 : f32 to vector<2x84xf32>
    %14 = arith.maximumf %12, %13 : vector<2x84xf32>
    %c0_12 = arith.constant 0 : index
    %c0_13 = arith.constant 0 : index
    %15 = vector.load %arg6[%c0_12, %c0_13] : memref<84x84xf32, #tpu.memory_space<vmem>>, vector<84x84xf32>
    %cst_14 = arith.constant dense<0.000000e+00> : vector<2x84xf32>
    %16 = tpu.matmul %14, %15, %cst_14 {dimension_numbers = #tpu.dot_dimension_numbers<[1], [0], [0], [1], [0, 0, 1, 1], [], []>} : vector<2x84xf32>, vector<84x84xf32>, vector<2x84xf32> -> vector<2x84xf32>
    %c0_15 = arith.constant 0 : index
    %c0_16 = arith.constant 0 : index
    %17 = vector.load %arg7[%c0_15, %c0_16] : memref<1x84xf32, #tpu.memory_space<vmem>>, vector<1x84xf32>
    %18 = vector.broadcast %17 : vector<1x84xf32> to vector<2x84xf32>
    %19 = arith.addf %16, %18 : vector<2x84xf32>
    %c0_17 = arith.constant 0 : index
    %c0_18 = arith.constant 0 : index
    %20 = vector.load %arg8[%c0_17, %c0_18] : memref<2x84xf32, #tpu.memory_space<vmem>>, vector<2x84xf32>
    tpu.vector_store %arg8[%c0_17, %c0_18], %19 {strides = array<i32>} : memref<2x84xf32, #tpu.memory_space<vmem>>, vector<2x84xf32>,
    return
  }
  func.func @transform_0(%arg0: i32) -> (i32, i32) {
    %c0_i32 = arith.constant 0 : i32
    %c0_i32_0 = arith.constant 0 : i32
    return %arg0, %c0_i32 : i32, i32
  }
  func.func @transform_1(%arg0: i32) -> (i32, i32) {
    %c0_i32 = arith.constant 0 : i32
    %c0_i32_0 = arith.constant 0 : i32
    %c0_i32_1 = arith.constant 0 : i32
    return %c0_i32, %c0_i32_0 : i32, i32
  }
  func.func @transform_2(%arg0: i32) -> (i32, i32) {
    %c0_i32 = arith.constant 0 : i32
    %c0_i32_0 = arith.constant 0 : i32
    %c0_i32_1 = arith.constant 0 : i32
    return %c0_i32, %c0_i32_0 : i32, i32
  }
  func.func @transform_3(%arg0: i32) -> (i32, i32) {
    %c0_i32 = arith.constant 0 : i32
    %c0_i32_0 = arith.constant 0 : i32
    %c0_i32_1 = arith.constant 0 : i32
    return %c0_i32, %c0_i32_0 : i32, i32
  }
  func.func @transform_4(%arg0: i32) -> (i32, i32) {
    %c0_i32 = arith.constant 0 : i32
    %c0_i32_0 = arith.constant 0 : i32
    %c0_i32_1 = arith.constant 0 : i32
    return %c0_i32, %c0_i32_0 : i32, i32
  }
  func.func @transform_5(%arg0: i32) -> (i32, i32) {
    %c0_i32 = arith.constant 0 : i32
    %c0_i32_0 = arith.constant 0 : i32
    %c0_i32_1 = arith.constant 0 : i32
    return %c0_i32, %c0_i32_0 : i32, i32
  }
  func.func @transform_6(%arg0: i32) -> (i32, i32) {
    %c0_i32 = arith.constant 0 : i32
    %c0_i32_0 = arith.constant 0 : i32
    %c0_i32_1 = arith.constant 0 : i32
    return %c0_i32, %c0_i32_0 : i32, i32
  }
  func.func @transform_7(%arg0: i32) -> (i32, i32) {
    %c0_i32 = arith.constant 0 : i32
    %c0_i32_0 = arith.constant 0 : i32
    return %arg0, %c0_i32 : i32, i32
  }
}

</mosaic_0001>

<llo_original>
// kernel: net_forward.3
$region0: #{net_forward.3}
  #allocation0 [shape = 'u32[]', space=smem, size = 0x4, offset = 0x4, fixed_abs, tag = 'smem constant byte address 0x4 - core index']
  #allocation1 [shape = 'u32[144,128]{1,0:T(1,128)}', space=vmem, size = 0x12000, scoped, tag = 'internal scratch']
  #allocation2 [shape = 'f32[62,64]{1,0:T(8,128)}', space=vmem, size = 0x8000, scoped, tag = 'scratch operand']
  %s0 = inlined_call_operand.vmem [shape: f32[2,64,64,3], index: 0, kind: input, shape index: {}]
  %s1 = inlined_call_operand.vmem [shape: f32[9,3,64], index: 1, kind: input, shape index: {}]
  %s2 = inlined_call_operand.vmem [shape: f32[1,64], index: 2, kind: input, shape index: {}]
  %s3 = inlined_call_operand.vmem [shape: f32[2,31,31,64], index: 3, kind: output, shape index: {}]
  %s4 = sld [smem:[#allocation0]]
  $region52: #{net_forward.3} parent=0
    _
  %s6 = ssub.s32 1, %s4
  %s7 = scalar_select 0, %s6, %s4
  loop: start=0, step=1, limit=4
  $region2: #{net_forward.3} parent=0 // loop_pre_header
    _
  $region3: #{net_forward.3} parent=0 // loop_header
    %s9 = sphi 0, %s13
    %p10 = scmp.ge.s32.totalorder %s9, 4
    %s19 = sphi 0, %s21
    %s22 = sphi 0, %s19
    %s23 = sphi 0, %s22
    %s39 = sphi 0, %s23
    %s43 = sphi 0, %s43
    %s45 = sphi 0, %s43
    %s46 = sphi 0, %s45
    %s60 = sphi 0, %s46
    %s64 = sphi 0, %s64
    %s66 = sphi 0, %s64
    %s67 = sphi 0, %s66
    %s81 = sphi 0, %s67
    %s87 = sphi 0, %s89
    %s90 = sphi 0, %s87
    %s91 = sphi 0, %s90
    %s107 = sphi 0, %s91
  $region4: #{net_forward.3} parent=0 // loop_header_branch
    %12 = sbr.rel (%p10) target = $region8
  $region5: #{net_forward.3} parent=0 // loop_body
    %s14 = ssub.s32 %s9, 1
    %s15 = ssub.s32 %s9, 2
    %s16 = sadd.s32 %s9, 1
    %s17 = ssub.s32 %s9, %s16
    %p18 = scmp.eq.s32.totalorder %s17, 0
    %s20 = sadd.s32 %s19, 1
    %s21 = scalar_select %p18, %s19, %s20
    %p24 = pneg %p18
    %p25 = scmp.eq.s32.totalorder %s9, 1
    %p26 = por %p24, %p25
    %p27 = scmp.ne.s32.totalorder %s19, %s22
    %p28 = scmp.eq.s32.totalorder %s9, 0
    %p29 = por %p27, %p28
    %p30 = scmp.ne.s32.totalorder %s19, %s22
    %p31 = scmp.eq.s32.totalorder %s14, 1
    %p32 = por %p30, %p31
    %p33 = scmp.ne.s32.totalorder %s22, %s23
    %p34 = scmp.eq.s32.totalorder %s14, 0
    %p35 = por %p33, %p34
    %p36 = scmp.ne.s32.totalorder %s22, %s23
    %p37 = scmp.eq.s32.totalorder %s15, 1
    %p38 = por %p36, %p37
    %p40 = scmp.ne.s32.totalorder %s23, %s39
    %p41 = scmp.eq.s32.totalorder %s15, 0
    %p42 = por %p40, %p41
    %s44 = sadd.s32 %s43, 1
    %p47 = scmp.eq.s32.totalorder %s9, 1
    %p48 = scmp.ne.s32.totalorder %s43, %s45
    %p49 = scmp.eq.s32.totalorder %s9, 0
    %p50 = por %p48, %p49
    %p51 = scmp.ne.s32.totalorder %s43, %s45
    %p52 = scmp.eq.s32.totalorder %s14, 1
    %p53 = por %p51, %p52
    %p54 = scmp.ne.s32.totalorder %s45, %s46
    %p55 = scmp.eq.s32.totalorder %s14, 0
    %p56 = por %p54, %p55
    %p57 = scmp.ne.s32.totalorder %s45, %s46
    %p58 = scmp.eq.s32.totalorder %s15, 1
    %p59 = por %p57, %p58
    %p61 = scmp.ne.s32.totalorder %s46, %s60
    %p62 = scmp.eq.s32.totalorder %s15, 0
    %p63 = por %p61, %p62
    %s65 = sadd.s32 %s64, 1
    %p68 = scmp.eq.s32.totalorder %s9, 1
    %p69 = scmp.ne.s32.totalorder %s64, %s66
    %p70 = scmp.eq.s32.totalorder %s9, 0
    %p71 = por %p69, %p70
    %p72 = scmp.ne.s32.totalorder %s64, %s66
    %p73 = scmp.eq.s32.totalorder %s14, 1
    %p74 = por %p72, %p73
    %p75 = scmp.ne.s32.totalorder %s66, %s67
    %p76 = scmp.eq.s32.totalorder %s14, 0
    %p77 = por %p75, %p76
    %p78 = scmp.ne.s32.totalorder %s66, %s67
    %p79 = scmp.eq.s32.totalorder %s15, 1
    %p80 = por %p78, %p79
    %p82 = scmp.ne.s32.totalorder %s67, %s81
    %p83 = scmp.eq.s32.totalorder %s15, 0
    %p84 = por %p82, %p83
    %s85 = ssub.s32 %s9, %s16
    %p86 = scmp.eq.s32.totalorder %s85, 0
    %s88 = sadd.s32 %s87, 1
    %s89 = scalar_select %p86, %s87, %s88
    %p92 = pneg %p86
    %p93 = scmp.eq.s32.totalorder %s9, 1
    %p94 = por %p92, %p93
    %p95 = scmp.ne.s32.totalorder %s87, %s90
    %p96 = scmp.eq.s32.totalorder %s9, 0
    %p97 = por %p95, %p96
    %p98 = scmp.ne.s32.totalorder %s87, %s90
    %p99 = scmp.eq.s32.totalorder %s14, 1
    %p100 = por %p98, %p99
    %p101 = scmp.ne.s32.totalorder %s90, %s91
    %p102 = scmp.eq.s32.totalorder %s14, 0
    %p103 = por %p101, %p102
    %p104 = scmp.ne.s32.totalorder %s90, %s91
    %p105 = scmp.eq.s32.totalorder %s15, 1
    %p106 = por %p104, %p105
    %p108 = scmp.ne.s32.totalorder %s91, %s107
    %p109 = scmp.eq.s32.totalorder %s15, 0
    %p110 = por %p108, %p109
    %p111 = scmp.le.s32.totalorder 1, %s9
    %p112 = scmp.lt.s32.totalorder %s9, 3
    %p113 = pnand %p111, %p112
    %p114 = pneg %p113
    // Predicated region
    $region9: #{net_forward.3} parent=5 // pred_check
      _
    $region10: #{net_forward.3} parent=5 // pred_check_branch
      %116 = sbr.rel (%p113) target = $region12
    $region11: #{net_forward.3} parent=5 // pred_region
      %s117 = ssub.s32 %s9, 1
      // Predicated region
      $region13: #{net_forward.3} parent=11 // pred_check
        %p118 = pneg %p56
      $region14: #{net_forward.3} parent=11 // pred_check_branch
        %120 = sbr.rel (%p118) target = $region16
      $region15: #{net_forward.3} parent=11 // pred_region
        _
      $region16: #{net_forward.3} parent=11 // pred_fallthru
        _
      // Predicated region
      $region17: #{net_forward.3} parent=11 // pred_check
        %p121 = pneg %p77
      $region18: #{net_forward.3} parent=11 // pred_check_branch
        %123 = sbr.rel (%p121) target = $region20
      $region19: #{net_forward.3} parent=11 // pred_region
        _
      $region20: #{net_forward.3} parent=11 // pred_fallthru
        _
    $region12: #{net_forward.3} parent=5 // pred_fallthru
      _
    %p124 = scmp.lt.s32.totalorder %s9, 2
    // Predicated region
    $region21: #{net_forward.3} parent=5 // pred_check
      %p125 = pneg %p124
    $region22: #{net_forward.3} parent=5 // pred_check_branch
      %127 = sbr.rel (%p125) target = $region24
    $region23: #{net_forward.3} parent=5 // pred_region
      // Predicated region
      $region25: #{net_forward.3} parent=23 // pred_check
        %p128 = pneg %p29
      $region26: #{net_forward.3} parent=23 // pred_check_branch
        %130 = sbr.rel (%p128) target = $region28
      $region27: #{net_forward.3} parent=23 // pred_region
        %p131 = scmp.lt.s32.totalorder %s9, 1
        %s132 = scalar_select %p131, %s9, 1
        %s133 = smul.addr %s132, 512
        %s134 = smul.addr %s133, 8
        %s135 = scalar_lea.vmem %s0, %s134
      $region28: #{net_forward.3} parent=23 // pred_fallthru
        _
    $region24: #{net_forward.3} parent=5 // pred_fallthru
      _
    %p136 = scmp.le.s32.totalorder 1, %s9
    %p137 = scmp.lt.s32.totalorder %s9, 3
    %p138 = pnand %p136, %p137
    %p139 = pneg %p138
    // Predicated region
    $region29: #{net_forward.3} parent=5 // pred_check
      _
    $region30: #{net_forward.3} parent=5 // pred_check_branch
      %141 = sbr.rel (%p138) target = $region32
    $region31: #{net_forward.3} parent=5 // pred_region
      %s142 = ssub.s32 %s9, 1
      %p143 = scmp.lt.s32.totalorder %s14, 1
      %s144 = scalar_select %p143, %s14, 1
      %s145 = smul.addr %s144, 512
      %s146 = smul.addr %s145, 8
      %s147 = scalar_lea.vmem %s0, %s146
      %p148 = pneg %p35
      %p149 = pneg %p32
      %p150 = pneg %p56
      %p151 = pneg %p53
      %p152 = pneg %p77
      %p153 = pneg %p74
      %p154 = pneg %p103
      %p155 = pneg %p100
      %p156 = scmp.lt.s32.totalorder %s14, 1
      %s157 = scalar_select %p156, %s14, 1
      %s158 = smul.addr %s157, 124
      %s159 = smul.addr %s158, 8
      %s160 = scalar_lea.vmem %s3, %s159
      %p161 = scmp.lt.s32.totalorder %s14, 1
      %s162 = scalar_select %p161, %s14, 1
      %s163 = smul.addr %s162, 512
      %s164 = smul.addr %s163, 8
      %s165 = scalar_lea.vmem %s0, %s164
      %p166 = scmp.lt.s32.totalorder %s14, 1
      %s167 = scalar_select %p166, %s14, 1
      %s168 = smul.addr %s167, 124
      %s169 = smul.addr %s168, 8
      %s170 = scalar_lea.vmem %s3, %s169
      %v171 = vld [vmem:[%s2] sm:$0x1]
      loop: start=0, step=1, limit=31
      $region33: #{net_forward.3} parent=31 // loop_pre_header
        _
      $region34: #{net_forward.3} parent=31 // loop_header
        %s173 = sphi 0, %s177
        %p174 = scmp.ge.s32.totalorder %s173, 31
      $region35: #{net_forward.3} parent=31 // loop_header_branch
        %176 = sbr.rel (%p174) target = $region39
      $region36: #{net_forward.3} parent=31 // loop_body
        %s178 = smul.u32 %s173, 2
        %s179 = smul.u32 %s178, 64
        %s180 = scalar_lea.vmem %s165, %s179
        %v181 = vld [vmem:[%s180] sm:$0xff]
        %v182 = vld [vmem:[%s180 + $0x8] sm:$0xff]
        %v183 = vld [vmem:[%s180 + $0x10] sm:$0xff]
        %v184 = vld [vmem:[%s180 + $0x18] sm:$0xff]
        %v185 = vld [vmem:[%s180 + $0x20] sm:$0xff]
        %v186 = vld [vmem:[%s180 + $0x28] sm:$0xff]
        %v187 = vld [vmem:[%s180 + $0x30] sm:$0xff]
        %v188 = vld [vmem:[%s180 + $0x38] sm:$0x3f]
        %v189 = vld [vmem:[%s1] sm:$0x7]
        %v190 = vld [vmem:[%s180 + $0x1] sm:$0xff]
        %v191 = vld [vmem:[%s180 + $0x9] sm:$0xff]
        %v192 = vld [vmem:[%s180 + $0x11] sm:$0xff]
        %v193 = vld [vmem:[%s180 + $0x19] sm:$0xff]
        %v194 = vld [vmem:[%s180 + $0x21] sm:$0xff]
        %v195 = vld [vmem:[%s180 + $0x29] sm:$0xff]
        %v196 = vld [vmem:[%s180 + $0x31] sm:$0xff]
        %v197 = vld [vmem:[%s180 + $0x39] sm:$0x3f]
        %s198 = scalar_lea.vmem %s1, 4
        %v199 = vld [vmem:[%s198] sm:$0x7]
        %vm200 = vcmask 23552
        %v202 = vsel %vm200, %v190, 0
        %v205 = vsel %vm200, %v191, 0
        %v208 = vsel %vm200, %v192, 0
        %v211 = vsel %vm200, %v193, 0
        %v214 = vsel %vm200, %v194, 0
        %v217 = vsel %vm200, %v195, 0
        %v220 = vsel %vm200, %v196, 0
        %v223 = vsel %vm200, %v197, 0
        %vm225 = vcmask 1042432
        %v227 = vsel %vm225, %v199, 0
        %229 = vmatprep.subr.mxu0 0.0
        %230 = vmatpush1.msra.mxu0 %v227
        %231 = vmatprep.subr.mxu0 0.0
        %232 = vmatpush1.msra.mxu0 0.0
        %233 = vmatprep.subr.mxu0 0.0
        %234 = vmatpush1.msra.mxu0 0.0
        %235 = vmatprep.subr.mxu0 0.0
        %236 = vmatpush1.msra.mxu0 0.0
        %237 = vmatprep.subr.mxu0 0.0
        %238 = vmatpush1.msra.mxu0 0.0
        %239 = vmatprep.subr.mxu0 0.0
        %240 = vmatpush1.msra.mxu0 0.0
        %241 = vmatprep.subr.mxu0 0.0
        %242 = vmatpush1.msra.mxu0 0.0
        %243 = vmatprep.subr.mxu0 0.0
        %244 = vmatpush1.msra.mxu0 0.0
        %245 = vmatprep.subr.mxu0 0.0
        %246 = vmatpush1.msra.mxu0 0.0
        %247 = vmatprep.subr.mxu0 0.0
        %248 = vmatpush1.msra.mxu0 0.0
        %249 = vmatprep.subr.mxu0 0.0
        %250 = vmatpush1.msra.mxu0 0.0
        %251 = vmatprep.subr.mxu0 0.0
        %252 = vmatpush1.msra.mxu0 0.0
        %253 = vmatprep.subr.mxu0 0.0
        %254 = vmatpush1.msra.mxu0 0.0
        %255 = vmatprep.subr.mxu0 0.0
        %256 = vmatpush1.msra.mxu0 0.0
        %257 = vmatprep.subr.mxu0 0.0
        %258 = vmatpush1.msra.mxu0 0.0
        %259 = vmatprep.subr.mxu0 0.0
        %260 = vmatpush1.msra.mxu0 0.0
        %261 = vmatprep.subr.mxu0 0.0
        %262 = vmatpush1.msra.mxu0 0.0
        %263 = vmatprep.subr.mxu0 0.0
        %264 = vmatpush1.msra.mxu0 0.0
        %265 = vmatprep.subr.mxu0 0.0
        %266 = vmatpush1.msra.mxu0 0.0
        %267 = vmatprep.subr.mxu0 0.0
        %268 = vmatpush1.msra.mxu0 0.0
        %269 = vmatprep.subr.mxu0 0.0
        %270 = vmatpush1.msra.mxu0 0.0
        %271 = vmatprep.subr.mxu0 0.0
        %272 = vmatpush1.msra.mxu0 0.0
        %273 = vmatprep.subr.mxu0 0.0
        %274 = vmatpush1.msra.mxu0 0.0
        %275 = vmatprep.subr.mxu0 0.0
        %276 = vmatpush1.msra.mxu0 0.0
        %277 = vmatprep.subr.mxu0 0.0
        %278 = vmatpush1.msra.mxu0 0.0
        %279 = vmatprep.subr.mxu0 0.0
        %280 = vmatpush1.msra.mxu0 0.0
        %281 = vmatprep.subr.mxu0 0.0
        %282 = vmatpush1.msra.mxu0 0.0
        %283 = vmatprep.subr.mxu0 0.0
        %284 = vmatpush1.msra.mxu0 0.0
        %285 = vmatprep.subr.mxu0 0.0
        %286 = vmatpush1.msra.mxu0 0.0
        %287 = vmatprep.subr.mxu0 0.0
        %288 = vmatpush1.msra.mxu0 0.0
        %289 = vmatprep.subr.mxu0 0.0
        %290 = vmatpush1.msra.mxu0 0.0
        %291 = vmatprep.subr.mxu0 0.0
        %292 = vmatpush1.msra.mxu0 0.0
        %293 = vmatprep.mubr.f32.mxu0 0.0
        %294 = vmatmul.mubr.f32.gmra.mrb[0].mxu0 %v202
        %v295 = vpop.f32.mrb[0].mxu0
        %v296 = vadd.f32 0.0, %v295
        %v297 = vpop.f32.mrb[0].mxu0
        %298 = vmatprep.mubr.f32.mxu0 0.0
        %299 = vmatmul.mubr.f32.gmra.mrb[0].mxu0 %v205
        %v300 = vpop.f32.mrb[0].mxu0
        %v301 = vadd.f32 0.0, %v300
        %v302 = vpop.f32.mrb[0].mxu0
        %303 = vmatprep.mubr.f32.mxu0 0.0
        %304 = vmatmul.mubr.f32.gmra.mrb[0].mxu0 %v208
        %v305 = vpop.f32.mrb[0].mxu0
        %v306 = vadd.f32 0.0, %v305
        %v307 = vpop.f32.mrb[0].mxu0
        %308 = vmatprep.mubr.f32.mxu0 0.0
        %309 = vmatmul.mubr.f32.gmra.mrb[0].mxu0 %v211
        %v310 = vpop.f32.mrb[0].mxu0
        %v311 = vadd.f32 0.0, %v310
        %v312 = vpop.f32.mrb[0].mxu0
        %313 = vmatprep.mubr.f32.mxu0 0.0
        %314 = vmatmul.mubr.f32.gmra.mrb[0].mxu0 %v214
        %v315 = vpop.f32.mrb[0].mxu0
        %v316 = vadd.f32 0.0, %v315
        %v317 = vpop.f32.mrb[0].mxu0
        %318 = vmatprep.mubr.f32.mxu0 0.0
        %319 = vmatmul.mubr.f32.gmra.mrb[0].mxu0 %v217
        %v320 = vpop.f32.mrb[0].mxu0
        %v321 = vadd.f32 0.0, %v320
        %v322 = vpop.f32.mrb[0].mxu0
        %323 = vmatprep.mubr.f32.mxu0 0.0
        %324 = vmatmul.mubr.f32.gmra.mrb[0].mxu0 %v220
        %v325 = vpop.f32.mrb[0].mxu0
        %v326 = vadd.f32 0.0, %v325
        %v327 = vpop.f32.mrb[0].mxu0
        %328 = vmatprep.mubr.f32.mxu0 0.0
        %329 = vmatmul.mubr.f32.gmra.mrb[0].mxu0 %v223
        %v330 = vpop.f32.mrb[0].mxu0
        %v331 = vadd.f32 0.0, %v330
        %v332 = vpop.f32.mrb[0].mxu0
        %333 = vdwg.mxu0
        %v335 = vsel %vm200, %v181, 0
        %v338 = vsel %vm200, %v182, 0
        %v341 = vsel %vm200, %v183, 0
        %v344 = vsel %vm200, %v184, 0
        %v347 = vsel %vm200, %v185, 0
        %v350 = vsel %vm200, %v186, 0
        %v353 = vsel %vm200, %v187, 0
        %v356 = vsel %vm200, %v188, 0
        %v359 = vsel %vm225, %v189, 0
        %361 = vmatprep.subr.mxu0 0.0
        %362 = vmatpush1.msra.mxu0 %v359
        %363 = vmatprep.subr.mxu0 0.0
        %364 = vmatpush1.msra.mxu0 0.0
        %365 = vmatprep.subr.mxu0 0.0
        %366 = vmatpush1.msra.mxu0 0.0
        %367 = vmatprep.subr.mxu0 0.0
        %368 = vmatpush1.msra.mxu0 0.0
        %369 = vmatprep.subr.mxu0 0.0
        %370 = vmatpush1.msra.mxu0 0.0
        %371 = vmatprep.subr.mxu0 0.0
        %372 = vmatpush1.msra.mxu0 0.0
        %373 = vmatprep.subr.mxu0 0.0
        %374 = vmatpush1.msra.mxu0 0.0
        %375 = vmatprep.subr.mxu0 0.0
        %376 = vmatpush1.msra.mxu0 0.0
        %377 = vmatprep.subr.mxu0 0.0
        %378 = vmatpush1.msra.mxu0 0.0
        %379 = vmatprep.subr.mxu0 0.0
        %380 = vmatpush1.msra.mxu0 0.0
        %381 = vmatprep.subr.mxu0 0.0
        %382 = vmatpush1.msra.mxu0 0.0
        %383 = vmatprep.subr.mxu0 0.0
        %384 = vmatpush1.msra.mxu0 0.0
        %385 = vmatprep.subr.mxu0 0.0
        %386 = vmatpush1.msra.mxu0 0.0
        %387 = vmatprep.subr.mxu0 0.0
        %388 = vmatpush1.msra.mxu0 0.0
        %389 = vmatprep.subr.mxu0 0.0
        %390 = vmatpush1.msra.mxu0 0.0
        %391 = vmatprep.subr.mxu0 0.0
        %392 = vmatpush1.msra.mxu0 0.0
        %393 = vmatprep.subr.mxu0 0.0
        %394 = vmatpush1.msra.mxu0 0.0
        %395 = vmatprep.subr.mxu0 0.0
        %396 = vmatpush1.msra.mxu0 0.0
        %397 = vmatprep.subr.mxu0 0.0
        %398 = vmatpush1.msra.mxu0 0.0
        %399 = vmatprep.subr.mxu0 0.0
        %400 = vmatpush1.msra.mxu0 0.0
        %401 = vmatprep.subr.mxu0 0.0
        %402 = vmatpush1.msra.mxu0 0.0
        %403 = vmatprep.subr.mxu0 0.0
        %404 = vmatpush1.msra.mxu0 0.0
        %405 = vmatprep.subr.mxu0 0.0
        %406 = vmatpush1.msra.mxu0 0.0
        %407 = vmatprep.subr.mxu0 0.0
        %408 = vmatpush1.msra.mxu0 0.0
        %409 = vmatprep.subr.mxu0 0.0
        %410 = vmatpush1.msra.mxu0 0.0
        %411 = vmatprep.subr.mxu0 0.0
        %412 = vmatpush1.msra.mxu0 0.0
        %413 = vmatprep.subr.mxu0 0.0
        %414 = vmatpush1.msra.mxu0 0.0
        %415 = vmatprep.subr.mxu0 0.0
        %416 = vmatpush1.msra.mxu0 0.0
        %417 = vmatprep.subr.mxu0 0.0
        %418 = vmatpush1.msra.mxu0 0.0
        %419 = vmatprep.subr.mxu0 0.0
        %420 = vmatpush1.msra.mxu0 0.0
        %421 = vmatprep.subr.mxu0 0.0
        %422 = vmatpush1.msra.mxu0 0.0
        %423 = vmatprep.subr.mxu0 0.0
        %424 = vmatpush1.msra.mxu0 0.0
        %425 = vmatprep.mubr.f32.mxu0 0.0
        %426 = vmatmul.mubr.f32.gmra.mrb[0].mxu0 %v335
        %v427 = vpop.f32.mrb[0].mxu0
        %v428 = vadd.f32 %v296, %v427
        %v429 = vpop.f32.mrb[0].mxu0
        %430 = vmatprep.mubr.f32.mxu0 0.0
        %431 = vmatmul.mubr.f32.gmra.mrb[0].mxu0 %v338
        %v432 = vpop.f32.mrb[0].mxu0
        %v433 = vadd.f32 %v301, %v432
        %v434 = vpop.f32.mrb[0].mxu0
        %435 = vmatprep.mubr.f32.mxu0 0.0
        %436 = vmatmul.mubr.f32.gmra.mrb[0].mxu0 %v341
        %v437 = vpop.f32.mrb[0].mxu0
        %v438 = vadd.f32 %v306, %v437
        %v439 = vpop.f32.mrb[0].mxu0
        %440 = vmatprep.mubr.f32.mxu0 0.0
        %441 = vmatmul.mubr.f32.gmra.mrb[0].mxu0 %v344
        %v442 = vpop.f32.mrb[0].mxu0
        %v443 = vadd.f32 %v311, %v442
        %v444 = vpop.f32.mrb[0].mxu0
        %445 = vmatprep.mubr.f32.mxu0 0.0
        %446 = vmatmul.mubr.f32.gmra.mrb[0].mxu0 %v347
        %v447 = vpop.f32.mrb[0].mxu0
        %v448 = vadd.f32 %v316, %v447
        %v449 = vpop.f32.mrb[0].mxu0
        %450 = vmatprep.mubr.f32.mxu0 0.0
        %451 = vmatmul.mubr.f32.gmra.mrb[0].mxu0 %v350
        %v452 = vpop.f32.mrb[0].mxu0
        %v453 = vadd.f32 %v321, %v452
        %v454 = vpop.f32.mrb[0].mxu0
        %455 = vmatprep.mubr.f32.mxu0 0.0
        %456 = vmatmul.mubr.f32.gmra.mrb[0].mxu0 %v353
        %v457 = vpop.f32.mrb[0].mxu0
        %v458 = vadd.f32 %v326, %v457
        %v459 = vpop.f32.mrb[0].mxu0
        %460 = vmatprep.mubr.f32.mxu0 0.0
        %461 = vmatmul.mubr.f32.gmra.mrb[0].mxu0 %v356
        %v462 = vpop.f32.mrb[0].mxu0
        %v463 = vadd.f32 %v331, %v462
        %v464 = vpop.f32.mrb[0].mxu0
        %465 = vdwg.mxu0
        %v466 = vld [vmem:[%s180 + $0x2] sm:$0xff]
        %v467 = vld [vmem:[%s180 + $0xa] sm:$0xff]
        %v468 = vld [vmem:[%s180 + $0x12] sm:$0xff]
        %v469 = vld [vmem:[%s180 + $0x1a] sm:$0xff]
        %v470 = vld [vmem:[%s180 + $0x22] sm:$0xff]
        %v471 = vld [vmem:[%s180 + $0x2a] sm:$0xff]
        %v472 = vld [vmem:[%s180 + $0x32] sm:$0xff]
        %v473 = vld [vmem:[%s180 + $0x3a] sm:$0x3f]
        %s474 = scalar_lea.vmem %s1, 8
        %v475 = vld [vmem:[%s474] sm:$0x7]
        %v477 = vsel %vm200, %v466, 0
        %v480 = vsel %vm200, %v467, 0
        %v483 = vsel %vm200, %v468, 0
        %v486 = vsel %vm200, %v469, 0
        %v489 = vsel %vm200, %v470, 0
        %v492 = vsel %vm200, %v471, 0
        %v495 = vsel %vm200, %v472, 0
        %v498 = vsel %vm200, %v473, 0
        %v501 = vsel %vm225, %v475, 0
        %503 = vmatprep.subr.mxu0 0.0
        %504 = vmatpush1.msra.mxu0 %v501
        %505 = vmatprep.subr.mxu0 0.0
        %506 = vmatpush1.msra.mxu0 0.0
        %507 = vmatprep.subr.mxu0 0.0
        %508 = vmatpush1.msra.mxu0 0.0
        %509 = vmatprep.subr.mxu0 0.0
        %510 = vmatpush1.msra.mxu0 0.0
        %511 = vmatprep.subr.mxu0 0.0
        %512 = vmatpush1.msra.mxu0 0.0
        %513 = vmatprep.subr.mxu0 0.0
        %514 = vmatpush1.msra.mxu0 0.0
        %515 = vmatprep.subr.mxu0 0.0
        %516 = vmatpush1.msra.mxu0 0.0
        %517 = vmatprep.subr.mxu0 0.0
        %518 = vmatpush1.msra.mxu0 0.0
        %519 = vmatprep.subr.mxu0 0.0
        %520 = vmatpush1.msra.mxu0 0.0
        %521 = vmatprep.subr.mxu0 0.0
        %522 = vmatpush1.msra.mxu0 0.0
        %523 = vmatprep.subr.mxu0 0.0
        %524 = vmatpush1.msra.mxu0 0.0
        %525 = vmatprep.subr.mxu0 0.0
        %526 = vmatpush1.msra.mxu0 0.0
        %527 = vmatprep.subr.mxu0 0.0
        %528 = vmatpush1.msra.mxu0 0.0
        %529 = vmatprep.subr.mxu0 0.0
        %530 = vmatpush1.msra.mxu0 0.0
        %531 = vmatprep.subr.mxu0 0.0
        %532 = vmatpush1.msra.mxu0 0.0
        %533 = vmatprep.subr.mxu0 0.0
        %534 = vmatpush1.msra.mxu0 0.0
        %535 = vmatprep.subr.mxu0 0.0
        %536 = vmatpush1.msra.mxu0 0.0
        %537 = vmatprep.subr.mxu0 0.0
        %538 = vmatpush1.msra.mxu0 0.0
        %539 = vmatprep.subr.mxu0 0.0
        %540 = vmatpush1.msra.mxu0 0.0
        %541 = vmatprep.subr.mxu0 0.0
        %542 = vmatpush1.msra.mxu0 0.0
        %543 = vmatprep.subr.mxu0 0.0
        %544 = vmatpush1.msra.mxu0 0.0
        %545 = vmatprep.subr.mxu0 0.0
        %546 = vmatpush1.msra.mxu0 0.0
        %547 = vmatprep.subr.mxu0 0.0
        %548 = vmatpush1.msra.mxu0 0.0
        %549 = vmatprep.subr.mxu0 0.0
        %550 = vmatpush1.msra.mxu0 0.0
        %551 = vmatprep.subr.mxu0 0.0
        %552 = vmatpush1.msra.mxu0 0.0
        %553 = vmatprep.subr.mxu0 0.0
        %554 = vmatpush1.msra.mxu0 0.0
        %555 = vmatprep.subr.mxu0 0.0
        %556 = vmatpush1.msra.mxu0 0.0
        %557 = vmatprep.subr.mxu0 0.0
        %558 = vmatpush1.msra.mxu0 0.0
        %559 = vmatprep.subr.mxu0 0.0
        %560 = vmatpush1.msra.mxu0 0.0
        %561 = vmatprep.subr.mxu0 0.0
        %562 = vmatpush1.msra.mxu0 0.0
        %563 = vmatprep.subr.mxu0 0.0
        %564 = vmatpush1.msra.mxu0 0.0
        %565 = vmatprep.subr.mxu0 0.0
        %566 = vmatpush1.msra.mxu0 0.0
        %567 = vmatprep.mubr.f32.mxu0 0.0
        %568 = vmatmul.mubr.f32.gmra.mrb[0].mxu0 %v477
        %v569 = vpop.f32.mrb[0].mxu0
        %v570 = vadd.f32 0.0, %v569
        %v571 = vpop.f32.mrb[0].mxu0
        %572 = vmatprep.mubr.f32.mxu0 0.0
        %573 = vmatmul.mubr.f32.gmra.mrb[0].mxu0 %v480
        %v574 = vpop.f32.mrb[0].mxu0
        %v575 = vadd.f32 0.0, %v574
        %v576 = vpop.f32.mrb[0].mxu0
        %577 = vmatprep.mubr.f32.mxu0 0.0
        %578 = vmatmul.mubr.f32.gmra.mrb[0].mxu0 %v483
        %v579 = vpop.f32.mrb[0].mxu0
        %v580 = vadd.f32 0.0, %v579
        %v581 = vpop.f32.mrb[0].mxu0
        %582 = vmatprep.mubr.f32.mxu0 0.0
        %583 = vmatmul.mubr.f32.gmra.mrb[0].mxu0 %v486
        %v584 = vpop.f32.mrb[0].mxu0
        %v585 = vadd.f32 0.0, %v584
        %v586 = vpop.f32.mrb[0].mxu0
        %587 = vmatprep.mubr.f32.mxu0 0.0
        %588 = vmatmul.mubr.f32.gmra.mrb[0].mxu0 %v489
        %v589 = vpop.f32.mrb[0].mxu0
        %v590 = vadd.f32 0.0, %v589
        %v591 = vpop.f32.mrb[0].mxu0
        %592 = vmatprep.mubr.f32.mxu0 0.0
        %593 = vmatmul.mubr.f32.gmra.mrb[0].mxu0 %v492
        %v594 = vpop.f32.mrb[0].mxu0
        %v595 = vadd.f32 0.0, %v594
        %v596 = vpop.f32.mrb[0].mxu0
        %597 = vmatprep.mubr.f32.mxu0 0.0
        %598 = vmatmul.mubr.f32.gmra.mrb[0].mxu0 %v495
        %v599 = vpop.f32.mrb[0].mxu0
        %v600 = vadd.f32 0.0, %v599
        %v601 = vpop.f32.mrb[0].mxu0
        %602 = vmatprep.mubr.f32.mxu0 0.0
        %603 = vmatmul.mubr.f32.gmra.mrb[0].mxu0 %v498
        %v604 = vpop.f32.mrb[0].mxu0
        %v605 = vadd.f32 0.0, %v604
        %v606 = vpop.f32.mrb[0].mxu0
        %607 = vdwg.mxu0
        %v608 = vadd.f32 %v428, %v570
        %v609 = vadd.f32 %v433, %v575
        %v610 = vadd.f32 %v438, %v580
        %v611 = vadd.f32 %v443, %v585
        %v612 = vadd.f32 %v448, %v590
        %v613 = vadd.f32 %v453, %v595
        %v614 = vadd.f32 %v458, %v600
        %v615 = vadd.f32 %v463, %v605
        %s616 = sadd.s32 %s178, 1
        %s617 = smul.u32 %s616, 64
        %s618 = scalar_lea.vmem %s165, %s617
        %v619 = vld [vmem:[%s618] sm:$0xff]
        %v620 = vld [vmem:[%s618 + $0x8] sm:$0xff]
        %v621 = vld [vmem:[%s618 + $0x10] sm:$0xff]
        %v622 = vld [vmem:[%s618 + $0x18] sm:$0xff]
        %v623 = vld [vmem:[%s618 + $0x20] sm:$0xff]
        %v624 = vld [vmem:[%s618 + $0x28] sm:$0xff]
        %v625 = vld [vmem:[%s618 + $0x30] sm:$0xff]
        %v626 = vld [vmem:[%s618 + $0x38] sm:$0x3f]
        %s627 = scalar_lea.vmem %s1, 12
        %v628 = vld [vmem:[%s627] sm:$0x7]
        %v630 = vsel %vm200, %v619, 0
        %v633 = vsel %vm200, %v620, 0
        %v636 = vsel %vm200, %v621, 0
        %v639 = vsel %vm200, %v622, 0
        %v642 = vsel %vm200, %v623, 0
        %v645 = vsel %vm200, %v624, 0
        %v648 = vsel %vm200, %v625, 0
        %v651 = vsel %vm200, %v626, 0
        %v654 = vsel %vm225, %v628, 0
        %656 = vmatprep.subr.mxu0 0.0
        %657 = vmatpush1.msra.mxu0 %v654
        %658 = vmatprep.subr.mxu0 0.0
        %659 = vmatpush1.msra.mxu0 0.0
        %660 = vmatprep.subr.mxu0 0.0
        %661 = vmatpush1.msra.mxu0 0.0
        %662 = vmatprep.subr.mxu0 0.0
        %663 = vmatpush1.msra.mxu0 0.0
        %664 = vmatprep.subr.mxu0 0.0
        %665 = vmatpush1.msra.mxu0 0.0
        %666 = vmatprep.subr.mxu0 0.0
        %667 = vmatpush1.msra.mxu0 0.0
        %668 = vmatprep.subr.mxu0 0.0
        %669 = vmatpush1.msra.mxu0 0.0
        %670 = vmatprep.subr.mxu0 0.0
        %671 = vmatpush1.msra.mxu0 0.0
        %672 = vmatprep.subr.mxu0 0.0
        %673 = vmatpush1.msra.mxu0 0.0
        %674 = vmatprep.subr.mxu0 0.0
        %675 = vmatpush1.msra.mxu0 0.0
        %676 = vmatprep.subr.mxu0 0.0
        %677 = vmatpush1.msra.mxu0 0.0
        %678 = vmatprep.subr.mxu0 0.0
        %679 = vmatpush1.msra.mxu0 0.0
        %680 = vmatprep.subr.mxu0 0.0
        %681 = vmatpush1.msra.mxu0 0.0
        %682 = vmatprep.subr.mxu0 0.0
        %683 = vmatpush1.msra.mxu0 0.0
        %684 = vmatprep.subr.mxu0 0.0
        %685 = vmatpush1.msra.mxu0 0.0
        %686 = vmatprep.subr.mxu0 0.0
        %687 = vmatpush1.msra.mxu0 0.0
        %688 = vmatprep.subr.mxu0 0.0
        %689 = vmatpush1.msra.mxu0 0.0
        %690 = vmatprep.subr.mxu0 0.0
        %691 = vmatpush1.msra.mxu0 0.0
        %692 = vmatprep.subr.mxu0 0.0
        %693 = vmatpush1.msra.mxu0 0.0
        %694 = vmatprep.subr.mxu0 0.0
        %695 = vmatpush1.msra.mxu0 0.0
        %696 = vmatprep.subr.mxu0 0.0
        %697 = vmatpush1.msra.mxu0 0.0
        %698 = vmatprep.subr.mxu0 0.0
        %699 = vmatpush1.msra.mxu0 0.0
        %700 = vmatprep.subr.mxu0 0.0
        %701 = vmatpush1.msra.mxu0 0.0
        %702 = vmatprep.subr.mxu0 0.0
        %703 = vmatpush1.msra.mxu0 0.0
        %704 = vmatprep.subr.mxu0 0.0
        %705 = vmatpush1.msra.mxu0 0.0
        %706 = vmatprep.subr.mxu0 0.0
        %707 = vmatpush1.msra.mxu0 0.0
        %708 = vmatprep.subr.mxu0 0.0
        %709 = vmatpush1.msra.mxu0 0.0
        %710 = vmatprep.subr.mxu0 0.0
        %711 = vmatpush1.msra.mxu0 0.0
        %712 = vmatprep.subr.mxu0 0.0
        %713 = vmatpush1.msra.mxu0 0.0
        %714 = vmatprep.subr.mxu0 0.0
        %715 = vmatpush1.msra.mxu0 0.0
        %716 = vmatprep.subr.mxu0 0.0
        %717 = vmatpush1.msra.mxu0 0.0
        %718 = vmatprep.subr.mxu0 0.0
        %719 = vmatpush1.msra.mxu0 0.0
        %720 = vmatprep.mubr.f32.mxu0 0.0
        %721 = vmatmul.mubr.f32.gmra.mrb[0].mxu0 %v630
        %v722 = vpop.f32.mrb[0].mxu0
        %v723 = vadd.f32 0.0, %v722
        %v724 = vpop.f32.mrb[0].mxu0
        %725 = vmatprep.mubr.f32.mxu0 0.0
        %726 = vmatmul.mubr.f32.gmra.mrb[0].mxu0 %v633
        %v727 = vpop.f32.mrb[0].mxu0
        %v728 = vadd.f32 0.0, %v727
        %v729 = vpop.f32.mrb[0].mxu0
        %730 = vmatprep.mubr.f32.mxu0 0.0
        %731 = vmatmul.mubr.f32.gmra.mrb[0].mxu0 %v636
        %v732 = vpop.f32.mrb[0].mxu0
        %v733 = vadd.f32 0.0, %v732
        %v734 = vpop.f32.mrb[0].mxu0
        %735 = vmatprep.mubr.f32.mxu0 0.0
        %736 = vmatmul.mubr.f32.gmra.mrb[0].mxu0 %v639
        %v737 = vpop.f32.mrb[0].mxu0
        %v738 = vadd.f32 0.0, %v737
        %v739 = vpop.f32.mrb[0].mxu0
        %740 = vmatprep.mubr.f32.mxu0 0.0
        %741 = vmatmul.mubr.f32.gmra.mrb[0].mxu0 %v642
        %v742 = vpop.f32.mrb[0].mxu0
        %v743 = vadd.f32 0.0, %v742
        %v744 = vpop.f32.mrb[0].mxu0
        %745 = vmatprep.mubr.f32.mxu0 0.0
        %746 = vmatmul.mubr.f32.gmra.mrb[0].mxu0 %v645
        %v747 = vpop.f32.mrb[0].mxu0
        %v748 = vadd.f32 0.0, %v747
        %v749 = vpop.f32.mrb[0].mxu0
        %750 = vmatprep.mubr.f32.mxu0 0.0
        %751 = vmatmul.mubr.f32.gmra.mrb[0].mxu0 %v648
        %v752 = vpop.f32.mrb[0].mxu0
        %v753 = vadd.f32 0.0, %v752
        %v754 = vpop.f32.mrb[0].mxu0
        %755 = vmatprep.mubr.f32.mxu0 0.0
        %756 = vmatmul.mubr.f32.gmra.mrb[0].mxu0 %v651
        %v757 = vpop.f32.mrb[0].mxu0
        %v758 = vadd.f32 0.0, %v757
        %v759 = vpop.f32.mrb[0].mxu0
        %760 = vdwg.mxu0
        %v761 = vadd.f32 %v608, %v723
        %v762 = vadd.f32 %v609, %v728
        %v763 = vadd.f32 %v610, %v733
        %v764 = vadd.f32 %v611, %v738
        %v765 = vadd.f32 %v612, %v743
        %v766 = vadd.f32 %v613, %v748
        %v767 = vadd.f32 %v614, %v753
        %v768 = vadd.f32 %v615, %v758
        %v769 = vld [vmem:[%s618 + $0x1] sm:$0xff]
        %v770 = vld [vmem:[%s618 + $0x9] sm:$0xff]
        %v771 = vld [vmem:[%s618 + $0x11] sm:$0xff]
        %v772 = vld [vmem:[%s618 + $0x19] sm:$0xff]
        %v773 = vld [vmem:[%s618 + $0x21] sm:$0xff]
        %v774 = vld [vmem:[%s618 + $0x29] sm:$0xff]
        %v775 = vld [vmem:[%s618 + $0x31] sm:$0xff]
        %v776 = vld [vmem:[%s618 + $0x39] sm:$0x3f]
        %s777 = scalar_lea.vmem %s1, 16
        %v778 = vld [vmem:[%s777] sm:$0x7]
        %v780 = vsel %vm200, %v769, 0
        %v783 = vsel %vm200, %v770, 0
        %v786 = vsel %vm200, %v771, 0
        %v789 = vsel %vm200, %v772, 0
        %v792 = vsel %vm200, %v773, 0
        %v795 = vsel %vm200, %v774, 0
        %v798 = vsel %vm200, %v775, 0
        %v801 = vsel %vm200, %v776, 0
        %v804 = vsel %vm225, %v778, 0
        %806 = vmatprep.subr.mxu0 0.0
        %807 = vmatpush1.msra.mxu0 %v804
        %808 = vmatprep.subr.mxu0 0.0
        %809 = vmatpush1.msra.mxu0 0.0
        %810 = vmatprep.subr.mxu0 0.0
        %811 = vmatpush1.msra.mxu0 0.0
        %812 = vmatprep.subr.mxu0 0.0
        %813 = vmatpush1.msra.mxu0 0.0
        %814 = vmatprep.subr.mxu0 0.0
        %815 = vmatpush1.msra.mxu0 0.0
        %816 = vmatprep.subr.mxu0 0.0
        %817 = vmatpush1.msra.mxu0 0.0
        %818 = vmatprep.subr.mxu0 0.0
        %819 = vmatpush1.msra.mxu0 0.0
        %820 = vmatprep.subr.mxu0 0.0
        %821 = vmatpush1.msra.mxu0 0.0
        %822 = vmatprep.subr.mxu0 0.0
        %823 = vmatpush1.msra.mxu0 0.0
        %824 = vmatprep.subr.mxu0 0.0
        %825 = vmatpush1.msra.mxu0 0.0
        %826 = vmatprep.subr.mxu0 0.0
        %827 = vmatpush1.msra.mxu0 0.0
        %828 = vmatprep.subr.mxu0 0.0
        %829 = vmatpush1.msra.mxu0 0.0
        %830 = vmatprep.subr.mxu0 0.0
        %831 = vmatpush1.msra.mxu0 0.0
        %832 = vmatprep.subr.mxu0 0.0
        %833 = vmatpush1.msra.mxu0 0.0
        %834 = vmatprep.subr.mxu0 0.0
        %835 = vmatpush1.msra.mxu0 0.0
        %836 = vmatprep.subr.mxu0 0.0
        %837 = vmatpush1.msra.mxu0 0.0
        %838 = vmatprep.subr.mxu0 0.0
        %839 = vmatpush1.msra.mxu0 0.0
        %840 = vmatprep.subr.mxu0 0.0
        %841 = vmatpush1.msra.mxu0 0.0
        %842 = vmatprep.subr.mxu0 0.0
        %843 = vmatpush1.msra.mxu0 0.0
        %844 = vmatprep.subr.mxu0 0.0
        %845 = vmatpush1.msra.mxu0 0.0
        %846 = vmatprep.subr.mxu0 0.0
        %847 = vmatpush1.msra.mxu0 0.0
        %848 = vmatprep.subr.mxu0 0.0
        %849 = vmatpush1.msra.mxu0 0.0
        %850 = vmatprep.subr.mxu0 0.0
        %851 = vmatpush1.msra.mxu0 0.0
        %852 = vmatprep.subr.mxu0 0.0
        %853 = vmatpush1.msra.mxu0 0.0
        %854 = vmatprep.subr.mxu0 0.0
        %855 = vmatpush1.msra.mxu0 0.0
        %856 = vmatprep.subr.mxu0 0.0
        %857 = vmatpush1.msra.mxu0 0.0
        %858 = vmatprep.subr.mxu0 0.0
        %859 = vmatpush1.msra.mxu0 0.0
        %860 = vmatprep.subr.mxu0 0.0
        %861 = vmatpush1.msra.mxu0 0.0
        %862 = vmatprep.subr.mxu0 0.0
        %863 = vmatpush1.msra.mxu0 0.0
        %864 = vmatprep.subr.mxu0 0.0
        %865 = vmatpush1.msra.mxu0 0.0
        %866 = vmatprep.subr.mxu0 0.0
        %867 = vmatpush1.msra.mxu0 0.0
        %868 = vmatprep.subr.mxu0 0.0
        %869 = vmatpush1.msra.mxu0 0.0
        %870 = vmatprep.mubr.f32.mxu0 0.0
        %871 = vmatmul.mubr.f32.gmra.mrb[0].mxu0 %v780
        %v872 = vpop.f32.mrb[0].mxu0
        %v873 = vadd.f32 0.0, %v872
        %v874 = vpop.f32.mrb[0].mxu0
        %875 = vmatprep.mubr.f32.mxu0 0.0
        %876 = vmatmul.mubr.f32.gmra.mrb[0].mxu0 %v783
        %v877 = vpop.f32.mrb[0].mxu0
        %v878 = vadd.f32 0.0, %v877
        %v879 = vpop.f32.mrb[0].mxu0
        %880 = vmatprep.mubr.f32.mxu0 0.0
        %881 = vmatmul.mubr.f32.gmra.mrb[0].mxu0 %v786
        %v882 = vpop.f32.mrb[0].mxu0
        %v883 = vadd.f32 0.0, %v882
        %v884 = vpop.f32.mrb[0].mxu0
        %885 = vmatprep.mubr.f32.mxu0 0.0
        %886 = vmatmul.mubr.f32.gmra.mrb[0].mxu0 %v789
        %v887 = vpop.f32.mrb[0].mxu0
        %v888 = vadd.f32 0.0, %v887
        %v889 = vpop.f32.mrb[0].mxu0
        %890 = vmatprep.mubr.f32.mxu0 0.0
        %891 = vmatmul.mubr.f32.gmra.mrb[0].mxu0 %v792
        %v892 = vpop.f32.mrb[0].mxu0
        %v893 = vadd.f32 0.0, %v892
        %v894 = vpop.f32.mrb[0].mxu0
        %895 = vmatprep.mubr.f32.mxu0 0.0
        %896 = vmatmul.mubr.f32.gmra.mrb[0].mxu0 %v795
        %v897 = vpop.f32.mrb[0].mxu0
        %v898 = vadd.f32 0.0, %v897
        %v899 = vpop.f32.mrb[0].mxu0
        %900 = vmatprep.mubr.f32.mxu0 0.0
        %901 = vmatmul.mubr.f32.gmra.mrb[0].mxu0 %v798
        %v902 = vpop.f32.mrb[0].mxu0
        %v903 = vadd.f32 0.0, %v902
        %v904 = vpop.f32.mrb[0].mxu0
        %905 = vmatprep.mubr.f32.mxu0 0.0
        %906 = vmatmul.mubr.f32.gmra.mrb[0].mxu0 %v801
        %v907 = vpop.f32.mrb[0].mxu0
        %v908 = vadd.f32 0.0, %v907
        %v909 = vpop.f32.mrb[0].mxu0
        %910 = vdwg.mxu0
        %v911 = vadd.f32 %v761, %v873
        %v912 = vadd.f32 %v762, %v878
        %v913 = vadd.f32 %v763, %v883
        %v914 = vadd.f32 %v764, %v888
        %v915 = vadd.f32 %v765, %v893
        %v916 = vadd.f32 %v766, %v898
        %v917 = vadd.f32 %v767, %v903
        %v918 = vadd.f32 %v768, %v908
        %v919 = vld [vmem:[%s618 + $0x2] sm:$0xff]
        %v920 = vld [vmem:[%s618 + $0xa] sm:$0xff]
        %v921 = vld [vmem:[%s618 + $0x12] sm:$0xff]
        %v922 = vld [vmem:[%s618 + $0x1a] sm:$0xff]
        %v923 = vld [vmem:[%s618 + $0x22] sm:$0xff]
        %v924 = vld [vmem:[%s618 + $0x2a] sm:$0xff]
        %v925 = vld [vmem:[%s618 + $0x32] sm:$0xff]
        %v926 = vld [vmem:[%s618 + $0x3a] sm:$0x3f]
        %s927 = scalar_lea.vmem %s1, 20
        %v928 = vld [vmem:[%s927] sm:$0x7]
        %v930 = vsel %vm200, %v919, 0
        %v933 = vsel %vm200, %v920, 0
        %v936 = vsel %vm200, %v921, 0
        %v939 = vsel %vm200, %v922, 0
        %v942 = vsel %vm200, %v923, 0
        %v945 = vsel %vm200, %v924, 0
        %v948 = vsel %vm200, %v925, 0
        %v951 = vsel %vm200, %v926, 0
        %v954 = vsel %vm225, %v928, 0
        %956 = vmatprep.subr.mxu0 0.0
        %957 = vmatpush1.msra.mxu0 %v954
        %958 = vmatprep.subr.mxu0 0.0
        %959 = vmatpush1.msra.mxu0 0.0
        %960 = vmatprep.subr.mxu0 0.0
        %961 = vmatpush1.msra.mxu0 0.0
        %962 = vmatprep.subr.mxu0 0.0
        %963 = vmatpush1.msra.mxu0 0.0
        %964 = vmatprep.subr.mxu0 0.0
        %965 = vmatpush1.msra.mxu0 0.0
        %966 = vmatprep.subr.mxu0 0.0
        %967 = vmatpush1.msra.mxu0 0.0
        %968 = vmatprep.subr.mxu0 0.0
        %969 = vmatpush1.msra.mxu0 0.0
        %970 = vmatprep.subr.mxu0 0.0
        %971 = vmatpush1.msra.mxu0 0.0
        %972 = vmatprep.subr.mxu0 0.0
        %973 = vmatpush1.msra.mxu0 0.0
        %974 = vmatprep.subr.mxu0 0.0
        %975 = vmatpush1.msra.mxu0 0.0
        %976 = vmatprep.subr.mxu0 0.0
        %977 = vmatpush1.msra.mxu0 0.0
        %978 = vmatprep.subr.mxu0 0.0
        %979 = vmatpush1.msra.mxu0 0.0
        %980 = vmatprep.subr.mxu0 0.0
        %981 = vmatpush1.msra.mxu0 0.0
        %982 = vmatprep.subr.mxu0 0.0
        %983 = vmatpush1.msra.mxu0 0.0
        %984 = vmatprep.subr.mxu0 0.0
        %985 = vmatpush1.msra.mxu0 0.0
        %986 = vmatprep.subr.mxu0 0.0
        %987 = vmatpush1.msra.mxu0 0.0
        %988 = vmatprep.subr.mxu0 0.0
        %989 = vmatpush1.msra.mxu0 0.0
        %990 = vmatprep.subr.mxu0 0.0
        %991 = vmatpush1.msra.mxu0 0.0
        %992 = vmatprep.subr.mxu0 0.0
        %993 = vmatpush1.msra.mxu0 0.0
        %994 = vmatprep.subr.mxu0 0.0
        %995 = vmatpush1.msra.mxu0 0.0
        %996 = vmatprep.subr.mxu0 0.0
        %997 = vmatpush1.msra.mxu0 0.0
        %998 = vmatprep.subr.mxu0 0.0
        %999 = vmatpush1.msra.mxu0 0.0
        %1000 = vmatprep.subr.mxu0 0.0
        %1001 = vmatpush1.msra.mxu0 0.0
        %1002 = vmatprep.subr.mxu0 0.0
        %1003 = vmatpush1.msra.mxu0 0.0
        %1004 = vmatprep.subr.mxu0 0.0
        %1005 = vmatpush1.msra.mxu0 0.0
        %1006 = vmatprep.subr.mxu0 0.0
        %1007 = vmatpush1.msra.mxu0 0.0
        %1008 = vmatprep.subr.mxu0 0.0
        %1009 = vmatpush1.msra.mxu0 0.0
        %1010 = vmatprep.subr.mxu0 0.0
        %1011 = vmatpush1.msra.mxu0 0.0
        %1012 = vmatprep.subr.mxu0 0.0
        %1013 = vmatpush1.msra.mxu0 0.0
        %1014 = vmatprep.subr.mxu0 0.0
        %1015 = vmatpush1.msra.mxu0 0.0
        %1016 = vmatprep.subr.mxu0 0.0
        %1017 = vmatpush1.msra.mxu0 0.0
        %1018 = vmatprep.subr.mxu0 0.0
        %1019 = vmatpush1.msra.mxu0 0.0
        %1020 = vmatprep.mubr.f32.mxu0 0.0
        %1021 = vmatmul.mubr.f32.gmra.mrb[0].mxu0 %v930
        %v1022 = vpop.f32.mrb[0].mxu0
        %v1023 = vadd.f32 0.0, %v1022
        %v1024 = vpop.f32.mrb[0].mxu0
        %1025 = vmatprep.mubr.f32.mxu0 0.0
        %1026 = vmatmul.mubr.f32.gmra.mrb[0].mxu0 %v933
        %v1027 = vpop.f32.mrb[0].mxu0
        %v1028 = vadd.f32 0.0, %v1027
        %v1029 = vpop.f32.mrb[0].mxu0
        %1030 = vmatprep.mubr.f32.mxu0 0.0
        %1031 = vmatmul.mubr.f32.gmra.mrb[0].mxu0 %v936
        %v1032 = vpop.f32.mrb[0].mxu0
        %v1033 = vadd.f32 0.0, %v1032
        %v1034 = vpop.f32.mrb[0].mxu0
        %1035 = vmatprep.mubr.f32.mxu0 0.0
        %1036 = vmatmul.mubr.f32.gmra.mrb[0].mxu0 %v939
        %v1037 = vpop.f32.mrb[0].mxu0
        %v1038 = vadd.f32 0.0, %v1037
        %v1039 = vpop.f32.mrb[0].mxu0
        %1040 = vmatprep.mubr.f32.mxu0 0.0
        %1041 = vmatmul.mubr.f32.gmra.mrb[0].mxu0 %v942
        %v1042 = vpop.f32.mrb[0].mxu0
        %v1043 = vadd.f32 0.0, %v1042
        %v1044 = vpop.f32.mrb[0].mxu0
        %1045 = vmatprep.mubr.f32.mxu0 0.0
        %1046 = vmatmul.mubr.f32.gmra.mrb[0].mxu0 %v945
        %v1047 = vpop.f32.mrb[0].mxu0
        %v1048 = vadd.f32 0.0, %v1047
        %v1049 = vpop.f32.mrb[0].mxu0
        %1050 = vmatprep.mubr.f32.mxu0 0.0
        %1051 = vmatmul.mubr.f32.gmra.mrb[0].mxu0 %v948
        %v1052 = vpop.f32.mrb[0].mxu0
        %v1053 = vadd.f32 0.0, %v1052
        %v1054 = vpop.f32.mrb[0].mxu0
        %1055 = vmatprep.mubr.f32.mxu0 0.0
        %1056 = vmatmul.mubr.f32.gmra.mrb[0].mxu0 %v951
        %v1057 = vpop.f32.mrb[0].mxu0
        %v1058 = vadd.f32 0.0, %v1057
        %v1059 = vpop.f32.mrb[0].mxu0
        %1060 = vdwg.mxu0
        %v1061 = vadd.f32 %v911, %v1023
        %v1062 = vadd.f32 %v912, %v1028
        %v1063 = vadd.f32 %v913, %v1033
        %v1064 = vadd.f32 %v914, %v1038
        %v1065 = vadd.f32 %v915, %v1043
        %v1066 = vadd.f32 %v916, %v1048
        %v1067 = vadd.f32 %v917, %v1053
        %v1068 = vadd.f32 %v918, %v1058
        %s1069 = sadd.s32 %s178, 2
        %s1070 = smul.u32 %s1069, 64
        %s1071 = scalar_lea.vmem %s165, %s1070
        %v1072 = vld [vmem:[%s1071] sm:$0xff]
        %v1073 = vld [vmem:[%s1071 + $0x8] sm:$0xff]
        %v1074 = vld [vmem:[%s1071 + $0x10] sm:$0xff]
        %v1075 = vld [vmem:[%s1071 + $0x18] sm:$0xff]
        %v1076 = vld [vmem:[%s1071 + $0x20] sm:$0xff]
        %v1077 = vld [vmem:[%s1071 + $0x28] sm:$0xff]
        %v1078 = vld [vmem:[%s1071 + $0x30] sm:$0xff]
        %v1079 = vld [vmem:[%s1071 + $0x38] sm:$0x3f]
        %s1080 = scalar_lea.vmem %s1, 24
        %v1081 = vld [vmem:[%s1080] sm:$0x7]
        %v1083 = vsel %vm200, %v1072, 0
        %v1086 = vsel %vm200, %v1073, 0
        %v1089 = vsel %vm200, %v1074, 0
        %v1092 = vsel %vm200, %v1075, 0
        %v1095 = vsel %vm200, %v1076, 0
        %v1098 = vsel %vm200, %v1077, 0
        %v1101 = vsel %vm200, %v1078, 0
        %v1104 = vsel %vm200, %v1079, 0
        %v1107 = vsel %vm225, %v1081, 0
        %1109 = vmatprep.subr.mxu0 0.0
        %1110 = vmatpush1.msra.mxu0 %v1107
        %1111 = vmatprep.subr.mxu0 0.0
        %1112 = vmatpush1.msra.mxu0 0.0
        %1113 = vmatprep.subr.mxu0 0.0
        %1114 = vmatpush1.msra.mxu0 0.0
        %1115 = vmatprep.subr.mxu0 0.0
        %1116 = vmatpush1.msra.mxu0 0.0
        %1117 = vmatprep.subr.mxu0 0.0
        %1118 = vmatpush1.msra.mxu0 0.0
        %1119 = vmatprep.subr.mxu0 0.0
        %1120 = vmatpush1.msra.mxu0 0.0
        %1121 = vmatprep.subr.mxu0 0.0
        %1122 = vmatpush1.msra.mxu0 0.0
        %1123 = vmatprep.subr.mxu0 0.0
        %1124 = vmatpush1.msra.mxu0 0.0
        %1125 = vmatprep.subr.mxu0 0.0
        %1126 = vmatpush1.msra.mxu0 0.0
        %1127 = vmatprep.subr.mxu0 0.0
        %1128 = vmatpush1.msra.mxu0 0.0
        %1129 = vmatprep.subr.mxu0 0.0
        %1130 = vmatpush1.msra.mxu0 0.0
        %1131 = vmatprep.subr.mxu0 0.0
        %1132 = vmatpush1.msra.mxu0 0.0
        %1133 = vmatprep.subr.mxu0 0.0
        %1134 = vmatpush1.msra.mxu0 0.0
        %1135 = vmatprep.subr.mxu0 0.0
        %1136 = vmatpush1.msra.mxu0 0.0
        %1137 = vmatprep.subr.mxu0 0.0
        %1138 = vmatpush1.msra.mxu0 0.0
        %1139 = vmatprep.subr.mxu0 0.0
        %1140 = vmatpush1.msra.mxu0 0.0
        %1141 = vmatprep.subr.mxu0 0.0
        %1142 = vmatpush1.msra.mxu0 0.0
        %1143 = vmatprep.subr.mxu0 0.0
        %1144 = vmatpush1.msra.mxu0 0.0
        %1145 = vmatprep.subr.mxu0 0.0
        %1146 = vmatpush1.msra.mxu0 0.0
        %1147 = vmatprep.subr.mxu0 0.0
        %1148 = vmatpush1.msra.mxu0 0.0
        %1149 = vmatprep.subr.mxu0 0.0
        %1150 = vmatpush1.msra.mxu0 0.0
        %1151 = vmatprep.subr.mxu0 0.0
        %1152 = vmatpush1.msra.mxu0 0.0
        %1153 = vmatprep.subr.mxu0 0.0
        %1154 = vmatpush1.msra.mxu0 0.0
        %1155 = vmatprep.subr.mxu0 0.0
        %1156 = vmatpush1.msra.mxu0 0.0
        %1157 = vmatprep.subr.mxu0 0.0
        %1158 = vmatpush1.msra.mxu0 0.0
        %1159 = vmatprep.subr.mxu0 0.0
        %1160 = vmatpush1.msra.mxu0 0.0
        %1161 = vmatprep.subr.mxu0 0.0
        %1162 = vmatpush1.msra.mxu0 0.0
        %1163 = vmatprep.subr.mxu0 0.0
        %1164 = vmatpush1.msra.mxu0 0.0
        %1165 = vmatprep.subr.mxu0 0.0
        %1166 = vmatpush1.msra.mxu0 0.0
        %1167 = vmatprep.subr.mxu0 0.0
        %1168 = vmatpush1.msra.mxu0 0.0
        %1169 = vmatprep.subr.mxu0 0.0
        %1170 = vmatpush1.msra.mxu0 0.0
        %1171 = vmatprep.subr.mxu0 0.0
        %1172 = vmatpush1.msra.mxu0 0.0
        %1173 = vmatprep.mubr.f32.mxu0 0.0
        %1174 = vmatmul.mubr.f32.gmra.mrb[0].mxu0 %v1083
        %v1175 = vpop.f32.mrb[0].mxu0
        %v1176 = vadd.f32 0.0, %v1175
        %v1177 = vpop.f32.mrb[0].mxu0
        %1178 = vmatprep.mubr.f32.mxu0 0.0
        %1179 = vmatmul.mubr.f32.gmra.mrb[0].mxu0 %v1086
        %v1180 = vpop.f32.mrb[0].mxu0
        %v1181 = vadd.f32 0.0, %v1180
        %v1182 = vpop.f32.mrb[0].mxu0
        %1183 = vmatprep.mubr.f32.mxu0 0.0
        %1184 = vmatmul.mubr.f32.gmra.mrb[0].mxu0 %v1089
        %v1185 = vpop.f32.mrb[0].mxu0
        %v1186 = vadd.f32 0.0, %v1185
        %v1187 = vpop.f32.mrb[0].mxu0
        %1188 = vmatprep.mubr.f32.mxu0 0.0
        %1189 = vmatmul.mubr.f32.gmra.mrb[0].mxu0 %v1092
        %v1190 = vpop.f32.mrb[0].mxu0
        %v1191 = vadd.f32 0.0, %v1190
        %v1192 = vpop.f32.mrb[0].mxu0
        %1193 = vmatprep.mubr.f32.mxu0 0.0
        %1194 = vmatmul.mubr.f32.gmra.mrb[0].mxu0 %v1095
        %v1195 = vpop.f32.mrb[0].mxu0
        %v1196 = vadd.f32 0.0, %v1195
        %v1197 = vpop.f32.mrb[0].mxu0
        %1198 = vmatprep.mubr.f32.mxu0 0.0
        %1199 = vmatmul.mubr.f32.gmra.mrb[0].mxu0 %v1098
        %v1200 = vpop.f32.mrb[0].mxu0
        %v1201 = vadd.f32 0.0, %v1200
        %v1202 = vpop.f32.mrb[0].mxu0
        %1203 = vmatprep.mubr.f32.mxu0 0.0
        %1204 = vmatmul.mubr.f32.gmra.mrb[0].mxu0 %v1101
        %v1205 = vpop.f32.mrb[0].mxu0
        %v1206 = vadd.f32 0.0, %v1205
        %v1207 = vpop.f32.mrb[0].mxu0
        %1208 = vmatprep.mubr.f32.mxu0 0.0
        %1209 = vmatmul.mubr.f32.gmra.mrb[0].mxu0 %v1104
        %v1210 = vpop.f32.mrb[0].mxu0
        %v1211 = vadd.f32 0.0, %v1210
        %v1212 = vpop.f32.mrb[0].mxu0
        %1213 = vdwg.mxu0
        %v1214 = vadd.f32 %v1061, %v1176
        %v1215 = vadd.f32 %v1062, %v1181
        %v1216 = vadd.f32 %v1063, %v1186
        %v1217 = vadd.f32 %v1064, %v1191
        %v1218 = vadd.f32 %v1065, %v1196
        %v1219 = vadd.f32 %v1066, %v1201
        %v1220 = vadd.f32 %v1067, %v1206
        %v1221 = vadd.f32 %v1068, %v1211
        %v1222 = vld [vmem:[%s1071 + $0x1] sm:$0xff]
        %v1223 = vld [vmem:[%s1071 + $0x9] sm:$0xff]
        %v1224 = vld [vmem:[%s1071 + $0x11] sm:$0xff]
        %v1225 = vld [vmem:[%s1071 + $0x19] sm:$0xff]
        %v1226 = vld [vmem:[%s1071 + $0x21] sm:$0xff]
        %v1227 = vld [vmem:[%s1071 + $0x29] sm:$0xff]
        %v1228 = vld [vmem:[%s1071 + $0x31] sm:$0xff]
        %v1229 = vld [vmem:[%s1071 + $0x39] sm:$0x3f]
        %s1230 = scalar_lea.vmem %s1, 28
        %v1231 = vld [vmem:[%s1230] sm:$0x7]
        %v1233 = vsel %vm200, %v1222, 0
        %v1236 = vsel %vm200, %v1223, 0
        %v1239 = vsel %vm200, %v1224, 0
        %v1242 = vsel %vm200, %v1225, 0
        %v1245 = vsel %vm200, %v1226, 0
        %v1248 = vsel %vm200, %v1227, 0
        %v1251 = vsel %vm200, %v1228, 0
        %v1254 = vsel %vm200, %v1229, 0
        %v1257 = vsel %vm225, %v1231, 0
        %1259 = vmatprep.subr.mxu0 0.0
        %1260 = vmatpush1.msra.mxu0 %v1257
        %1261 = vmatprep.subr.mxu0 0.0
        %1262 = vmatpush1.msra.mxu0 0.0
        %1263 = vmatprep.subr.mxu0 0.0
        %1264 = vmatpush1.msra.mxu0 0.0
        %1265 = vmatprep.subr.mxu0 0.0
        %1266 = vmatpush1.msra.mxu0 0.0
        %1267 = vmatprep.subr.mxu0 0.0
        %1268 = vmatpush1.msra.mxu0 0.0
        %1269 = vmatprep.subr.mxu0 0.0
        %1270 = vmatpush1.msra.mxu0 0.0
        %1271 = vmatprep.subr.mxu0 0.0
        %1272 = vmatpush1.msra.mxu0 0.0
        %1273 = vmatprep.subr.mxu0 0.0
        %1274 = vmatpush1.msra.mxu0 0.0
        %1275 = vmatprep.subr.mxu0 0.0
        %1276 = vmatpush1.msra.mxu0 0.0
        %1277 = vmatprep.subr.mxu0 0.0
        %1278 = vmatpush1.msra.mxu0 0.0
        %1279 = vmatprep.subr.mxu0 0.0
        %1280 = vmatpush1.msra.mxu0 0.0
        %1281 = vmatprep.subr.mxu0 0.0
        %1282 = vmatpush1.msra.mxu0 0.0
        %1283 = vmatprep.subr.mxu0 0.0
        %1284 = vmatpush1.msra.mxu0 0.0
        %1285 = vmatprep.subr.mxu0 0.0
        %1286 = vmatpush1.msra.mxu0 0.0
        %1287 = vmatprep.subr.mxu0 0.0
        %1288 = vmatpush1.msra.mxu0 0.0
        %1289 = vmatprep.subr.mxu0 0.0
        %1290 = vmatpush1.msra.mxu0 0.0
        %1291 = vmatprep.subr.mxu0 0.0
        %1292 = vmatpush1.msra.mxu0 0.0
        %1293 = vmatprep.subr.mxu0 0.0
        %1294 = vmatpush1.msra.mxu0 0.0
        %1295 = vmatprep.subr.mxu0 0.0
        %1296 = vmatpush1.msra.mxu0 0.0
        %1297 = vmatprep.subr.mxu0 0.0
        %1298 = vmatpush1.msra.mxu0 0.0
        %1299 = vmatprep.subr.mxu0 0.0
        %1300 = vmatpush1.msra.mxu0 0.0
        %1301 = vmatprep.subr.mxu0 0.0
        %1302 = vmatpush1.msra.mxu0 0.0
        %1303 = vmatprep.subr.mxu0 0.0
        %1304 = vmatpush1.msra.mxu0 0.0
        %1305 = vmatprep.subr.mxu0 0.0
        %1306 = vmatpush1.msra.mxu0 0.0
        %1307 = vmatprep.subr.mxu0 0.0
        %1308 = vmatpush1.msra.mxu0 0.0
        %1309 = vmatprep.subr.mxu0 0.0
        %1310 = vmatpush1.msra.mxu0 0.0
        %1311 = vmatprep.subr.mxu0 0.0
        %1312 = vmatpush1.msra.mxu0 0.0
        %1313 = vmatprep.subr.mxu0 0.0
        %1314 = vmatpush1.msra.mxu0 0.0
        %1315 = vmatprep.subr.mxu0 0.0
        %1316 = vmatpush1.msra.mxu0 0.0
        %1317 = vmatprep.subr.mxu0 0.0
        %1318 = vmatpush1.msra.mxu0 0.0
        %1319 = vmatprep.subr.mxu0 0.0
        %1320 = vmatpush1.msra.mxu0 0.0
        %1321 = vmatprep.subr.mxu0 0.0
        %1322 = vmatpush1.msra.mxu0 0.0
        %1323 = vmatprep.mubr.f32.mxu0 0.0
        %1324 = vmatmul.mubr.f32.gmra.mrb[0].mxu0 %v1233
        %v1325 = vpop.f32.mrb[0].mxu0
        %v1326 = vadd.f32 0.0, %v1325
        %v1327 = vpop.f32.mrb[0].mxu0
        %1328 = vmatprep.mubr.f32.mxu0 0.0
        %1329 = vmatmul.mubr.f32.gmra.mrb[0].mxu0 %v1236
        %v1330 = vpop.f32.mrb[0].mxu0
        %v1331 = vadd.f32 0.0, %v1330
        %v1332 = vpop.f32.mrb[0].mxu0
        %1333 = vmatprep.mubr.f32.mxu0 0.0
        %1334 = vmatmul.mubr.f32.gmra.mrb[0].mxu0 %v1239
        %v1335 = vpop.f32.mrb[0].mxu0
        %v1336 = vadd.f32 0.0, %v1335
        %v1337 = vpop.f32.mrb[0].mxu0
        %1338 = vmatprep.mubr.f32.mxu0 0.0
        %1339 = vmatmul.mubr.f32.gmra.mrb[0].mxu0 %v1242
        %v1340 = vpop.f32.mrb[0].mxu0
        %v1341 = vadd.f32 0.0, %v1340
        %v1342 = vpop.f32.mrb[0].mxu0
        %1343 = vmatprep.mubr.f32.mxu0 0.0
        %1344 = vmatmul.mubr.f32.gmra.mrb[0].mxu0 %v1245
        %v1345 = vpop.f32.mrb[0].mxu0
        %v1346 = vadd.f32 0.0, %v1345
        %v1347 = vpop.f32.mrb[0].mxu0
        %1348 = vmatprep.mubr.f32.mxu0 0.0
        %1349 = vmatmul.mubr.f32.gmra.mrb[0].mxu0 %v1248
        %v1350 = vpop.f32.mrb[0].mxu0
        %v1351 = vadd.f32 0.0, %v1350
        %v1352 = vpop.f32.mrb[0].mxu0
        %1353 = vmatprep.mubr.f32.mxu0 0.0
        %1354 = vmatmul.mubr.f32.gmra.mrb[0].mxu0 %v1251
        %v1355 = vpop.f32.mrb[0].mxu0
        %v1356 = vadd.f32 0.0, %v1355
        %v1357 = vpop.f32.mrb[0].mxu0
        %1358 = vmatprep.mubr.f32.mxu0 0.0
        %1359 = vmatmul.mubr.f32.gmra.mrb[0].mxu0 %v1254
        %v1360 = vpop.f32.mrb[0].mxu0
        %v1361 = vadd.f32 0.0, %v1360
        %v1362 = vpop.f32.mrb[0].mxu0
        %1363 = vdwg.mxu0
        %v1364 = vadd.f32 %v1214, %v1326
        %v1365 = vadd.f32 %v1215, %v1331
        %v1366 = vadd.f32 %v1216, %v1336
        %v1367 = vadd.f32 %v1217, %v1341
        %v1368 = vadd.f32 %v1218, %v1346
        %v1369 = vadd.f32 %v1219, %v1351
        %v1370 = vadd.f32 %v1220, %v1356
        %v1371 = vadd.f32 %v1221, %v1361
        %v1372 = vld [vmem:[%s1071 + $0x2] sm:$0xff]
        %v1373 = vld [vmem:[%s1071 + $0xa] sm:$0xff]
        %v1374 = vld [vmem:[%s1071 + $0x12] sm:$0xff]
        %v1375 = vld [vmem:[%s1071 + $0x1a] sm:$0xff]
        %v1376 = vld [vmem:[%s1071 + $0x22] sm:$0xff]
        %v1377 = vld [vmem:[%s1071 + $0x2a] sm:$0xff]
        %v1378 = vld [vmem:[%s1071 + $0x32] sm:$0xff]
        %v1379 = vld [vmem:[%s1071 + $0x3a] sm:$0x3f]
        %s1380 = scalar_lea.vmem %s1, 32
        %v1381 = vld [vmem:[%s1380] sm:$0x7]
        %v1383 = vsel %vm200, %v1372, 0
        %v1386 = vsel %vm200, %v1373, 0
        %v1389 = vsel %vm200, %v1374, 0
        %v1392 = vsel %vm200, %v1375, 0
        %v1395 = vsel %vm200, %v1376, 0
        %v1398 = vsel %vm200, %v1377, 0
        %v1401 = vsel %vm200, %v1378, 0
        %v1404 = vsel %vm200, %v1379, 0
        %v1407 = vsel %vm225, %v1381, 0
        %1409 = vmatprep.subr.mxu0 0.0
        %1410 = vmatpush1.msra.mxu0 %v1407
        %1411 = vmatprep.subr.mxu0 0.0
        %1412 = vmatpush1.msra.mxu0 0.0
        %1413 = vmatprep.subr.mxu0 0.0
        %1414 = vmatpush1.msra.mxu0 0.0
        %1415 = vmatprep.subr.mxu0 0.0
        %1416 = vmatpush1.msra.mxu0 0.0
        %1417 = vmatprep.subr.mxu0 0.0
        %1418 = vmatpush1.msra.mxu0 0.0
        %1419 = vmatprep.subr.mxu0 0.0
        %1420 = vmatpush1.msra.mxu0 0.0
        %1421 = vmatprep.subr.mxu0 0.0
        %1422 = vmatpush1.msra.mxu0 0.0
        %1423 = vmatprep.subr.mxu0 0.0
        %1424 = vmatpush1.msra.mxu0 0.0
        %1425 = vmatprep.subr.mxu0 0.0
        %1426 = vmatpush1.msra.mxu0 0.0
        %1427 = vmatprep.subr.mxu0 0.0
        %1428 = vmatpush1.msra.mxu0 0.0
        %1429 = vmatprep.subr.mxu0 0.0
        %1430 = vmatpush1.msra.mxu0 0.0
        %1431 = vmatprep.subr.mxu0 0.0
        %1432 = vmatpush1.msra.mxu0 0.0
        %1433 = vmatprep.subr.mxu0 0.0
        %1434 = vmatpush1.msra.mxu0 0.0
        %1435 = vmatprep.subr.mxu0 0.0
        %1436 = vmatpush1.msra.mxu0 0.0
        %1437 = vmatprep.subr.mxu0 0.0
        %1438 = vmatpush1.msra.mxu0 0.0
        %1439 = vmatprep.subr.mxu0 0.0
        %1440 = vmatpush1.msra.mxu0 0.0
        %1441 = vmatprep.subr.mxu0 0.0
        %1442 = vmatpush1.msra.mxu0 0.0
        %1443 = vmatprep.subr.mxu0 0.0
        %1444 = vmatpush1.msra.mxu0 0.0
        %1445 = vmatprep.subr.mxu0 0.0
        %1446 = vmatpush1.msra.mxu0 0.0
        %1447 = vmatprep.subr.mxu0 0.0
        %1448 = vmatpush1.msra.mxu0 0.0
        %1449 = vmatprep.subr.mxu0 0.0
        %1450 = vmatpush1.msra.mxu0 0.0
        %1451 = vmatprep.subr.mxu0 0.0
        %1452 = vmatpush1.msra.mxu0 0.0
        %1453 = vmatprep.subr.mxu0 0.0
        %1454 = vmatpush1.msra.mxu0 0.0
        %1455 = vmatprep.subr.mxu0 0.0
        %1456 = vmatpush1.msra.mxu0 0.0
        %1457 = vmatprep.subr.mxu0 0.0
        %1458 = vmatpush1.msra.mxu0 0.0
        %1459 = vmatprep.subr.mxu0 0.0
        %1460 = vmatpush1.msra.mxu0 0.0
        %1461 = vmatprep.subr.mxu0 0.0
        %1462 = vmatpush1.msra.mxu0 0.0
        %1463 = vmatprep.subr.mxu0 0.0
        %1464 = vmatpush1.msra.mxu0 0.0
        %1465 = vmatprep.subr.mxu0 0.0
        %1466 = vmatpush1.msra.mxu0 0.0
        %1467 = vmatprep.subr.mxu0 0.0
        %1468 = vmatpush1.msra.mxu0 0.0
        %1469 = vmatprep.subr.mxu0 0.0
        %1470 = vmatpush1.msra.mxu0 0.0
        %1471 = vmatprep.subr.mxu0 0.0
        %1472 = vmatpush1.msra.mxu0 0.0
        %1473 = vmatprep.mubr.f32.mxu0 0.0
        %1474 = vmatmul.mubr.f32.gmra.mrb[0].mxu0 %v1383
        %v1475 = vpop.f32.mrb[0].mxu0
        %v1476 = vadd.f32 0.0, %v1475
        %v1477 = vpop.f32.mrb[0].mxu0
        %1478 = vmatprep.mubr.f32.mxu0 0.0
        %1479 = vmatmul.mubr.f32.gmra.mrb[0].mxu0 %v1386
        %v1480 = vpop.f32.mrb[0].mxu0
        %v1481 = vadd.f32 0.0, %v1480
        %v1482 = vpop.f32.mrb[0].mxu0
        %1483 = vmatprep.mubr.f32.mxu0 0.0
        %1484 = vmatmul.mubr.f32.gmra.mrb[0].mxu0 %v1389
        %v1485 = vpop.f32.mrb[0].mxu0
        %v1486 = vadd.f32 0.0, %v1485
        %v1487 = vpop.f32.mrb[0].mxu0
        %1488 = vmatprep.mubr.f32.mxu0 0.0
        %1489 = vmatmul.mubr.f32.gmra.mrb[0].mxu0 %v1392
        %v1490 = vpop.f32.mrb[0].mxu0
        %v1491 = vadd.f32 0.0, %v1490
        %v1492 = vpop.f32.mrb[0].mxu0
        %1493 = vmatprep.mubr.f32.mxu0 0.0
        %1494 = vmatmul.mubr.f32.gmra.mrb[0].mxu0 %v1395
        %v1495 = vpop.f32.mrb[0].mxu0
        %v1496 = vadd.f32 0.0, %v1495
        %v1497 = vpop.f32.mrb[0].mxu0
        %1498 = vmatprep.mubr.f32.mxu0 0.0
        %1499 = vmatmul.mubr.f32.gmra.mrb[0].mxu0 %v1398
        %v1500 = vpop.f32.mrb[0].mxu0
        %v1501 = vadd.f32 0.0, %v1500
        %v1502 = vpop.f32.mrb[0].mxu0
        %1503 = vmatprep.mubr.f32.mxu0 0.0
        %1504 = vmatmul.mubr.f32.gmra.mrb[0].mxu0 %v1401
        %v1505 = vpop.f32.mrb[0].mxu0
        %v1506 = vadd.f32 0.0, %v1505
        %v1507 = vpop.f32.mrb[0].mxu0
        %1508 = vmatprep.mubr.f32.mxu0 0.0
        %1509 = vmatmul.mubr.f32.gmra.mrb[0].mxu0 %v1404
        %v1510 = vpop.f32.mrb[0].mxu0
        %v1511 = vadd.f32 0.0, %v1510
        %v1512 = vpop.f32.mrb[0].mxu0
        %1513 = vdwg.mxu0
        %v1514 = vadd.f32 %v1364, %v1476
        %v1515 = vadd.f32 %v1365, %v1481
        %v1516 = vadd.f32 %v1366, %v1486
        %v1517 = vadd.f32 %v1367, %v1491
        %v1518 = vadd.f32 %v1368, %v1496
        %v1519 = vadd.f32 %v1369, %v1501
        %v1520 = vadd.f32 %v1370, %v1506
        %v1521 = vadd.f32 %v1371, %v1511
        %v1523 = vlaneseq
        %v1524 = vshrl.u32 %v1523, 7
        %v1525 = vsub.s32 0, %v1524
        %v1526 = vrot.slane %v171, %v1525
        %v1528 = vadd.f32 %v1514, %v1526
        %v1529 = vadd.f32 %v1515, %v1526
        %v1530 = vadd.f32 %v1516, %v1526
        %v1531 = vadd.f32 %v1517, %v1526
        %v1532 = vadd.f32 %v1518, %v1526
        %v1533 = vadd.f32 %v1519, %v1526
        %v1534 = vadd.f32 %v1520, %v1526
        %v1535 = vadd.f32 %v1521, %v1526
        %v1536 = vmax.f32 %v1528, 0.0
        %v1537 = vmax.f32 %v1529, 0.0
        %v1538 = vmax.f32 %v1530, 0.0
        %v1539 = vmax.f32 %v1531, 0.0
        %v1540 = vmax.f32 %v1532, 0.0
        %v1541 = vmax.f32 %v1533, 0.0
        %v1542 = vmax.f32 %v1534, 0.0
        %v1543 = vmax.f32 %v1535, 0.0
        %1544 = vmatprep.subr.mxu0 0.0
        %1545 = vmatpush1.msra.mxu0 %v227
        %1546 = vmatprep.subr.mxu0 0.0
        %1547 = vmatpush1.msra.mxu0 0.0
        %1548 = vmatprep.subr.mxu0 0.0
        %1549 = vmatpush1.msra.mxu0 0.0
        %1550 = vmatprep.subr.mxu0 0.0
        %1551 = vmatpush1.msra.mxu0 0.0
        %1552 = vmatprep.subr.mxu0 0.0
        %1553 = vmatpush1.msra.mxu0 0.0
        %1554 = vmatprep.subr.mxu0 0.0
        %1555 = vmatpush1.msra.mxu0 0.0
        %1556 = vmatprep.subr.mxu0 0.0
        %1557 = vmatpush1.msra.mxu0 0.0
        %1558 = vmatprep.subr.mxu0 0.0
        %1559 = vmatpush1.msra.mxu0 0.0
        %1560 = vmatprep.subr.mxu0 0.0
        %1561 = vmatpush1.msra.mxu0 0.0
        %1562 = vmatprep.subr.mxu0 0.0
        %1563 = vmatpush1.msra.mxu0 0.0
        %1564 = vmatprep.subr.mxu0 0.0
        %1565 = vmatpush1.msra.mxu0 0.0
        %1566 = vmatprep.subr.mxu0 0.0
        %1567 = vmatpush1.msra.mxu0 0.0
        %1568 = vmatprep.subr.mxu0 0.0
        %1569 = vmatpush1.msra.mxu0 0.0
        %1570 = vmatprep.subr.mxu0 0.0
        %1571 = vmatpush1.msra.mxu0 0.0
        %1572 = vmatprep.subr.mxu0 0.0
        %1573 = vmatpush1.msra.mxu0 0.0
        %1574 = vmatprep.subr.mxu0 0.0
        %1575 = vmatpush1.msra.mxu0 0.0
        %1576 = vmatprep.subr.mxu0 0.0
        %1577 = vmatpush1.msra.mxu0 0.0
        %1578 = vmatprep.subr.mxu0 0.0
        %1579 = vmatpush1.msra.mxu0 0.0
        %1580 = vmatprep.subr.mxu0 0.0
        %1581 = vmatpush1.msra.mxu0 0.0
        %1582 = vmatprep.subr.mxu0 0.0
        %1583 = vmatpush1.msra.mxu0 0.0
        %1584 = vmatprep.subr.mxu0 0.0
        %1585 = vmatpush1.msra.mxu0 0.0
        %1586 = vmatprep.subr.mxu0 0.0
        %1587 = vmatpush1.msra.mxu0 0.0
        %1588 = vmatprep.subr.mxu0 0.0
        %1589 = vmatpush1.msra.mxu0 0.0
        %1590 = vmatprep.subr.mxu0 0.0
        %1591 = vmatpush1.msra.mxu0 0.0
        %1592 = vmatprep.subr.mxu0 0.0
        %1593 = vmatpush1.msra.mxu0 0.0
        %1594 = vmatprep.subr.mxu0 0.0
        %1595 = vmatpush1.msra.mxu0 0.0
        %1596 = vmatprep.subr.mxu0 0.0
        %1597 = vmatpush1.msra.mxu0 0.0
        %1598 = vmatprep.subr.mxu0 0.0
        %1599 = vmatpush1.msra.mxu0 0.0
        %1600 = vmatprep.subr.mxu0 0.0
        %1601 = vmatpush1.msra.mxu0 0.0
        %1602 = vmatprep.subr.mxu0 0.0
        %1603 = vmatpush1.msra.mxu0 0.0
        %1604 = vmatprep.subr.mxu0 0.0
        %1605 = vmatpush1.msra.mxu0 0.0
        %1606 = vmatprep.subr.mxu0 0.0
        %1607 = vmatpush1.msra.mxu0 0.0
        %1608 = vmatprep.mubr.f32.mxu0 0.0
        %1609 = vmatmul.mubr.f32.gmra.mrb[0].mxu0 %v780
        %v1610 = vpop.f32.mrb[0].mxu0
        %v1611 = vadd.f32 0.0, %v1610
        %v1612 = vpop.f32.mrb[0].mxu0
        %1613 = vmatprep.mubr.f32.mxu0 0.0
        %1614 = vmatmul.mubr.f32.gmra.mrb[0].mxu0 %v783
        %v1615 = vpop.f32.mrb[0].mxu0
        %v1616 = vadd.f32 0.0, %v1615
        %v1617 = vpop.f32.mrb[0].mxu0
        %1618 = vmatprep.mubr.f32.mxu0 0.0
        %1619 = vmatmul.mubr.f32.gmra.mrb[0].mxu0 %v786
        %v1620 = vpop.f32.mrb[0].mxu0
        %v1621 = vadd.f32 0.0, %v1620
        %v1622 = vpop.f32.mrb[0].mxu0
        %1623 = vmatprep.mubr.f32.mxu0 0.0
        %1624 = vmatmul.mubr.f32.gmra.mrb[0].mxu0 %v789
        %v1625 = vpop.f32.mrb[0].mxu0
        %v1626 = vadd.f32 0.0, %v1625
        %v1627 = vpop.f32.mrb[0].mxu0
        %1628 = vmatprep.mubr.f32.mxu0 0.0
        %1629 = vmatmul.mubr.f32.gmra.mrb[0].mxu0 %v792
        %v1630 = vpop.f32.mrb[0].mxu0
        %v1631 = vadd.f32 0.0, %v1630
        %v1632 = vpop.f32.mrb[0].mxu0
        %1633 = vmatprep.mubr.f32.mxu0 0.0
        %1634 = vmatmul.mubr.f32.gmra.mrb[0].mxu0 %v795
        %v1635 = vpop.f32.mrb[0].mxu0
        %v1636 = vadd.f32 0.0, %v1635
        %v1637 = vpop.f32.mrb[0].mxu0
        %1638 = vmatprep.mubr.f32.mxu0 0.0
        %1639 = vmatmul.mubr.f32.gmra.mrb[0].mxu0 %v798
        %v1640 = vpop.f32.mrb[0].mxu0
        %v1641 = vadd.f32 0.0, %v1640
        %v1642 = vpop.f32.mrb[0].mxu0
        %1643 = vmatprep.mubr.f32.mxu0 0.0
        %1644 = vmatmul.mubr.f32.gmra.mrb[0].mxu0 %v801
        %v1645 = vpop.f32.mrb[0].mxu0
        %v1646 = vadd.f32 0.0, %v1645
        %v1647 = vpop.f32.mrb[0].mxu0
        %1648 = vdwg.mxu0
        %1649 = vmatprep.subr.mxu0 0.0
        %1650 = vmatpush1.msra.mxu0 %v359
        %1651 = vmatprep.subr.mxu0 0.0
        %1652 = vmatpush1.msra.mxu0 0.0
        %1653 = vmatprep.subr.mxu0 0.0
        %1654 = vmatpush1.msra.mxu0 0.0
        %1655 = vmatprep.subr.mxu0 0.0
        %1656 = vmatpush1.msra.mxu0 0.0
        %1657 = vmatprep.subr.mxu0 0.0
        %1658 = vmatpush1.msra.mxu0 0.0
        %1659 = vmatprep.subr.mxu0 0.0
        %1660 = vmatpush1.msra.mxu0 0.0
        %1661 = vmatprep.subr.mxu0 0.0
        %1662 = vmatpush1.msra.mxu0 0.0
        %1663 = vmatprep.subr.mxu0 0.0
        %1664 = vmatpush1.msra.mxu0 0.0
        %1665 = vmatprep.subr.mxu0 0.0
        %1666 = vmatpush1.msra.mxu0 0.0
        %1667 = vmatprep.subr.mxu0 0.0
        %1668 = vmatpush1.msra.mxu0 0.0
        %1669 = vmatprep.subr.mxu0 0.0
        %1670 = vmatpush1.msra.mxu0 0.0
        %1671 = vmatprep.subr.mxu0 0.0
        %1672 = vmatpush1.msra.mxu0 0.0
        %1673 = vmatprep.subr.mxu0 0.0
        %1674 = vmatpush1.msra.mxu0 0.0
        %1675 = vmatprep.subr.mxu0 0.0
        %1676 = vmatpush1.msra.mxu0 0.0
        %1677 = vmatprep.subr.mxu0 0.0
        %1678 = vmatpush1.msra.mxu0 0.0
        %1679 = vmatprep.subr.mxu0 0.0
        %1680 = vmatpush1.msra.mxu0 0.0
        %1681 = vmatprep.subr.mxu0 0.0
        %1682 = vmatpush1.msra.mxu0 0.0
        %1683 = vmatprep.subr.mxu0 0.0
        %1684 = vmatpush1.msra.mxu0 0.0
        %1685 = vmatprep.subr.mxu0 0.0
        %1686 = vmatpush1.msra.mxu0 0.0
        %1687 = vmatprep.subr.mxu0 0.0
        %1688 = vmatpush1.msra.mxu0 0.0
        %1689 = vmatprep.subr.mxu0 0.0
        %1690 = vmatpush1.msra.mxu0 0.0
        %1691 = vmatprep.subr.mxu0 0.0
        %1692 = vmatpush1.msra.mxu0 0.0
        %1693 = vmatprep.subr.mxu0 0.0
        %1694 = vmatpush1.msra.mxu0 0.0
        %1695 = vmatprep.subr.mxu0 0.0
        %1696 = vmatpush1.msra.mxu0 0.0
        %1697 = vmatprep.subr.mxu0 0.0
        %1698 = vmatpush1.msra.mxu0 0.0
        %1699 = vmatprep.subr.mxu0 0.0
        %1700 = vmatpush1.msra.mxu0 0.0
        %1701 = vmatprep.subr.mxu0 0.0
        %1702 = vmatpush1.msra.mxu0 0.0
        %1703 = vmatprep.subr.mxu0 0.0
        %1704 = vmatpush1.msra.mxu0 0.0
        %1705 = vmatprep.subr.mxu0 0.0
        %1706 = vmatpush1.msra.mxu0 0.0
        %1707 = vmatprep.subr.mxu0 0.0
        %1708 = vmatpush1.msra.mxu0 0.0
        %1709 = vmatprep.subr.mxu0 0.0
        %1710 = vmatpush1.msra.mxu0 0.0
        %1711 = vmatprep.subr.mxu0 0.0
        %1712 = vmatpush1.msra.mxu0 0.0
        %1713 = vmatprep.mubr.f32.mxu0 0.0
        %1714 = vmatmul.mubr.f32.gmra.mrb[0].mxu0 %v630
        %v1715 = vpop.f32.mrb[0].mxu0
        %v1716 = vadd.f32 %v1611, %v1715
        %v1717 = vpop.f32.mrb[0].mxu0
        %1718 = vmatprep.mubr.f32.mxu0 0.0
        %1719 = vmatmul.mubr.f32.gmra.mrb[0].mxu0 %v633
        %v1720 = vpop.f32.mrb[0].mxu0
        %v1721 = vadd.f32 %v1616, %v1720
        %v1722 = vpop.f32.mrb[0].mxu0
        %1723 = vmatprep.mubr.f32.mxu0 0.0
        %1724 = vmatmul.mubr.f32.gmra.mrb[0].mxu0 %v636
        %v1725 = vpop.f32.mrb[0].mxu0
        %v1726 = vadd.f32 %v1621, %v1725
        %v1727 = vpop.f32.mrb[0].mxu0
        %1728 = vmatprep.mubr.f32.mxu0 0.0
        %1729 = vmatmul.mubr.f32.gmra.mrb[0].mxu0 %v639
        %v1730 = vpop.f32.mrb[0].mxu0
        %v1731 = vadd.f32 %v1626, %v1730
        %v1732 = vpop.f32.mrb[0].mxu0
        %1733 = vmatprep.mubr.f32.mxu0 0.0
        %1734 = vmatmul.mubr.f32.gmra.mrb[0].mxu0 %v642
        %v1735 = vpop.f32.mrb[0].mxu0
        %v1736 = vadd.f32 %v1631, %v1735
        %v1737 = vpop.f32.mrb[0].mxu0
        %1738 = vmatprep.mubr.f32.mxu0 0.0
        %1739 = vmatmul.mubr.f32.gmra.mrb[0].mxu0 %v645
        %v1740 = vpop.f32.mrb[0].mxu0
        %v1741 = vadd.f32 %v1636, %v1740
        %v1742 = vpop.f32.mrb[0].mxu0
        %1743 = vmatprep.mubr.f32.mxu0 0.0
        %1744 = vmatmul.mubr.f32.gmra.mrb[0].mxu0 %v648
        %v1745 = vpop.f32.mrb[0].mxu0
        %v1746 = vadd.f32 %v1641, %v1745
        %v1747 = vpop.f32.mrb[0].mxu0
        %1748 = vmatprep.mubr.f32.mxu0 0.0
        %1749 = vmatmul.mubr.f32.gmra.mrb[0].mxu0 %v651
        %v1750 = vpop.f32.mrb[0].mxu0
        %v1751 = vadd.f32 %v1646, %v1750
        %v1752 = vpop.f32.mrb[0].mxu0
        %1753 = vdwg.mxu0
        %1754 = vmatprep.subr.mxu0 0.0
        %1755 = vmatpush1.msra.mxu0 %v501
        %1756 = vmatprep.subr.mxu0 0.0
        %1757 = vmatpush1.msra.mxu0 0.0
        %1758 = vmatprep.subr.mxu0 0.0
        %1759 = vmatpush1.msra.mxu0 0.0
        %1760 = vmatprep.subr.mxu0 0.0
        %1761 = vmatpush1.msra.mxu0 0.0
        %1762 = vmatprep.subr.mxu0 0.0
        %1763 = vmatpush1.msra.mxu0 0.0
        %1764 = vmatprep.subr.mxu0 0.0
        %1765 = vmatpush1.msra.mxu0 0.0
        %1766 = vmatprep.subr.mxu0 0.0
        %1767 = vmatpush1.msra.mxu0 0.0
        %1768 = vmatprep.subr.mxu0 0.0
        %1769 = vmatpush1.msra.mxu0 0.0
        %1770 = vmatprep.subr.mxu0 0.0
        %1771 = vmatpush1.msra.mxu0 0.0
        %1772 = vmatprep.subr.mxu0 0.0
        %1773 = vmatpush1.msra.mxu0 0.0
        %1774 = vmatprep.subr.mxu0 0.0
        %1775 = vmatpush1.msra.mxu0 0.0
        %1776 = vmatprep.subr.mxu0 0.0
        %1777 = vmatpush1.msra.mxu0 0.0
        %1778 = vmatprep.subr.mxu0 0.0
        %1779 = vmatpush1.msra.mxu0 0.0
        %1780 = vmatprep.subr.mxu0 0.0
        %1781 = vmatpush1.msra.mxu0 0.0
        %1782 = vmatprep.subr.mxu0 0.0
        %1783 = vmatpush1.msra.mxu0 0.0
        %1784 = vmatprep.subr.mxu0 0.0
        %1785 = vmatpush1.msra.mxu0 0.0
        %1786 = vmatprep.subr.mxu0 0.0
        %1787 = vmatpush1.msra.mxu0 0.0
        %1788 = vmatprep.subr.mxu0 0.0
        %1789 = vmatpush1.msra.mxu0 0.0
        %1790 = vmatprep.subr.mxu0 0.0
        %1791 = vmatpush1.msra.mxu0 0.0
        %1792 = vmatprep.subr.mxu0 0.0
        %1793 = vmatpush1.msra.mxu0 0.0
        %1794 = vmatprep.subr.mxu0 0.0
        %1795 = vmatpush1.msra.mxu0 0.0
        %1796 = vmatprep.subr.mxu0 0.0
        %1797 = vmatpush1.msra.mxu0 0.0
        %1798 = vmatprep.subr.mxu0 0.0
        %1799 = vmatpush1.msra.mxu0 0.0
        %1800 = vmatprep.subr.mxu0 0.0
        %1801 = vmatpush1.msra.mxu0 0.0
        %1802 = vmatprep.subr.mxu0 0.0
        %1803 = vmatpush1.msra.mxu0 0.0
        %1804 = vmatprep.subr.mxu0 0.0
        %1805 = vmatpush1.msra.mxu0 0.0
        %1806 = vmatprep.subr.mxu0 0.0
        %1807 = vmatpush1.msra.mxu0 0.0
        %1808 = vmatprep.subr.mxu0 0.0
        %1809 = vmatpush1.msra.mxu0 0.0
        %1810 = vmatprep.subr.mxu0 0.0
        %1811 = vmatpush1.msra.mxu0 0.0
        %1812 = vmatprep.subr.mxu0 0.0
        %1813 = vmatpush1.msra.mxu0 0.0
        %1814 = vmatprep.subr.mxu0 0.0
        %1815 = vmatpush1.msra.mxu0 0.0
        %1816 = vmatprep.subr.mxu0 0.0
        %1817 = vmatpush1.msra.mxu0 0.0
        %1818 = vmatprep.mubr.f32.mxu0 0.0
        %1819 = vmatmul.mubr.f32.gmra.mrb[0].mxu0 %v930
        %v1820 = vpop.f32.mrb[0].mxu0
        %v1821 = vadd.f32 0.0, %v1820
        %v1822 = vpop.f32.mrb[0].mxu0
        %1823 = vmatprep.mubr.f32.mxu0 0.0
        %1824 = vmatmul.mubr.f32.gmra.mrb[0].mxu0 %v933
        %v1825 = vpop.f32.mrb[0].mxu0
        %v1826 = vadd.f32 0.0, %v1825
        %v1827 = vpop.f32.mrb[0].mxu0
        %1828 = vmatprep.mubr.f32.mxu0 0.0
        %1829 = vmatmul.mubr.f32.gmra.mrb[0].mxu0 %v936
        %v1830 = vpop.f32.mrb[0].mxu0
        %v1831 = vadd.f32 0.0, %v1830
        %v1832 = vpop.f32.mrb[0].mxu0
        %1833 = vmatprep.mubr.f32.mxu0 0.0
        %1834 = vmatmul.mubr.f32.gmra.mrb[0].mxu0 %v939
        %v1835 = vpop.f32.mrb[0].mxu0
        %v1836 = vadd.f32 0.0, %v1835
        %v1837 = vpop.f32.mrb[0].mxu0
        %1838 = vmatprep.mubr.f32.mxu0 0.0
        %1839 = vmatmul.mubr.f32.gmra.mrb[0].mxu0 %v942
        %v1840 = vpop.f32.mrb[0].mxu0
        %v1841 = vadd.f32 0.0, %v1840
        %v1842 = vpop.f32.mrb[0].mxu0
        %1843 = vmatprep.mubr.f32.mxu0 0.0
        %1844 = vmatmul.mubr.f32.gmra.mrb[0].mxu0 %v945
        %v1845 = vpop.f32.mrb[0].mxu0
        %v1846 = vadd.f32 0.0, %v1845
        %v1847 = vpop.f32.mrb[0].mxu0
        %1848 = vmatprep.mubr.f32.mxu0 0.0
        %1849 = vmatmul.mubr.f32.gmra.mrb[0].mxu0 %v948
        %v1850 = vpop.f32.mrb[0].mxu0
        %v1851 = vadd.f32 0.0, %v1850
        %v1852 = vpop.f32.mrb[0].mxu0
        %1853 = vmatprep.mubr.f32.mxu0 0.0
        %1854 = vmatmul.mubr.f32.gmra.mrb[0].mxu0 %v951
        %v1855 = vpop.f32.mrb[0].mxu0
        %v1856 = vadd.f32 0.0, %v1855
        %v1857 = vpop.f32.mrb[0].mxu0
        %1858 = vdwg.mxu0
        %v1859 = vadd.f32 %v1716, %v1821
        %v1860 = vadd.f32 %v1721, %v1826
        %v1861 = vadd.f32 %v1726, %v1831
        %v1862 = vadd.f32 %v1731, %v1836
        %v1863 = vadd.f32 %v1736, %v1841
        %v1864 = vadd.f32 %v1741, %v1846
        %v1865 = vadd.f32 %v1746, %v1851
        %v1866 = vadd.f32 %v1751, %v1856
        %1867 = vmatprep.subr.mxu0 0.0
        %1868 = vmatpush1.msra.mxu0 %v654
        %1869 = vmatprep.subr.mxu0 0.0
        %1870 = vmatpush1.msra.mxu0 0.0
        %1871 = vmatprep.subr.mxu0 0.0
        %1872 = vmatpush1.msra.mxu0 0.0
        %1873 = vmatprep.subr.mxu0 0.0
        %1874 = vmatpush1.msra.mxu0 0.0
        %1875 = vmatprep.subr.mxu0 0.0
        %1876 = vmatpush1.msra.mxu0 0.0
        %1877 = vmatprep.subr.mxu0 0.0
        %1878 = vmatpush1.msra.mxu0 0.0
        %1879 = vmatprep.subr.mxu0 0.0
        %1880 = vmatpush1.msra.mxu0 0.0
        %1881 = vmatprep.subr.mxu0 0.0
        %1882 = vmatpush1.msra.mxu0 0.0
        %1883 = vmatprep.subr.mxu0 0.0
        %1884 = vmatpush1.msra.mxu0 0.0
        %1885 = vmatprep.subr.mxu0 0.0
        %1886 = vmatpush1.msra.mxu0 0.0
        %1887 = vmatprep.subr.mxu0 0.0
        %1888 = vmatpush1.msra.mxu0 0.0
        %1889 = vmatprep.subr.mxu0 0.0
        %1890 = vmatpush1.msra.mxu0 0.0
        %1891 = vmatprep.subr.mxu0 0.0
        %1892 = vmatpush1.msra.mxu0 0.0
        %1893 = vmatprep.subr.mxu0 0.0
        %1894 = vmatpush1.msra.mxu0 0.0
        %1895 = vmatprep.subr.mxu0 0.0
        %1896 = vmatpush1.msra.mxu0 0.0
        %1897 = vmatprep.subr.mxu0 0.0
        %1898 = vmatpush1.msra.mxu0 0.0
        %1899 = vmatprep.subr.mxu0 0.0
        %1900 = vmatpush1.msra.mxu0 0.0
        %1901 = vmatprep.subr.mxu0 0.0
        %1902 = vmatpush1.msra.mxu0 0.0
        %1903 = vmatprep.subr.mxu0 0.0
        %1904 = vmatpush1.msra.mxu0 0.0
        %1905 = vmatprep.subr.mxu0 0.0
        %1906 = vmatpush1.msra.mxu0 0.0
        %1907 = vmatprep.subr.mxu0 0.0
        %1908 = vmatpush1.msra.mxu0 0.0
        %1909 = vmatprep.subr.mxu0 0.0
        %1910 = vmatpush1.msra.mxu0 0.0
        %1911 = vmatprep.subr.mxu0 0.0
        %1912 = vmatpush1.msra.mxu0 0.0
        %1913 = vmatprep.subr.mxu0 0.0
        %1914 = vmatpush1.msra.mxu0 0.0
        %1915 = vmatprep.subr.mxu0 0.0
        %1916 = vmatpush1.msra.mxu0 0.0
        %1917 = vmatprep.subr.mxu0 0.0
        %1918 = vmatpush1.msra.mxu0 0.0
        %1919 = vmatprep.subr.mxu0 0.0
        %1920 = vmatpush1.msra.mxu0 0.0
        %1921 = vmatprep.subr.mxu0 0.0
        %1922 = vmatpush1.msra.mxu0 0.0
        %1923 = vmatprep.subr.mxu0 0.0
        %1924 = vmatpush1.msra.mxu0 0.0
        %1925 = vmatprep.subr.mxu0 0.0
        %1926 = vmatpush1.msra.mxu0 0.0
        %1927 = vmatprep.subr.mxu0 0.0
        %1928 = vmatpush1.msra.mxu0 0.0
        %1929 = vmatprep.subr.mxu0 0.0
        %1930 = vmatpush1.msra.mxu0 0.0
        %1931 = vmatprep.mubr.f32.mxu0 0.0
        %1932 = vmatmul.mubr.f32.gmra.mrb[0].mxu0 %v1083
        %v1933 = vpop.f32.mrb[0].mxu0
        %v1934 = vadd.f32 0.0, %v1933
        %v1935 = vpop.f32.mrb[0].mxu0
        %1936 = vmatprep.mubr.f32.mxu0 0.0
        %1937 = vmatmul.mubr.f32.gmra.mrb[0].mxu0 %v1086
        %v1938 = vpop.f32.mrb[0].mxu0
        %v1939 = vadd.f32 0.0, %v1938
        %v1940 = vpop.f32.mrb[0].mxu0
        %1941 = vmatprep.mubr.f32.mxu0 0.0
        %1942 = vmatmul.mubr.f32.gmra.mrb[0].mxu0 %v1089
        %v1943 = vpop.f32.mrb[0].mxu0
        %v1944 = vadd.f32 0.0, %v1943
        %v1945 = vpop.f32.mrb[0].mxu0
        %1946 = vmatprep.mubr.f32.mxu0 0.0
        %1947 = vmatmul.mubr.f32.gmra.mrb[0].mxu0 %v1092
        %v1948 = vpop.f32.mrb[0].mxu0
        %v1949 = vadd.f32 0.0, %v1948
        %v1950 = vpop.f32.mrb[0].mxu0
        %1951 = vmatprep.mubr.f32.mxu0 0.0
        %1952 = vmatmul.mubr.f32.gmra.mrb[0].mxu0 %v1095
        %v1953 = vpop.f32.mrb[0].mxu0
        %v1954 = vadd.f32 0.0, %v1953
        %v1955 = vpop.f32.mrb[0].mxu0
        %1956 = vmatprep.mubr.f32.mxu0 0.0
        %1957 = vmatmul.mubr.f32.gmra.mrb[0].mxu0 %v1098
        %v1958 = vpop.f32.mrb[0].mxu0
        %v1959 = vadd.f32 0.0, %v1958
        %v1960 = vpop.f32.mrb[0].mxu0
        %1961 = vmatprep.mubr.f32.mxu0 0.0
        %1962 = vmatmul.mubr.f32.gmra.mrb[0].mxu0 %v1101
        %v1963 = vpop.f32.mrb[0].mxu0
        %v1964 = vadd.f32 0.0, %v1963
        %v1965 = vpop.f32.mrb[0].mxu0
        %1966 = vmatprep.mubr.f32.mxu0 0.0
        %1967 = vmatmul.mubr.f32.gmra.mrb[0].mxu0 %v1104
        %v1968 = vpop.f32.mrb[0].mxu0
        %v1969 = vadd.f32 0.0, %v1968
        %v1970 = vpop.f32.mrb[0].mxu0
        %1971 = vdwg.mxu0
        %v1972 = vadd.f32 %v1859, %v1934
        %v1973 = vadd.f32 %v1860, %v1939
        %v1974 = vadd.f32 %v1861, %v1944
        %v1975 = vadd.f32 %v1862, %v1949
        %v1976 = vadd.f32 %v1863, %v1954
        %v1977 = vadd.f32 %v1864, %v1959
        %v1978 = vadd.f32 %v1865, %v1964
        %v1979 = vadd.f32 %v1866, %v1969
        %1980 = vmatprep.subr.mxu0 0.0
        %1981 = vmatpush1.msra.mxu0 %v804
        %1982 = vmatprep.subr.mxu0 0.0
        %1983 = vmatpush1.msra.mxu0 0.0
        %1984 = vmatprep.subr.mxu0 0.0
        %1985 = vmatpush1.msra.mxu0 0.0
        %1986 = vmatprep.subr.mxu0 0.0
        %1987 = vmatpush1.msra.mxu0 0.0
        %1988 = vmatprep.subr.mxu0 0.0
        %1989 = vmatpush1.msra.mxu0 0.0
        %1990 = vmatprep.subr.mxu0 0.0
        %1991 = vmatpush1.msra.mxu0 0.0
        %1992 = vmatprep.subr.mxu0 0.0
        %1993 = vmatpush1.msra.mxu0 0.0
        %1994 = vmatprep.subr.mxu0 0.0
        %1995 = vmatpush1.msra.mxu0 0.0
        %1996 = vmatprep.subr.mxu0 0.0
        %1997 = vmatpush1.msra.mxu0 0.0
        %1998 = vmatprep.subr.mxu0 0.0
        %1999 = vmatpush1.msra.mxu0 0.0
        %2000 = vmatprep.subr.mxu0 0.0
        %2001 = vmatpush1.msra.mxu0 0.0
        %2002 = vmatprep.subr.mxu0 0.0
        %2003 = vmatpush1.msra.mxu0 0.0
        %2004 = vmatprep.subr.mxu0 0.0
        %2005 = vmatpush1.msra.mxu0 0.0
        %2006 = vmatprep.subr.mxu0 0.0
        %2007 = vmatpush1.msra.mxu0 0.0
        %2008 = vmatprep.subr.mxu0 0.0
        %2009 = vmatpush1.msra.mxu0 0.0
        %2010 = vmatprep.subr.mxu0 0.0
        %2011 = vmatpush1.msra.mxu0 0.0
        %2012 = vmatprep.subr.mxu0 0.0
        %2013 = vmatpush1.msra.mxu0 0.0
        %2014 = vmatprep.subr.mxu0 0.0
        %2015 = vmatpush1.msra.mxu0 0.0
        %2016 = vmatprep.subr.mxu0 0.0
        %2017 = vmatpush1.msra.mxu0 0.0
        %2018 = vmatprep.subr.mxu0 0.0
        %2019 = vmatpush1.msra.mxu0 0.0
        %2020 = vmatprep.subr.mxu0 0.0
        %2021 = vmatpush1.msra.mxu0 0.0
        %2022 = vmatprep.subr.mxu0 0.0
        %2023 = vmatpush1.msra.mxu0 0.0
        %2024 = vmatprep.subr.mxu0 0.0
        %2025 = vmatpush1.msra.mxu0 0.0
        %2026 = vmatprep.subr.mxu0 0.0
        %2027 = vmatpush1.msra.mxu0 0.0
        %2028 = vmatprep.subr.mxu0 0.0
        %2029 = vmatpush1.msra.mxu0 0.0
        %2030 = vmatprep.subr.mxu0 0.0
        %2031 = vmatpush1.msra.mxu0 0.0
        %2032 = vmatprep.subr.mxu0 0.0
        %2033 = vmatpush1.msra.mxu0 0.0
        %2034 = vmatprep.subr.mxu0 0.0
        %2035 = vmatpush1.msra.mxu0 0.0
        %2036 = vmatprep.subr.mxu0 0.0
        %2037 = vmatpush1.msra.mxu0 0.0
        %2038 = vmatprep.subr.mxu0 0.0
        %2039 = vmatpush1.msra.mxu0 0.0
        %2040 = vmatprep.subr.mxu0 0.0
        %2041 = vmatpush1.msra.mxu0 0.0
        %2042 = vmatprep.subr.mxu0 0.0
        %2043 = vmatpush1.msra.mxu0 0.0
        %2044 = vmatprep.mubr.f32.mxu0 0.0
        %2045 = vmatmul.mubr.f32.gmra.mrb[0].mxu0 %v1233
        %v2046 = vpop.f32.mrb[0].mxu0
        %v2047 = vadd.f32 0.0, %v2046
        %v2048 = vpop.f32.mrb[0].mxu0
        %2049 = vmatprep.mubr.f32.mxu0 0.0
        %2050 = vmatmul.mubr.f32.gmra.mrb[0].mxu0 %v1236
        %v2051 = vpop.f32.mrb[0].mxu0
        %v2052 = vadd.f32 0.0, %v2051
        %v2053 = vpop.f32.mrb[0].mxu0
        %2054 = vmatprep.mubr.f32.mxu0 0.0
        %2055 = vmatmul.mubr.f32.gmra.mrb[0].mxu0 %v1239
        %v2056 = vpop.f32.mrb[0].mxu0
        %v2057 = vadd.f32 0.0, %v2056
        %v2058 = vpop.f32.mrb[0].mxu0
        %2059 = vmatprep.mubr.f32.mxu0 0.0
        %2060 = vmatmul.mubr.f32.gmra.mrb[0].mxu0 %v1242
        %v2061 = vpop.f32.mrb[0].mxu0
        %v2062 = vadd.f32 0.0, %v2061
        %v2063 = vpop.f32.mrb[0].mxu0
        %2064 = vmatprep.mubr.f32.mxu0 0.0
        %2065 = vmatmul.mubr.f32.gmra.mrb[0].mxu0 %v1245
        %v2066 = vpop.f32.mrb[0].mxu0
        %v2067 = vadd.f32 0.0, %v2066
        %v2068 = vpop.f32.mrb[0].mxu0
        %2069 = vmatprep.mubr.f32.mxu0 0.0
        %2070 = vmatmul.mubr.f32.gmra.mrb[0].mxu0 %v1248
        %v2071 = vpop.f32.mrb[0].mxu0
        %v2072 = vadd.f32 0.0, %v2071
        %v2073 = vpop.f32.mrb[0].mxu0
        %2074 = vmatprep.mubr.f32.mxu0 0.0
        %2075 = vmatmul.mubr.f32.gmra.mrb[0].mxu0 %v1251
        %v2076 = vpop.f32.mrb[0].mxu0
        %v2077 = vadd.f32 0.0, %v2076
        %v2078 = vpop.f32.mrb[0].mxu0
        %2079 = vmatprep.mubr.f32.mxu0 0.0
        %2080 = vmatmul.mubr.f32.gmra.mrb[0].mxu0 %v1254
        %v2081 = vpop.f32.mrb[0].mxu0
        %v2082 = vadd.f32 0.0, %v2081
        %v2083 = vpop.f32.mrb[0].mxu0
        %2084 = vdwg.mxu0
        %v2085 = vadd.f32 %v1972, %v2047
        %v2086 = vadd.f32 %v1973, %v2052
        %v2087 = vadd.f32 %v1974, %v2057
        %v2088 = vadd.f32 %v1975, %v2062
        %v2089 = vadd.f32 %v1976, %v2067
        %v2090 = vadd.f32 %v1977, %v2072
        %v2091 = vadd.f32 %v1978, %v2077
        %v2092 = vadd.f32 %v1979, %v2082
        %2093 = vmatprep.subr.mxu0 0.0
        %2094 = vmatpush1.msra.mxu0 %v954
        %2095 = vmatprep.subr.mxu0 0.0
        %2096 = vmatpush1.msra.mxu0 0.0
        %2097 = vmatprep.subr.mxu0 0.0
        %2098 = vmatpush1.msra.mxu0 0.0
        %2099 = vmatprep.subr.mxu0 0.0
        %2100 = vmatpush1.msra.mxu0 0.0
        %2101 = vmatprep.subr.mxu0 0.0
        %2102 = vmatpush1.msra.mxu0 0.0
        %2103 = vmatprep.subr.mxu0 0.0
        %2104 = vmatpush1.msra.mxu0 0.0
        %2105 = vmatprep.subr.mxu0 0.0
        %2106 = vmatpush1.msra.mxu0 0.0
        %2107 = vmatprep.subr.mxu0 0.0
        %2108 = vmatpush1.msra.mxu0 0.0
        %2109 = vmatprep.subr.mxu0 0.0
        %2110 = vmatpush1.msra.mxu0 0.0
        %2111 = vmatprep.subr.mxu0 0.0
        %2112 = vmatpush1.msra.mxu0 0.0
        %2113 = vmatprep.subr.mxu0 0.0
        %2114 = vmatpush1.msra.mxu0 0.0
        %2115 = vmatprep.subr.mxu0 0.0
        %2116 = vmatpush1.msra.mxu0 0.0
        %2117 = vmatprep.subr.mxu0 0.0
        %2118 = vmatpush1.msra.mxu0 0.0
        %2119 = vmatprep.subr.mxu0 0.0
        %2120 = vmatpush1.msra.mxu0 0.0
        %2121 = vmatprep.subr.mxu0 0.0
        %2122 = vmatpush1.msra.mxu0 0.0
        %2123 = vmatprep.subr.mxu0 0.0
        %2124 = vmatpush1.msra.mxu0 0.0
        %2125 = vmatprep.subr.mxu0 0.0
        %2126 = vmatpush1.msra.mxu0 0.0
        %2127 = vmatprep.subr.mxu0 0.0
        %2128 = vmatpush1.msra.mxu0 0.0
        %2129 = vmatprep.subr.mxu0 0.0
        %2130 = vmatpush1.msra.mxu0 0.0
        %2131 = vmatprep.subr.mxu0 0.0
        %2132 = vmatpush1.msra.mxu0 0.0
        %2133 = vmatprep.subr.mxu0 0.0
        %2134 = vmatpush1.msra.mxu0 0.0
        %2135 = vmatprep.subr.mxu0 0.0
        %2136 = vmatpush1.msra.mxu0 0.0
        %2137 = vmatprep.subr.mxu0 0.0
        %2138 = vmatpush1.msra.mxu0 0.0
        %2139 = vmatprep.subr.mxu0 0.0
        %2140 = vmatpush1.msra.mxu0 0.0
        %2141 = vmatprep.subr.mxu0 0.0
        %2142 = vmatpush1.msra.mxu0 0.0
        %2143 = vmatprep.subr.mxu0 0.0
        %2144 = vmatpush1.msra.mxu0 0.0
        %2145 = vmatprep.subr.mxu0 0.0
        %2146 = vmatpush1.msra.mxu0 0.0
        %2147 = vmatprep.subr.mxu0 0.0
        %2148 = vmatpush1.msra.mxu0 0.0
        %2149 = vmatprep.subr.mxu0 0.0
        %2150 = vmatpush1.msra.mxu0 0.0
        %2151 = vmatprep.subr.mxu0 0.0
        %2152 = vmatpush1.msra.mxu0 0.0
        %2153 = vmatprep.subr.mxu0 0.0
        %2154 = vmatpush1.msra.mxu0 0.0
        %2155 = vmatprep.subr.mxu0 0.0
        %2156 = vmatpush1.msra.mxu0 0.0
        %2157 = vmatprep.mubr.f32.mxu0 0.0
        %2158 = vmatmul.mubr.f32.gmra.mrb[0].mxu0 %v1383
        %v2159 = vpop.f32.mrb[0].mxu0
        %v2160 = vadd.f32 0.0, %v2159
        %v2161 = vpop.f32.mrb[0].mxu0
        %2162 = vmatprep.mubr.f32.mxu0 0.0
        %2163 = vmatmul.mubr.f32.gmra.mrb[0].mxu0 %v1386
        %v2164 = vpop.f32.mrb[0].mxu0
        %v2165 = vadd.f32 0.0, %v2164
        %v2166 = vpop.f32.mrb[0].mxu0
        %2167 = vmatprep.mubr.f32.mxu0 0.0
        %2168 = vmatmul.mubr.f32.gmra.mrb[0].mxu0 %v1389
        %v2169 = vpop.f32.mrb[0].mxu0
        %v2170 = vadd.f32 0.0, %v2169
        %v2171 = vpop.f32.mrb[0].mxu0
        %2172 = vmatprep.mubr.f32.mxu0 0.0
        %2173 = vmatmul.mubr.f32.gmra.mrb[0].mxu0 %v1392
        %v2174 = vpop.f32.mrb[0].mxu0
        %v2175 = vadd.f32 0.0, %v2174
        %v2176 = vpop.f32.mrb[0].mxu0
        %2177 = vmatprep.mubr.f32.mxu0 0.0
        %2178 = vmatmul.mubr.f32.gmra.mrb[0].mxu0 %v1395
        %v2179 = vpop.f32.mrb[0].mxu0
        %v2180 = vadd.f32 0.0, %v2179
        %v2181 = vpop.f32.mrb[0].mxu0
        %2182 = vmatprep.mubr.f32.mxu0 0.0
        %2183 = vmatmul.mubr.f32.gmra.mrb[0].mxu0 %v1398
        %v2184 = vpop.f32.mrb[0].mxu0
        %v2185 = vadd.f32 0.0, %v2184
        %v2186 = vpop.f32.mrb[0].mxu0
        %2187 = vmatprep.mubr.f32.mxu0 0.0
        %2188 = vmatmul.mubr.f32.gmra.mrb[0].mxu0 %v1401
        %v2189 = vpop.f32.mrb[0].mxu0
        %v2190 = vadd.f32 0.0, %v2189
        %v2191 = vpop.f32.mrb[0].mxu0
        %2192 = vmatprep.mubr.f32.mxu0 0.0
        %2193 = vmatmul.mubr.f32.gmra.mrb[0].mxu0 %v1404
        %v2194 = vpop.f32.mrb[0].mxu0
        %v2195 = vadd.f32 0.0, %v2194
        %v2196 = vpop.f32.mrb[0].mxu0
        %2197 = vdwg.mxu0
        %v2198 = vadd.f32 %v2085, %v2160
        %v2199 = vadd.f32 %v2086, %v2165
        %v2200 = vadd.f32 %v2087, %v2170
        %v2201 = vadd.f32 %v2088, %v2175
        %v2202 = vadd.f32 %v2089, %v2180
        %v2203 = vadd.f32 %v2090, %v2185
        %v2204 = vadd.f32 %v2091, %v2190
        %v2205 = vadd.f32 %v2092, %v2195
        %s2206 = sadd.s32 %s178, 3
        %s2207 = smul.u32 %s2206, 64
        %s2208 = scalar_lea.vmem %s165, %s2207
        %v2209 = vld [vmem:[%s2208] sm:$0xff]
        %v2210 = vld [vmem:[%s2208 + $0x8] sm:$0xff]
        %v2211 = vld [vmem:[%s2208 + $0x10] sm:$0xff]
        %v2212 = vld [vmem:[%s2208 + $0x18] sm:$0xff]
        %v2213 = vld [vmem:[%s2208 + $0x20] sm:$0xff]
        %v2214 = vld [vmem:[%s2208 + $0x28] sm:$0xff]
        %v2215 = vld [vmem:[%s2208 + $0x30] sm:$0xff]
        %v2216 = vld [vmem:[%s2208 + $0x38] sm:$0x3f]
        %v2218 = vsel %vm200, %v2209, 0
        %v2221 = vsel %vm200, %v2210, 0
        %v2224 = vsel %vm200, %v2211, 0
        %v2227 = vsel %vm200, %v2212, 0
        %v2230 = vsel %vm200, %v2213, 0
        %v2233 = vsel %vm200, %v2214, 0
        %v2236 = vsel %vm200, %v2215, 0
        %v2239 = vsel %vm200, %v2216, 0
        %2241 = vmatprep.subr.mxu0 0.0
        %2242 = vmatpush1.msra.mxu0 %v1107
        %2243 = vmatprep.subr.mxu0 0.0
        %2244 = vmatpush1.msra.mxu0 0.0
        %2245 = vmatprep.subr.mxu0 0.0
        %2246 = vmatpush1.msra.mxu0 0.0
        %2247 = vmatprep.subr.mxu0 0.0
        %2248 = vmatpush1.msra.mxu0 0.0
        %2249 = vmatprep.subr.mxu0 0.0
        %2250 = vmatpush1.msra.mxu0 0.0
        %2251 = vmatprep.subr.mxu0 0.0
        %2252 = vmatpush1.msra.mxu0 0.0
        %2253 = vmatprep.subr.mxu0 0.0
        %2254 = vmatpush1.msra.mxu0 0.0
        %2255 = vmatprep.subr.mxu0 0.0
        %2256 = vmatpush1.msra.mxu0 0.0
        %2257 = vmatprep.subr.mxu0 0.0
        %2258 = vmatpush1.msra.mxu0 0.0
        %2259 = vmatprep.subr.mxu0 0.0
        %2260 = vmatpush1.msra.mxu0 0.0
        %2261 = vmatprep.subr.mxu0 0.0
        %2262 = vmatpush1.msra.mxu0 0.0
        %2263 = vmatprep.subr.mxu0 0.0
        %2264 = vmatpush1.msra.mxu0 0.0
        %2265 = vmatprep.subr.mxu0 0.0
        %2266 = vmatpush1.msra.mxu0 0.0
        %2267 = vmatprep.subr.mxu0 0.0
        %2268 = vmatpush1.msra.mxu0 0.0
        %2269 = vmatprep.subr.mxu0 0.0
        %2270 = vmatpush1.msra.mxu0 0.0
        %2271 = vmatprep.subr.mxu0 0.0
        %2272 = vmatpush1.msra.mxu0 0.0
        %2273 = vmatprep.subr.mxu0 0.0
        %2274 = vmatpush1.msra.mxu0 0.0
        %2275 = vmatprep.subr.mxu0 0.0
        %2276 = vmatpush1.msra.mxu0 0.0
        %2277 = vmatprep.subr.mxu0 0.0
        %2278 = vmatpush1.msra.mxu0 0.0
        %2279 = vmatprep.subr.mxu0 0.0
        %2280 = vmatpush1.msra.mxu0 0.0
        %2281 = vmatprep.subr.mxu0 0.0
        %2282 = vmatpush1.msra.mxu0 0.0
        %2283 = vmatprep.subr.mxu0 0.0
        %2284 = vmatpush1.msra.mxu0 0.0
        %2285 = vmatprep.subr.mxu0 0.0
        %2286 = vmatpush1.msra.mxu0 0.0
        %2287 = vmatprep.subr.mxu0 0.0
        %2288 = vmatpush1.msra.mxu0 0.0
        %2289 = vmatprep.subr.mxu0 0.0
        %2290 = vmatpush1.msra.mxu0 0.0
        %2291 = vmatprep.subr.mxu0 0.0
        %2292 = vmatpush1.msra.mxu0 0.0
        %2293 = vmatprep.subr.mxu0 0.0
        %2294 = vmatpush1.msra.mxu0 0.0
        %2295 = vmatprep.subr.mxu0 0.0
        %2296 = vmatpush1.msra.mxu0 0.0
        %2297 = vmatprep.subr.mxu0 0.0
        %2298 = vmatpush1.msra.mxu0 0.0
        %2299 = vmatprep.subr.mxu0 0.0
        %2300 = vmatpush1.msra.mxu0 0.0
        %2301 = vmatprep.subr.mxu0 0.0
        %2302 = vmatpush1.msra.mxu0 0.0
        %2303 = vmatprep.subr.mxu0 0.0
        %2304 = vmatpush1.msra.mxu0 0.0
        %2305 = vmatprep.mubr.f32.mxu0 0.0
        %2306 = vmatmul.mubr.f32.gmra.mrb[0].mxu0 %v2218
        %v2307 = vpop.f32.mrb[0].mxu0
        %v2308 = vadd.f32 0.0, %v2307
        %v2309 = vpop.f32.mrb[0].mxu0
        %2310 = vmatprep.mubr.f32.mxu0 0.0
        %2311 = vmatmul.mubr.f32.gmra.mrb[0].mxu0 %v2221
        %v2312 = vpop.f32.mrb[0].mxu0
        %v2313 = vadd.f32 0.0, %v2312
        %v2314 = vpop.f32.mrb[0].mxu0
        %2315 = vmatprep.mubr.f32.mxu0 0.0
        %2316 = vmatmul.mubr.f32.gmra.mrb[0].mxu0 %v2224
        %v2317 = vpop.f32.mrb[0].mxu0
        %v2318 = vadd.f32 0.0, %v2317
        %v2319 = vpop.f32.mrb[0].mxu0
        %2320 = vmatprep.mubr.f32.mxu0 0.0
        %2321 = vmatmul.mubr.f32.gmra.mrb[0].mxu0 %v2227
        %v2322 = vpop.f32.mrb[0].mxu0
        %v2323 = vadd.f32 0.0, %v2322
        %v2324 = vpop.f32.mrb[0].mxu0
        %2325 = vmatprep.mubr.f32.mxu0 0.0
        %2326 = vmatmul.mubr.f32.gmra.mrb[0].mxu0 %v2230
        %v2327 = vpop.f32.mrb[0].mxu0
        %v2328 = vadd.f32 0.0, %v2327
        %v2329 = vpop.f32.mrb[0].mxu0
        %2330 = vmatprep.mubr.f32.mxu0 0.0
        %2331 = vmatmul.mubr.f32.gmra.mrb[0].mxu0 %v2233
        %v2332 = vpop.f32.mrb[0].mxu0
        %v2333 = vadd.f32 0.0, %v2332
        %v2334 = vpop.f32.mrb[0].mxu0
        %2335 = vmatprep.mubr.f32.mxu0 0.0
        %2336 = vmatmul.mubr.f32.gmra.mrb[0].mxu0 %v2236
        %v2337 = vpop.f32.mrb[0].mxu0
        %v2338 = vadd.f32 0.0, %v2337
        %v2339 = vpop.f32.mrb[0].mxu0
        %2340 = vmatprep.mubr.f32.mxu0 0.0
        %2341 = vmatmul.mubr.f32.gmra.mrb[0].mxu0 %v2239
        %v2342 = vpop.f32.mrb[0].mxu0
        %v2343 = vadd.f32 0.0, %v2342
        %v2344 = vpop.f32.mrb[0].mxu0
        %2345 = vdwg.mxu0
        %v2346 = vadd.f32 %v2198, %v2308
        %v2347 = vadd.f32 %v2199, %v2313
        %v2348 = vadd.f32 %v2200, %v2318
        %v2349 = vadd.f32 %v2201, %v2323
        %v2350 = vadd.f32 %v2202, %v2328
        %v2351 = vadd.f32 %v2203, %v2333
        %v2352 = vadd.f32 %v2204, %v2338
        %v2353 = vadd.f32 %v2205, %v2343
        %v2354 = vld [vmem:[%s2208 + $0x1] sm:$0xff]
        %v2355 = vld [vmem:[%s2208 + $0x9] sm:$0xff]
        %v2356 = vld [vmem:[%s2208 + $0x11] sm:$0xff]
        %v2357 = vld [vmem:[%s2208 + $0x19] sm:$0xff]
        %v2358 = vld [vmem:[%s2208 + $0x21] sm:$0xff]
        %v2359 = vld [vmem:[%s2208 + $0x29] sm:$0xff]
        %v2360 = vld [vmem:[%s2208 + $0x31] sm:$0xff]
        %v2361 = vld [vmem:[%s2208 + $0x39] sm:$0x3f]
        %v2363 = vsel %vm200, %v2354, 0
        %v2366 = vsel %vm200, %v2355, 0
        %v2369 = vsel %vm200, %v2356, 0
        %v2372 = vsel %vm200, %v2357, 0
        %v2375 = vsel %vm200, %v2358, 0
        %v2378 = vsel %vm200, %v2359, 0
        %v2381 = vsel %vm200, %v2360, 0
        %v2384 = vsel %vm200, %v2361, 0
        %2386 = vmatprep.subr.mxu0 0.0
        %2387 = vmatpush1.msra.mxu0 %v1257
        %2388 = vmatprep.subr.mxu0 0.0
        %2389 = vmatpush1.msra.mxu0 0.0
        %2390 = vmatprep.subr.mxu0 0.0
        %2391 = vmatpush1.msra.mxu0 0.0
        %2392 = vmatprep.subr.mxu0 0.0
        %2393 = vmatpush1.msra.mxu0 0.0
        %2394 = vmatprep.subr.mxu0 0.0
        %2395 = vmatpush1.msra.mxu0 0.0
        %2396 = vmatprep.subr.mxu0 0.0
        %2397 = vmatpush1.msra.mxu0 0.0
        %2398 = vmatprep.subr.mxu0 0.0
        %2399 = vmatpush1.msra.mxu0 0.0
        %2400 = vmatprep.subr.mxu0 0.0
        %2401 = vmatpush1.msra.mxu0 0.0
        %2402 = vmatprep.subr.mxu0 0.0
        %2403 = vmatpush1.msra.mxu0 0.0
        %2404 = vmatprep.subr.mxu0 0.0
        %2405 = vmatpush1.msra.mxu0 0.0
        %2406 = vmatprep.subr.mxu0 0.0
        %2407 = vmatpush1.msra.mxu0 0.0
        %2408 = vmatprep.subr.mxu0 0.0
        %2409 = vmatpush1.msra.mxu0 0.0
        %2410 = vmatprep.subr.mxu0 0.0
        %2411 = vmatpush1.msra.mxu0 0.0
        %2412 = vmatprep.subr.mxu0 0.0
        %2413 = vmatpush1.msra.mxu0 0.0
        %2414 = vmatprep.subr.mxu0 0.0
        %2415 = vmatpush1.msra.mxu0 0.0
        %2416 = vmatprep.subr.mxu0 0.0
        %2417 = vmatpush1.msra.mxu0 0.0
        %2418 = vmatprep.subr.mxu0 0.0
        %2419 = vmatpush1.msra.mxu0 0.0
        %2420 = vmatprep.subr.mxu0 0.0
        %2421 = vmatpush1.msra.mxu0 0.0
        %2422 = vmatprep.subr.mxu0 0.0
        %2423 = vmatpush1.msra.mxu0 0.0
        %2424 = vmatprep.subr.mxu0 0.0
        %2425 = vmatpush1.msra.mxu0 0.0
        %2426 = vmatprep.subr.mxu0 0.0
        %2427 = vmatpush1.msra.mxu0 0.0
        %2428 = vmatprep.subr.mxu0 0.0
        %2429 = vmatpush1.msra.mxu0 0.0
        %2430 = vmatprep.subr.mxu0 0.0
        %2431 = vmatpush1.msra.mxu0 0.0
        %2432 = vmatprep.subr.mxu0 0.0
        %2433 = vmatpush1.msra.mxu0 0.0
        %2434 = vmatprep.subr.mxu0 0.0
        %2435 = vmatpush1.msra.mxu0 0.0
        %2436 = vmatprep.subr.mxu0 0.0
        %2437 = vmatpush1.msra.mxu0 0.0
        %2438 = vmatprep.subr.mxu0 0.0
        %2439 = vmatpush1.msra.mxu0 0.0
        %2440 = vmatprep.subr.mxu0 0.0
        %2441 = vmatpush1.msra.mxu0 0.0
        %2442 = vmatprep.subr.mxu0 0.0
        %2443 = vmatpush1.msra.mxu0 0.0
        %2444 = vmatprep.subr.mxu0 0.0
        %2445 = vmatpush1.msra.mxu0 0.0
        %2446 = vmatprep.subr.mxu0 0.0
        %2447 = vmatpush1.msra.mxu0 0.0
        %2448 = vmatprep.subr.mxu0 0.0
        %2449 = vmatpush1.msra.mxu0 0.0
        %2450 = vmatprep.mubr.f32.mxu0 0.0
        %2451 = vmatmul.mubr.f32.gmra.mrb[0].mxu0 %v2363
        %v2452 = vpop.f32.mrb[0].mxu0
        %v2453 = vadd.f32 0.0, %v2452
        %v2454 = vpop.f32.mrb[0].mxu0
        %2455 = vmatprep.mubr.f32.mxu0 0.0
        %2456 = vmatmul.mubr.f32.gmra.mrb[0].mxu0 %v2366
        %v2457 = vpop.f32.mrb[0].mxu0
        %v2458 = vadd.f32 0.0, %v2457
        %v2459 = vpop.f32.mrb[0].mxu0
        %2460 = vmatprep.mubr.f32.mxu0 0.0
        %2461 = vmatmul.mubr.f32.gmra.mrb[0].mxu0 %v2369
        %v2462 = vpop.f32.mrb[0].mxu0
        %v2463 = vadd.f32 0.0, %v2462
        %v2464 = vpop.f32.mrb[0].mxu0
        %2465 = vmatprep.mubr.f32.mxu0 0.0
        %2466 = vmatmul.mubr.f32.gmra.mrb[0].mxu0 %v2372
        %v2467 = vpop.f32.mrb[0].mxu0
        %v2468 = vadd.f32 0.0, %v2467
        %v2469 = vpop.f32.mrb[0].mxu0
        %2470 = vmatprep.mubr.f32.mxu0 0.0
        %2471 = vmatmul.mubr.f32.gmra.mrb[0].mxu0 %v2375
        %v2472 = vpop.f32.mrb[0].mxu0
        %v2473 = vadd.f32 0.0, %v2472
        %v2474 = vpop.f32.mrb[0].mxu0
        %2475 = vmatprep.mubr.f32.mxu0 0.0
        %2476 = vmatmul.mubr.f32.gmra.mrb[0].mxu0 %v2378
        %v2477 = vpop.f32.mrb[0].mxu0
        %v2478 = vadd.f32 0.0, %v2477
        %v2479 = vpop.f32.mrb[0].mxu0
        %2480 = vmatprep.mubr.f32.mxu0 0.0
        %2481 = vmatmul.mubr.f32.gmra.mrb[0].mxu0 %v2381
        %v2482 = vpop.f32.mrb[0].mxu0
        %v2483 = vadd.f32 0.0, %v2482
        %v2484 = vpop.f32.mrb[0].mxu0
        %2485 = vmatprep.mubr.f32.mxu0 0.0
        %2486 = vmatmul.mubr.f32.gmra.mrb[0].mxu0 %v2384
        %v2487 = vpop.f32.mrb[0].mxu0
        %v2488 = vadd.f32 0.0, %v2487
        %v2489 = vpop.f32.mrb[0].mxu0
        %2490 = vdwg.mxu0
        %v2491 = vadd.f32 %v2346, %v2453
        %v2492 = vadd.f32 %v2347, %v2458
        %v2493 = vadd.f32 %v2348, %v2463
        %v2494 = vadd.f32 %v2349, %v2468
        %v2495 = vadd.f32 %v2350, %v2473
        %v2496 = vadd.f32 %v2351, %v2478
        %v2497 = vadd.f32 %v2352, %v2483
        %v2498 = vadd.f32 %v2353, %v2488
        %v2499 = vld [vmem:[%s2208 + $0x2] sm:$0xff]
        %v2500 = vld [vmem:[%s2208 + $0xa] sm:$0xff]
        %v2501 = vld [vmem:[%s2208 + $0x12] sm:$0xff]
        %v2502 = vld [vmem:[%s2208 + $0x1a] sm:$0xff]
        %v2503 = vld [vmem:[%s2208 + $0x22] sm:$0xff]
        %v2504 = vld [vmem:[%s2208 + $0x2a] sm:$0xff]
        %v2505 = vld [vmem:[%s2208 + $0x32] sm:$0xff]
        %v2506 = vld [vmem:[%s2208 + $0x3a] sm:$0x3f]
        %v2508 = vsel %vm200, %v2499, 0
        %v2511 = vsel %vm200, %v2500, 0
        %v2514 = vsel %vm200, %v2501, 0
        %v2517 = vsel %vm200, %v2502, 0
        %v2520 = vsel %vm200, %v2503, 0
        %v2523 = vsel %vm200, %v2504, 0
        %v2526 = vsel %vm200, %v2505, 0
        %v2529 = vsel %vm200, %v2506, 0
        %2531 = vmatprep.subr.mxu0 0.0
        %2532 = vmatpush1.msra.mxu0 %v1407
        %2533 = vmatprep.subr.mxu0 0.0
        %2534 = vmatpush1.msra.mxu0 0.0
        %2535 = vmatprep.subr.mxu0 0.0
        %2536 = vmatpush1.msra.mxu0 0.0
        %2537 = vmatprep.subr.mxu0 0.0
        %2538 = vmatpush1.msra.mxu0 0.0
        %2539 = vmatprep.subr.mxu0 0.0
        %2540 = vmatpush1.msra.mxu0 0.0
        %2541 = vmatprep.subr.mxu0 0.0
        %2542 = vmatpush1.msra.mxu0 0.0
        %2543 = vmatprep.subr.mxu0 0.0
        %2544 = vmatpush1.msra.mxu0 0.0
        %2545 = vmatprep.subr.mxu0 0.0
        %2546 = vmatpush1.msra.mxu0 0.0
        %2547 = vmatprep.subr.mxu0 0.0
        %2548 = vmatpush1.msra.mxu0 0.0
        %2549 = vmatprep.subr.mxu0 0.0
        %2550 = vmatpush1.msra.mxu0 0.0
        %2551 = vmatprep.subr.mxu0 0.0
        %2552 = vmatpush1.msra.mxu0 0.0
        %2553 = vmatprep.subr.mxu0 0.0
        %2554 = vmatpush1.msra.mxu0 0.0
        %2555 = vmatprep.subr.mxu0 0.0
        %2556 = vmatpush1.msra.mxu0 0.0
        %2557 = vmatprep.subr.mxu0 0.0
        %2558 = vmatpush1.msra.mxu0 0.0
        %2559 = vmatprep.subr.mxu0 0.0
        %2560 = vmatpush1.msra.mxu0 0.0
        %2561 = vmatprep.subr.mxu0 0.0
        %2562 = vmatpush1.msra.mxu0 0.0
        %2563 = vmatprep.subr.mxu0 0.0
        %2564 = vmatpush1.msra.mxu0 0.0
        %2565 = vmatprep.subr.mxu0 0.0
        %2566 = vmatpush1.msra.mxu0 0.0
        %2567 = vmatprep.subr.mxu0 0.0
        %2568 = vmatpush1.msra.mxu0 0.0
        %2569 = vmatprep.subr.mxu0 0.0
        %2570 = vmatpush1.msra.mxu0 0.0
        %2571 = vmatprep.subr.mxu0 0.0
        %2572 = vmatpush1.msra.mxu0 0.0
        %2573 = vmatprep.subr.mxu0 0.0
        %2574 = vmatpush1.msra.mxu0 0.0
        %2575 = vmatprep.subr.mxu0 0.0
        %2576 = vmatpush1.msra.mxu0 0.0
        %2577 = vmatprep.subr.mxu0 0.0
        %2578 = vmatpush1.msra.mxu0 0.0
        %2579 = vmatprep.subr.mxu0 0.0
        %2580 = vmatpush1.msra.mxu0 0.0
        %2581 = vmatprep.subr.mxu0 0.0
        %2582 = vmatpush1.msra.mxu0 0.0
        %2583 = vmatprep.subr.mxu0 0.0
        %2584 = vmatpush1.msra.mxu0 0.0
        %2585 = vmatprep.subr.mxu0 0.0
        %2586 = vmatpush1.msra.mxu0 0.0
        %2587 = vmatprep.subr.mxu0 0.0
        %2588 = vmatpush1.msra.mxu0 0.0
        %2589 = vmatprep.subr.mxu0 0.0
        %2590 = vmatpush1.msra.mxu0 0.0
        %2591 = vmatprep.subr.mxu0 0.0
        %2592 = vmatpush1.msra.mxu0 0.0
        %2593 = vmatprep.subr.mxu0 0.0
        %2594 = vmatpush1.msra.mxu0 0.0
        %2595 = vmatprep.mubr.f32.mxu0 0.0
        %2596 = vmatmul.mubr.f32.gmra.mrb[0].mxu0 %v2508
        %v2597 = vpop.f32.mrb[0].mxu0
        %v2598 = vadd.f32 0.0, %v2597
        %v2599 = vpop.f32.mrb[0].mxu0
        %2600 = vmatprep.mubr.f32.mxu0 0.0
        %2601 = vmatmul.mubr.f32.gmra.mrb[0].mxu0 %v2511
        %v2602 = vpop.f32.mrb[0].mxu0
        %v2603 = vadd.f32 0.0, %v2602
        %v2604 = vpop.f32.mrb[0].mxu0
        %2605 = vmatprep.mubr.f32.mxu0 0.0
        %2606 = vmatmul.mubr.f32.gmra.mrb[0].mxu0 %v2514
        %v2607 = vpop.f32.mrb[0].mxu0
        %v2608 = vadd.f32 0.0, %v2607
        %v2609 = vpop.f32.mrb[0].mxu0
        %2610 = vmatprep.mubr.f32.mxu0 0.0
        %2611 = vmatmul.mubr.f32.gmra.mrb[0].mxu0 %v2517
        %v2612 = vpop.f32.mrb[0].mxu0
        %v2613 = vadd.f32 0.0, %v2612
        %v2614 = vpop.f32.mrb[0].mxu0
        %2615 = vmatprep.mubr.f32.mxu0 0.0
        %2616 = vmatmul.mubr.f32.gmra.mrb[0].mxu0 %v2520
        %v2617 = vpop.f32.mrb[0].mxu0
        %v2618 = vadd.f32 0.0, %v2617
        %v2619 = vpop.f32.mrb[0].mxu0
        %2620 = vmatprep.mubr.f32.mxu0 0.0
        %2621 = vmatmul.mubr.f32.gmra.mrb[0].mxu0 %v2523
        %v2622 = vpop.f32.mrb[0].mxu0
        %v2623 = vadd.f32 0.0, %v2622
        %v2624 = vpop.f32.mrb[0].mxu0
        %2625 = vmatprep.mubr.f32.mxu0 0.0
        %2626 = vmatmul.mubr.f32.gmra.mrb[0].mxu0 %v2526
        %v2627 = vpop.f32.mrb[0].mxu0
        %v2628 = vadd.f32 0.0, %v2627
        %v2629 = vpop.f32.mrb[0].mxu0
        %2630 = vmatprep.mubr.f32.mxu0 0.0
        %2631 = vmatmul.mubr.f32.gmra.mrb[0].mxu0 %v2529
        %v2632 = vpop.f32.mrb[0].mxu0
        %v2633 = vadd.f32 0.0, %v2632
        %v2634 = vpop.f32.mrb[0].mxu0
        %2635 = vdwg.mxu0
        %v2636 = vadd.f32 %v2491, %v2598
        %v2637 = vadd.f32 %v2492, %v2603
        %v2638 = vadd.f32 %v2493, %v2608
        %v2639 = vadd.f32 %v2494, %v2613
        %v2640 = vadd.f32 %v2495, %v2618
        %v2641 = vadd.f32 %v2496, %v2623
        %v2642 = vadd.f32 %v2497, %v2628
        %v2643 = vadd.f32 %v2498, %v2633
        %v2644 = vadd.f32 %v2636, %v1526
        %v2645 = vadd.f32 %v2637, %v1526
        %v2646 = vadd.f32 %v2638, %v1526
        %v2647 = vadd.f32 %v2639, %v1526
        %v2648 = vadd.f32 %v2640, %v1526
        %v2649 = vadd.f32 %v2641, %v1526
        %v2650 = vadd.f32 %v2642, %v1526
        %v2651 = vadd.f32 %v2643, %v1526
        %v2652 = vmax.f32 %v2644, 0.0
        %v2653 = vmax.f32 %v2645, 0.0
        %v2654 = vmax.f32 %v2646, 0.0
        %v2655 = vmax.f32 %v2647, 0.0
        %v2656 = vmax.f32 %v2648, 0.0
        %v2657 = vmax.f32 %v2649, 0.0
        %v2658 = vmax.f32 %v2650, 0.0
        %v2659 = vmax.f32 %v2651, 0.0
        %v2660 = vmax.f32 %v1536, %v2652
        %v2661 = vmax.f32 %v1537, %v2653
        %v2662 = vmax.f32 %v1538, %v2654
        %v2663 = vmax.f32 %v1539, %v2655
        %v2664 = vmax.f32 %v1540, %v2656
        %v2665 = vmax.f32 %v1541, %v2657
        %v2666 = vmax.f32 %v1542, %v2658
        %v2667 = vmax.f32 %v1543, %v2659
        %vm2668 = vcmask 523264
        %2669 = vst.msk [vmem:[#allocation2] sm:$0xff] %vm2668, %v2660
        %2670 = vst.msk [vmem:[#allocation2 + $0x8] sm:$0xff] %vm2668, %v2661
        %2671 = vst.msk [vmem:[#allocation2 + $0x10] sm:$0xff] %vm2668, %v2662
        %2672 = vst.msk [vmem:[#allocation2 + $0x18] sm:$0xff] %vm2668, %v2663
        %2673 = vst.msk [vmem:[#allocation2 + $0x20] sm:$0xff] %vm2668, %v2664
        %2674 = vst.msk [vmem:[#allocation2 + $0x28] sm:$0xff] %vm2668, %v2665
        %2675 = vst.msk [vmem:[#allocation2 + $0x30] sm:$0xff] %vm2668, %v2666
        %vm2676 = vcmask 521216
        %2677 = vst.msk [vmem:[#allocation2 + $0x38] sm:$0x3f] %vm2676, %v2667
        %v2678 = vld [vmem:[#allocation2] ss:$2 sm:$0xff]
        %s2679 = scalar_lea.vmem [#allocation2], 16
        %v2680 = vld [vmem:[%s2679] ss:$2 sm:$0xff]
        %s2681 = scalar_lea.vmem [#allocation2], 32
        %v2682 = vld [vmem:[%s2681] ss:$2 sm:$0xff]
        %s2683 = scalar_lea.vmem [#allocation2], 48
        %v2684 = vld [vmem:[%s2683] ss:$2 sm:$0x7f]
        %s2685 = scalar_lea.vmem [#allocation2], 1
        %v2686 = vld [vmem:[%s2685] ss:$2 sm:$0xff]
        %s2687 = scalar_lea.vmem [#allocation2], 17
        %v2688 = vld [vmem:[%s2687] ss:$2 sm:$0xff]
        %s2689 = scalar_lea.vmem [#allocation2], 33
        %v2690 = vld [vmem:[%s2689] ss:$2 sm:$0xff]
        %s2691 = scalar_lea.vmem [#allocation2], 49
        %v2692 = vld [vmem:[%s2691] ss:$2 sm:$0x7f]
        %v2693 = vmax.f32 %v2678, %v2686
        %v2694 = vmax.f32 %v2680, %v2688
        %v2695 = vmax.f32 %v2682, %v2690
        %v2696 = vmax.f32 %v2684, %v2692
        %s2697 = smul.u32 %s173, 32
        %s2698 = scalar_lea.vmem %s170, %s2697
        %2699 = vst.msk [vmem:[%s2698] sm:$0xff] %vm2668, %v2693
        %2700 = vst.msk [vmem:[%s2698 + $0x8] sm:$0xff] %vm2668, %v2694
        %2701 = vst.msk [vmem:[%s2698 + $0x10] sm:$0xff] %vm2668, %v2695
        %vm2702 = vcmask 522240
        %2703 = vst.msk [vmem:[%s2698 + $0x18] sm:$0x7f] %vm2702, %v2696
      $region37: #{net_forward.3} parent=31 // loop_footer
        %s177 = sadd.s32 1, %s173
      $region38: #{net_forward.3} parent=31 // loop_footer_branch
        %172 = sbr.rel target = $region34
      $region39: #{net_forward.3} parent=31 // loop_exit
        _
      %p2704 = scmp.lt.s32.totalorder %s14, 1
      %s2705 = scalar_select %p2704, %s14, 1
      %s2706 = smul.addr %s2705, 124
      %s2707 = smul.addr %s2706, 8
      %s2708 = scalar_lea.vmem %s3, %s2707
      // Predicated region
      $region40: #{net_forward.3} parent=31 // pred_check
        %p2709 = pneg %p100
      $region41: #{net_forward.3} parent=31 // pred_check_branch
        %2711 = sbr.rel (%p2709) target = $region43
      $region42: #{net_forward.3} parent=31 // pred_region
        _
      $region43: #{net_forward.3} parent=31 // pred_fallthru
        _
    $region32: #{net_forward.3} parent=5 // pred_fallthru
      _
    %p2712 = scmp.le.s32.totalorder 2, %s9
    // Predicated region
    $region44: #{net_forward.3} parent=5 // pred_check
      %p2713 = pneg %p2712
    $region45: #{net_forward.3} parent=5 // pred_check_branch
      %2715 = sbr.rel (%p2713) target = $region47
    $region46: #{net_forward.3} parent=5 // pred_region
      %s2716 = ssub.s32 %s9, 2
      // Predicated region
      $region48: #{net_forward.3} parent=46 // pred_check
        %p2717 = pneg %p106
      $region49: #{net_forward.3} parent=46 // pred_check_branch
        %2719 = sbr.rel (%p2717) target = $region51
      $region50: #{net_forward.3} parent=46 // pred_region
        %p2720 = scmp.lt.s32.totalorder %s15, 1
        %s2721 = scalar_select %p2720, %s15, 1
        %s2722 = smul.addr %s2721, 124
        %s2723 = smul.addr %s2722, 8
        %s2724 = scalar_lea.vmem %s3, %s2723
      $region51: #{net_forward.3} parent=46 // pred_fallthru
        _
    $region47: #{net_forward.3} parent=5 // pred_fallthru
      _
  $region6: #{net_forward.3} parent=0 // loop_footer
    %s13 = sadd.s32 1, %s9
  $region7: #{net_forward.3} parent=0 // loop_footer_branch
    %8 = sbr.rel target = $region3
  $region8: #{net_forward.3} parent=0 // loop_exit
    _

// kernel: net_forward.5
$region0: #{net_forward.5}
  #allocation0 [shape = 'u32[]', space=smem, size = 0x4, offset = 0x4, fixed_abs, tag = 'smem constant byte address 0x4 - core index']
  #allocation1 [shape = 'u32[144,128]{1,0:T(1,128)}', space=vmem, size = 0x12000, scoped, tag = 'internal scratch']
  %s0 = inlined_call_operand.vmem [shape: f32[2,2704], index: 0, kind: input, shape index: {}]
  %s1 = inlined_call_operand.vmem [shape: f32[2704,120], index: 1, kind: input, shape index: {}]
  %s2 = inlined_call_operand.vmem [shape: f32[1,120], index: 2, kind: input, shape index: {}]
  %s3 = inlined_call_operand.vmem [shape: f32[120,84], index: 3, kind: input, shape index: {}]
  %s4 = inlined_call_operand.vmem [shape: f32[1,84], index: 4, kind: input, shape index: {}]
  %s5 = inlined_call_operand.vmem [shape: f32[84,84], index: 5, kind: input, shape index: {}]
  %s6 = inlined_call_operand.vmem [shape: f32[1,84], index: 6, kind: input, shape index: {}]
  %s7 = inlined_call_operand.hbm [shape: f32[2,84], index: 7, kind: output, shape index: {}]
  %s8 = sld [smem:[#allocation0]]
  $region38: #{net_forward.5} parent=0
    _
  %s10 = ssub.s32 1, %s8
  %s11 = scalar_select 0, %s10, %s8
  $region1: #{net_forward.5} parent=0
    #allocation2 [shape = 'u8[1024]{0}', space=vmem, size = 0x400, scoped, tag = 'output window, operand 0, single buffered']
    #allocation3 [shape = 's32[1]{0}', space=sflag, size = 0x4, scoped, tag = 'scoped memory for net_forward.5']
    %12 = vsyncpa [#allocation3], 0
    // Predicated region
    $region2: #{net_forward.5} parent=1 // pred_check
      _
    $region3: #{net_forward.5} parent=1 // pred_check_branch
      %14 = sbr.rel (0) target = $region5
    $region4: #{net_forward.5} parent=1 // pred_region
      _
    $region5: #{net_forward.5} parent=1 // pred_fallthru
      _
    // Predicated region
    $region6: #{net_forward.5} parent=1 // pred_check
      _
    $region7: #{net_forward.5} parent=1 // pred_check_branch
      %16 = sbr.rel (0) target = $region9
    $region8: #{net_forward.5} parent=1 // pred_region
      _
    $region9: #{net_forward.5} parent=1 // pred_fallthru
      _
    // Predicated region
    $region10: #{net_forward.5} parent=1 // pred_check
      _
    $region11: #{net_forward.5} parent=1 // pred_check_branch
      %18 = sbr.rel (0) target = $region13
    $region12: #{net_forward.5} parent=1 // pred_region
      _
    $region13: #{net_forward.5} parent=1 // pred_fallthru
      _
    // Predicated region
    $region14: #{net_forward.5} parent=1 // pred_check
      _
    $region15: #{net_forward.5} parent=1 // pred_check_branch
      %20 = sbr.rel (0) target = $region17
    $region16: #{net_forward.5} parent=1 // pred_region
      _
    $region17: #{net_forward.5} parent=1 // pred_fallthru
      _
    // Predicated region
    $region18: #{net_forward.5} parent=1 // pred_check
      _
    $region19: #{net_forward.5} parent=1 // pred_check_branch
      %22 = sbr.rel (0) target = $region21
    $region20: #{net_forward.5} parent=1 // pred_region
      _
    $region21: #{net_forward.5} parent=1 // pred_fallthru
      _
    // Predicated region
    $region22: #{net_forward.5} parent=1 // pred_check
      _
    $region23: #{net_forward.5} parent=1 // pred_check_branch
      %24 = sbr.rel (0) target = $region25
    $region24: #{net_forward.5} parent=1 // pred_region
      _
    $region25: #{net_forward.5} parent=1 // pred_fallthru
      _
    // Predicated region
    $region26: #{net_forward.5} parent=1 // pred_check
      _
    $region27: #{net_forward.5} parent=1 // pred_check_branch
      %26 = sbr.rel (0) target = $region29
    $region28: #{net_forward.5} parent=1 // pred_region
      _
    $region29: #{net_forward.5} parent=1 // pred_fallthru
      _
    %v27 = vld [vmem:[%s0] sm:$0xff]
    %v28 = vld [vmem:[%s0 + $0x8] sm:$0xff]
    %v29 = vld [vmem:[%s0 + $0x10] sm:$0xff]
    %v30 = vld [vmem:[%s0 + $0x18] sm:$0xff]
    %v31 = vld [vmem:[%s0 + $0x20] sm:$0xff]
    %v32 = vld [vmem:[%s0 + $0x28] sm:$0xf]
    %v33 = vld [vmem:[%s1] sm:$0xff]
    %v34 = vld [vmem:[%s1 + $0x8] sm:$0xff]
    %v35 = vld [vmem:[%s1 + $0x10] sm:$0xff]
    %v36 = vld [vmem:[%s1 + $0x18] sm:$0xff]
    %v37 = vld [vmem:[%s1 + $0x20] sm:$0xff]
    %v38 = vld [vmem:[%s1 + $0x28] sm:$0xff]
    %v39 = vld [vmem:[%s1 + $0x30] sm:$0xff]
    %v40 = vld [vmem:[%s1 + $0x38] sm:$0xff]
    %v41 = vld [vmem:[%s1 + $0x40] sm:$0xff]
    %v42 = vld [vmem:[%s1 + $0x48] sm:$0xff]
    %v43 = vld [vmem:[%s1 + $0x50] sm:$0xff]
    %v44 = vld [vmem:[%s1 + $0x58] sm:$0xff]
    %v45 = vld [vmem:[%s1 + $0x60] sm:$0xff]
    %v46 = vld [vmem:[%s1 + $0x68] sm:$0xff]
    %v47 = vld [vmem:[%s1 + $0x70] sm:$0xff]
    %v48 = vld [vmem:[%s1 + $0x78] sm:$0xff]
    %v49 = vld [vmem:[%s1 + $0x80] sm:$0xff]
    %v50 = vld [vmem:[%s1 + $0x88] sm:$0xff]
    %v51 = vld [vmem:[%s1 + $0x90] sm:$0xff]
    %v52 = vld [vmem:[%s1 + $0x98] sm:$0xff]
    %v53 = vld [vmem:[%s1 + $0xa0] sm:$0xff]
    %v54 = vld [vmem:[%s1 + $0xa8] sm:$0xff]
    %v55 = vld [vmem:[%s1 + $0xb0] sm:$0xff]
    %v56 = vld [vmem:[%s1 + $0xb8] sm:$0xff]
    %v57 = vld [vmem:[%s1 + $0xc0] sm:$0xff]
    %v58 = vld [vmem:[%s1 + $0xc8] sm:$0xff]
    %v59 = vld [vmem:[%s1 + $0xd0] sm:$0xff]
    %v60 = vld [vmem:[%s1 + $0xd8] sm:$0xff]
    %v61 = vld [vmem:[%s1 + $0xe0] sm:$0xff]
    %v62 = vld [vmem:[%s1 + $0xe8] sm:$0xff]
    %v63 = vld [vmem:[%s1 + $0xf0] sm:$0xff]
    %v64 = vld [vmem:[%s1 + $0xf8] sm:$0xff]
    %v65 = vld [vmem:[%s1 + $0x100] sm:$0xff]
    %v66 = vld [vmem:[%s1 + $0x108] sm:$0xff]
    %v67 = vld [vmem:[%s1 + $0x110] sm:$0xff]
    %v68 = vld [vmem:[%s1 + $0x118] sm:$0xff]
    %v69 = vld [vmem:[%s1 + $0x120] sm:$0xff]
    %v70 = vld [vmem:[%s1 + $0x128] sm:$0xff]
    %v71 = vld [vmem:[%s1 + $0x130] sm:$0xff]
    %v72 = vld [vmem:[%s1 + $0x138] sm:$0xff]
    %v73 = vld [vmem:[%s1 + $0x140] sm:$0xff]
    %v74 = vld [vmem:[%s1 + $0x148] sm:$0xff]
    %v75 = vld [vmem:[%s1 + $0x150] sm:$0xff]
    %v76 = vld [vmem:[%s1 + $0x158] sm:$0xff]
    %v77 = vld [vmem:[%s1 + $0x160] sm:$0xff]
    %v78 = vld [vmem:[%s1 + $0x168] sm:$0xff]
    %v79 = vld [vmem:[%s1 + $0x170] sm:$0xff]
    %v80 = vld [vmem:[%s1 + $0x178] sm:$0xff]
    %v81 = vld [vmem:[%s1 + $0x180] sm:$0xff]
    %v82 = vld [vmem:[%s1 + $0x188] sm:$0xff]
    %v83 = vld [vmem:[%s1 + $0x190] sm:$0xff]
    %v84 = vld [vmem:[%s1 + $0x198] sm:$0xff]
    %v85 = vld [vmem:[%s1 + $0x1a0] sm:$0xff]
    %v86 = vld [vmem:[%s1 + $0x1a8] sm:$0xff]
    %v87 = vld [vmem:[%s1 + $0x1b0] sm:$0xff]
    %v88 = vld [vmem:[%s1 + $0x1b8] sm:$0xff]
    %v89 = vld [vmem:[%s1 + $0x1c0] sm:$0xff]
    %v90 = vld [vmem:[%s1 + $0x1c8] sm:$0xff]
    %v91 = vld [vmem:[%s1 + $0x1d0] sm:$0xff]
    %v92 = vld [vmem:[%s1 + $0x1d8] sm:$0xff]
    %v93 = vld [vmem:[%s1 + $0x1e0] sm:$0xff]
    %v94 = vld [vmem:[%s1 + $0x1e8] sm:$0xff]
    %v95 = vld [vmem:[%s1 + $0x1f0] sm:$0xff]
    %v96 = vld [vmem:[%s1 + $0x1f8] sm:$0xff]
    %v97 = vld [vmem:[%s1 + $0x200] sm:$0xff]
    %v98 = vld [vmem:[%s1 + $0x208] sm:$0xff]
    %v99 = vld [vmem:[%s1 + $0x210] sm:$0xff]
    %v100 = vld [vmem:[%s1 + $0x218] sm:$0xff]
    %v101 = vld [vmem:[%s1 + $0x220] sm:$0xff]
    %v102 = vld [vmem:[%s1 + $0x228] sm:$0xff]
    %v103 = vld [vmem:[%s1 + $0x230] sm:$0xff]
    %v104 = vld [vmem:[%s1 + $0x238] sm:$0xff]
    %v105 = vld [vmem:[%s1 + $0x240] sm:$0xff]
    %v106 = vld [vmem:[%s1 + $0x248] sm:$0xff]
    %v107 = vld [vmem:[%s1 + $0x250] sm:$0xff]
    %v108 = vld [vmem:[%s1 + $0x258] sm:$0xff]
    %v109 = vld [vmem:[%s1 + $0x260] sm:$0xff]
    %v110 = vld [vmem:[%s1 + $0x268] sm:$0xff]
    %v111 = vld [vmem:[%s1 + $0x270] sm:$0xff]
    %v112 = vld [vmem:[%s1 + $0x278] sm:$0xff]
    %v113 = vld [vmem:[%s1 + $0x280] sm:$0xff]
    %v114 = vld [vmem:[%s1 + $0x288] sm:$0xff]
    %v115 = vld [vmem:[%s1 + $0x290] sm:$0xff]
    %v116 = vld [vmem:[%s1 + $0x298] sm:$0xff]
    %v117 = vld [vmem:[%s1 + $0x2a0] sm:$0xff]
    %v118 = vld [vmem:[%s1 + $0x2a8] sm:$0xff]
    %v119 = vld [vmem:[%s1 + $0x2b0] sm:$0xff]
    %v120 = vld [vmem:[%s1 + $0x2b8] sm:$0xff]
    %v121 = vld [vmem:[%s1 + $0x2c0] sm:$0xff]
    %v122 = vld [vmem:[%s1 + $0x2c8] sm:$0xff]
    %v123 = vld [vmem:[%s1 + $0x2d0] sm:$0xff]
    %v124 = vld [vmem:[%s1 + $0x2d8] sm:$0xff]
    %v125 = vld [vmem:[%s1 + $0x2e0] sm:$0xff]
    %v126 = vld [vmem:[%s1 + $0x2e8] sm:$0xff]
    %v127 = vld [vmem:[%s1 + $0x2f0] sm:$0xff]
    %v128 = vld [vmem:[%s1 + $0x2f8] sm:$0xff]
    %v129 = vld [vmem:[%s1 + $0x300] sm:$0xff]
    %v130 = vld [vmem:[%s1 + $0x308] sm:$0xff]
    %v131 = vld [vmem:[%s1 + $0x310] sm:$0xff]
    %v132 = vld [vmem:[%s1 + $0x318] sm:$0xff]
    %v133 = vld [vmem:[%s1 + $0x320] sm:$0xff]
    %v134 = vld [vmem:[%s1 + $0x328] sm:$0xff]
    %v135 = vld [vmem:[%s1 + $0x330] sm:$0xff]
    %v136 = vld [vmem:[%s1 + $0x338] sm:$0xff]
    %v137 = vld [vmem:[%s1 + $0x340] sm:$0xff]
    %v138 = vld [vmem:[%s1 + $0x348] sm:$0xff]
    %v139 = vld [vmem:[%s1 + $0x350] sm:$0xff]
    %v140 = vld [vmem:[%s1 + $0x358] sm:$0xff]
    %v141 = vld [vmem:[%s1 + $0x360] sm:$0xff]
    %v142 = vld [vmem:[%s1 + $0x368] sm:$0xff]
    %v143 = vld [vmem:[%s1 + $0x370] sm:$0xff]
    %v144 = vld [vmem:[%s1 + $0x378] sm:$0xff]
    %v145 = vld [vmem:[%s1 + $0x380] sm:$0xff]
    %v146 = vld [vmem:[%s1 + $0x388] sm:$0xff]
    %v147 = vld [vmem:[%s1 + $0x390] sm:$0xff]
    %v148 = vld [vmem:[%s1 + $0x398] sm:$0xff]
    %v149 = vld [vmem:[%s1 + $0x3a0] sm:$0xff]
    %v150 = vld [vmem:[%s1 + $0x3a8] sm:$0xff]
    %v151 = vld [vmem:[%s1 + $0x3b0] sm:$0xff]
    %v152 = vld [vmem:[%s1 + $0x3b8] sm:$0xff]
    %v153 = vld [vmem:[%s1 + $0x3c0] sm:$0xff]
    %v154 = vld [vmem:[%s1 + $0x3c8] sm:$0xff]
    %v155 = vld [vmem:[%s1 + $0x3d0] sm:$0xff]
    %v156 = vld [vmem:[%s1 + $0x3d8] sm:$0xff]
    %v157 = vld [vmem:[%s1 + $0x3e0] sm:$0xff]
    %v158 = vld [vmem:[%s1 + $0x3e8] sm:$0xff]
    %v159 = vld [vmem:[%s1 + $0x3f0] sm:$0xff]
    %v160 = vld [vmem:[%s1 + $0x3f8] sm:$0xff]
    %v161 = vld [vmem:[%s1 + $0x400] sm:$0xff]
    %v162 = vld [vmem:[%s1 + $0x408] sm:$0xff]
    %v163 = vld [vmem:[%s1 + $0x410] sm:$0xff]
    %v164 = vld [vmem:[%s1 + $0x418] sm:$0xff]
    %v165 = vld [vmem:[%s1 + $0x420] sm:$0xff]
    %v166 = vld [vmem:[%s1 + $0x428] sm:$0xff]
    %v167 = vld [vmem:[%s1 + $0x430] sm:$0xff]
    %v168 = vld [vmem:[%s1 + $0x438] sm:$0xff]
    %v169 = vld [vmem:[%s1 + $0x440] sm:$0xff]
    %v170 = vld [vmem:[%s1 + $0x448] sm:$0xff]
    %v171 = vld [vmem:[%s1 + $0x450] sm:$0xff]
    %v172 = vld [vmem:[%s1 + $0x458] sm:$0xff]
    %v173 = vld [vmem:[%s1 + $0x460] sm:$0xff]
    %v174 = vld [vmem:[%s1 + $0x468] sm:$0xff]
    %v175 = vld [vmem:[%s1 + $0x470] sm:$0xff]
    %v176 = vld [vmem:[%s1 + $0x478] sm:$0xff]
    %v177 = vld [vmem:[%s1 + $0x480] sm:$0xff]
    %v178 = vld [vmem:[%s1 + $0x488] sm:$0xff]
    %v179 = vld [vmem:[%s1 + $0x490] sm:$0xff]
    %v180 = vld [vmem:[%s1 + $0x498] sm:$0xff]
    %v181 = vld [vmem:[%s1 + $0x4a0] sm:$0xff]
    %v182 = vld [vmem:[%s1 + $0x4a8] sm:$0xff]
    %v183 = vld [vmem:[%s1 + $0x4b0] sm:$0xff]
    %v184 = vld [vmem:[%s1 + $0x4b8] sm:$0xff]
    %v185 = vld [vmem:[%s1 + $0x4c0] sm:$0xff]
    %v186 = vld [vmem:[%s1 + $0x4c8] sm:$0xff]
    %v187 = vld [vmem:[%s1 + $0x4d0] sm:$0xff]
    %v188 = vld [vmem:[%s1 + $0x4d8] sm:$0xff]
    %v189 = vld [vmem:[%s1 + $0x4e0] sm:$0xff]
    %v190 = vld [vmem:[%s1 + $0x4e8] sm:$0xff]
    %v191 = vld [vmem:[%s1 + $0x4f0] sm:$0xff]
    %v192 = vld [vmem:[%s1 + $0x4f8] sm:$0xff]
    %v193 = vld [vmem:[%s1 + $0x500] sm:$0xff]
    %v194 = vld [vmem:[%s1 + $0x508] sm:$0xff]
    %v195 = vld [vmem:[%s1 + $0x510] sm:$0xff]
    %v196 = vld [vmem:[%s1 + $0x518] sm:$0xff]
    %v197 = vld [vmem:[%s1 + $0x520] sm:$0xff]
    %v198 = vld [vmem:[%s1 + $0x528] sm:$0xff]
    %v199 = vld [vmem:[%s1 + $0x530] sm:$0xff]
    %v200 = vld [vmem:[%s1 + $0x538] sm:$0xff]
    %v201 = vld [vmem:[%s1 + $0x540] sm:$0xff]
    %v202 = vld [vmem:[%s1 + $0x548] sm:$0xff]
    %v203 = vld [vmem:[%s1 + $0x550] sm:$0xff]
    %v204 = vld [vmem:[%s1 + $0x558] sm:$0xff]
    %v205 = vld [vmem:[%s1 + $0x560] sm:$0xff]
    %v206 = vld [vmem:[%s1 + $0x568] sm:$0xff]
    %v207 = vld [vmem:[%s1 + $0x570] sm:$0xff]
    %v208 = vld [vmem:[%s1 + $0x578] sm:$0xff]
    %v209 = vld [vmem:[%s1 + $0x580] sm:$0xff]
    %v210 = vld [vmem:[%s1 + $0x588] sm:$0xff]
    %v211 = vld [vmem:[%s1 + $0x590] sm:$0xff]
    %v212 = vld [vmem:[%s1 + $0x598] sm:$0xff]
    %v213 = vld [vmem:[%s1 + $0x5a0] sm:$0xff]
    %v214 = vld [vmem:[%s1 + $0x5a8] sm:$0xff]
    %v215 = vld [vmem:[%s1 + $0x5b0] sm:$0xff]
    %v216 = vld [vmem:[%s1 + $0x5b8] sm:$0xff]
    %v217 = vld [vmem:[%s1 + $0x5c0] sm:$0xff]
    %v218 = vld [vmem:[%s1 + $0x5c8] sm:$0xff]
    %v219 = vld [vmem:[%s1 + $0x5d0] sm:$0xff]
    %v220 = vld [vmem:[%s1 + $0x5d8] sm:$0xff]
    %v221 = vld [vmem:[%s1 + $0x5e0] sm:$0xff]
    %v222 = vld [vmem:[%s1 + $0x5e8] sm:$0xff]
    %v223 = vld [vmem:[%s1 + $0x5f0] sm:$0xff]
    %v224 = vld [vmem:[%s1 + $0x5f8] sm:$0xff]
    %v225 = vld [vmem:[%s1 + $0x600] sm:$0xff]
    %v226 = vld [vmem:[%s1 + $0x608] sm:$0xff]
    %v227 = vld [vmem:[%s1 + $0x610] sm:$0xff]
    %v228 = vld [vmem:[%s1 + $0x618] sm:$0xff]
    %v229 = vld [vmem:[%s1 + $0x620] sm:$0xff]
    %v230 = vld [vmem:[%s1 + $0x628] sm:$0xff]
    %v231 = vld [vmem:[%s1 + $0x630] sm:$0xff]
    %v232 = vld [vmem:[%s1 + $0x638] sm:$0xff]
    %v233 = vld [vmem:[%s1 + $0x640] sm:$0xff]
    %v234 = vld [vmem:[%s1 + $0x648] sm:$0xff]
    %v235 = vld [vmem:[%s1 + $0x650] sm:$0xff]
    %v236 = vld [vmem:[%s1 + $0x658] sm:$0xff]
    %v237 = vld [vmem:[%s1 + $0x660] sm:$0xff]
    %v238 = vld [vmem:[%s1 + $0x668] sm:$0xff]
    %v239 = vld [vmem:[%s1 + $0x670] sm:$0xff]
    %v240 = vld [vmem:[%s1 + $0x678] sm:$0xff]
    %v241 = vld [vmem:[%s1 + $0x680] sm:$0xff]
    %v242 = vld [vmem:[%s1 + $0x688] sm:$0xff]
    %v243 = vld [vmem:[%s1 + $0x690] sm:$0xff]
    %v244 = vld [vmem:[%s1 + $0x698] sm:$0xff]
    %v245 = vld [vmem:[%s1 + $0x6a0] sm:$0xff]
    %v246 = vld [vmem:[%s1 + $0x6a8] sm:$0xff]
    %v247 = vld [vmem:[%s1 + $0x6b0] sm:$0xff]
    %v248 = vld [vmem:[%s1 + $0x6b8] sm:$0xff]
    %v249 = vld [vmem:[%s1 + $0x6c0] sm:$0xff]
    %v250 = vld [vmem:[%s1 + $0x6c8] sm:$0xff]
    %v251 = vld [vmem:[%s1 + $0x6d0] sm:$0xff]
    %v252 = vld [vmem:[%s1 + $0x6d8] sm:$0xff]
    %v253 = vld [vmem:[%s1 + $0x6e0] sm:$0xff]
    %v254 = vld [vmem:[%s1 + $0x6e8] sm:$0xff]
    %v255 = vld [vmem:[%s1 + $0x6f0] sm:$0xff]
    %v256 = vld [vmem:[%s1 + $0x6f8] sm:$0xff]
    %v257 = vld [vmem:[%s1 + $0x700] sm:$0xff]
    %v258 = vld [vmem:[%s1 + $0x708] sm:$0xff]
    %v259 = vld [vmem:[%s1 + $0x710] sm:$0xff]
    %v260 = vld [vmem:[%s1 + $0x718] sm:$0xff]
    %v261 = vld [vmem:[%s1 + $0x720] sm:$0xff]
    %v262 = vld [vmem:[%s1 + $0x728] sm:$0xff]
    %v263 = vld [vmem:[%s1 + $0x730] sm:$0xff]
    %v264 = vld [vmem:[%s1 + $0x738] sm:$0xff]
    %v265 = vld [vmem:[%s1 + $0x740] sm:$0xff]
    %v266 = vld [vmem:[%s1 + $0x748] sm:$0xff]
    %v267 = vld [vmem:[%s1 + $0x750] sm:$0xff]
    %v268 = vld [vmem:[%s1 + $0x758] sm:$0xff]
    %v269 = vld [vmem:[%s1 + $0x760] sm:$0xff]
    %v270 = vld [vmem:[%s1 + $0x768] sm:$0xff]
    %v271 = vld [vmem:[%s1 + $0x770] sm:$0xff]
    %v272 = vld [vmem:[%s1 + $0x778] sm:$0xff]
    %v273 = vld [vmem:[%s1 + $0x780] sm:$0xff]
    %v274 = vld [vmem:[%s1 + $0x788] sm:$0xff]
    %v275 = vld [vmem:[%s1 + $0x790] sm:$0xff]
    %v276 = vld [vmem:[%s1 + $0x798] sm:$0xff]
    %v277 = vld [vmem:[%s1 + $0x7a0] sm:$0xff]
    %v278 = vld [vmem:[%s1 + $0x7a8] sm:$0xff]
    %v279 = vld [vmem:[%s1 + $0x7b0] sm:$0xff]
    %v280 = vld [vmem:[%s1 + $0x7b8] sm:$0xff]
    %v281 = vld [vmem:[%s1 + $0x7c0] sm:$0xff]
    %v282 = vld [vmem:[%s1 + $0x7c8] sm:$0xff]
    %v283 = vld [vmem:[%s1 + $0x7d0] sm:$0xff]
    %v284 = vld [vmem:[%s1 + $0x7d8] sm:$0xff]
    %v285 = vld [vmem:[%s1 + $0x7e0] sm:$0xff]
    %v286 = vld [vmem:[%s1 + $0x7e8] sm:$0xff]
    %v287 = vld [vmem:[%s1 + $0x7f0] sm:$0xff]
    %v288 = vld [vmem:[%s1 + $0x7f8] sm:$0xff]
    %v289 = vld [vmem:[%s1 + $0x800] sm:$0xff]
    %v290 = vld [vmem:[%s1 + $0x808] sm:$0xff]
    %v291 = vld [vmem:[%s1 + $0x810] sm:$0xff]
    %v292 = vld [vmem:[%s1 + $0x818] sm:$0xff]
    %v293 = vld [vmem:[%s1 + $0x820] sm:$0xff]
    %v294 = vld [vmem:[%s1 + $0x828] sm:$0xff]
    %v295 = vld [vmem:[%s1 + $0x830] sm:$0xff]
    %v296 = vld [vmem:[%s1 + $0x838] sm:$0xff]
    %v297 = vld [vmem:[%s1 + $0x840] sm:$0xff]
    %v298 = vld [vmem:[%s1 + $0x848] sm:$0xff]
    %v299 = vld [vmem:[%s1 + $0x850] sm:$0xff]
    %v300 = vld [vmem:[%s1 + $0x858] sm:$0xff]
    %v301 = vld [vmem:[%s1 + $0x860] sm:$0xff]
    %v302 = vld [vmem:[%s1 + $0x868] sm:$0xff]
    %v303 = vld [vmem:[%s1 + $0x870] sm:$0xff]
    %v304 = vld [vmem:[%s1 + $0x878] sm:$0xff]
    %v305 = vld [vmem:[%s1 + $0x880] sm:$0xff]
    %v306 = vld [vmem:[%s1 + $0x888] sm:$0xff]
    %v307 = vld [vmem:[%s1 + $0x890] sm:$0xff]
    %v308 = vld [vmem:[%s1 + $0x898] sm:$0xff]
    %v309 = vld [vmem:[%s1 + $0x8a0] sm:$0xff]
    %v310 = vld [vmem:[%s1 + $0x8a8] sm:$0xff]
    %v311 = vld [vmem:[%s1 + $0x8b0] sm:$0xff]
    %v312 = vld [vmem:[%s1 + $0x8b8] sm:$0xff]
    %v313 = vld [vmem:[%s1 + $0x8c0] sm:$0xff]
    %v314 = vld [vmem:[%s1 + $0x8c8] sm:$0xff]
    %v315 = vld [vmem:[%s1 + $0x8d0] sm:$0xff]
    %v316 = vld [vmem:[%s1 + $0x8d8] sm:$0xff]
    %v317 = vld [vmem:[%s1 + $0x8e0] sm:$0xff]
    %v318 = vld [vmem:[%s1 + $0x8e8] sm:$0xff]
    %v319 = vld [vmem:[%s1 + $0x8f0] sm:$0xff]
    %v320 = vld [vmem:[%s1 + $0x8f8] sm:$0xff]
    %v321 = vld [vmem:[%s1 + $0x900] sm:$0xff]
    %v322 = vld [vmem:[%s1 + $0x908] sm:$0xff]
    %v323 = vld [vmem:[%s1 + $0x910] sm:$0xff]
    %v324 = vld [vmem:[%s1 + $0x918] sm:$0xff]
    %v325 = vld [vmem:[%s1 + $0x920] sm:$0xff]
    %v326 = vld [vmem:[%s1 + $0x928] sm:$0xff]
    %v327 = vld [vmem:[%s1 + $0x930] sm:$0xff]
    %v328 = vld [vmem:[%s1 + $0x938] sm:$0xff]
    %v329 = vld [vmem:[%s1 + $0x940] sm:$0xff]
    %v330 = vld [vmem:[%s1 + $0x948] sm:$0xff]
    %v331 = vld [vmem:[%s1 + $0x950] sm:$0xff]
    %v332 = vld [vmem:[%s1 + $0x958] sm:$0xff]
    %v333 = vld [vmem:[%s1 + $0x960] sm:$0xff]
    %v334 = vld [vmem:[%s1 + $0x968] sm:$0xff]
    %v335 = vld [vmem:[%s1 + $0x970] sm:$0xff]
    %v336 = vld [vmem:[%s1 + $0x978] sm:$0xff]
    %v337 = vld [vmem:[%s1 + $0x980] sm:$0xff]
    %v338 = vld [vmem:[%s1 + $0x988] sm:$0xff]
    %v339 = vld [vmem:[%s1 + $0x990] sm:$0xff]
    %v340 = vld [vmem:[%s1 + $0x998] sm:$0xff]
    %v341 = vld [vmem:[%s1 + $0x9a0] sm:$0xff]
    %v342 = vld [vmem:[%s1 + $0x9a8] sm:$0xff]
    %v343 = vld [vmem:[%s1 + $0x9b0] sm:$0xff]
    %v344 = vld [vmem:[%s1 + $0x9b8] sm:$0xff]
    %v345 = vld [vmem:[%s1 + $0x9c0] sm:$0xff]
    %v346 = vld [vmem:[%s1 + $0x9c8] sm:$0xff]
    %v347 = vld [vmem:[%s1 + $0x9d0] sm:$0xff]
    %v348 = vld [vmem:[%s1 + $0x9d8] sm:$0xff]
    %v349 = vld [vmem:[%s1 + $0x9e0] sm:$0xff]
    %v350 = vld [vmem:[%s1 + $0x9e8] sm:$0xff]
    %v351 = vld [vmem:[%s1 + $0x9f0] sm:$0xff]
    %v352 = vld [vmem:[%s1 + $0x9f8] sm:$0xff]
    %v353 = vld [vmem:[%s1 + $0xa00] sm:$0xff]
    %v354 = vld [vmem:[%s1 + $0xa08] sm:$0xff]
    %v355 = vld [vmem:[%s1 + $0xa10] sm:$0xff]
    %v356 = vld [vmem:[%s1 + $0xa18] sm:$0xff]
    %v357 = vld [vmem:[%s1 + $0xa20] sm:$0xff]
    %v358 = vld [vmem:[%s1 + $0xa28] sm:$0xff]
    %v359 = vld [vmem:[%s1 + $0xa30] sm:$0xff]
    %v360 = vld [vmem:[%s1 + $0xa38] sm:$0xff]
    %v361 = vld [vmem:[%s1 + $0xa40] sm:$0xff]
    %v362 = vld [vmem:[%s1 + $0xa48] sm:$0xff]
    %v363 = vld [vmem:[%s1 + $0xa50] sm:$0xff]
    %v364 = vld [vmem:[%s1 + $0xa58] sm:$0xff]
    %v365 = vld [vmem:[%s1 + $0xa60] sm:$0xff]
    %v366 = vld [vmem:[%s1 + $0xa68] sm:$0xff]
    %v367 = vld [vmem:[%s1 + $0xa70] sm:$0xff]
    %v368 = vld [vmem:[%s1 + $0xa78] sm:$0xff]
    %v369 = vld [vmem:[%s1 + $0xa80] sm:$0xff]
    %v370 = vld [vmem:[%s1 + $0xa88] sm:$0xff]
    %v371 = vld [vmem:[%s2] sm:$0x1]
    %v373 = vlaneseq
    %v374 = vshrl.u32 %v373, 7
    %v375 = vsub.s32 0, %v374
    %v376 = vrot.slane %v371, %v375
    %v384 = vcombine.high %v27, %v27
    %v386 = vunpack.c.l.s4 1983009808
    %v387 = vunpack.c.0.s8 %v386
    %v388 = vlaneseq
    %v389 = vshrl.u32 %v388, 7
    %v390 = vsub.s32 %v387, %v389
    %v391 = vrot.slane %v27, %v390
    %v393 = vunpack.c.l.s4 1983009808
    %v394 = vunpack.c.0.s8 %v393
    %v395 = vlaneseq
    %v396 = vshrl.u32 %v395, 7
    %v397 = vsub.s32 %v394, %v396
    %v398 = vrot.slane %v384, %v397
    %v399 = vcombine.high %v391, %v391
    %v400 = vcombine.high %v398, %v398
    %v401 = vcombine.high %v28, %v28
    %v403 = vunpack.c.l.s4 1983009808
    %v404 = vunpack.c.0.s8 %v403
    %v405 = vlaneseq
    %v406 = vshrl.u32 %v405, 7
    %v407 = vsub.s32 %v404, %v406
    %v408 = vrot.slane %v28, %v407
    %v410 = vunpack.c.l.s4 1983009808
    %v411 = vunpack.c.0.s8 %v410
    %v412 = vlaneseq
    %v413 = vshrl.u32 %v412, 7
    %v414 = vsub.s32 %v411, %v413
    %v415 = vrot.slane %v401, %v414
    %v416 = vcombine.high %v408, %v408
    %v417 = vcombine.high %v415, %v415
    %v418 = vcombine.high %v29, %v29
    %v420 = vunpack.c.l.s4 1983009808
    %v421 = vunpack.c.0.s8 %v420
    %v422 = vlaneseq
    %v423 = vshrl.u32 %v422, 7
    %v424 = vsub.s32 %v421, %v423
    %v425 = vrot.slane %v29, %v424
    %v427 = vunpack.c.l.s4 1983009808
    %v428 = vunpack.c.0.s8 %v427
    %v429 = vlaneseq
    %v430 = vshrl.u32 %v429, 7
    %v431 = vsub.s32 %v428, %v430
    %v432 = vrot.slane %v418, %v431
    %v433 = vcombine.high %v425, %v425
    %v434 = vcombine.high %v432, %v432
    %v435 = vcombine.high %v30, %v30
    %v437 = vunpack.c.l.s4 1983009808
    %v438 = vunpack.c.0.s8 %v437
    %v439 = vlaneseq
    %v440 = vshrl.u32 %v439, 7
    %v441 = vsub.s32 %v438, %v440
    %v442 = vrot.slane %v30, %v441
    %v444 = vunpack.c.l.s4 1983009808
    %v445 = vunpack.c.0.s8 %v444
    %v446 = vlaneseq
    %v447 = vshrl.u32 %v446, 7
    %v448 = vsub.s32 %v445, %v447
    %v449 = vrot.slane %v435, %v448
    %v450 = vcombine.high %v442, %v442
    %v451 = vcombine.high %v449, %v449
    %v452 = vcombine.high %v31, %v31
    %v454 = vunpack.c.l.s4 1983009808
    %v455 = vunpack.c.0.s8 %v454
    %v456 = vlaneseq
    %v457 = vshrl.u32 %v456, 7
    %v458 = vsub.s32 %v455, %v457
    %v459 = vrot.slane %v31, %v458
    %v461 = vunpack.c.l.s4 1983009808
    %v462 = vunpack.c.0.s8 %v461
    %v463 = vlaneseq
    %v464 = vshrl.u32 %v463, 7
    %v465 = vsub.s32 %v462, %v464
    %v466 = vrot.slane %v452, %v465
    %v467 = vcombine.high %v459, %v459
    %v468 = vcombine.high %v466, %v466
    %v470 = vunpack.c.l.s4 1983009808
    %v471 = vunpack.c.0.s8 %v470
    %v472 = vlaneseq
    %v473 = vshrl.u32 %v472, 7
    %v474 = vsub.s32 %v471, %v473
    %v475 = vrot.slane %v32, %v474
    %v476 = vcombine.high %v475, %v475
    %vm498 = vcmask 130048
    %v499 = vsel %vm498, %v476, 0
    %501 = vmatprep.subr.mxu0 0.0
    %502 = vmatpush1.msra.mxu0 %v33
    %503 = vmatprep.subr.mxu0 0.0
    %504 = vmatpush1.msra.mxu0 %v34
    %505 = vmatprep.subr.mxu0 0.0
    %506 = vmatpush1.msra.mxu0 %v35
    %507 = vmatprep.subr.mxu0 0.0
    %508 = vmatpush1.msra.mxu0 %v36
    %509 = vmatprep.subr.mxu0 0.0
    %510 = vmatpush1.msra.mxu0 %v37
    %511 = vmatprep.subr.mxu0 0.0
    %512 = vmatpush1.msra.mxu0 %v38
    %513 = vmatprep.subr.mxu0 0.0
    %514 = vmatpush1.msra.mxu0 %v39
    %515 = vmatprep.subr.mxu0 0.0
    %516 = vmatpush1.msra.mxu0 %v40
    %517 = vmatprep.subr.mxu0 0.0
    %518 = vmatpush1.msra.mxu0 %v41
    %519 = vmatprep.subr.mxu0 0.0
    %520 = vmatpush1.msra.mxu0 %v42
    %521 = vmatprep.subr.mxu0 0.0
    %522 = vmatpush1.msra.mxu0 %v43
    %523 = vmatprep.subr.mxu0 0.0
    %524 = vmatpush1.msra.mxu0 %v44
    %525 = vmatprep.subr.mxu0 0.0
    %526 = vmatpush1.msra.mxu0 %v45
    %527 = vmatprep.subr.mxu0 0.0
    %528 = vmatpush1.msra.mxu0 %v46
    %529 = vmatprep.subr.mxu0 0.0
    %530 = vmatpush1.msra.mxu0 %v47
    %531 = vmatprep.subr.mxu0 0.0
    %532 = vmatpush1.msra.mxu0 %v48
    %533 = vmatprep.subr.mxu0 0.0
    %534 = vmatpush1.msra.mxu0 %v49
    %535 = vmatprep.subr.mxu0 0.0
    %536 = vmatpush1.msra.mxu0 %v50
    %537 = vmatprep.subr.mxu0 0.0
    %538 = vmatpush1.msra.mxu0 %v51
    %539 = vmatprep.subr.mxu0 0.0
    %540 = vmatpush1.msra.mxu0 %v52
    %541 = vmatprep.subr.mxu0 0.0
    %542 = vmatpush1.msra.mxu0 %v53
    %543 = vmatprep.subr.mxu0 0.0
    %544 = vmatpush1.msra.mxu0 %v54
    %545 = vmatprep.subr.mxu0 0.0
    %546 = vmatpush1.msra.mxu0 %v55
    %547 = vmatprep.subr.mxu0 0.0
    %548 = vmatpush1.msra.mxu0 %v56
    %549 = vmatprep.subr.mxu0 0.0
    %550 = vmatpush1.msra.mxu0 %v57
    %551 = vmatprep.subr.mxu0 0.0
    %552 = vmatpush1.msra.mxu0 %v58
    %553 = vmatprep.subr.mxu0 0.0
    %554 = vmatpush1.msra.mxu0 %v59
    %555 = vmatprep.subr.mxu0 0.0
    %556 = vmatpush1.msra.mxu0 %v60
    %557 = vmatprep.subr.mxu0 0.0
    %558 = vmatpush1.msra.mxu0 %v61
    %559 = vmatprep.subr.mxu0 0.0
    %560 = vmatpush1.msra.mxu0 %v62
    %561 = vmatprep.subr.mxu0 0.0
    %562 = vmatpush1.msra.mxu0 %v63
    %563 = vmatprep.subr.mxu0 0.0
    %564 = vmatpush1.msra.mxu0 %v64
    %565 = vmatprep.mubr.f32.mxu0 %v399
    %566 = vmatmul.mubr.f32.gmra.mrb[0].mxu0 %v391
    %v567 = vpop.f32.mrb[0].mxu0
    %v568 = vadd.f32 %v376, %v567
    %v569 = vpop.f32.mrb[0].mxu0
    %570 = vdwg.mxu0
    %571 = vmatprep.subr.mxu0 0.0
    %572 = vmatpush1.msra.mxu0 %v65
    %573 = vmatprep.subr.mxu0 0.0
    %574 = vmatpush1.msra.mxu0 %v66
    %575 = vmatprep.subr.mxu0 0.0
    %576 = vmatpush1.msra.mxu0 %v67
    %577 = vmatprep.subr.mxu0 0.0
    %578 = vmatpush1.msra.mxu0 %v68
    %579 = vmatprep.subr.mxu0 0.0
    %580 = vmatpush1.msra.mxu0 %v69
    %581 = vmatprep.subr.mxu0 0.0
    %582 = vmatpush1.msra.mxu0 %v70
    %583 = vmatprep.subr.mxu0 0.0
    %584 = vmatpush1.msra.mxu0 %v71
    %585 = vmatprep.subr.mxu0 0.0
    %586 = vmatpush1.msra.mxu0 %v72
    %587 = vmatprep.subr.mxu0 0.0
    %588 = vmatpush1.msra.mxu0 %v73
    %589 = vmatprep.subr.mxu0 0.0
    %590 = vmatpush1.msra.mxu0 %v74
    %591 = vmatprep.subr.mxu0 0.0
    %592 = vmatpush1.msra.mxu0 %v75
    %593 = vmatprep.subr.mxu0 0.0
    %594 = vmatpush1.msra.mxu0 %v76
    %595 = vmatprep.subr.mxu0 0.0
    %596 = vmatpush1.msra.mxu0 %v77
    %597 = vmatprep.subr.mxu0 0.0
    %598 = vmatpush1.msra.mxu0 %v78
    %599 = vmatprep.subr.mxu0 0.0
    %600 = vmatpush1.msra.mxu0 %v79
    %601 = vmatprep.subr.mxu0 0.0
    %602 = vmatpush1.msra.mxu0 %v80
    %603 = vmatprep.subr.mxu0 0.0
    %604 = vmatpush1.msra.mxu0 %v81
    %605 = vmatprep.subr.mxu0 0.0
    %606 = vmatpush1.msra.mxu0 %v82
    %607 = vmatprep.subr.mxu0 0.0
    %608 = vmatpush1.msra.mxu0 %v83
    %609 = vmatprep.subr.mxu0 0.0
    %610 = vmatpush1.msra.mxu0 %v84
    %611 = vmatprep.subr.mxu0 0.0
    %612 = vmatpush1.msra.mxu0 %v85
    %613 = vmatprep.subr.mxu0 0.0
    %614 = vmatpush1.msra.mxu0 %v86
    %615 = vmatprep.subr.mxu0 0.0
    %616 = vmatpush1.msra.mxu0 %v87
    %617 = vmatprep.subr.mxu0 0.0
    %618 = vmatpush1.msra.mxu0 %v88
    %619 = vmatprep.subr.mxu0 0.0
    %620 = vmatpush1.msra.mxu0 %v89
    %621 = vmatprep.subr.mxu0 0.0
    %622 = vmatpush1.msra.mxu0 %v90
    %623 = vmatprep.subr.mxu0 0.0
    %624 = vmatpush1.msra.mxu0 %v91
    %625 = vmatprep.subr.mxu0 0.0
    %626 = vmatpush1.msra.mxu0 %v92
    %627 = vmatprep.subr.mxu0 0.0
    %628 = vmatpush1.msra.mxu0 %v93
    %629 = vmatprep.subr.mxu0 0.0
    %630 = vmatpush1.msra.mxu0 %v94
    %631 = vmatprep.subr.mxu0 0.0
    %632 = vmatpush1.msra.mxu0 %v95
    %633 = vmatprep.subr.mxu0 0.0
    %634 = vmatpush1.msra.mxu0 %v96
    %635 = vmatprep.mubr.f32.mxu0 %v400
    %636 = vmatmul.mubr.f32.gmra.mrb[0].mxu0 %v398
    %v637 = vpop.f32.mrb[0].mxu0
    %v638 = vadd.f32 %v568, %v637
    %v639 = vpop.f32.mrb[0].mxu0
    %640 = vdwg.mxu0
    %641 = vmatprep.subr.mxu0 0.0
    %642 = vmatpush1.msra.mxu0 %v97
    %643 = vmatprep.subr.mxu0 0.0
    %644 = vmatpush1.msra.mxu0 %v98
    %645 = vmatprep.subr.mxu0 0.0
    %646 = vmatpush1.msra.mxu0 %v99
    %647 = vmatprep.subr.mxu0 0.0
    %648 = vmatpush1.msra.mxu0 %v100
    %649 = vmatprep.subr.mxu0 0.0
    %650 = vmatpush1.msra.mxu0 %v101
    %651 = vmatprep.subr.mxu0 0.0
    %652 = vmatpush1.msra.mxu0 %v102
    %653 = vmatprep.subr.mxu0 0.0
    %654 = vmatpush1.msra.mxu0 %v103
    %655 = vmatprep.subr.mxu0 0.0
    %656 = vmatpush1.msra.mxu0 %v104
    %657 = vmatprep.subr.mxu0 0.0
    %658 = vmatpush1.msra.mxu0 %v105
    %659 = vmatprep.subr.mxu0 0.0
    %660 = vmatpush1.msra.mxu0 %v106
    %661 = vmatprep.subr.mxu0 0.0
    %662 = vmatpush1.msra.mxu0 %v107
    %663 = vmatprep.subr.mxu0 0.0
    %664 = vmatpush1.msra.mxu0 %v108
    %665 = vmatprep.subr.mxu0 0.0
    %666 = vmatpush1.msra.mxu0 %v109
    %667 = vmatprep.subr.mxu0 0.0
    %668 = vmatpush1.msra.mxu0 %v110
    %669 = vmatprep.subr.mxu0 0.0
    %670 = vmatpush1.msra.mxu0 %v111
    %671 = vmatprep.subr.mxu0 0.0
    %672 = vmatpush1.msra.mxu0 %v112
    %673 = vmatprep.subr.mxu0 0.0
    %674 = vmatpush1.msra.mxu0 %v113
    %675 = vmatprep.subr.mxu0 0.0
    %676 = vmatpush1.msra.mxu0 %v114
    %677 = vmatprep.subr.mxu0 0.0
    %678 = vmatpush1.msra.mxu0 %v115
    %679 = vmatprep.subr.mxu0 0.0
    %680 = vmatpush1.msra.mxu0 %v116
    %681 = vmatprep.subr.mxu0 0.0
    %682 = vmatpush1.msra.mxu0 %v117
    %683 = vmatprep.subr.mxu0 0.0
    %684 = vmatpush1.msra.mxu0 %v118
    %685 = vmatprep.subr.mxu0 0.0
    %686 = vmatpush1.msra.mxu0 %v119
    %687 = vmatprep.subr.mxu0 0.0
    %688 = vmatpush1.msra.mxu0 %v120
    %689 = vmatprep.subr.mxu0 0.0
    %690 = vmatpush1.msra.mxu0 %v121
    %691 = vmatprep.subr.mxu0 0.0
    %692 = vmatpush1.msra.mxu0 %v122
    %693 = vmatprep.subr.mxu0 0.0
    %694 = vmatpush1.msra.mxu0 %v123
    %695 = vmatprep.subr.mxu0 0.0
    %696 = vmatpush1.msra.mxu0 %v124
    %697 = vmatprep.subr.mxu0 0.0
    %698 = vmatpush1.msra.mxu0 %v125
    %699 = vmatprep.subr.mxu0 0.0
    %700 = vmatpush1.msra.mxu0 %v126
    %701 = vmatprep.subr.mxu0 0.0
    %702 = vmatpush1.msra.mxu0 %v127
    %703 = vmatprep.subr.mxu0 0.0
    %704 = vmatpush1.msra.mxu0 %v128
    %705 = vmatprep.mubr.f32.mxu0 %v416
    %706 = vmatmul.mubr.f32.gmra.mrb[0].mxu0 %v408
    %v707 = vpop.f32.mrb[0].mxu0
    %v708 = vadd.f32 %v638, %v707
    %v709 = vpop.f32.mrb[0].mxu0
    %710 = vdwg.mxu0
    %711 = vmatprep.subr.mxu0 0.0
    %712 = vmatpush1.msra.mxu0 %v129
    %713 = vmatprep.subr.mxu0 0.0
    %714 = vmatpush1.msra.mxu0 %v130
    %715 = vmatprep.subr.mxu0 0.0
    %716 = vmatpush1.msra.mxu0 %v131
    %717 = vmatprep.subr.mxu0 0.0
    %718 = vmatpush1.msra.mxu0 %v132
    %719 = vmatprep.subr.mxu0 0.0
    %720 = vmatpush1.msra.mxu0 %v133
    %721 = vmatprep.subr.mxu0 0.0
    %722 = vmatpush1.msra.mxu0 %v134
    %723 = vmatprep.subr.mxu0 0.0
    %724 = vmatpush1.msra.mxu0 %v135
    %725 = vmatprep.subr.mxu0 0.0
    %726 = vmatpush1.msra.mxu0 %v136
    %727 = vmatprep.subr.mxu0 0.0
    %728 = vmatpush1.msra.mxu0 %v137
    %729 = vmatprep.subr.mxu0 0.0
    %730 = vmatpush1.msra.mxu0 %v138
    %731 = vmatprep.subr.mxu0 0.0
    %732 = vmatpush1.msra.mxu0 %v139
    %733 = vmatprep.subr.mxu0 0.0
    %734 = vmatpush1.msra.mxu0 %v140
    %735 = vmatprep.subr.mxu0 0.0
    %736 = vmatpush1.msra.mxu0 %v141
    %737 = vmatprep.subr.mxu0 0.0
    %738 = vmatpush1.msra.mxu0 %v142
    %739 = vmatprep.subr.mxu0 0.0
    %740 = vmatpush1.msra.mxu0 %v143
    %741 = vmatprep.subr.mxu0 0.0
    %742 = vmatpush1.msra.mxu0 %v144
    %743 = vmatprep.subr.mxu0 0.0
    %744 = vmatpush1.msra.mxu0 %v145
    %745 = vmatprep.subr.mxu0 0.0
    %746 = vmatpush1.msra.mxu0 %v146
    %747 = vmatprep.subr.mxu0 0.0
    %748 = vmatpush1.msra.mxu0 %v147
    %749 = vmatprep.subr.mxu0 0.0
    %750 = vmatpush1.msra.mxu0 %v148
    %751 = vmatprep.subr.mxu0 0.0
    %752 = vmatpush1.msra.mxu0 %v149
    %753 = vmatprep.subr.mxu0 0.0
    %754 = vmatpush1.msra.mxu0 %v150
    %755 = vmatprep.subr.mxu0 0.0
    %756 = vmatpush1.msra.mxu0 %v151
    %757 = vmatprep.subr.mxu0 0.0
    %758 = vmatpush1.msra.mxu0 %v152
    %759 = vmatprep.subr.mxu0 0.0
    %760 = vmatpush1.msra.mxu0 %v153
    %761 = vmatprep.subr.mxu0 0.0
    %762 = vmatpush1.msra.mxu0 %v154
    %763 = vmatprep.subr.mxu0 0.0
    %764 = vmatpush1.msra.mxu0 %v155
    %765 = vmatprep.subr.mxu0 0.0
    %766 = vmatpush1.msra.mxu0 %v156
    %767 = vmatprep.subr.mxu0 0.0
    %768 = vmatpush1.msra.mxu0 %v157
    %769 = vmatprep.subr.mxu0 0.0
    %770 = vmatpush1.msra.mxu0 %v158
    %771 = vmatprep.subr.mxu0 0.0
    %772 = vmatpush1.msra.mxu0 %v159
    %773 = vmatprep.subr.mxu0 0.0
    %774 = vmatpush1.msra.mxu0 %v160
    %775 = vmatprep.mubr.f32.mxu0 %v417
    %776 = vmatmul.mubr.f32.gmra.mrb[0].mxu0 %v415
    %v777 = vpop.f32.mrb[0].mxu0
    %v778 = vadd.f32 %v708, %v777
    %v779 = vpop.f32.mrb[0].mxu0
    %780 = vdwg.mxu0
    %781 = vmatprep.subr.mxu0 0.0
    %782 = vmatpush1.msra.mxu0 %v161
    %783 = vmatprep.subr.mxu0 0.0
    %784 = vmatpush1.msra.mxu0 %v162
    %785 = vmatprep.subr.mxu0 0.0
    %786 = vmatpush1.msra.mxu0 %v163
    %787 = vmatprep.subr.mxu0 0.0
    %788 = vmatpush1.msra.mxu0 %v164
    %789 = vmatprep.subr.mxu0 0.0
    %790 = vmatpush1.msra.mxu0 %v165
    %791 = vmatprep.subr.mxu0 0.0
    %792 = vmatpush1.msra.mxu0 %v166
    %793 = vmatprep.subr.mxu0 0.0
    %794 = vmatpush1.msra.mxu0 %v167
    %795 = vmatprep.subr.mxu0 0.0
    %796 = vmatpush1.msra.mxu0 %v168
    %797 = vmatprep.subr.mxu0 0.0
    %798 = vmatpush1.msra.mxu0 %v169
    %799 = vmatprep.subr.mxu0 0.0
    %800 = vmatpush1.msra.mxu0 %v170
    %801 = vmatprep.subr.mxu0 0.0
    %802 = vmatpush1.msra.mxu0 %v171
    %803 = vmatprep.subr.mxu0 0.0
    %804 = vmatpush1.msra.mxu0 %v172
    %805 = vmatprep.subr.mxu0 0.0
    %806 = vmatpush1.msra.mxu0 %v173
    %807 = vmatprep.subr.mxu0 0.0
    %808 = vmatpush1.msra.mxu0 %v174
    %809 = vmatprep.subr.mxu0 0.0
    %810 = vmatpush1.msra.mxu0 %v175
    %811 = vmatprep.subr.mxu0 0.0
    %812 = vmatpush1.msra.mxu0 %v176
    %813 = vmatprep.subr.mxu0 0.0
    %814 = vmatpush1.msra.mxu0 %v177
    %815 = vmatprep.subr.mxu0 0.0
    %816 = vmatpush1.msra.mxu0 %v178
    %817 = vmatprep.subr.mxu0 0.0
    %818 = vmatpush1.msra.mxu0 %v179
    %819 = vmatprep.subr.mxu0 0.0
    %820 = vmatpush1.msra.mxu0 %v180
    %821 = vmatprep.subr.mxu0 0.0
    %822 = vmatpush1.msra.mxu0 %v181
    %823 = vmatprep.subr.mxu0 0.0
    %824 = vmatpush1.msra.mxu0 %v182
    %825 = vmatprep.subr.mxu0 0.0
    %826 = vmatpush1.msra.mxu0 %v183
    %827 = vmatprep.subr.mxu0 0.0
    %828 = vmatpush1.msra.mxu0 %v184
    %829 = vmatprep.subr.mxu0 0.0
    %830 = vmatpush1.msra.mxu0 %v185
    %831 = vmatprep.subr.mxu0 0.0
    %832 = vmatpush1.msra.mxu0 %v186
    %833 = vmatprep.subr.mxu0 0.0
    %834 = vmatpush1.msra.mxu0 %v187
    %835 = vmatprep.subr.mxu0 0.0
    %836 = vmatpush1.msra.mxu0 %v188
    %837 = vmatprep.subr.mxu0 0.0
    %838 = vmatpush1.msra.mxu0 %v189
    %839 = vmatprep.subr.mxu0 0.0
    %840 = vmatpush1.msra.mxu0 %v190
    %841 = vmatprep.subr.mxu0 0.0
    %842 = vmatpush1.msra.mxu0 %v191
    %843 = vmatprep.subr.mxu0 0.0
    %844 = vmatpush1.msra.mxu0 %v192
    %845 = vmatprep.mubr.f32.mxu0 %v433
    %846 = vmatmul.mubr.f32.gmra.mrb[0].mxu0 %v425
    %v847 = vpop.f32.mrb[0].mxu0
    %v848 = vadd.f32 %v778, %v847
    %v849 = vpop.f32.mrb[0].mxu0
    %850 = vdwg.mxu0
    %851 = vmatprep.subr.mxu0 0.0
    %852 = vmatpush1.msra.mxu0 %v193
    %853 = vmatprep.subr.mxu0 0.0
    %854 = vmatpush1.msra.mxu0 %v194
    %855 = vmatprep.subr.mxu0 0.0
    %856 = vmatpush1.msra.mxu0 %v195
    %857 = vmatprep.subr.mxu0 0.0
    %858 = vmatpush1.msra.mxu0 %v196
    %859 = vmatprep.subr.mxu0 0.0
    %860 = vmatpush1.msra.mxu0 %v197
    %861 = vmatprep.subr.mxu0 0.0
    %862 = vmatpush1.msra.mxu0 %v198
    %863 = vmatprep.subr.mxu0 0.0
    %864 = vmatpush1.msra.mxu0 %v199
    %865 = vmatprep.subr.mxu0 0.0
    %866 = vmatpush1.msra.mxu0 %v200
    %867 = vmatprep.subr.mxu0 0.0
    %868 = vmatpush1.msra.mxu0 %v201
    %869 = vmatprep.subr.mxu0 0.0
    %870 = vmatpush1.msra.mxu0 %v202
    %871 = vmatprep.subr.mxu0 0.0
    %872 = vmatpush1.msra.mxu0 %v203
    %873 = vmatprep.subr.mxu0 0.0
    %874 = vmatpush1.msra.mxu0 %v204
    %875 = vmatprep.subr.mxu0 0.0
    %876 = vmatpush1.msra.mxu0 %v205
    %877 = vmatprep.subr.mxu0 0.0
    %878 = vmatpush1.msra.mxu0 %v206
    %879 = vmatprep.subr.mxu0 0.0
    %880 = vmatpush1.msra.mxu0 %v207
    %881 = vmatprep.subr.mxu0 0.0
    %882 = vmatpush1.msra.mxu0 %v208
    %883 = vmatprep.subr.mxu0 0.0
    %884 = vmatpush1.msra.mxu0 %v209
    %885 = vmatprep.subr.mxu0 0.0
    %886 = vmatpush1.msra.mxu0 %v210
    %887 = vmatprep.subr.mxu0 0.0
    %888 = vmatpush1.msra.mxu0 %v211
    %889 = vmatprep.subr.mxu0 0.0
    %890 = vmatpush1.msra.mxu0 %v212
    %891 = vmatprep.subr.mxu0 0.0
    %892 = vmatpush1.msra.mxu0 %v213
    %893 = vmatprep.subr.mxu0 0.0
    %894 = vmatpush1.msra.mxu0 %v214
    %895 = vmatprep.subr.mxu0 0.0
    %896 = vmatpush1.msra.mxu0 %v215
    %897 = vmatprep.subr.mxu0 0.0
    %898 = vmatpush1.msra.mxu0 %v216
    %899 = vmatprep.subr.mxu0 0.0
    %900 = vmatpush1.msra.mxu0 %v217
    %901 = vmatprep.subr.mxu0 0.0
    %902 = vmatpush1.msra.mxu0 %v218
    %903 = vmatprep.subr.mxu0 0.0
    %904 = vmatpush1.msra.mxu0 %v219
    %905 = vmatprep.subr.mxu0 0.0
    %906 = vmatpush1.msra.mxu0 %v220
    %907 = vmatprep.subr.mxu0 0.0
    %908 = vmatpush1.msra.mxu0 %v221
    %909 = vmatprep.subr.mxu0 0.0
    %910 = vmatpush1.msra.mxu0 %v222
    %911 = vmatprep.subr.mxu0 0.0
    %912 = vmatpush1.msra.mxu0 %v223
    %913 = vmatprep.subr.mxu0 0.0
    %914 = vmatpush1.msra.mxu0 %v224
    %915 = vmatprep.mubr.f32.mxu0 %v434
    %916 = vmatmul.mubr.f32.gmra.mrb[0].mxu0 %v432
    %v917 = vpop.f32.mrb[0].mxu0
    %v918 = vadd.f32 %v848, %v917
    %v919 = vpop.f32.mrb[0].mxu0
    %920 = vdwg.mxu0
    %921 = vmatprep.subr.mxu0 0.0
    %922 = vmatpush1.msra.mxu0 %v225
    %923 = vmatprep.subr.mxu0 0.0
    %924 = vmatpush1.msra.mxu0 %v226
    %925 = vmatprep.subr.mxu0 0.0
    %926 = vmatpush1.msra.mxu0 %v227
    %927 = vmatprep.subr.mxu0 0.0
    %928 = vmatpush1.msra.mxu0 %v228
    %929 = vmatprep.subr.mxu0 0.0
    %930 = vmatpush1.msra.mxu0 %v229
    %931 = vmatprep.subr.mxu0 0.0
    %932 = vmatpush1.msra.mxu0 %v230
    %933 = vmatprep.subr.mxu0 0.0
    %934 = vmatpush1.msra.mxu0 %v231
    %935 = vmatprep.subr.mxu0 0.0
    %936 = vmatpush1.msra.mxu0 %v232
    %937 = vmatprep.subr.mxu0 0.0
    %938 = vmatpush1.msra.mxu0 %v233
    %939 = vmatprep.subr.mxu0 0.0
    %940 = vmatpush1.msra.mxu0 %v234
    %941 = vmatprep.subr.mxu0 0.0
    %942 = vmatpush1.msra.mxu0 %v235
    %943 = vmatprep.subr.mxu0 0.0
    %944 = vmatpush1.msra.mxu0 %v236
    %945 = vmatprep.subr.mxu0 0.0
    %946 = vmatpush1.msra.mxu0 %v237
    %947 = vmatprep.subr.mxu0 0.0
    %948 = vmatpush1.msra.mxu0 %v238
    %949 = vmatprep.subr.mxu0 0.0
    %950 = vmatpush1.msra.mxu0 %v239
    %951 = vmatprep.subr.mxu0 0.0
    %952 = vmatpush1.msra.mxu0 %v240
    %953 = vmatprep.subr.mxu0 0.0
    %954 = vmatpush1.msra.mxu0 %v241
    %955 = vmatprep.subr.mxu0 0.0
    %956 = vmatpush1.msra.mxu0 %v242
    %957 = vmatprep.subr.mxu0 0.0
    %958 = vmatpush1.msra.mxu0 %v243
    %959 = vmatprep.subr.mxu0 0.0
    %960 = vmatpush1.msra.mxu0 %v244
    %961 = vmatprep.subr.mxu0 0.0
    %962 = vmatpush1.msra.mxu0 %v245
    %963 = vmatprep.subr.mxu0 0.0
    %964 = vmatpush1.msra.mxu0 %v246
    %965 = vmatprep.subr.mxu0 0.0
    %966 = vmatpush1.msra.mxu0 %v247
    %967 = vmatprep.subr.mxu0 0.0
    %968 = vmatpush1.msra.mxu0 %v248
    %969 = vmatprep.subr.mxu0 0.0
    %970 = vmatpush1.msra.mxu0 %v249
    %971 = vmatprep.subr.mxu0 0.0
    %972 = vmatpush1.msra.mxu0 %v250
    %973 = vmatprep.subr.mxu0 0.0
    %974 = vmatpush1.msra.mxu0 %v251
    %975 = vmatprep.subr.mxu0 0.0
    %976 = vmatpush1.msra.mxu0 %v252
    %977 = vmatprep.subr.mxu0 0.0
    %978 = vmatpush1.msra.mxu0 %v253
    %979 = vmatprep.subr.mxu0 0.0
    %980 = vmatpush1.msra.mxu0 %v254
    %981 = vmatprep.subr.mxu0 0.0
    %982 = vmatpush1.msra.mxu0 %v255
    %983 = vmatprep.subr.mxu0 0.0
    %984 = vmatpush1.msra.mxu0 %v256
    %985 = vmatprep.mubr.f32.mxu0 %v450
    %986 = vmatmul.mubr.f32.gmra.mrb[0].mxu0 %v442
    %v987 = vpop.f32.mrb[0].mxu0
    %v988 = vadd.f32 %v918, %v987
    %v989 = vpop.f32.mrb[0].mxu0
    %990 = vdwg.mxu0
    %991 = vmatprep.subr.mxu0 0.0
    %992 = vmatpush1.msra.mxu0 %v257
    %993 = vmatprep.subr.mxu0 0.0
    %994 = vmatpush1.msra.mxu0 %v258
    %995 = vmatprep.subr.mxu0 0.0
    %996 = vmatpush1.msra.mxu0 %v259
    %997 = vmatprep.subr.mxu0 0.0
    %998 = vmatpush1.msra.mxu0 %v260
    %999 = vmatprep.subr.mxu0 0.0
    %1000 = vmatpush1.msra.mxu0 %v261
    %1001 = vmatprep.subr.mxu0 0.0
    %1002 = vmatpush1.msra.mxu0 %v262
    %1003 = vmatprep.subr.mxu0 0.0
    %1004 = vmatpush1.msra.mxu0 %v263
    %1005 = vmatprep.subr.mxu0 0.0
    %1006 = vmatpush1.msra.mxu0 %v264
    %1007 = vmatprep.subr.mxu0 0.0
    %1008 = vmatpush1.msra.mxu0 %v265
    %1009 = vmatprep.subr.mxu0 0.0
    %1010 = vmatpush1.msra.mxu0 %v266
    %1011 = vmatprep.subr.mxu0 0.0
    %1012 = vmatpush1.msra.mxu0 %v267
    %1013 = vmatprep.subr.mxu0 0.0
    %1014 = vmatpush1.msra.mxu0 %v268
    %1015 = vmatprep.subr.mxu0 0.0
    %1016 = vmatpush1.msra.mxu0 %v269
    %1017 = vmatprep.subr.mxu0 0.0
    %1018 = vmatpush1.msra.mxu0 %v270
    %1019 = vmatprep.subr.mxu0 0.0
    %1020 = vmatpush1.msra.mxu0 %v271
    %1021 = vmatprep.subr.mxu0 0.0
    %1022 = vmatpush1.msra.mxu0 %v272
    %1023 = vmatprep.subr.mxu0 0.0
    %1024 = vmatpush1.msra.mxu0 %v273
    %1025 = vmatprep.subr.mxu0 0.0
    %1026 = vmatpush1.msra.mxu0 %v274
    %1027 = vmatprep.subr.mxu0 0.0
    %1028 = vmatpush1.msra.mxu0 %v275
    %1029 = vmatprep.subr.mxu0 0.0
    %1030 = vmatpush1.msra.mxu0 %v276
    %1031 = vmatprep.subr.mxu0 0.0
    %1032 = vmatpush1.msra.mxu0 %v277
    %1033 = vmatprep.subr.mxu0 0.0
    %1034 = vmatpush1.msra.mxu0 %v278
    %1035 = vmatprep.subr.mxu0 0.0
    %1036 = vmatpush1.msra.mxu0 %v279
    %1037 = vmatprep.subr.mxu0 0.0
    %1038 = vmatpush1.msra.mxu0 %v280
    %1039 = vmatprep.subr.mxu0 0.0
    %1040 = vmatpush1.msra.mxu0 %v281
    %1041 = vmatprep.subr.mxu0 0.0
    %1042 = vmatpush1.msra.mxu0 %v282
    %1043 = vmatprep.subr.mxu0 0.0
    %1044 = vmatpush1.msra.mxu0 %v283
    %1045 = vmatprep.subr.mxu0 0.0
    %1046 = vmatpush1.msra.mxu0 %v284
    %1047 = vmatprep.subr.mxu0 0.0
    %1048 = vmatpush1.msra.mxu0 %v285
    %1049 = vmatprep.subr.mxu0 0.0
    %1050 = vmatpush1.msra.mxu0 %v286
    %1051 = vmatprep.subr.mxu0 0.0
    %1052 = vmatpush1.msra.mxu0 %v287
    %1053 = vmatprep.subr.mxu0 0.0
    %1054 = vmatpush1.msra.mxu0 %v288
    %1055 = vmatprep.mubr.f32.mxu0 %v451
    %1056 = vmatmul.mubr.f32.gmra.mrb[0].mxu0 %v449
    %v1057 = vpop.f32.mrb[0].mxu0
    %v1058 = vadd.f32 %v988, %v1057
    %v1059 = vpop.f32.mrb[0].mxu0
    %1060 = vdwg.mxu0
    %1061 = vmatprep.subr.mxu0 0.0
    %1062 = vmatpush1.msra.mxu0 %v289
    %1063 = vmatprep.subr.mxu0 0.0
    %1064 = vmatpush1.msra.mxu0 %v290
    %1065 = vmatprep.subr.mxu0 0.0
    %1066 = vmatpush1.msra.mxu0 %v291
    %1067 = vmatprep.subr.mxu0 0.0
    %1068 = vmatpush1.msra.mxu0 %v292
    %1069 = vmatprep.subr.mxu0 0.0
    %1070 = vmatpush1.msra.mxu0 %v293
    %1071 = vmatprep.subr.mxu0 0.0
    %1072 = vmatpush1.msra.mxu0 %v294
    %1073 = vmatprep.subr.mxu0 0.0
    %1074 = vmatpush1.msra.mxu0 %v295
    %1075 = vmatprep.subr.mxu0 0.0
    %1076 = vmatpush1.msra.mxu0 %v296
    %1077 = vmatprep.subr.mxu0 0.0
    %1078 = vmatpush1.msra.mxu0 %v297
    %1079 = vmatprep.subr.mxu0 0.0
    %1080 = vmatpush1.msra.mxu0 %v298
    %1081 = vmatprep.subr.mxu0 0.0
    %1082 = vmatpush1.msra.mxu0 %v299
    %1083 = vmatprep.subr.mxu0 0.0
    %1084 = vmatpush1.msra.mxu0 %v300
    %1085 = vmatprep.subr.mxu0 0.0
    %1086 = vmatpush1.msra.mxu0 %v301
    %1087 = vmatprep.subr.mxu0 0.0
    %1088 = vmatpush1.msra.mxu0 %v302
    %1089 = vmatprep.subr.mxu0 0.0
    %1090 = vmatpush1.msra.mxu0 %v303
    %1091 = vmatprep.subr.mxu0 0.0
    %1092 = vmatpush1.msra.mxu0 %v304
    %1093 = vmatprep.subr.mxu0 0.0
    %1094 = vmatpush1.msra.mxu0 %v305
    %1095 = vmatprep.subr.mxu0 0.0
    %1096 = vmatpush1.msra.mxu0 %v306
    %1097 = vmatprep.subr.mxu0 0.0
    %1098 = vmatpush1.msra.mxu0 %v307
    %1099 = vmatprep.subr.mxu0 0.0
    %1100 = vmatpush1.msra.mxu0 %v308
    %1101 = vmatprep.subr.mxu0 0.0
    %1102 = vmatpush1.msra.mxu0 %v309
    %1103 = vmatprep.subr.mxu0 0.0
    %1104 = vmatpush1.msra.mxu0 %v310
    %1105 = vmatprep.subr.mxu0 0.0
    %1106 = vmatpush1.msra.mxu0 %v311
    %1107 = vmatprep.subr.mxu0 0.0
    %1108 = vmatpush1.msra.mxu0 %v312
    %1109 = vmatprep.subr.mxu0 0.0
    %1110 = vmatpush1.msra.mxu0 %v313
    %1111 = vmatprep.subr.mxu0 0.0
    %1112 = vmatpush1.msra.mxu0 %v314
    %1113 = vmatprep.subr.mxu0 0.0
    %1114 = vmatpush1.msra.mxu0 %v315
    %1115 = vmatprep.subr.mxu0 0.0
    %1116 = vmatpush1.msra.mxu0 %v316
    %1117 = vmatprep.subr.mxu0 0.0
    %1118 = vmatpush1.msra.mxu0 %v317
    %1119 = vmatprep.subr.mxu0 0.0
    %1120 = vmatpush1.msra.mxu0 %v318
    %1121 = vmatprep.subr.mxu0 0.0
    %1122 = vmatpush1.msra.mxu0 %v319
    %1123 = vmatprep.subr.mxu0 0.0
    %1124 = vmatpush1.msra.mxu0 %v320
    %1125 = vmatprep.mubr.f32.mxu0 %v467
    %1126 = vmatmul.mubr.f32.gmra.mrb[0].mxu0 %v459
    %v1127 = vpop.f32.mrb[0].mxu0
    %v1128 = vadd.f32 %v1058, %v1127
    %v1129 = vpop.f32.mrb[0].mxu0
    %1130 = vdwg.mxu0
    %1131 = vmatprep.subr.mxu0 0.0
    %1132 = vmatpush1.msra.mxu0 %v321
    %1133 = vmatprep.subr.mxu0 0.0
    %1134 = vmatpush1.msra.mxu0 %v322
    %1135 = vmatprep.subr.mxu0 0.0
    %1136 = vmatpush1.msra.mxu0 %v323
    %1137 = vmatprep.subr.mxu0 0.0
    %1138 = vmatpush1.msra.mxu0 %v324
    %1139 = vmatprep.subr.mxu0 0.0
    %1140 = vmatpush1.msra.mxu0 %v325
    %1141 = vmatprep.subr.mxu0 0.0
    %1142 = vmatpush1.msra.mxu0 %v326
    %1143 = vmatprep.subr.mxu0 0.0
    %1144 = vmatpush1.msra.mxu0 %v327
    %1145 = vmatprep.subr.mxu0 0.0
    %1146 = vmatpush1.msra.mxu0 %v328
    %1147 = vmatprep.subr.mxu0 0.0
    %1148 = vmatpush1.msra.mxu0 %v329
    %1149 = vmatprep.subr.mxu0 0.0
    %1150 = vmatpush1.msra.mxu0 %v330
    %1151 = vmatprep.subr.mxu0 0.0
    %1152 = vmatpush1.msra.mxu0 %v331
    %1153 = vmatprep.subr.mxu0 0.0
    %1154 = vmatpush1.msra.mxu0 %v332
    %1155 = vmatprep.subr.mxu0 0.0
    %1156 = vmatpush1.msra.mxu0 %v333
    %1157 = vmatprep.subr.mxu0 0.0
    %1158 = vmatpush1.msra.mxu0 %v334
    %1159 = vmatprep.subr.mxu0 0.0
    %1160 = vmatpush1.msra.mxu0 %v335
    %1161 = vmatprep.subr.mxu0 0.0
    %1162 = vmatpush1.msra.mxu0 %v336
    %1163 = vmatprep.subr.mxu0 0.0
    %1164 = vmatpush1.msra.mxu0 %v337
    %1165 = vmatprep.subr.mxu0 0.0
    %1166 = vmatpush1.msra.mxu0 %v338
    %1167 = vmatprep.subr.mxu0 0.0
    %1168 = vmatpush1.msra.mxu0 %v339
    %1169 = vmatprep.subr.mxu0 0.0
    %1170 = vmatpush1.msra.mxu0 %v340
    %1171 = vmatprep.subr.mxu0 0.0
    %1172 = vmatpush1.msra.mxu0 %v341
    %1173 = vmatprep.subr.mxu0 0.0
    %1174 = vmatpush1.msra.mxu0 %v342
    %1175 = vmatprep.subr.mxu0 0.0
    %1176 = vmatpush1.msra.mxu0 %v343
    %1177 = vmatprep.subr.mxu0 0.0
    %1178 = vmatpush1.msra.mxu0 %v344
    %1179 = vmatprep.subr.mxu0 0.0
    %1180 = vmatpush1.msra.mxu0 %v345
    %1181 = vmatprep.subr.mxu0 0.0
    %1182 = vmatpush1.msra.mxu0 %v346
    %1183 = vmatprep.subr.mxu0 0.0
    %1184 = vmatpush1.msra.mxu0 %v347
    %1185 = vmatprep.subr.mxu0 0.0
    %1186 = vmatpush1.msra.mxu0 %v348
    %1187 = vmatprep.subr.mxu0 0.0
    %1188 = vmatpush1.msra.mxu0 %v349
    %1189 = vmatprep.subr.mxu0 0.0
    %1190 = vmatpush1.msra.mxu0 %v350
    %1191 = vmatprep.subr.mxu0 0.0
    %1192 = vmatpush1.msra.mxu0 %v351
    %1193 = vmatprep.subr.mxu0 0.0
    %1194 = vmatpush1.msra.mxu0 %v352
    %1195 = vmatprep.mubr.f32.mxu0 %v468
    %1196 = vmatmul.mubr.f32.gmra.mrb[0].mxu0 %v466
    %v1197 = vpop.f32.mrb[0].mxu0
    %v1198 = vadd.f32 %v1128, %v1197
    %v1199 = vpop.f32.mrb[0].mxu0
    %1200 = vdwg.mxu0
    %1201 = vmatprep.subr.mxu0 0.0
    %1202 = vmatpush1.msra.mxu0 %v353
    %1203 = vmatprep.subr.mxu0 0.0
    %1204 = vmatpush1.msra.mxu0 %v354
    %1205 = vmatprep.subr.mxu0 0.0
    %1206 = vmatpush1.msra.mxu0 %v355
    %1207 = vmatprep.subr.mxu0 0.0
    %1208 = vmatpush1.msra.mxu0 %v356
    %1209 = vmatprep.subr.mxu0 0.0
    %1210 = vmatpush1.msra.mxu0 %v357
    %1211 = vmatprep.subr.mxu0 0.0
    %1212 = vmatpush1.msra.mxu0 %v358
    %1213 = vmatprep.subr.mxu0 0.0
    %1214 = vmatpush1.msra.mxu0 %v359
    %1215 = vmatprep.subr.mxu0 0.0
    %1216 = vmatpush1.msra.mxu0 %v360
    %1217 = vmatprep.subr.mxu0 0.0
    %1218 = vmatpush1.msra.mxu0 %v361
    %1219 = vmatprep.subr.mxu0 0.0
    %1220 = vmatpush1.msra.mxu0 %v362
    %1221 = vmatprep.subr.mxu0 0.0
    %1222 = vmatpush1.msra.mxu0 %v363
    %1223 = vmatprep.subr.mxu0 0.0
    %1224 = vmatpush1.msra.mxu0 %v364
    %1225 = vmatprep.subr.mxu0 0.0
    %1226 = vmatpush1.msra.mxu0 %v365
    %1227 = vmatprep.subr.mxu0 0.0
    %1228 = vmatpush1.msra.mxu0 %v366
    %1229 = vmatprep.subr.mxu0 0.0
    %1230 = vmatpush1.msra.mxu0 %v367
    %1231 = vmatprep.subr.mxu0 0.0
    %1232 = vmatpush1.msra.mxu0 %v368
    %1233 = vmatprep.subr.mxu0 0.0
    %1234 = vmatpush1.msra.mxu0 %v369
    %1235 = vmatprep.subr.mxu0 0.0
    %1236 = vmatpush1.msra.mxu0 %v370
    %1237 = vmatprep.subr.mxu0 0.0
    %1238 = vmatpush1.msra.mxu0 0.0
    %1239 = vmatprep.subr.mxu0 0.0
    %1240 = vmatpush1.msra.mxu0 0.0
    %1241 = vmatprep.subr.mxu0 0.0
    %1242 = vmatpush1.msra.mxu0 0.0
    %1243 = vmatprep.subr.mxu0 0.0
    %1244 = vmatpush1.msra.mxu0 0.0
    %1245 = vmatprep.subr.mxu0 0.0
    %1246 = vmatpush1.msra.mxu0 0.0
    %1247 = vmatprep.subr.mxu0 0.0
    %1248 = vmatpush1.msra.mxu0 0.0
    %1249 = vmatprep.subr.mxu0 0.0
    %1250 = vmatpush1.msra.mxu0 0.0
    %1251 = vmatprep.subr.mxu0 0.0
    %1252 = vmatpush1.msra.mxu0 0.0
    %1253 = vmatprep.subr.mxu0 0.0
    %1254 = vmatpush1.msra.mxu0 0.0
    %1255 = vmatprep.subr.mxu0 0.0
    %1256 = vmatpush1.msra.mxu0 0.0
    %1257 = vmatprep.subr.mxu0 0.0
    %1258 = vmatpush1.msra.mxu0 0.0
    %1259 = vmatprep.subr.mxu0 0.0
    %1260 = vmatpush1.msra.mxu0 0.0
    %1261 = vmatprep.subr.mxu0 0.0
    %1262 = vmatpush1.msra.mxu0 0.0
    %1263 = vmatprep.subr.mxu0 0.0
    %1264 = vmatpush1.msra.mxu0 0.0
    %1265 = vmatprep.mubr.f32.mxu0 %v499
    %1266 = vmatmul.mubr.f32.gmra.mrb[0].mxu0 %v475
    %v1267 = vpop.f32.mrb[0].mxu0
    %v1268 = vadd.f32 %v1198, %v1267
    %v1269 = vpop.f32.mrb[0].mxu0
    %1270 = vdwg.mxu0
    %v1271 = vmax.f32 %v1268, 0.0
    %v1272 = vld [vmem:[%s3] sm:$0xff]
    %v1273 = vld [vmem:[%s3 + $0x8] sm:$0xff]
    %v1274 = vld [vmem:[%s3 + $0x10] sm:$0xff]
    %v1275 = vld [vmem:[%s3 + $0x18] sm:$0xff]
    %v1276 = vld [vmem:[%s3 + $0x20] sm:$0xff]
    %v1277 = vld [vmem:[%s3 + $0x28] sm:$0xff]
    %v1278 = vld [vmem:[%s3 + $0x30] sm:$0xff]
    %v1279 = vld [vmem:[%s3 + $0x38] sm:$0xff]
    %v1280 = vld [vmem:[%s3 + $0x40] sm:$0xff]
    %v1281 = vld [vmem:[%s3 + $0x48] sm:$0xff]
    %v1282 = vld [vmem:[%s3 + $0x50] sm:$0xff]
    %v1283 = vld [vmem:[%s3 + $0x58] sm:$0xff]
    %v1284 = vld [vmem:[%s3 + $0x60] sm:$0xff]
    %v1285 = vld [vmem:[%s3 + $0x68] sm:$0xff]
    %v1286 = vld [vmem:[%s3 + $0x70] sm:$0xff]
    %v1287 = vld [vmem:[%s4] sm:$0x1]
    %v1289 = vlaneseq
    %v1290 = vshrl.u32 %v1289, 7
    %v1291 = vsub.s32 0, %v1290
    %v1292 = vrot.slane %v1287, %v1291
    %vm1294 = vcmask 982016
    %v1296 = vsel %vm1294, %v1271, 0
    %1298 = vmatprep.subr.mxu0 0.0
    %1299 = vmatpush1.msra.mxu0 %v1272
    %1300 = vmatprep.subr.mxu0 0.0
    %1301 = vmatpush1.msra.mxu0 %v1273
    %1302 = vmatprep.subr.mxu0 0.0
    %1303 = vmatpush1.msra.mxu0 %v1274
    %1304 = vmatprep.subr.mxu0 0.0
    %1305 = vmatpush1.msra.mxu0 %v1275
    %1306 = vmatprep.subr.mxu0 0.0
    %1307 = vmatpush1.msra.mxu0 %v1276
    %1308 = vmatprep.subr.mxu0 0.0
    %1309 = vmatpush1.msra.mxu0 %v1277
    %1310 = vmatprep.subr.mxu0 0.0
    %1311 = vmatpush1.msra.mxu0 %v1278
    %1312 = vmatprep.subr.mxu0 0.0
    %1313 = vmatpush1.msra.mxu0 %v1279
    %1314 = vmatprep.subr.mxu0 0.0
    %1315 = vmatpush1.msra.mxu0 %v1280
    %1316 = vmatprep.subr.mxu0 0.0
    %1317 = vmatpush1.msra.mxu0 %v1281
    %1318 = vmatprep.subr.mxu0 0.0
    %1319 = vmatpush1.msra.mxu0 %v1282
    %1320 = vmatprep.subr.mxu0 0.0
    %1321 = vmatpush1.msra.mxu0 %v1283
    %1322 = vmatprep.subr.mxu0 0.0
    %1323 = vmatpush1.msra.mxu0 %v1284
    %1324 = vmatprep.subr.mxu0 0.0
    %1325 = vmatpush1.msra.mxu0 %v1285
    %1326 = vmatprep.subr.mxu0 0.0
    %1327 = vmatpush1.msra.mxu0 %v1286
    %1328 = vmatprep.subr.mxu0 0.0
    %1329 = vmatpush1.msra.mxu0 0.0
    %1330 = vmatprep.subr.mxu0 0.0
    %1331 = vmatpush1.msra.mxu0 0.0
    %1332 = vmatprep.subr.mxu0 0.0
    %1333 = vmatpush1.msra.mxu0 0.0
    %1334 = vmatprep.subr.mxu0 0.0
    %1335 = vmatpush1.msra.mxu0 0.0
    %1336 = vmatprep.subr.mxu0 0.0
    %1337 = vmatpush1.msra.mxu0 0.0
    %1338 = vmatprep.subr.mxu0 0.0
    %1339 = vmatpush1.msra.mxu0 0.0
    %1340 = vmatprep.subr.mxu0 0.0
    %1341 = vmatpush1.msra.mxu0 0.0
    %1342 = vmatprep.subr.mxu0 0.0
    %1343 = vmatpush1.msra.mxu0 0.0
    %1344 = vmatprep.subr.mxu0 0.0
    %1345 = vmatpush1.msra.mxu0 0.0
    %1346 = vmatprep.subr.mxu0 0.0
    %1347 = vmatpush1.msra.mxu0 0.0
    %1348 = vmatprep.subr.mxu0 0.0
    %1349 = vmatpush1.msra.mxu0 0.0
    %1350 = vmatprep.subr.mxu0 0.0
    %1351 = vmatpush1.msra.mxu0 0.0
    %1352 = vmatprep.subr.mxu0 0.0
    %1353 = vmatpush1.msra.mxu0 0.0
    %1354 = vmatprep.subr.mxu0 0.0
    %1355 = vmatpush1.msra.mxu0 0.0
    %1356 = vmatprep.subr.mxu0 0.0
    %1357 = vmatpush1.msra.mxu0 0.0
    %1358 = vmatprep.subr.mxu0 0.0
    %1359 = vmatpush1.msra.mxu0 0.0
    %1360 = vmatprep.subr.mxu0 0.0
    %1361 = vmatpush1.msra.mxu0 0.0
    %1362 = vmatprep.mubr.f32.mxu0 0.0
    %1363 = vmatmul.mubr.f32.gmra.mrb[0].mxu0 %v1296
    %v1364 = vpop.f32.mrb[0].mxu0
    %v1365 = vadd.f32 %v1292, %v1364
    %v1366 = vpop.f32.mrb[0].mxu0
    %1367 = vdwg.mxu0
    %v1368 = vmax.f32 %v1365, 0.0
    %v1369 = vld [vmem:[%s5] sm:$0xff]
    %v1370 = vld [vmem:[%s5 + $0x8] sm:$0xff]
    %v1371 = vld [vmem:[%s5 + $0x10] sm:$0xff]
    %v1372 = vld [vmem:[%s5 + $0x18] sm:$0xff]
    %v1373 = vld [vmem:[%s5 + $0x20] sm:$0xff]
    %v1374 = vld [vmem:[%s5 + $0x28] sm:$0xff]
    %v1375 = vld [vmem:[%s5 + $0x30] sm:$0xff]
    %v1376 = vld [vmem:[%s5 + $0x38] sm:$0xff]
    %v1377 = vld [vmem:[%s5 + $0x40] sm:$0xff]
    %v1378 = vld [vmem:[%s5 + $0x48] sm:$0xff]
    %v1379 = vld [vmem:[%s5 + $0x50] sm:$0xf]
    %v1380 = vld [vmem:[%s6] sm:$0x1]
    %v1382 = vlaneseq
    %v1383 = vshrl.u32 %v1382, 7
    %v1384 = vsub.s32 0, %v1383
    %v1385 = vrot.slane %v1380, %v1384
    %vm1387 = vcmask 687104
    %v1389 = vsel %vm1387, %v1368, 0
    %vm1391 = vcmask 1043456
    %v1393 = vsel %vm1391, %v1379, 0
    %1395 = vmatprep.subr.mxu0 0.0
    %1396 = vmatpush1.msra.mxu0 %v1369
    %1397 = vmatprep.subr.mxu0 0.0
    %1398 = vmatpush1.msra.mxu0 %v1370
    %1399 = vmatprep.subr.mxu0 0.0
    %1400 = vmatpush1.msra.mxu0 %v1371
    %1401 = vmatprep.subr.mxu0 0.0
    %1402 = vmatpush1.msra.mxu0 %v1372
    %1403 = vmatprep.subr.mxu0 0.0
    %1404 = vmatpush1.msra.mxu0 %v1373
    %1405 = vmatprep.subr.mxu0 0.0
    %1406 = vmatpush1.msra.mxu0 %v1374
    %1407 = vmatprep.subr.mxu0 0.0
    %1408 = vmatpush1.msra.mxu0 %v1375
    %1409 = vmatprep.subr.mxu0 0.0
    %1410 = vmatpush1.msra.mxu0 %v1376
    %1411 = vmatprep.subr.mxu0 0.0
    %1412 = vmatpush1.msra.mxu0 %v1377
    %1413 = vmatprep.subr.mxu0 0.0
    %1414 = vmatpush1.msra.mxu0 %v1378
    %1415 = vmatprep.subr.mxu0 0.0
    %1416 = vmatpush1.msra.mxu0 %v1393
    %1417 = vmatprep.subr.mxu0 0.0
    %1418 = vmatpush1.msra.mxu0 0.0
    %1419 = vmatprep.subr.mxu0 0.0
    %1420 = vmatpush1.msra.mxu0 0.0
    %1421 = vmatprep.subr.mxu0 0.0
    %1422 = vmatpush1.msra.mxu0 0.0
    %1423 = vmatprep.subr.mxu0 0.0
    %1424 = vmatpush1.msra.mxu0 0.0
    %1425 = vmatprep.subr.mxu0 0.0
    %1426 = vmatpush1.msra.mxu0 0.0
    %1427 = vmatprep.subr.mxu0 0.0
    %1428 = vmatpush1.msra.mxu0 0.0
    %1429 = vmatprep.subr.mxu0 0.0
    %1430 = vmatpush1.msra.mxu0 0.0
    %1431 = vmatprep.subr.mxu0 0.0
    %1432 = vmatpush1.msra.mxu0 0.0
    %1433 = vmatprep.subr.mxu0 0.0
    %1434 = vmatpush1.msra.mxu0 0.0
    %1435 = vmatprep.subr.mxu0 0.0
    %1436 = vmatpush1.msra.mxu0 0.0
    %1437 = vmatprep.subr.mxu0 0.0
    %1438 = vmatpush1.msra.mxu0 0.0
    %1439 = vmatprep.subr.mxu0 0.0
    %1440 = vmatpush1.msra.mxu0 0.0
    %1441 = vmatprep.subr.mxu0 0.0
    %1442 = vmatpush1.msra.mxu0 0.0
    %1443 = vmatprep.subr.mxu0 0.0
    %1444 = vmatpush1.msra.mxu0 0.0
    %1445 = vmatprep.subr.mxu0 0.0
    %1446 = vmatpush1.msra.mxu0 0.0
    %1447 = vmatprep.subr.mxu0 0.0
    %1448 = vmatpush1.msra.mxu0 0.0
    %1449 = vmatprep.subr.mxu0 0.0
    %1450 = vmatpush1.msra.mxu0 0.0
    %1451 = vmatprep.subr.mxu0 0.0
    %1452 = vmatpush1.msra.mxu0 0.0
    %1453 = vmatprep.subr.mxu0 0.0
    %1454 = vmatpush1.msra.mxu0 0.0
    %1455 = vmatprep.subr.mxu0 0.0
    %1456 = vmatpush1.msra.mxu0 0.0
    %1457 = vmatprep.subr.mxu0 0.0
    %1458 = vmatpush1.msra.mxu0 0.0
    %1459 = vmatprep.mubr.f32.mxu0 0.0
    %1460 = vmatmul.mubr.f32.gmra.mrb[0].mxu0 %v1389
    %v1461 = vpop.f32.mrb[0].mxu0
    %v1462 = vadd.f32 %v1385, %v1461
    %v1463 = vpop.f32.mrb[0].mxu0
    %1464 = vdwg.mxu0
    %vm1465 = vcmask 680960
    %1466 = vst.msk [vmem:[#allocation2] sm:$0x3] %vm1465, %v1462
    // Predicated region
    $region30: #{net_forward.5} parent=1 // pred_check
      _
    $region31: #{net_forward.5} parent=1 // pred_check_branch
      %1468 = sbr.rel (0) target = $region33
    $region32: #{net_forward.5} parent=1 // pred_region
      %s1470 = ssub.s32 32, 32
      %1471 = vsyncadd [#allocation3], %s1470
      %s1473 = sshll.u32 [#allocation2], 4
      %s1474 = int_to_ptr.vmem [resolvable:$true] %s1473
      %1476 = dma.vmem_to_hbm [thread:$0]  %s1474, 32, %s7, [#allocation3]
    $region33: #{net_forward.5} parent=1 // pred_fallthru
      _
    // Predicated region
    $region34: #{net_forward.5} parent=1 // pred_check
      _
    $region35: #{net_forward.5} parent=1 // pred_check_branch
      %1478 = sbr.rel (0) target = $region37
    $region36: #{net_forward.5} parent=1 // pred_region
      %1479 = dma.done [#allocation3], 32
    $region37: #{net_forward.5} parent=1 // pred_fallthru
      _
    %1480 = vsyncpa [#allocation3], 1

// kernel: net_forward.4
$region0: #{net_forward.4}
  #allocation0 [shape = 'u32[]', space=smem, size = 0x4, offset = 0x4, fixed_abs, tag = 'smem constant byte address 0x4 - core index']
  #allocation1 [shape = 'u32[144,128]{1,0:T(1,128)}', space=vmem, size = 0x12000, scoped, tag = 'internal scratch']
  #allocation2 [shape = 'f32[27,16]{1,0:T(8,128)}', space=vmem, size = 0x4000, scoped, tag = 'scratch operand']
  %s0 = inlined_call_operand.vmem [shape: f32[2,31,31,64], index: 0, kind: input, shape index: {}]
  %s1 = inlined_call_operand.vmem [shape: bf16[25,64,16], index: 1, kind: input, shape index: {}]
  %s2 = inlined_call_operand.vmem [shape: f32[1,16], index: 2, kind: input, shape index: {}]
  %s3 = inlined_call_operand.vmem [shape: f32[2,13,13,16], index: 3, kind: output, shape index: {}]
  %s4 = sld [smem:[#allocation0]]
  $region52: #{net_forward.4} parent=0
    _
  %s6 = ssub.s32 1, %s4
  %s7 = scalar_select 0, %s6, %s4
  loop: start=0, step=1, limit=4
  $region2: #{net_forward.4} parent=0 // loop_pre_header
    _
  $region3: #{net_forward.4} parent=0 // loop_header
    %s9 = sphi 0, %s13
    %p10 = scmp.ge.s32.totalorder %s9, 4
    %s19 = sphi 0, %s21
    %s22 = sphi 0, %s19
    %s23 = sphi 0, %s22
    %s39 = sphi 0, %s23
    %s43 = sphi 0, %s43
    %s45 = sphi 0, %s43
    %s46 = sphi 0, %s45
    %s60 = sphi 0, %s46
    %s64 = sphi 0, %s64
    %s66 = sphi 0, %s64
    %s67 = sphi 0, %s66
    %s81 = sphi 0, %s67
    %s87 = sphi 0, %s89
    %s90 = sphi 0, %s87
    %s91 = sphi 0, %s90
    %s107 = sphi 0, %s91
  $region4: #{net_forward.4} parent=0 // loop_header_branch
    %12 = sbr.rel (%p10) target = $region8
  $region5: #{net_forward.4} parent=0 // loop_body
    %s14 = ssub.s32 %s9, 1
    %s15 = ssub.s32 %s9, 2
    %s16 = sadd.s32 %s9, 1
    %s17 = ssub.s32 %s9, %s16
    %p18 = scmp.eq.s32.totalorder %s17, 0
    %s20 = sadd.s32 %s19, 1
    %s21 = scalar_select %p18, %s19, %s20
    %p24 = pneg %p18
    %p25 = scmp.eq.s32.totalorder %s9, 1
    %p26 = por %p24, %p25
    %p27 = scmp.ne.s32.totalorder %s19, %s22
    %p28 = scmp.eq.s32.totalorder %s9, 0
    %p29 = por %p27, %p28
    %p30 = scmp.ne.s32.totalorder %s19, %s22
    %p31 = scmp.eq.s32.totalorder %s14, 1
    %p32 = por %p30, %p31
    %p33 = scmp.ne.s32.totalorder %s22, %s23
    %p34 = scmp.eq.s32.totalorder %s14, 0
    %p35 = por %p33, %p34
    %p36 = scmp.ne.s32.totalorder %s22, %s23
    %p37 = scmp.eq.s32.totalorder %s15, 1
    %p38 = por %p36, %p37
    %p40 = scmp.ne.s32.totalorder %s23, %s39
    %p41 = scmp.eq.s32.totalorder %s15, 0
    %p42 = por %p40, %p41
    %s44 = sadd.s32 %s43, 1
    %p47 = scmp.eq.s32.totalorder %s9, 1
    %p48 = scmp.ne.s32.totalorder %s43, %s45
    %p49 = scmp.eq.s32.totalorder %s9, 0
    %p50 = por %p48, %p49
    %p51 = scmp.ne.s32.totalorder %s43, %s45
    %p52 = scmp.eq.s32.totalorder %s14, 1
    %p53 = por %p51, %p52
    %p54 = scmp.ne.s32.totalorder %s45, %s46
    %p55 = scmp.eq.s32.totalorder %s14, 0
    %p56 = por %p54, %p55
    %p57 = scmp.ne.s32.totalorder %s45, %s46
    %p58 = scmp.eq.s32.totalorder %s15, 1
    %p59 = por %p57, %p58
    %p61 = scmp.ne.s32.totalorder %s46, %s60
    %p62 = scmp.eq.s32.totalorder %s15, 0
    %p63 = por %p61, %p62
    %s65 = sadd.s32 %s64, 1
    %p68 = scmp.eq.s32.totalorder %s9, 1
    %p69 = scmp.ne.s32.totalorder %s64, %s66
    %p70 = scmp.eq.s32.totalorder %s9, 0
    %p71 = por %p69, %p70
    %p72 = scmp.ne.s32.totalorder %s64, %s66
    %p73 = scmp.eq.s32.totalorder %s14, 1
    %p74 = por %p72, %p73
    %p75 = scmp.ne.s32.totalorder %s66, %s67
    %p76 = scmp.eq.s32.totalorder %s14, 0
    %p77 = por %p75, %p76
    %p78 = scmp.ne.s32.totalorder %s66, %s67
    %p79 = scmp.eq.s32.totalorder %s15, 1
    %p80 = por %p78, %p79
    %p82 = scmp.ne.s32.totalorder %s67, %s81
    %p83 = scmp.eq.s32.totalorder %s15, 0
    %p84 = por %p82, %p83
    %s85 = ssub.s32 %s9, %s16
    %p86 = scmp.eq.s32.totalorder %s85, 0
    %s88 = sadd.s32 %s87, 1
    %s89 = scalar_select %p86, %s87, %s88
    %p92 = pneg %p86
    %p93 = scmp.eq.s32.totalorder %s9, 1
    %p94 = por %p92, %p93
    %p95 = scmp.ne.s32.totalorder %s87, %s90
    %p96 = scmp.eq.s32.totalorder %s9, 0
    %p97 = por %p95, %p96
    %p98 = scmp.ne.s32.totalorder %s87, %s90
    %p99 = scmp.eq.s32.totalorder %s14, 1
    %p100 = por %p98, %p99
    %p101 = scmp.ne.s32.totalorder %s90, %s91
    %p102 = scmp.eq.s32.totalorder %s14, 0
    %p103 = por %p101, %p102
    %p104 = scmp.ne.s32.totalorder %s90, %s91
    %p105 = scmp.eq.s32.totalorder %s15, 1
    %p106 = por %p104, %p105
    %p108 = scmp.ne.s32.totalorder %s91, %s107
    %p109 = scmp.eq.s32.totalorder %s15, 0
    %p110 = por %p108, %p109
    %p111 = scmp.le.s32.totalorder 1, %s9
    %p112 = scmp.lt.s32.totalorder %s9, 3
    %p113 = pnand %p111, %p112
    %p114 = pneg %p113
    // Predicated region
    $region9: #{net_forward.4} parent=5 // pred_check
      _
    $region10: #{net_forward.4} parent=5 // pred_check_branch
      %116 = sbr.rel (%p113) target = $region12
    $region11: #{net_forward.4} parent=5 // pred_region
      %s117 = ssub.s32 %s9, 1
      // Predicated region
      $region13: #{net_forward.4} parent=11 // pred_check
        %p118 = pneg %p56
      $region14: #{net_forward.4} parent=11 // pred_check_branch
        %120 = sbr.rel (%p118) target = $region16
      $region15: #{net_forward.4} parent=11 // pred_region
        _
      $region16: #{net_forward.4} parent=11 // pred_fallthru
        _
      // Predicated region
      $region17: #{net_forward.4} parent=11 // pred_check
        %p121 = pneg %p77
      $region18: #{net_forward.4} parent=11 // pred_check_branch
        %123 = sbr.rel (%p121) target = $region20
      $region19: #{net_forward.4} parent=11 // pred_region
        _
      $region20: #{net_forward.4} parent=11 // pred_fallthru
        _
    $region12: #{net_forward.4} parent=5 // pred_fallthru
      _
    %p124 = scmp.lt.s32.totalorder %s9, 2
    // Predicated region
    $region21: #{net_forward.4} parent=5 // pred_check
      %p125 = pneg %p124
    $region22: #{net_forward.4} parent=5 // pred_check_branch
      %127 = sbr.rel (%p125) target = $region24
    $region23: #{net_forward.4} parent=5 // pred_region
      // Predicated region
      $region25: #{net_forward.4} parent=23 // pred_check
        %p128 = pneg %p29
      $region26: #{net_forward.4} parent=23 // pred_check_branch
        %130 = sbr.rel (%p128) target = $region28
      $region27: #{net_forward.4} parent=23 // pred_region
        %p131 = scmp.lt.s32.totalorder %s9, 1
        %s132 = scalar_select %p131, %s9, 1
        %s133 = smul.addr %s132, 124
        %s134 = smul.addr %s133, 8
        %s135 = scalar_lea.vmem %s0, %s134
      $region28: #{net_forward.4} parent=23 // pred_fallthru
        _
    $region24: #{net_forward.4} parent=5 // pred_fallthru
      _
    %p136 = scmp.le.s32.totalorder 1, %s9
    %p137 = scmp.lt.s32.totalorder %s9, 3
    %p138 = pnand %p136, %p137
    %p139 = pneg %p138
    // Predicated region
    $region29: #{net_forward.4} parent=5 // pred_check
      _
    $region30: #{net_forward.4} parent=5 // pred_check_branch
      %141 = sbr.rel (%p138) target = $region32
    $region31: #{net_forward.4} parent=5 // pred_region
      %s142 = ssub.s32 %s9, 1
      %p143 = scmp.lt.s32.totalorder %s14, 1
      %s144 = scalar_select %p143, %s14, 1
      %s145 = smul.addr %s144, 124
      %s146 = smul.addr %s145, 8
      %s147 = scalar_lea.vmem %s0, %s146
      %p148 = pneg %p35
      %p149 = pneg %p32
      %p150 = pneg %p56
      %p151 = pneg %p53
      %p152 = pneg %p77
      %p153 = pneg %p74
      %p154 = pneg %p103
      %p155 = pneg %p100
      %p156 = scmp.lt.s32.totalorder %s14, 1
      %s157 = scalar_select %p156, %s14, 1
      %s158 = smul.addr %s157, 26
      %s159 = smul.addr %s158, 8
      %s160 = scalar_lea.vmem %s3, %s159
      %p161 = scmp.lt.s32.totalorder %s14, 1
      %s162 = scalar_select %p161, %s14, 1
      %s163 = smul.addr %s162, 124
      %s164 = smul.addr %s163, 8
      %s165 = scalar_lea.vmem %s0, %s164
      %p166 = scmp.lt.s32.totalorder %s14, 1
      %s167 = scalar_select %p166, %s14, 1
      %s168 = smul.addr %s167, 26
      %s169 = smul.addr %s168, 8
      %s170 = scalar_lea.vmem %s3, %s169
      %v172 = vld [vmem:[%s2] sm:$0x1]
      loop: start=0, step=1, limit=13
      $region33: #{net_forward.4} parent=31 // loop_pre_header
        _
      $region34: #{net_forward.4} parent=31 // loop_header
        %s174 = sphi 0, %s178
        %p175 = scmp.ge.s32.totalorder %s174, 13
      $region35: #{net_forward.4} parent=31 // loop_header_branch
        %177 = sbr.rel (%p175) target = $region39
      $region36: #{net_forward.4} parent=31 // loop_body
        %s179 = smul.u32 %s174, 2
        %s180 = smul.u32 %s179, 32
        %s181 = scalar_lea.vmem %s165, %s180
        %v182 = vld [vmem:[%s181] sm:$0xff]
        %v183 = vld [vmem:[%s181 + $0x8] sm:$0xff]
        %v184 = vld [vmem:[%s181 + $0x10] sm:$0xff]
        %v185 = vld [vmem:[%s181 + $0x18] sm:$0x7]
        %v186 = vpack.c.bf16 %v183, %v182
        %v187 = vpack.c.bf16 %v185, %v184
        %v188 = vld [vmem:[%s1] sm:$0xf]
        %v189 = vld [vmem:[%s1 + $0x4] sm:$0xf]
        %v190 = vld [vmem:[%s1 + $0x8] sm:$0xf]
        %v191 = vld [vmem:[%s1 + $0xc] sm:$0xf]
        %v192 = vld [vmem:[%s1 + $0x10] sm:$0xf]
        %v193 = vld [vmem:[%s1 + $0x14] sm:$0xf]
        %v194 = vld [vmem:[%s1 + $0x18] sm:$0xf]
        %v195 = vld [vmem:[%s1 + $0x1c] sm:$0xf]
        %v196 = vld [vmem:[%s181 + $0x1] sm:$0xff]
        %v197 = vld [vmem:[%s181 + $0x9] sm:$0xff]
        %v198 = vld [vmem:[%s181 + $0x11] sm:$0xff]
        %v199 = vld [vmem:[%s181 + $0x19] sm:$0x7]
        %v200 = vpack.c.bf16 %v197, %v196
        %v201 = vpack.c.bf16 %v199, %v198
        %s202 = scalar_lea.vmem %s1, 32
        %v203 = vld [vmem:[%s202] sm:$0xf]
        %v204 = vld [vmem:[%s202 + $0x4] sm:$0xf]
        %v205 = vld [vmem:[%s202 + $0x8] sm:$0xf]
        %v206 = vld [vmem:[%s202 + $0xc] sm:$0xf]
        %v207 = vld [vmem:[%s202 + $0x10] sm:$0xf]
        %v208 = vld [vmem:[%s202 + $0x14] sm:$0xf]
        %v209 = vld [vmem:[%s202 + $0x18] sm:$0xf]
        %v210 = vld [vmem:[%s202 + $0x1c] sm:$0xf]
        %v219 = vunpack.c.l.b16 %v203
        %v220 = vunpack.c.l.b16 %v204
        %v221 = vunpack.c.l.b16 %v205
        %v222 = vunpack.c.l.b16 %v206
        %v223 = vunpack.c.l.b16 %v207
        %v224 = vunpack.c.l.b16 %v208
        %v225 = vunpack.c.l.b16 %v209
        %v226 = vunpack.c.l.b16 %v210
        %v227 = vpack.c.b16 %v220, %v219
        %v228 = vpack.c.b16 %v222, %v221
        %v229 = vpack.c.b16 %v224, %v223
        %v230 = vpack.c.b16 %v226, %v225
        %vm235 = vcmask 523264
        %v237 = vsel %vm235, %v200, 0
        %v240 = vsel %vm235, %v201, 0
        %242 = vmatprep.subr.bf16.mxu0 0
        %243 = vmatpush1.bf16.msra.mxu0 %v227
        %244 = vmatprep.subr.bf16.mxu0 0
        %245 = vmatpush1.bf16.msra.mxu0 %v228
        %246 = vmatprep.subr.bf16.mxu0 0
        %247 = vmatpush1.bf16.msra.mxu0 %v229
        %248 = vmatprep.subr.bf16.mxu0 0
        %249 = vmatpush1.bf16.msra.mxu0 %v230
        %250 = vmatprep.subr.bf16.mxu0 0
        %251 = vmatpush1.bf16.msra.mxu0 0
        %252 = vmatprep.subr.bf16.mxu0 0
        %253 = vmatpush1.bf16.msra.mxu0 0
        %254 = vmatprep.subr.bf16.mxu0 0
        %255 = vmatpush1.bf16.msra.mxu0 0
        %256 = vmatprep.subr.bf16.mxu0 0
        %257 = vmatpush1.bf16.msra.mxu0 0
        %258 = vmatprep.subr.bf16.mxu0 0
        %259 = vmatpush1.bf16.msra.mxu0 0
        %260 = vmatprep.subr.bf16.mxu0 0
        %261 = vmatpush1.bf16.msra.mxu0 0
        %262 = vmatprep.subr.bf16.mxu0 0
        %263 = vmatpush1.bf16.msra.mxu0 0
        %264 = vmatprep.subr.bf16.mxu0 0
        %265 = vmatpush1.bf16.msra.mxu0 0
        %266 = vmatprep.subr.bf16.mxu0 0
        %267 = vmatpush1.bf16.msra.mxu0 0
        %268 = vmatprep.subr.bf16.mxu0 0
        %269 = vmatpush1.bf16.msra.mxu0 0
        %270 = vmatprep.subr.bf16.mxu0 0
        %271 = vmatpush1.bf16.msra.mxu0 0
        %272 = vmatprep.subr.bf16.mxu0 0
        %273 = vmatpush1.bf16.msra.mxu0 0
        %274 = vmatprep.mubr.bf16.mxu0 0
        %275 = vmatmul.mubr.bf16.gmra.mrb[0].mxu0 %v237
        %v276 = vpop.f32.mrb[0].mxu0
        %v277 = vadd.f32 0.0, %v276
        %v278 = vpop.f32.mrb[0].mxu0
        %v279 = vpop.f32.mrb[0].mxu0
        %v280 = vadd.f32 0.0, %v279
        %v281 = vpop.f32.mrb[0].mxu0
        %282 = vmatprep.mubr.bf16.mxu0 0
        %283 = vmatmul.mubr.bf16.gmra.mrb[0].mxu0 %v240
        %v284 = vpop.f32.mrb[0].mxu0
        %v285 = vadd.f32 0.0, %v284
        %v286 = vpop.f32.mrb[0].mxu0
        %v287 = vpop.f32.mrb[0].mxu0
        %v288 = vadd.f32 0.0, %v287
        %v289 = vpop.f32.mrb[0].mxu0
        %290 = vdwg.mxu0
        %v299 = vunpack.c.l.b16 %v188
        %v300 = vunpack.c.l.b16 %v189
        %v301 = vunpack.c.l.b16 %v190
        %v302 = vunpack.c.l.b16 %v191
        %v303 = vunpack.c.l.b16 %v192
        %v304 = vunpack.c.l.b16 %v193
        %v305 = vunpack.c.l.b16 %v194
        %v306 = vunpack.c.l.b16 %v195
        %v307 = vpack.c.b16 %v300, %v299
        %v308 = vpack.c.b16 %v302, %v301
        %v309 = vpack.c.b16 %v304, %v303
        %v310 = vpack.c.b16 %v306, %v305
        %v316 = vsel %vm235, %v186, 0
        %v319 = vsel %vm235, %v187, 0
        %321 = vmatprep.subr.bf16.mxu0 0
        %322 = vmatpush1.bf16.msra.mxu0 %v307
        %323 = vmatprep.subr.bf16.mxu0 0
        %324 = vmatpush1.bf16.msra.mxu0 %v308
        %325 = vmatprep.subr.bf16.mxu0 0
        %326 = vmatpush1.bf16.msra.mxu0 %v309
        %327 = vmatprep.subr.bf16.mxu0 0
        %328 = vmatpush1.bf16.msra.mxu0 %v310
        %329 = vmatprep.subr.bf16.mxu0 0
        %330 = vmatpush1.bf16.msra.mxu0 0
        %331 = vmatprep.subr.bf16.mxu0 0
        %332 = vmatpush1.bf16.msra.mxu0 0
        %333 = vmatprep.subr.bf16.mxu0 0
        %334 = vmatpush1.bf16.msra.mxu0 0
        %335 = vmatprep.subr.bf16.mxu0 0
        %336 = vmatpush1.bf16.msra.mxu0 0
        %337 = vmatprep.subr.bf16.mxu0 0
        %338 = vmatpush1.bf16.msra.mxu0 0
        %339 = vmatprep.subr.bf16.mxu0 0
        %340 = vmatpush1.bf16.msra.mxu0 0
        %341 = vmatprep.subr.bf16.mxu0 0
        %342 = vmatpush1.bf16.msra.mxu0 0
        %343 = vmatprep.subr.bf16.mxu0 0
        %344 = vmatpush1.bf16.msra.mxu0 0
        %345 = vmatprep.subr.bf16.mxu0 0
        %346 = vmatpush1.bf16.msra.mxu0 0
        %347 = vmatprep.subr.bf16.mxu0 0
        %348 = vmatpush1.bf16.msra.mxu0 0
        %349 = vmatprep.subr.bf16.mxu0 0
        %350 = vmatpush1.bf16.msra.mxu0 0
        %351 = vmatprep.subr.bf16.mxu0 0
        %352 = vmatpush1.bf16.msra.mxu0 0
        %353 = vmatprep.mubr.bf16.mxu0 0
        %354 = vmatmul.mubr.bf16.gmra.mrb[0].mxu0 %v316
        %v355 = vpop.f32.mrb[0].mxu0
        %v356 = vadd.f32 %v277, %v355
        %v357 = vpop.f32.mrb[0].mxu0
        %v358 = vpop.f32.mrb[0].mxu0
        %v359 = vadd.f32 %v280, %v358
        %v360 = vpop.f32.mrb[0].mxu0
        %361 = vmatprep.mubr.bf16.mxu0 0
        %362 = vmatmul.mubr.bf16.gmra.mrb[0].mxu0 %v319
        %v363 = vpop.f32.mrb[0].mxu0
        %v364 = vadd.f32 %v285, %v363
        %v365 = vpop.f32.mrb[0].mxu0
        %v366 = vpop.f32.mrb[0].mxu0
        %v367 = vadd.f32 %v288, %v366
        %v368 = vpop.f32.mrb[0].mxu0
        %369 = vdwg.mxu0
        %v370 = vld [vmem:[%s181 + $0x2] sm:$0xff]
        %v371 = vld [vmem:[%s181 + $0xa] sm:$0xff]
        %v372 = vld [vmem:[%s181 + $0x12] sm:$0xff]
        %v373 = vld [vmem:[%s181 + $0x1a] sm:$0x7]
        %v374 = vpack.c.bf16 %v371, %v370
        %v375 = vpack.c.bf16 %v373, %v372
        %s376 = scalar_lea.vmem %s1, 64
        %v377 = vld [vmem:[%s376] sm:$0xf]
        %v378 = vld [vmem:[%s376 + $0x4] sm:$0xf]
        %v379 = vld [vmem:[%s376 + $0x8] sm:$0xf]
        %v380 = vld [vmem:[%s376 + $0xc] sm:$0xf]
        %v381 = vld [vmem:[%s376 + $0x10] sm:$0xf]
        %v382 = vld [vmem:[%s376 + $0x14] sm:$0xf]
        %v383 = vld [vmem:[%s376 + $0x18] sm:$0xf]
        %v384 = vld [vmem:[%s376 + $0x1c] sm:$0xf]
        %v393 = vunpack.c.l.b16 %v377
        %v394 = vunpack.c.l.b16 %v378
        %v395 = vunpack.c.l.b16 %v379
        %v396 = vunpack.c.l.b16 %v380
        %v397 = vunpack.c.l.b16 %v381
        %v398 = vunpack.c.l.b16 %v382
        %v399 = vunpack.c.l.b16 %v383
        %v400 = vunpack.c.l.b16 %v384
        %v401 = vpack.c.b16 %v394, %v393
        %v402 = vpack.c.b16 %v396, %v395
        %v403 = vpack.c.b16 %v398, %v397
        %v404 = vpack.c.b16 %v400, %v399
        %v410 = vsel %vm235, %v374, 0
        %v413 = vsel %vm235, %v375, 0
        %415 = vmatprep.subr.bf16.mxu0 0
        %416 = vmatpush1.bf16.msra.mxu0 %v401
        %417 = vmatprep.subr.bf16.mxu0 0
        %418 = vmatpush1.bf16.msra.mxu0 %v402
        %419 = vmatprep.subr.bf16.mxu0 0
        %420 = vmatpush1.bf16.msra.mxu0 %v403
        %421 = vmatprep.subr.bf16.mxu0 0
        %422 = vmatpush1.bf16.msra.mxu0 %v404
        %423 = vmatprep.subr.bf16.mxu0 0
        %424 = vmatpush1.bf16.msra.mxu0 0
        %425 = vmatprep.subr.bf16.mxu0 0
        %426 = vmatpush1.bf16.msra.mxu0 0
        %427 = vmatprep.subr.bf16.mxu0 0
        %428 = vmatpush1.bf16.msra.mxu0 0
        %429 = vmatprep.subr.bf16.mxu0 0
        %430 = vmatpush1.bf16.msra.mxu0 0
        %431 = vmatprep.subr.bf16.mxu0 0
        %432 = vmatpush1.bf16.msra.mxu0 0
        %433 = vmatprep.subr.bf16.mxu0 0
        %434 = vmatpush1.bf16.msra.mxu0 0
        %435 = vmatprep.subr.bf16.mxu0 0
        %436 = vmatpush1.bf16.msra.mxu0 0
        %437 = vmatprep.subr.bf16.mxu0 0
        %438 = vmatpush1.bf16.msra.mxu0 0
        %439 = vmatprep.subr.bf16.mxu0 0
        %440 = vmatpush1.bf16.msra.mxu0 0
        %441 = vmatprep.subr.bf16.mxu0 0
        %442 = vmatpush1.bf16.msra.mxu0 0
        %443 = vmatprep.subr.bf16.mxu0 0
        %444 = vmatpush1.bf16.msra.mxu0 0
        %445 = vmatprep.subr.bf16.mxu0 0
        %446 = vmatpush1.bf16.msra.mxu0 0
        %447 = vmatprep.mubr.bf16.mxu0 0
        %448 = vmatmul.mubr.bf16.gmra.mrb[0].mxu0 %v410
        %v449 = vpop.f32.mrb[0].mxu0
        %v450 = vadd.f32 0.0, %v449
        %v451 = vpop.f32.mrb[0].mxu0
        %v452 = vpop.f32.mrb[0].mxu0
        %v453 = vadd.f32 0.0, %v452
        %v454 = vpop.f32.mrb[0].mxu0
        %455 = vmatprep.mubr.bf16.mxu0 0
        %456 = vmatmul.mubr.bf16.gmra.mrb[0].mxu0 %v413
        %v457 = vpop.f32.mrb[0].mxu0
        %v458 = vadd.f32 0.0, %v457
        %v459 = vpop.f32.mrb[0].mxu0
        %v460 = vpop.f32.mrb[0].mxu0
        %v461 = vadd.f32 0.0, %v460
        %v462 = vpop.f32.mrb[0].mxu0
        %463 = vdwg.mxu0
        %v464 = vadd.f32 %v356, %v450
        %v465 = vadd.f32 %v359, %v453
        %v466 = vadd.f32 %v364, %v458
        %v467 = vadd.f32 %v367, %v461
        %v468 = vld [vmem:[%s181 + $0x3] sm:$0xff]
        %v469 = vld [vmem:[%s181 + $0xb] sm:$0xff]
        %v470 = vld [vmem:[%s181 + $0x13] sm:$0xff]
        %v471 = vld [vmem:[%s181 + $0x1b] sm:$0x7]
        %v472 = vpack.c.bf16 %v469, %v468
        %v473 = vpack.c.bf16 %v471, %v470
        %s474 = scalar_lea.vmem %s1, 96
        %v475 = vld [vmem:[%s474] sm:$0xf]
        %v476 = vld [vmem:[%s474 + $0x4] sm:$0xf]
        %v477 = vld [vmem:[%s474 + $0x8] sm:$0xf]
        %v478 = vld [vmem:[%s474 + $0xc] sm:$0xf]
        %v479 = vld [vmem:[%s474 + $0x10] sm:$0xf]
        %v480 = vld [vmem:[%s474 + $0x14] sm:$0xf]
        %v481 = vld [vmem:[%s474 + $0x18] sm:$0xf]
        %v482 = vld [vmem:[%s474 + $0x1c] sm:$0xf]
        %v491 = vunpack.c.l.b16 %v475
        %v492 = vunpack.c.l.b16 %v476
        %v493 = vunpack.c.l.b16 %v477
        %v494 = vunpack.c.l.b16 %v478
        %v495 = vunpack.c.l.b16 %v479
        %v496 = vunpack.c.l.b16 %v480
        %v497 = vunpack.c.l.b16 %v481
        %v498 = vunpack.c.l.b16 %v482
        %v499 = vpack.c.b16 %v492, %v491
        %v500 = vpack.c.b16 %v494, %v493
        %v501 = vpack.c.b16 %v496, %v495
        %v502 = vpack.c.b16 %v498, %v497
        %v508 = vsel %vm235, %v472, 0
        %v511 = vsel %vm235, %v473, 0
        %513 = vmatprep.subr.bf16.mxu0 0
        %514 = vmatpush1.bf16.msra.mxu0 %v499
        %515 = vmatprep.subr.bf16.mxu0 0
        %516 = vmatpush1.bf16.msra.mxu0 %v500
        %517 = vmatprep.subr.bf16.mxu0 0
        %518 = vmatpush1.bf16.msra.mxu0 %v501
        %519 = vmatprep.subr.bf16.mxu0 0
        %520 = vmatpush1.bf16.msra.mxu0 %v502
        %521 = vmatprep.subr.bf16.mxu0 0
        %522 = vmatpush1.bf16.msra.mxu0 0
        %523 = vmatprep.subr.bf16.mxu0 0
        %524 = vmatpush1.bf16.msra.mxu0 0
        %525 = vmatprep.subr.bf16.mxu0 0
        %526 = vmatpush1.bf16.msra.mxu0 0
        %527 = vmatprep.subr.bf16.mxu0 0
        %528 = vmatpush1.bf16.msra.mxu0 0
        %529 = vmatprep.subr.bf16.mxu0 0
        %530 = vmatpush1.bf16.msra.mxu0 0
        %531 = vmatprep.subr.bf16.mxu0 0
        %532 = vmatpush1.bf16.msra.mxu0 0
        %533 = vmatprep.subr.bf16.mxu0 0
        %534 = vmatpush1.bf16.msra.mxu0 0
        %535 = vmatprep.subr.bf16.mxu0 0
        %536 = vmatpush1.bf16.msra.mxu0 0
        %537 = vmatprep.subr.bf16.mxu0 0
        %538 = vmatpush1.bf16.msra.mxu0 0
        %539 = vmatprep.subr.bf16.mxu0 0
        %540 = vmatpush1.bf16.msra.mxu0 0
        %541 = vmatprep.subr.bf16.mxu0 0
        %542 = vmatpush1.bf16.msra.mxu0 0
        %543 = vmatprep.subr.bf16.mxu0 0
        %544 = vmatpush1.bf16.msra.mxu0 0
        %545 = vmatprep.mubr.bf16.mxu0 0
        %546 = vmatmul.mubr.bf16.gmra.mrb[0].mxu0 %v508
        %v547 = vpop.f32.mrb[0].mxu0
        %v548 = vadd.f32 0.0, %v547
        %v549 = vpop.f32.mrb[0].mxu0
        %v550 = vpop.f32.mrb[0].mxu0
        %v551 = vadd.f32 0.0, %v550
        %v552 = vpop.f32.mrb[0].mxu0
        %553 = vmatprep.mubr.bf16.mxu0 0
        %554 = vmatmul.mubr.bf16.gmra.mrb[0].mxu0 %v511
        %v555 = vpop.f32.mrb[0].mxu0
        %v556 = vadd.f32 0.0, %v555
        %v557 = vpop.f32.mrb[0].mxu0
        %v558 = vpop.f32.mrb[0].mxu0
        %v559 = vadd.f32 0.0, %v558
        %v560 = vpop.f32.mrb[0].mxu0
        %561 = vdwg.mxu0
        %v562 = vadd.f32 %v464, %v548
        %v563 = vadd.f32 %v465, %v551
        %v564 = vadd.f32 %v466, %v556
        %v565 = vadd.f32 %v467, %v559
        %v566 = vld [vmem:[%s181 + $0x4] sm:$0xff]
        %v567 = vld [vmem:[%s181 + $0xc] sm:$0xff]
        %v568 = vld [vmem:[%s181 + $0x14] sm:$0xff]
        %v569 = vld [vmem:[%s181 + $0x1c] sm:$0x7]
        %v570 = vpack.c.bf16 %v567, %v566
        %v571 = vpack.c.bf16 %v569, %v568
        %s572 = scalar_lea.vmem %s1, 128
        %v573 = vld [vmem:[%s572] sm:$0xf]
        %v574 = vld [vmem:[%s572 + $0x4] sm:$0xf]
        %v575 = vld [vmem:[%s572 + $0x8] sm:$0xf]
        %v576 = vld [vmem:[%s572 + $0xc] sm:$0xf]
        %v577 = vld [vmem:[%s572 + $0x10] sm:$0xf]
        %v578 = vld [vmem:[%s572 + $0x14] sm:$0xf]
        %v579 = vld [vmem:[%s572 + $0x18] sm:$0xf]
        %v580 = vld [vmem:[%s572 + $0x1c] sm:$0xf]
        %v589 = vunpack.c.l.b16 %v573
        %v590 = vunpack.c.l.b16 %v574
        %v591 = vunpack.c.l.b16 %v575
        %v592 = vunpack.c.l.b16 %v576
        %v593 = vunpack.c.l.b16 %v577
        %v594 = vunpack.c.l.b16 %v578
        %v595 = vunpack.c.l.b16 %v579
        %v596 = vunpack.c.l.b16 %v580
        %v597 = vpack.c.b16 %v590, %v589
        %v598 = vpack.c.b16 %v592, %v591
        %v599 = vpack.c.b16 %v594, %v593
        %v600 = vpack.c.b16 %v596, %v595
        %v606 = vsel %vm235, %v570, 0
        %v609 = vsel %vm235, %v571, 0
        %611 = vmatprep.subr.bf16.mxu0 0
        %612 = vmatpush1.bf16.msra.mxu0 %v597
        %613 = vmatprep.subr.bf16.mxu0 0
        %614 = vmatpush1.bf16.msra.mxu0 %v598
        %615 = vmatprep.subr.bf16.mxu0 0
        %616 = vmatpush1.bf16.msra.mxu0 %v599
        %617 = vmatprep.subr.bf16.mxu0 0
        %618 = vmatpush1.bf16.msra.mxu0 %v600
        %619 = vmatprep.subr.bf16.mxu0 0
        %620 = vmatpush1.bf16.msra.mxu0 0
        %621 = vmatprep.subr.bf16.mxu0 0
        %622 = vmatpush1.bf16.msra.mxu0 0
        %623 = vmatprep.subr.bf16.mxu0 0
        %624 = vmatpush1.bf16.msra.mxu0 0
        %625 = vmatprep.subr.bf16.mxu0 0
        %626 = vmatpush1.bf16.msra.mxu0 0
        %627 = vmatprep.subr.bf16.mxu0 0
        %628 = vmatpush1.bf16.msra.mxu0 0
        %629 = vmatprep.subr.bf16.mxu0 0
        %630 = vmatpush1.bf16.msra.mxu0 0
        %631 = vmatprep.subr.bf16.mxu0 0
        %632 = vmatpush1.bf16.msra.mxu0 0
        %633 = vmatprep.subr.bf16.mxu0 0
        %634 = vmatpush1.bf16.msra.mxu0 0
        %635 = vmatprep.subr.bf16.mxu0 0
        %636 = vmatpush1.bf16.msra.mxu0 0
        %637 = vmatprep.subr.bf16.mxu0 0
        %638 = vmatpush1.bf16.msra.mxu0 0
        %639 = vmatprep.subr.bf16.mxu0 0
        %640 = vmatpush1.bf16.msra.mxu0 0
        %641 = vmatprep.subr.bf16.mxu0 0
        %642 = vmatpush1.bf16.msra.mxu0 0
        %643 = vmatprep.mubr.bf16.mxu0 0
        %644 = vmatmul.mubr.bf16.gmra.mrb[0].mxu0 %v606
        %v645 = vpop.f32.mrb[0].mxu0
        %v646 = vadd.f32 0.0, %v645
        %v647 = vpop.f32.mrb[0].mxu0
        %v648 = vpop.f32.mrb[0].mxu0
        %v649 = vadd.f32 0.0, %v648
        %v650 = vpop.f32.mrb[0].mxu0
        %651 = vmatprep.mubr.bf16.mxu0 0
        %652 = vmatmul.mubr.bf16.gmra.mrb[0].mxu0 %v609
        %v653 = vpop.f32.mrb[0].mxu0
        %v654 = vadd.f32 0.0, %v653
        %v655 = vpop.f32.mrb[0].mxu0
        %v656 = vpop.f32.mrb[0].mxu0
        %v657 = vadd.f32 0.0, %v656
        %v658 = vpop.f32.mrb[0].mxu0
        %659 = vdwg.mxu0
        %v660 = vadd.f32 %v562, %v646
        %v661 = vadd.f32 %v563, %v649
        %v662 = vadd.f32 %v564, %v654
        %v663 = vadd.f32 %v565, %v657
        %s664 = sadd.s32 %s179, 1
        %s665 = smul.u32 %s664, 32
        %s666 = scalar_lea.vmem %s165, %s665
        %v667 = vld [vmem:[%s666] sm:$0xff]
        %v668 = vld [vmem:[%s666 + $0x8] sm:$0xff]
        %v669 = vld [vmem:[%s666 + $0x10] sm:$0xff]
        %v670 = vld [vmem:[%s666 + $0x18] sm:$0x7]
        %v671 = vpack.c.bf16 %v668, %v667
        %v672 = vpack.c.bf16 %v670, %v669
        %s673 = scalar_lea.vmem %s1, 160
        %v674 = vld [vmem:[%s673] sm:$0xf]
        %v675 = vld [vmem:[%s673 + $0x4] sm:$0xf]
        %v676 = vld [vmem:[%s673 + $0x8] sm:$0xf]
        %v677 = vld [vmem:[%s673 + $0xc] sm:$0xf]
        %v678 = vld [vmem:[%s673 + $0x10] sm:$0xf]
        %v679 = vld [vmem:[%s673 + $0x14] sm:$0xf]
        %v680 = vld [vmem:[%s673 + $0x18] sm:$0xf]
        %v681 = vld [vmem:[%s673 + $0x1c] sm:$0xf]
        %v690 = vunpack.c.l.b16 %v674
        %v691 = vunpack.c.l.b16 %v675
        %v692 = vunpack.c.l.b16 %v676
        %v693 = vunpack.c.l.b16 %v677
        %v694 = vunpack.c.l.b16 %v678
        %v695 = vunpack.c.l.b16 %v679
        %v696 = vunpack.c.l.b16 %v680
        %v697 = vunpack.c.l.b16 %v681
        %v698 = vpack.c.b16 %v691, %v690
        %v699 = vpack.c.b16 %v693, %v692
        %v700 = vpack.c.b16 %v695, %v694
        %v701 = vpack.c.b16 %v697, %v696
        %v707 = vsel %vm235, %v671, 0
        %v710 = vsel %vm235, %v672, 0
        %712 = vmatprep.subr.bf16.mxu0 0
        %713 = vmatpush1.bf16.msra.mxu0 %v698
        %714 = vmatprep.subr.bf16.mxu0 0
        %715 = vmatpush1.bf16.msra.mxu0 %v699
        %716 = vmatprep.subr.bf16.mxu0 0
        %717 = vmatpush1.bf16.msra.mxu0 %v700
        %718 = vmatprep.subr.bf16.mxu0 0
        %719 = vmatpush1.bf16.msra.mxu0 %v701
        %720 = vmatprep.subr.bf16.mxu0 0
        %721 = vmatpush1.bf16.msra.mxu0 0
        %722 = vmatprep.subr.bf16.mxu0 0
        %723 = vmatpush1.bf16.msra.mxu0 0
        %724 = vmatprep.subr.bf16.mxu0 0
        %725 = vmatpush1.bf16.msra.mxu0 0
        %726 = vmatprep.subr.bf16.mxu0 0
        %727 = vmatpush1.bf16.msra.mxu0 0
        %728 = vmatprep.subr.bf16.mxu0 0
        %729 = vmatpush1.bf16.msra.mxu0 0
        %730 = vmatprep.subr.bf16.mxu0 0
        %731 = vmatpush1.bf16.msra.mxu0 0
        %732 = vmatprep.subr.bf16.mxu0 0
        %733 = vmatpush1.bf16.msra.mxu0 0
        %734 = vmatprep.subr.bf16.mxu0 0
        %735 = vmatpush1.bf16.msra.mxu0 0
        %736 = vmatprep.subr.bf16.mxu0 0
        %737 = vmatpush1.bf16.msra.mxu0 0
        %738 = vmatprep.subr.bf16.mxu0 0
        %739 = vmatpush1.bf16.msra.mxu0 0
        %740 = vmatprep.subr.bf16.mxu0 0
        %741 = vmatpush1.bf16.msra.mxu0 0
        %742 = vmatprep.subr.bf16.mxu0 0
        %743 = vmatpush1.bf16.msra.mxu0 0
        %744 = vmatprep.mubr.bf16.mxu0 0
        %745 = vmatmul.mubr.bf16.gmra.mrb[0].mxu0 %v707
        %v746 = vpop.f32.mrb[0].mxu0
        %v747 = vadd.f32 0.0, %v746
        %v748 = vpop.f32.mrb[0].mxu0
        %v749 = vpop.f32.mrb[0].mxu0
        %v750 = vadd.f32 0.0, %v749
        %v751 = vpop.f32.mrb[0].mxu0
        %752 = vmatprep.mubr.bf16.mxu0 0
        %753 = vmatmul.mubr.bf16.gmra.mrb[0].mxu0 %v710
        %v754 = vpop.f32.mrb[0].mxu0
        %v755 = vadd.f32 0.0, %v754
        %v756 = vpop.f32.mrb[0].mxu0
        %v757 = vpop.f32.mrb[0].mxu0
        %v758 = vadd.f32 0.0, %v757
        %v759 = vpop.f32.mrb[0].mxu0
        %760 = vdwg.mxu0
        %v761 = vadd.f32 %v660, %v747
        %v762 = vadd.f32 %v661, %v750
        %v763 = vadd.f32 %v662, %v755
        %v764 = vadd.f32 %v663, %v758
        %v765 = vld [vmem:[%s666 + $0x1] sm:$0xff]
        %v766 = vld [vmem:[%s666 + $0x9] sm:$0xff]
        %v767 = vld [vmem:[%s666 + $0x11] sm:$0xff]
        %v768 = vld [vmem:[%s666 + $0x19] sm:$0x7]
        %v769 = vpack.c.bf16 %v766, %v765
        %v770 = vpack.c.bf16 %v768, %v767
        %s771 = scalar_lea.vmem %s1, 192
        %v772 = vld [vmem:[%s771] sm:$0xf]
        %v773 = vld [vmem:[%s771 + $0x4] sm:$0xf]
        %v774 = vld [vmem:[%s771 + $0x8] sm:$0xf]
        %v775 = vld [vmem:[%s771 + $0xc] sm:$0xf]
        %v776 = vld [vmem:[%s771 + $0x10] sm:$0xf]
        %v777 = vld [vmem:[%s771 + $0x14] sm:$0xf]
        %v778 = vld [vmem:[%s771 + $0x18] sm:$0xf]
        %v779 = vld [vmem:[%s771 + $0x1c] sm:$0xf]
        %v788 = vunpack.c.l.b16 %v772
        %v789 = vunpack.c.l.b16 %v773
        %v790 = vunpack.c.l.b16 %v774
        %v791 = vunpack.c.l.b16 %v775
        %v792 = vunpack.c.l.b16 %v776
        %v793 = vunpack.c.l.b16 %v777
        %v794 = vunpack.c.l.b16 %v778
        %v795 = vunpack.c.l.b16 %v779
        %v796 = vpack.c.b16 %v789, %v788
        %v797 = vpack.c.b16 %v791, %v790
        %v798 = vpack.c.b16 %v793, %v792
        %v799 = vpack.c.b16 %v795, %v794
        %v805 = vsel %vm235, %v769, 0
        %v808 = vsel %vm235, %v770, 0
        %810 = vmatprep.subr.bf16.mxu0 0
        %811 = vmatpush1.bf16.msra.mxu0 %v796
        %812 = vmatprep.subr.bf16.mxu0 0
        %813 = vmatpush1.bf16.msra.mxu0 %v797
        %814 = vmatprep.subr.bf16.mxu0 0
        %815 = vmatpush1.bf16.msra.mxu0 %v798
        %816 = vmatprep.subr.bf16.mxu0 0
        %817 = vmatpush1.bf16.msra.mxu0 %v799
        %818 = vmatprep.subr.bf16.mxu0 0
        %819 = vmatpush1.bf16.msra.mxu0 0
        %820 = vmatprep.subr.bf16.mxu0 0
        %821 = vmatpush1.bf16.msra.mxu0 0
        %822 = vmatprep.subr.bf16.mxu0 0
        %823 = vmatpush1.bf16.msra.mxu0 0
        %824 = vmatprep.subr.bf16.mxu0 0
        %825 = vmatpush1.bf16.msra.mxu0 0
        %826 = vmatprep.subr.bf16.mxu0 0
        %827 = vmatpush1.bf16.msra.mxu0 0
        %828 = vmatprep.subr.bf16.mxu0 0
        %829 = vmatpush1.bf16.msra.mxu0 0
        %830 = vmatprep.subr.bf16.mxu0 0
        %831 = vmatpush1.bf16.msra.mxu0 0
        %832 = vmatprep.subr.bf16.mxu0 0
        %833 = vmatpush1.bf16.msra.mxu0 0
        %834 = vmatprep.subr.bf16.mxu0 0
        %835 = vmatpush1.bf16.msra.mxu0 0
        %836 = vmatprep.subr.bf16.mxu0 0
        %837 = vmatpush1.bf16.msra.mxu0 0
        %838 = vmatprep.subr.bf16.mxu0 0
        %839 = vmatpush1.bf16.msra.mxu0 0
        %840 = vmatprep.subr.bf16.mxu0 0
        %841 = vmatpush1.bf16.msra.mxu0 0
        %842 = vmatprep.mubr.bf16.mxu0 0
        %843 = vmatmul.mubr.bf16.gmra.mrb[0].mxu0 %v805
        %v844 = vpop.f32.mrb[0].mxu0
        %v845 = vadd.f32 0.0, %v844
        %v846 = vpop.f32.mrb[0].mxu0
        %v847 = vpop.f32.mrb[0].mxu0
        %v848 = vadd.f32 0.0, %v847
        %v849 = vpop.f32.mrb[0].mxu0
        %850 = vmatprep.mubr.bf16.mxu0 0
        %851 = vmatmul.mubr.bf16.gmra.mrb[0].mxu0 %v808
        %v852 = vpop.f32.mrb[0].mxu0
        %v853 = vadd.f32 0.0, %v852
        %v854 = vpop.f32.mrb[0].mxu0
        %v855 = vpop.f32.mrb[0].mxu0
        %v856 = vadd.f32 0.0, %v855
        %v857 = vpop.f32.mrb[0].mxu0
        %858 = vdwg.mxu0
        %v859 = vadd.f32 %v761, %v845
        %v860 = vadd.f32 %v762, %v848
        %v861 = vadd.f32 %v763, %v853
        %v862 = vadd.f32 %v764, %v856
        %v863 = vld [vmem:[%s666 + $0x2] sm:$0xff]
        %v864 = vld [vmem:[%s666 + $0xa] sm:$0xff]
        %v865 = vld [vmem:[%s666 + $0x12] sm:$0xff]
        %v866 = vld [vmem:[%s666 + $0x1a] sm:$0x7]
        %v867 = vpack.c.bf16 %v864, %v863
        %v868 = vpack.c.bf16 %v866, %v865
        %s869 = scalar_lea.vmem %s1, 224
        %v870 = vld [vmem:[%s869] sm:$0xf]
        %v871 = vld [vmem:[%s869 + $0x4] sm:$0xf]
        %v872 = vld [vmem:[%s869 + $0x8] sm:$0xf]
        %v873 = vld [vmem:[%s869 + $0xc] sm:$0xf]
        %v874 = vld [vmem:[%s869 + $0x10] sm:$0xf]
        %v875 = vld [vmem:[%s869 + $0x14] sm:$0xf]
        %v876 = vld [vmem:[%s869 + $0x18] sm:$0xf]
        %v877 = vld [vmem:[%s869 + $0x1c] sm:$0xf]
        %v886 = vunpack.c.l.b16 %v870
        %v887 = vunpack.c.l.b16 %v871
        %v888 = vunpack.c.l.b16 %v872
        %v889 = vunpack.c.l.b16 %v873
        %v890 = vunpack.c.l.b16 %v874
        %v891 = vunpack.c.l.b16 %v875
        %v892 = vunpack.c.l.b16 %v876
        %v893 = vunpack.c.l.b16 %v877
        %v894 = vpack.c.b16 %v887, %v886
        %v895 = vpack.c.b16 %v889, %v888
        %v896 = vpack.c.b16 %v891, %v890
        %v897 = vpack.c.b16 %v893, %v892
        %v903 = vsel %vm235, %v867, 0
        %v906 = vsel %vm235, %v868, 0
        %908 = vmatprep.subr.bf16.mxu0 0
        %909 = vmatpush1.bf16.msra.mxu0 %v894
        %910 = vmatprep.subr.bf16.mxu0 0
        %911 = vmatpush1.bf16.msra.mxu0 %v895
        %912 = vmatprep.subr.bf16.mxu0 0
        %913 = vmatpush1.bf16.msra.mxu0 %v896
        %914 = vmatprep.subr.bf16.mxu0 0
        %915 = vmatpush1.bf16.msra.mxu0 %v897
        %916 = vmatprep.subr.bf16.mxu0 0
        %917 = vmatpush1.bf16.msra.mxu0 0
        %918 = vmatprep.subr.bf16.mxu0 0
        %919 = vmatpush1.bf16.msra.mxu0 0
        %920 = vmatprep.subr.bf16.mxu0 0
        %921 = vmatpush1.bf16.msra.mxu0 0
        %922 = vmatprep.subr.bf16.mxu0 0
        %923 = vmatpush1.bf16.msra.mxu0 0
        %924 = vmatprep.subr.bf16.mxu0 0
        %925 = vmatpush1.bf16.msra.mxu0 0
        %926 = vmatprep.subr.bf16.mxu0 0
        %927 = vmatpush1.bf16.msra.mxu0 0
        %928 = vmatprep.subr.bf16.mxu0 0
        %929 = vmatpush1.bf16.msra.mxu0 0
        %930 = vmatprep.subr.bf16.mxu0 0
        %931 = vmatpush1.bf16.msra.mxu0 0
        %932 = vmatprep.subr.bf16.mxu0 0
        %933 = vmatpush1.bf16.msra.mxu0 0
        %934 = vmatprep.subr.bf16.mxu0 0
        %935 = vmatpush1.bf16.msra.mxu0 0
        %936 = vmatprep.subr.bf16.mxu0 0
        %937 = vmatpush1.bf16.msra.mxu0 0
        %938 = vmatprep.subr.bf16.mxu0 0
        %939 = vmatpush1.bf16.msra.mxu0 0
        %940 = vmatprep.mubr.bf16.mxu0 0
        %941 = vmatmul.mubr.bf16.gmra.mrb[0].mxu0 %v903
        %v942 = vpop.f32.mrb[0].mxu0
        %v943 = vadd.f32 0.0, %v942
        %v944 = vpop.f32.mrb[0].mxu0
        %v945 = vpop.f32.mrb[0].mxu0
        %v946 = vadd.f32 0.0, %v945
        %v947 = vpop.f32.mrb[0].mxu0
        %948 = vmatprep.mubr.bf16.mxu0 0
        %949 = vmatmul.mubr.bf16.gmra.mrb[0].mxu0 %v906
        %v950 = vpop.f32.mrb[0].mxu0
        %v951 = vadd.f32 0.0, %v950
        %v952 = vpop.f32.mrb[0].mxu0
        %v953 = vpop.f32.mrb[0].mxu0
        %v954 = vadd.f32 0.0, %v953
        %v955 = vpop.f32.mrb[0].mxu0
        %956 = vdwg.mxu0
        %v957 = vadd.f32 %v859, %v943
        %v958 = vadd.f32 %v860, %v946
        %v959 = vadd.f32 %v861, %v951
        %v960 = vadd.f32 %v862, %v954
        %v961 = vld [vmem:[%s666 + $0x3] sm:$0xff]
        %v962 = vld [vmem:[%s666 + $0xb] sm:$0xff]
        %v963 = vld [vmem:[%s666 + $0x13] sm:$0xff]
        %v964 = vld [vmem:[%s666 + $0x1b] sm:$0x7]
        %v965 = vpack.c.bf16 %v962, %v961
        %v966 = vpack.c.bf16 %v964, %v963
        %s967 = scalar_lea.vmem %s1, 256
        %v968 = vld [vmem:[%s967] sm:$0xf]
        %v969 = vld [vmem:[%s967 + $0x4] sm:$0xf]
        %v970 = vld [vmem:[%s967 + $0x8] sm:$0xf]
        %v971 = vld [vmem:[%s967 + $0xc] sm:$0xf]
        %v972 = vld [vmem:[%s967 + $0x10] sm:$0xf]
        %v973 = vld [vmem:[%s967 + $0x14] sm:$0xf]
        %v974 = vld [vmem:[%s967 + $0x18] sm:$0xf]
        %v975 = vld [vmem:[%s967 + $0x1c] sm:$0xf]
        %v984 = vunpack.c.l.b16 %v968
        %v985 = vunpack.c.l.b16 %v969
        %v986 = vunpack.c.l.b16 %v970
        %v987 = vunpack.c.l.b16 %v971
        %v988 = vunpack.c.l.b16 %v972
        %v989 = vunpack.c.l.b16 %v973
        %v990 = vunpack.c.l.b16 %v974
        %v991 = vunpack.c.l.b16 %v975
        %v992 = vpack.c.b16 %v985, %v984
        %v993 = vpack.c.b16 %v987, %v986
        %v994 = vpack.c.b16 %v989, %v988
        %v995 = vpack.c.b16 %v991, %v990
        %v1001 = vsel %vm235, %v965, 0
        %v1004 = vsel %vm235, %v966, 0
        %1006 = vmatprep.subr.bf16.mxu0 0
        %1007 = vmatpush1.bf16.msra.mxu0 %v992
        %1008 = vmatprep.subr.bf16.mxu0 0
        %1009 = vmatpush1.bf16.msra.mxu0 %v993
        %1010 = vmatprep.subr.bf16.mxu0 0
        %1011 = vmatpush1.bf16.msra.mxu0 %v994
        %1012 = vmatprep.subr.bf16.mxu0 0
        %1013 = vmatpush1.bf16.msra.mxu0 %v995
        %1014 = vmatprep.subr.bf16.mxu0 0
        %1015 = vmatpush1.bf16.msra.mxu0 0
        %1016 = vmatprep.subr.bf16.mxu0 0
        %1017 = vmatpush1.bf16.msra.mxu0 0
        %1018 = vmatprep.subr.bf16.mxu0 0
        %1019 = vmatpush1.bf16.msra.mxu0 0
        %1020 = vmatprep.subr.bf16.mxu0 0
        %1021 = vmatpush1.bf16.msra.mxu0 0
        %1022 = vmatprep.subr.bf16.mxu0 0
        %1023 = vmatpush1.bf16.msra.mxu0 0
        %1024 = vmatprep.subr.bf16.mxu0 0
        %1025 = vmatpush1.bf16.msra.mxu0 0
        %1026 = vmatprep.subr.bf16.mxu0 0
        %1027 = vmatpush1.bf16.msra.mxu0 0
        %1028 = vmatprep.subr.bf16.mxu0 0
        %1029 = vmatpush1.bf16.msra.mxu0 0
        %1030 = vmatprep.subr.bf16.mxu0 0
        %1031 = vmatpush1.bf16.msra.mxu0 0
        %1032 = vmatprep.subr.bf16.mxu0 0
        %1033 = vmatpush1.bf16.msra.mxu0 0
        %1034 = vmatprep.subr.bf16.mxu0 0
        %1035 = vmatpush1.bf16.msra.mxu0 0
        %1036 = vmatprep.subr.bf16.mxu0 0
        %1037 = vmatpush1.bf16.msra.mxu0 0
        %1038 = vmatprep.mubr.bf16.mxu0 0
        %1039 = vmatmul.mubr.bf16.gmra.mrb[0].mxu0 %v1001
        %v1040 = vpop.f32.mrb[0].mxu0
        %v1041 = vadd.f32 0.0, %v1040
        %v1042 = vpop.f32.mrb[0].mxu0
        %v1043 = vpop.f32.mrb[0].mxu0
        %v1044 = vadd.f32 0.0, %v1043
        %v1045 = vpop.f32.mrb[0].mxu0
        %1046 = vmatprep.mubr.bf16.mxu0 0
        %1047 = vmatmul.mubr.bf16.gmra.mrb[0].mxu0 %v1004
        %v1048 = vpop.f32.mrb[0].mxu0
        %v1049 = vadd.f32 0.0, %v1048
        %v1050 = vpop.f32.mrb[0].mxu0
        %v1051 = vpop.f32.mrb[0].mxu0
        %v1052 = vadd.f32 0.0, %v1051
        %v1053 = vpop.f32.mrb[0].mxu0
        %1054 = vdwg.mxu0
        %v1055 = vadd.f32 %v957, %v1041
        %v1056 = vadd.f32 %v958, %v1044
        %v1057 = vadd.f32 %v959, %v1049
        %v1058 = vadd.f32 %v960, %v1052
        %v1059 = vld [vmem:[%s666 + $0x4] sm:$0xff]
        %v1060 = vld [vmem:[%s666 + $0xc] sm:$0xff]
        %v1061 = vld [vmem:[%s666 + $0x14] sm:$0xff]
        %v1062 = vld [vmem:[%s666 + $0x1c] sm:$0x7]
        %v1063 = vpack.c.bf16 %v1060, %v1059
        %v1064 = vpack.c.bf16 %v1062, %v1061
        %s1065 = scalar_lea.vmem %s1, 288
        %v1066 = vld [vmem:[%s1065] sm:$0xf]
        %v1067 = vld [vmem:[%s1065 + $0x4] sm:$0xf]
        %v1068 = vld [vmem:[%s1065 + $0x8] sm:$0xf]
        %v1069 = vld [vmem:[%s1065 + $0xc] sm:$0xf]
        %v1070 = vld [vmem:[%s1065 + $0x10] sm:$0xf]
        %v1071 = vld [vmem:[%s1065 + $0x14] sm:$0xf]
        %v1072 = vld [vmem:[%s1065 + $0x18] sm:$0xf]
        %v1073 = vld [vmem:[%s1065 + $0x1c] sm:$0xf]
        %v1082 = vunpack.c.l.b16 %v1066
        %v1083 = vunpack.c.l.b16 %v1067
        %v1084 = vunpack.c.l.b16 %v1068
        %v1085 = vunpack.c.l.b16 %v1069
        %v1086 = vunpack.c.l.b16 %v1070
        %v1087 = vunpack.c.l.b16 %v1071
        %v1088 = vunpack.c.l.b16 %v1072
        %v1089 = vunpack.c.l.b16 %v1073
        %v1090 = vpack.c.b16 %v1083, %v1082
        %v1091 = vpack.c.b16 %v1085, %v1084
        %v1092 = vpack.c.b16 %v1087, %v1086
        %v1093 = vpack.c.b16 %v1089, %v1088
        %v1099 = vsel %vm235, %v1063, 0
        %v1102 = vsel %vm235, %v1064, 0
        %1104 = vmatprep.subr.bf16.mxu0 0
        %1105 = vmatpush1.bf16.msra.mxu0 %v1090
        %1106 = vmatprep.subr.bf16.mxu0 0
        %1107 = vmatpush1.bf16.msra.mxu0 %v1091
        %1108 = vmatprep.subr.bf16.mxu0 0
        %1109 = vmatpush1.bf16.msra.mxu0 %v1092
        %1110 = vmatprep.subr.bf16.mxu0 0
        %1111 = vmatpush1.bf16.msra.mxu0 %v1093
        %1112 = vmatprep.subr.bf16.mxu0 0
        %1113 = vmatpush1.bf16.msra.mxu0 0
        %1114 = vmatprep.subr.bf16.mxu0 0
        %1115 = vmatpush1.bf16.msra.mxu0 0
        %1116 = vmatprep.subr.bf16.mxu0 0
        %1117 = vmatpush1.bf16.msra.mxu0 0
        %1118 = vmatprep.subr.bf16.mxu0 0
        %1119 = vmatpush1.bf16.msra.mxu0 0
        %1120 = vmatprep.subr.bf16.mxu0 0
        %1121 = vmatpush1.bf16.msra.mxu0 0
        %1122 = vmatprep.subr.bf16.mxu0 0
        %1123 = vmatpush1.bf16.msra.mxu0 0
        %1124 = vmatprep.subr.bf16.mxu0 0
        %1125 = vmatpush1.bf16.msra.mxu0 0
        %1126 = vmatprep.subr.bf16.mxu0 0
        %1127 = vmatpush1.bf16.msra.mxu0 0
        %1128 = vmatprep.subr.bf16.mxu0 0
        %1129 = vmatpush1.bf16.msra.mxu0 0
        %1130 = vmatprep.subr.bf16.mxu0 0
        %1131 = vmatpush1.bf16.msra.mxu0 0
        %1132 = vmatprep.subr.bf16.mxu0 0
        %1133 = vmatpush1.bf16.msra.mxu0 0
        %1134 = vmatprep.subr.bf16.mxu0 0
        %1135 = vmatpush1.bf16.msra.mxu0 0
        %1136 = vmatprep.mubr.bf16.mxu0 0
        %1137 = vmatmul.mubr.bf16.gmra.mrb[0].mxu0 %v1099
        %v1138 = vpop.f32.mrb[0].mxu0
        %v1139 = vadd.f32 0.0, %v1138
        %v1140 = vpop.f32.mrb[0].mxu0
        %v1141 = vpop.f32.mrb[0].mxu0
        %v1142 = vadd.f32 0.0, %v1141
        %v1143 = vpop.f32.mrb[0].mxu0
        %1144 = vmatprep.mubr.bf16.mxu0 0
        %1145 = vmatmul.mubr.bf16.gmra.mrb[0].mxu0 %v1102
        %v1146 = vpop.f32.mrb[0].mxu0
        %v1147 = vadd.f32 0.0, %v1146
        %v1148 = vpop.f32.mrb[0].mxu0
        %v1149 = vpop.f32.mrb[0].mxu0
        %v1150 = vadd.f32 0.0, %v1149
        %v1151 = vpop.f32.mrb[0].mxu0
        %1152 = vdwg.mxu0
        %v1153 = vadd.f32 %v1055, %v1139
        %v1154 = vadd.f32 %v1056, %v1142
        %v1155 = vadd.f32 %v1057, %v1147
        %v1156 = vadd.f32 %v1058, %v1150
        %s1157 = sadd.s32 %s179, 2
        %s1158 = smul.u32 %s1157, 32
        %s1159 = scalar_lea.vmem %s165, %s1158
        %v1160 = vld [vmem:[%s1159] sm:$0xff]
        %v1161 = vld [vmem:[%s1159 + $0x8] sm:$0xff]
        %v1162 = vld [vmem:[%s1159 + $0x10] sm:$0xff]
        %v1163 = vld [vmem:[%s1159 + $0x18] sm:$0x7]
        %v1164 = vpack.c.bf16 %v1161, %v1160
        %v1165 = vpack.c.bf16 %v1163, %v1162
        %s1166 = scalar_lea.vmem %s1, 320
        %v1167 = vld [vmem:[%s1166] sm:$0xf]
        %v1168 = vld [vmem:[%s1166 + $0x4] sm:$0xf]
        %v1169 = vld [vmem:[%s1166 + $0x8] sm:$0xf]
        %v1170 = vld [vmem:[%s1166 + $0xc] sm:$0xf]
        %v1171 = vld [vmem:[%s1166 + $0x10] sm:$0xf]
        %v1172 = vld [vmem:[%s1166 + $0x14] sm:$0xf]
        %v1173 = vld [vmem:[%s1166 + $0x18] sm:$0xf]
        %v1174 = vld [vmem:[%s1166 + $0x1c] sm:$0xf]
        %v1183 = vunpack.c.l.b16 %v1167
        %v1184 = vunpack.c.l.b16 %v1168
        %v1185 = vunpack.c.l.b16 %v1169
        %v1186 = vunpack.c.l.b16 %v1170
        %v1187 = vunpack.c.l.b16 %v1171
        %v1188 = vunpack.c.l.b16 %v1172
        %v1189 = vunpack.c.l.b16 %v1173
        %v1190 = vunpack.c.l.b16 %v1174
        %v1191 = vpack.c.b16 %v1184, %v1183
        %v1192 = vpack.c.b16 %v1186, %v1185
        %v1193 = vpack.c.b16 %v1188, %v1187
        %v1194 = vpack.c.b16 %v1190, %v1189
        %v1200 = vsel %vm235, %v1164, 0
        %v1203 = vsel %vm235, %v1165, 0
        %1205 = vmatprep.subr.bf16.mxu0 0
        %1206 = vmatpush1.bf16.msra.mxu0 %v1191
        %1207 = vmatprep.subr.bf16.mxu0 0
        %1208 = vmatpush1.bf16.msra.mxu0 %v1192
        %1209 = vmatprep.subr.bf16.mxu0 0
        %1210 = vmatpush1.bf16.msra.mxu0 %v1193
        %1211 = vmatprep.subr.bf16.mxu0 0
        %1212 = vmatpush1.bf16.msra.mxu0 %v1194
        %1213 = vmatprep.subr.bf16.mxu0 0
        %1214 = vmatpush1.bf16.msra.mxu0 0
        %1215 = vmatprep.subr.bf16.mxu0 0
        %1216 = vmatpush1.bf16.msra.mxu0 0
        %1217 = vmatprep.subr.bf16.mxu0 0
        %1218 = vmatpush1.bf16.msra.mxu0 0
        %1219 = vmatprep.subr.bf16.mxu0 0
        %1220 = vmatpush1.bf16.msra.mxu0 0
        %1221 = vmatprep.subr.bf16.mxu0 0
        %1222 = vmatpush1.bf16.msra.mxu0 0
        %1223 = vmatprep.subr.bf16.mxu0 0
        %1224 = vmatpush1.bf16.msra.mxu0 0
        %1225 = vmatprep.subr.bf16.mxu0 0
        %1226 = vmatpush1.bf16.msra.mxu0 0
        %1227 = vmatprep.subr.bf16.mxu0 0
        %1228 = vmatpush1.bf16.msra.mxu0 0
        %1229 = vmatprep.subr.bf16.mxu0 0
        %1230 = vmatpush1.bf16.msra.mxu0 0
        %1231 = vmatprep.subr.bf16.mxu0 0
        %1232 = vmatpush1.bf16.msra.mxu0 0
        %1233 = vmatprep.subr.bf16.mxu0 0
        %1234 = vmatpush1.bf16.msra.mxu0 0
        %1235 = vmatprep.subr.bf16.mxu0 0
        %1236 = vmatpush1.bf16.msra.mxu0 0
        %1237 = vmatprep.mubr.bf16.mxu0 0
        %1238 = vmatmul.mubr.bf16.gmra.mrb[0].mxu0 %v1200
        %v1239 = vpop.f32.mrb[0].mxu0
        %v1240 = vadd.f32 0.0, %v1239
        %v1241 = vpop.f32.mrb[0].mxu0
        %v1242 = vpop.f32.mrb[0].mxu0
        %v1243 = vadd.f32 0.0, %v1242
        %v1244 = vpop.f32.mrb[0].mxu0
        %1245 = vmatprep.mubr.bf16.mxu0 0
        %1246 = vmatmul.mubr.bf16.gmra.mrb[0].mxu0 %v1203
        %v1247 = vpop.f32.mrb[0].mxu0
        %v1248 = vadd.f32 0.0, %v1247
        %v1249 = vpop.f32.mrb[0].mxu0
        %v1250 = vpop.f32.mrb[0].mxu0
        %v1251 = vadd.f32 0.0, %v1250
        %v1252 = vpop.f32.mrb[0].mxu0
        %1253 = vdwg.mxu0
        %v1254 = vadd.f32 %v1153, %v1240
        %v1255 = vadd.f32 %v1154, %v1243
        %v1256 = vadd.f32 %v1155, %v1248
        %v1257 = vadd.f32 %v1156, %v1251
        %v1258 = vld [vmem:[%s1159 + $0x1] sm:$0xff]
        %v1259 = vld [vmem:[%s1159 + $0x9] sm:$0xff]
        %v1260 = vld [vmem:[%s1159 + $0x11] sm:$0xff]
        %v1261 = vld [vmem:[%s1159 + $0x19] sm:$0x7]
        %v1262 = vpack.c.bf16 %v1259, %v1258
        %v1263 = vpack.c.bf16 %v1261, %v1260
        %s1264 = scalar_lea.vmem %s1, 352
        %v1265 = vld [vmem:[%s1264] sm:$0xf]
        %v1266 = vld [vmem:[%s1264 + $0x4] sm:$0xf]
        %v1267 = vld [vmem:[%s1264 + $0x8] sm:$0xf]
        %v1268 = vld [vmem:[%s1264 + $0xc] sm:$0xf]
        %v1269 = vld [vmem:[%s1264 + $0x10] sm:$0xf]
        %v1270 = vld [vmem:[%s1264 + $0x14] sm:$0xf]
        %v1271 = vld [vmem:[%s1264 + $0x18] sm:$0xf]
        %v1272 = vld [vmem:[%s1264 + $0x1c] sm:$0xf]
        %v1281 = vunpack.c.l.b16 %v1265
        %v1282 = vunpack.c.l.b16 %v1266
        %v1283 = vunpack.c.l.b16 %v1267
        %v1284 = vunpack.c.l.b16 %v1268
        %v1285 = vunpack.c.l.b16 %v1269
        %v1286 = vunpack.c.l.b16 %v1270
        %v1287 = vunpack.c.l.b16 %v1271
        %v1288 = vunpack.c.l.b16 %v1272
        %v1289 = vpack.c.b16 %v1282, %v1281
        %v1290 = vpack.c.b16 %v1284, %v1283
        %v1291 = vpack.c.b16 %v1286, %v1285
        %v1292 = vpack.c.b16 %v1288, %v1287
        %v1298 = vsel %vm235, %v1262, 0
        %v1301 = vsel %vm235, %v1263, 0
        %1303 = vmatprep.subr.bf16.mxu0 0
        %1304 = vmatpush1.bf16.msra.mxu0 %v1289
        %1305 = vmatprep.subr.bf16.mxu0 0
        %1306 = vmatpush1.bf16.msra.mxu0 %v1290
        %1307 = vmatprep.subr.bf16.mxu0 0
        %1308 = vmatpush1.bf16.msra.mxu0 %v1291
        %1309 = vmatprep.subr.bf16.mxu0 0
        %1310 = vmatpush1.bf16.msra.mxu0 %v1292
        %1311 = vmatprep.subr.bf16.mxu0 0
        %1312 = vmatpush1.bf16.msra.mxu0 0
        %1313 = vmatprep.subr.bf16.mxu0 0
        %1314 = vmatpush1.bf16.msra.mxu0 0
        %1315 = vmatprep.subr.bf16.mxu0 0
        %1316 = vmatpush1.bf16.msra.mxu0 0
        %1317 = vmatprep.subr.bf16.mxu0 0
        %1318 = vmatpush1.bf16.msra.mxu0 0
        %1319 = vmatprep.subr.bf16.mxu0 0
        %1320 = vmatpush1.bf16.msra.mxu0 0
        %1321 = vmatprep.subr.bf16.mxu0 0
        %1322 = vmatpush1.bf16.msra.mxu0 0
        %1323 = vmatprep.subr.bf16.mxu0 0
        %1324 = vmatpush1.bf16.msra.mxu0 0
        %1325 = vmatprep.subr.bf16.mxu0 0
        %1326 = vmatpush1.bf16.msra.mxu0 0
        %1327 = vmatprep.subr.bf16.mxu0 0
        %1328 = vmatpush1.bf16.msra.mxu0 0
        %1329 = vmatprep.subr.bf16.mxu0 0
        %1330 = vmatpush1.bf16.msra.mxu0 0
        %1331 = vmatprep.subr.bf16.mxu0 0
        %1332 = vmatpush1.bf16.msra.mxu0 0
        %1333 = vmatprep.subr.bf16.mxu0 0
        %1334 = vmatpush1.bf16.msra.mxu0 0
        %1335 = vmatprep.mubr.bf16.mxu0 0
        %1336 = vmatmul.mubr.bf16.gmra.mrb[0].mxu0 %v1298
        %v1337 = vpop.f32.mrb[0].mxu0
        %v1338 = vadd.f32 0.0, %v1337
        %v1339 = vpop.f32.mrb[0].mxu0
        %v1340 = vpop.f32.mrb[0].mxu0
        %v1341 = vadd.f32 0.0, %v1340
        %v1342 = vpop.f32.mrb[0].mxu0
        %1343 = vmatprep.mubr.bf16.mxu0 0
        %1344 = vmatmul.mubr.bf16.gmra.mrb[0].mxu0 %v1301
        %v1345 = vpop.f32.mrb[0].mxu0
        %v1346 = vadd.f32 0.0, %v1345
        %v1347 = vpop.f32.mrb[0].mxu0
        %v1348 = vpop.f32.mrb[0].mxu0
        %v1349 = vadd.f32 0.0, %v1348
        %v1350 = vpop.f32.mrb[0].mxu0
        %1351 = vdwg.mxu0
        %v1352 = vadd.f32 %v1254, %v1338
        %v1353 = vadd.f32 %v1255, %v1341
        %v1354 = vadd.f32 %v1256, %v1346
        %v1355 = vadd.f32 %v1257, %v1349
        %v1356 = vld [vmem:[%s1159 + $0x2] sm:$0xff]
        %v1357 = vld [vmem:[%s1159 + $0xa] sm:$0xff]
        %v1358 = vld [vmem:[%s1159 + $0x12] sm:$0xff]
        %v1359 = vld [vmem:[%s1159 + $0x1a] sm:$0x7]
        %v1360 = vpack.c.bf16 %v1357, %v1356
        %v1361 = vpack.c.bf16 %v1359, %v1358
        %s1362 = scalar_lea.vmem %s1, 384
        %v1363 = vld [vmem:[%s1362] sm:$0xf]
        %v1364 = vld [vmem:[%s1362 + $0x4] sm:$0xf]
        %v1365 = vld [vmem:[%s1362 + $0x8] sm:$0xf]
        %v1366 = vld [vmem:[%s1362 + $0xc] sm:$0xf]
        %v1367 = vld [vmem:[%s1362 + $0x10] sm:$0xf]
        %v1368 = vld [vmem:[%s1362 + $0x14] sm:$0xf]
        %v1369 = vld [vmem:[%s1362 + $0x18] sm:$0xf]
        %v1370 = vld [vmem:[%s1362 + $0x1c] sm:$0xf]
        %v1379 = vunpack.c.l.b16 %v1363
        %v1380 = vunpack.c.l.b16 %v1364
        %v1381 = vunpack.c.l.b16 %v1365
        %v1382 = vunpack.c.l.b16 %v1366
        %v1383 = vunpack.c.l.b16 %v1367
        %v1384 = vunpack.c.l.b16 %v1368
        %v1385 = vunpack.c.l.b16 %v1369
        %v1386 = vunpack.c.l.b16 %v1370
        %v1387 = vpack.c.b16 %v1380, %v1379
        %v1388 = vpack.c.b16 %v1382, %v1381
        %v1389 = vpack.c.b16 %v1384, %v1383
        %v1390 = vpack.c.b16 %v1386, %v1385
        %v1396 = vsel %vm235, %v1360, 0
        %v1399 = vsel %vm235, %v1361, 0
        %1401 = vmatprep.subr.bf16.mxu0 0
        %1402 = vmatpush1.bf16.msra.mxu0 %v1387
        %1403 = vmatprep.subr.bf16.mxu0 0
        %1404 = vmatpush1.bf16.msra.mxu0 %v1388
        %1405 = vmatprep.subr.bf16.mxu0 0
        %1406 = vmatpush1.bf16.msra.mxu0 %v1389
        %1407 = vmatprep.subr.bf16.mxu0 0
        %1408 = vmatpush1.bf16.msra.mxu0 %v1390
        %1409 = vmatprep.subr.bf16.mxu0 0
        %1410 = vmatpush1.bf16.msra.mxu0 0
        %1411 = vmatprep.subr.bf16.mxu0 0
        %1412 = vmatpush1.bf16.msra.mxu0 0
        %1413 = vmatprep.subr.bf16.mxu0 0
        %1414 = vmatpush1.bf16.msra.mxu0 0
        %1415 = vmatprep.subr.bf16.mxu0 0
        %1416 = vmatpush1.bf16.msra.mxu0 0
        %1417 = vmatprep.subr.bf16.mxu0 0
        %1418 = vmatpush1.bf16.msra.mxu0 0
        %1419 = vmatprep.subr.bf16.mxu0 0
        %1420 = vmatpush1.bf16.msra.mxu0 0
        %1421 = vmatprep.subr.bf16.mxu0 0
        %1422 = vmatpush1.bf16.msra.mxu0 0
        %1423 = vmatprep.subr.bf16.mxu0 0
        %1424 = vmatpush1.bf16.msra.mxu0 0
        %1425 = vmatprep.subr.bf16.mxu0 0
        %1426 = vmatpush1.bf16.msra.mxu0 0
        %1427 = vmatprep.subr.bf16.mxu0 0
        %1428 = vmatpush1.bf16.msra.mxu0 0
        %1429 = vmatprep.subr.bf16.mxu0 0
        %1430 = vmatpush1.bf16.msra.mxu0 0
        %1431 = vmatprep.subr.bf16.mxu0 0
        %1432 = vmatpush1.bf16.msra.mxu0 0
        %1433 = vmatprep.mubr.bf16.mxu0 0
        %1434 = vmatmul.mubr.bf16.gmra.mrb[0].mxu0 %v1396
        %v1435 = vpop.f32.mrb[0].mxu0
        %v1436 = vadd.f32 0.0, %v1435
        %v1437 = vpop.f32.mrb[0].mxu0
        %v1438 = vpop.f32.mrb[0].mxu0
        %v1439 = vadd.f32 0.0, %v1438
        %v1440 = vpop.f32.mrb[0].mxu0
        %1441 = vmatprep.mubr.bf16.mxu0 0
        %1442 = vmatmul.mubr.bf16.gmra.mrb[0].mxu0 %v1399
        %v1443 = vpop.f32.mrb[0].mxu0
        %v1444 = vadd.f32 0.0, %v1443
        %v1445 = vpop.f32.mrb[0].mxu0
        %v1446 = vpop.f32.mrb[0].mxu0
        %v1447 = vadd.f32 0.0, %v1446
        %v1448 = vpop.f32.mrb[0].mxu0
        %1449 = vdwg.mxu0
        %v1450 = vadd.f32 %v1352, %v1436
        %v1451 = vadd.f32 %v1353, %v1439
        %v1452 = vadd.f32 %v1354, %v1444
        %v1453 = vadd.f32 %v1355, %v1447
        %v1454 = vld [vmem:[%s1159 + $0x3] sm:$0xff]
        %v1455 = vld [vmem:[%s1159 + $0xb] sm:$0xff]
        %v1456 = vld [vmem:[%s1159 + $0x13] sm:$0xff]
        %v1457 = vld [vmem:[%s1159 + $0x1b] sm:$0x7]
        %v1458 = vpack.c.bf16 %v1455, %v1454
        %v1459 = vpack.c.bf16 %v1457, %v1456
        %s1460 = scalar_lea.vmem %s1, 416
        %v1461 = vld [vmem:[%s1460] sm:$0xf]
        %v1462 = vld [vmem:[%s1460 + $0x4] sm:$0xf]
        %v1463 = vld [vmem:[%s1460 + $0x8] sm:$0xf]
        %v1464 = vld [vmem:[%s1460 + $0xc] sm:$0xf]
        %v1465 = vld [vmem:[%s1460 + $0x10] sm:$0xf]
        %v1466 = vld [vmem:[%s1460 + $0x14] sm:$0xf]
        %v1467 = vld [vmem:[%s1460 + $0x18] sm:$0xf]
        %v1468 = vld [vmem:[%s1460 + $0x1c] sm:$0xf]
        %v1477 = vunpack.c.l.b16 %v1461
        %v1478 = vunpack.c.l.b16 %v1462
        %v1479 = vunpack.c.l.b16 %v1463
        %v1480 = vunpack.c.l.b16 %v1464
        %v1481 = vunpack.c.l.b16 %v1465
        %v1482 = vunpack.c.l.b16 %v1466
        %v1483 = vunpack.c.l.b16 %v1467
        %v1484 = vunpack.c.l.b16 %v1468
        %v1485 = vpack.c.b16 %v1478, %v1477
        %v1486 = vpack.c.b16 %v1480, %v1479
        %v1487 = vpack.c.b16 %v1482, %v1481
        %v1488 = vpack.c.b16 %v1484, %v1483
        %v1494 = vsel %vm235, %v1458, 0
        %v1497 = vsel %vm235, %v1459, 0
        %1499 = vmatprep.subr.bf16.mxu0 0
        %1500 = vmatpush1.bf16.msra.mxu0 %v1485
        %1501 = vmatprep.subr.bf16.mxu0 0
        %1502 = vmatpush1.bf16.msra.mxu0 %v1486
        %1503 = vmatprep.subr.bf16.mxu0 0
        %1504 = vmatpush1.bf16.msra.mxu0 %v1487
        %1505 = vmatprep.subr.bf16.mxu0 0
        %1506 = vmatpush1.bf16.msra.mxu0 %v1488
        %1507 = vmatprep.subr.bf16.mxu0 0
        %1508 = vmatpush1.bf16.msra.mxu0 0
        %1509 = vmatprep.subr.bf16.mxu0 0
        %1510 = vmatpush1.bf16.msra.mxu0 0
        %1511 = vmatprep.subr.bf16.mxu0 0
        %1512 = vmatpush1.bf16.msra.mxu0 0
        %1513 = vmatprep.subr.bf16.mxu0 0
        %1514 = vmatpush1.bf16.msra.mxu0 0
        %1515 = vmatprep.subr.bf16.mxu0 0
        %1516 = vmatpush1.bf16.msra.mxu0 0
        %1517 = vmatprep.subr.bf16.mxu0 0
        %1518 = vmatpush1.bf16.msra.mxu0 0
        %1519 = vmatprep.subr.bf16.mxu0 0
        %1520 = vmatpush1.bf16.msra.mxu0 0
        %1521 = vmatprep.subr.bf16.mxu0 0
        %1522 = vmatpush1.bf16.msra.mxu0 0
        %1523 = vmatprep.subr.bf16.mxu0 0
        %1524 = vmatpush1.bf16.msra.mxu0 0
        %1525 = vmatprep.subr.bf16.mxu0 0
        %1526 = vmatpush1.bf16.msra.mxu0 0
        %1527 = vmatprep.subr.bf16.mxu0 0
        %1528 = vmatpush1.bf16.msra.mxu0 0
        %1529 = vmatprep.subr.bf16.mxu0 0
        %1530 = vmatpush1.bf16.msra.mxu0 0
        %1531 = vmatprep.mubr.bf16.mxu0 0
        %1532 = vmatmul.mubr.bf16.gmra.mrb[0].mxu0 %v1494
        %v1533 = vpop.f32.mrb[0].mxu0
        %v1534 = vadd.f32 0.0, %v1533
        %v1535 = vpop.f32.mrb[0].mxu0
        %v1536 = vpop.f32.mrb[0].mxu0
        %v1537 = vadd.f32 0.0, %v1536
        %v1538 = vpop.f32.mrb[0].mxu0
        %1539 = vmatprep.mubr.bf16.mxu0 0
        %1540 = vmatmul.mubr.bf16.gmra.mrb[0].mxu0 %v1497
        %v1541 = vpop.f32.mrb[0].mxu0
        %v1542 = vadd.f32 0.0, %v1541
        %v1543 = vpop.f32.mrb[0].mxu0
        %v1544 = vpop.f32.mrb[0].mxu0
        %v1545 = vadd.f32 0.0, %v1544
        %v1546 = vpop.f32.mrb[0].mxu0
        %1547 = vdwg.mxu0
        %v1548 = vadd.f32 %v1450, %v1534
        %v1549 = vadd.f32 %v1451, %v1537
        %v1550 = vadd.f32 %v1452, %v1542
        %v1551 = vadd.f32 %v1453, %v1545
        %v1552 = vld [vmem:[%s1159 + $0x4] sm:$0xff]
        %v1553 = vld [vmem:[%s1159 + $0xc] sm:$0xff]
        %v1554 = vld [vmem:[%s1159 + $0x14] sm:$0xff]
        %v1555 = vld [vmem:[%s1159 + $0x1c] sm:$0x7]
        %v1556 = vpack.c.bf16 %v1553, %v1552
        %v1557 = vpack.c.bf16 %v1555, %v1554
        %s1558 = scalar_lea.vmem %s1, 448
        %v1559 = vld [vmem:[%s1558] sm:$0xf]
        %v1560 = vld [vmem:[%s1558 + $0x4] sm:$0xf]
        %v1561 = vld [vmem:[%s1558 + $0x8] sm:$0xf]
        %v1562 = vld [vmem:[%s1558 + $0xc] sm:$0xf]
        %v1563 = vld [vmem:[%s1558 + $0x10] sm:$0xf]
        %v1564 = vld [vmem:[%s1558 + $0x14] sm:$0xf]
        %v1565 = vld [vmem:[%s1558 + $0x18] sm:$0xf]
        %v1566 = vld [vmem:[%s1558 + $0x1c] sm:$0xf]
        %v1575 = vunpack.c.l.b16 %v1559
        %v1576 = vunpack.c.l.b16 %v1560
        %v1577 = vunpack.c.l.b16 %v1561
        %v1578 = vunpack.c.l.b16 %v1562
        %v1579 = vunpack.c.l.b16 %v1563
        %v1580 = vunpack.c.l.b16 %v1564
        %v1581 = vunpack.c.l.b16 %v1565
        %v1582 = vunpack.c.l.b16 %v1566
        %v1583 = vpack.c.b16 %v1576, %v1575
        %v1584 = vpack.c.b16 %v1578, %v1577
        %v1585 = vpack.c.b16 %v1580, %v1579
        %v1586 = vpack.c.b16 %v1582, %v1581
        %v1592 = vsel %vm235, %v1556, 0
        %v1595 = vsel %vm235, %v1557, 0
        %1597 = vmatprep.subr.bf16.mxu0 0
        %1598 = vmatpush1.bf16.msra.mxu0 %v1583
        %1599 = vmatprep.subr.bf16.mxu0 0
        %1600 = vmatpush1.bf16.msra.mxu0 %v1584
        %1601 = vmatprep.subr.bf16.mxu0 0
        %1602 = vmatpush1.bf16.msra.mxu0 %v1585
        %1603 = vmatprep.subr.bf16.mxu0 0
        %1604 = vmatpush1.bf16.msra.mxu0 %v1586
        %1605 = vmatprep.subr.bf16.mxu0 0
        %1606 = vmatpush1.bf16.msra.mxu0 0
        %1607 = vmatprep.subr.bf16.mxu0 0
        %1608 = vmatpush1.bf16.msra.mxu0 0
        %1609 = vmatprep.subr.bf16.mxu0 0
        %1610 = vmatpush1.bf16.msra.mxu0 0
        %1611 = vmatprep.subr.bf16.mxu0 0
        %1612 = vmatpush1.bf16.msra.mxu0 0
        %1613 = vmatprep.subr.bf16.mxu0 0
        %1614 = vmatpush1.bf16.msra.mxu0 0
        %1615 = vmatprep.subr.bf16.mxu0 0
        %1616 = vmatpush1.bf16.msra.mxu0 0
        %1617 = vmatprep.subr.bf16.mxu0 0
        %1618 = vmatpush1.bf16.msra.mxu0 0
        %1619 = vmatprep.subr.bf16.mxu0 0
        %1620 = vmatpush1.bf16.msra.mxu0 0
        %1621 = vmatprep.subr.bf16.mxu0 0
        %1622 = vmatpush1.bf16.msra.mxu0 0
        %1623 = vmatprep.subr.bf16.mxu0 0
        %1624 = vmatpush1.bf16.msra.mxu0 0
        %1625 = vmatprep.subr.bf16.mxu0 0
        %1626 = vmatpush1.bf16.msra.mxu0 0
        %1627 = vmatprep.subr.bf16.mxu0 0
        %1628 = vmatpush1.bf16.msra.mxu0 0
        %1629 = vmatprep.mubr.bf16.mxu0 0
        %1630 = vmatmul.mubr.bf16.gmra.mrb[0].mxu0 %v1592
        %v1631 = vpop.f32.mrb[0].mxu0
        %v1632 = vadd.f32 0.0, %v1631
        %v1633 = vpop.f32.mrb[0].mxu0
        %v1634 = vpop.f32.mrb[0].mxu0
        %v1635 = vadd.f32 0.0, %v1634
        %v1636 = vpop.f32.mrb[0].mxu0
        %1637 = vmatprep.mubr.bf16.mxu0 0
        %1638 = vmatmul.mubr.bf16.gmra.mrb[0].mxu0 %v1595
        %v1639 = vpop.f32.mrb[0].mxu0
        %v1640 = vadd.f32 0.0, %v1639
        %v1641 = vpop.f32.mrb[0].mxu0
        %v1642 = vpop.f32.mrb[0].mxu0
        %v1643 = vadd.f32 0.0, %v1642
        %v1644 = vpop.f32.mrb[0].mxu0
        %1645 = vdwg.mxu0
        %v1646 = vadd.f32 %v1548, %v1632
        %v1647 = vadd.f32 %v1549, %v1635
        %v1648 = vadd.f32 %v1550, %v1640
        %v1649 = vadd.f32 %v1551, %v1643
        %s1650 = sadd.s32 %s179, 3
        %s1651 = smul.u32 %s1650, 32
        %s1652 = scalar_lea.vmem %s165, %s1651
        %v1653 = vld [vmem:[%s1652] sm:$0xff]
        %v1654 = vld [vmem:[%s1652 + $0x8] sm:$0xff]
        %v1655 = vld [vmem:[%s1652 + $0x10] sm:$0xff]
        %v1656 = vld [vmem:[%s1652 + $0x18] sm:$0x7]
        %v1657 = vpack.c.bf16 %v1654, %v1653
        %v1658 = vpack.c.bf16 %v1656, %v1655
        %s1659 = scalar_lea.vmem %s1, 480
        %v1660 = vld [vmem:[%s1659] sm:$0xf]
        %v1661 = vld [vmem:[%s1659 + $0x4] sm:$0xf]
        %v1662 = vld [vmem:[%s1659 + $0x8] sm:$0xf]
        %v1663 = vld [vmem:[%s1659 + $0xc] sm:$0xf]
        %v1664 = vld [vmem:[%s1659 + $0x10] sm:$0xf]
        %v1665 = vld [vmem:[%s1659 + $0x14] sm:$0xf]
        %v1666 = vld [vmem:[%s1659 + $0x18] sm:$0xf]
        %v1667 = vld [vmem:[%s1659 + $0x1c] sm:$0xf]
        %v1676 = vunpack.c.l.b16 %v1660
        %v1677 = vunpack.c.l.b16 %v1661
        %v1678 = vunpack.c.l.b16 %v1662
        %v1679 = vunpack.c.l.b16 %v1663
        %v1680 = vunpack.c.l.b16 %v1664
        %v1681 = vunpack.c.l.b16 %v1665
        %v1682 = vunpack.c.l.b16 %v1666
        %v1683 = vunpack.c.l.b16 %v1667
        %v1684 = vpack.c.b16 %v1677, %v1676
        %v1685 = vpack.c.b16 %v1679, %v1678
        %v1686 = vpack.c.b16 %v1681, %v1680
        %v1687 = vpack.c.b16 %v1683, %v1682
        %v1693 = vsel %vm235, %v1657, 0
        %v1696 = vsel %vm235, %v1658, 0
        %1698 = vmatprep.subr.bf16.mxu0 0
        %1699 = vmatpush1.bf16.msra.mxu0 %v1684
        %1700 = vmatprep.subr.bf16.mxu0 0
        %1701 = vmatpush1.bf16.msra.mxu0 %v1685
        %1702 = vmatprep.subr.bf16.mxu0 0
        %1703 = vmatpush1.bf16.msra.mxu0 %v1686
        %1704 = vmatprep.subr.bf16.mxu0 0
        %1705 = vmatpush1.bf16.msra.mxu0 %v1687
        %1706 = vmatprep.subr.bf16.mxu0 0
        %1707 = vmatpush1.bf16.msra.mxu0 0
        %1708 = vmatprep.subr.bf16.mxu0 0
        %1709 = vmatpush1.bf16.msra.mxu0 0
        %1710 = vmatprep.subr.bf16.mxu0 0
        %1711 = vmatpush1.bf16.msra.mxu0 0
        %1712 = vmatprep.subr.bf16.mxu0 0
        %1713 = vmatpush1.bf16.msra.mxu0 0
        %1714 = vmatprep.subr.bf16.mxu0 0
        %1715 = vmatpush1.bf16.msra.mxu0 0
        %1716 = vmatprep.subr.bf16.mxu0 0
        %1717 = vmatpush1.bf16.msra.mxu0 0
        %1718 = vmatprep.subr.bf16.mxu0 0
        %1719 = vmatpush1.bf16.msra.mxu0 0
        %1720 = vmatprep.subr.bf16.mxu0 0
        %1721 = vmatpush1.bf16.msra.mxu0 0
        %1722 = vmatprep.subr.bf16.mxu0 0
        %1723 = vmatpush1.bf16.msra.mxu0 0
        %1724 = vmatprep.subr.bf16.mxu0 0
        %1725 = vmatpush1.bf16.msra.mxu0 0
        %1726 = vmatprep.subr.bf16.mxu0 0
        %1727 = vmatpush1.bf16.msra.mxu0 0
        %1728 = vmatprep.subr.bf16.mxu0 0
        %1729 = vmatpush1.bf16.msra.mxu0 0
        %1730 = vmatprep.mubr.bf16.mxu0 0
        %1731 = vmatmul.mubr.bf16.gmra.mrb[0].mxu0 %v1693
        %v1732 = vpop.f32.mrb[0].mxu0
        %v1733 = vadd.f32 0.0, %v1732
        %v1734 = vpop.f32.mrb[0].mxu0
        %v1735 = vpop.f32.mrb[0].mxu0
        %v1736 = vadd.f32 0.0, %v1735
        %v1737 = vpop.f32.mrb[0].mxu0
        %1738 = vmatprep.mubr.bf16.mxu0 0
        %1739 = vmatmul.mubr.bf16.gmra.mrb[0].mxu0 %v1696
        %v1740 = vpop.f32.mrb[0].mxu0
        %v1741 = vadd.f32 0.0, %v1740
        %v1742 = vpop.f32.mrb[0].mxu0
        %v1743 = vpop.f32.mrb[0].mxu0
        %v1744 = vadd.f32 0.0, %v1743
        %v1745 = vpop.f32.mrb[0].mxu0
        %1746 = vdwg.mxu0
        %v1747 = vadd.f32 %v1646, %v1733
        %v1748 = vadd.f32 %v1647, %v1736
        %v1749 = vadd.f32 %v1648, %v1741
        %v1750 = vadd.f32 %v1649, %v1744
        %v1751 = vld [vmem:[%s1652 + $0x1] sm:$0xff]
        %v1752 = vld [vmem:[%s1652 + $0x9] sm:$0xff]
        %v1753 = vld [vmem:[%s1652 + $0x11] sm:$0xff]
        %v1754 = vld [vmem:[%s1652 + $0x19] sm:$0x7]
        %v1755 = vpack.c.bf16 %v1752, %v1751
        %v1756 = vpack.c.bf16 %v1754, %v1753
        %s1757 = scalar_lea.vmem %s1, 512
        %v1758 = vld [vmem:[%s1757] sm:$0xf]
        %v1759 = vld [vmem:[%s1757 + $0x4] sm:$0xf]
        %v1760 = vld [vmem:[%s1757 + $0x8] sm:$0xf]
        %v1761 = vld [vmem:[%s1757 + $0xc] sm:$0xf]
        %v1762 = vld [vmem:[%s1757 + $0x10] sm:$0xf]
        %v1763 = vld [vmem:[%s1757 + $0x14] sm:$0xf]
        %v1764 = vld [vmem:[%s1757 + $0x18] sm:$0xf]
        %v1765 = vld [vmem:[%s1757 + $0x1c] sm:$0xf]
        %v1774 = vunpack.c.l.b16 %v1758
        %v1775 = vunpack.c.l.b16 %v1759
        %v1776 = vunpack.c.l.b16 %v1760
        %v1777 = vunpack.c.l.b16 %v1761
        %v1778 = vunpack.c.l.b16 %v1762
        %v1779 = vunpack.c.l.b16 %v1763
        %v1780 = vunpack.c.l.b16 %v1764
        %v1781 = vunpack.c.l.b16 %v1765
        %v1782 = vpack.c.b16 %v1775, %v1774
        %v1783 = vpack.c.b16 %v1777, %v1776
        %v1784 = vpack.c.b16 %v1779, %v1778
        %v1785 = vpack.c.b16 %v1781, %v1780
        %v1791 = vsel %vm235, %v1755, 0
        %v1794 = vsel %vm235, %v1756, 0
        %1796 = vmatprep.subr.bf16.mxu0 0
        %1797 = vmatpush1.bf16.msra.mxu0 %v1782
        %1798 = vmatprep.subr.bf16.mxu0 0
        %1799 = vmatpush1.bf16.msra.mxu0 %v1783
        %1800 = vmatprep.subr.bf16.mxu0 0
        %1801 = vmatpush1.bf16.msra.mxu0 %v1784
        %1802 = vmatprep.subr.bf16.mxu0 0
        %1803 = vmatpush1.bf16.msra.mxu0 %v1785
        %1804 = vmatprep.subr.bf16.mxu0 0
        %1805 = vmatpush1.bf16.msra.mxu0 0
        %1806 = vmatprep.subr.bf16.mxu0 0
        %1807 = vmatpush1.bf16.msra.mxu0 0
        %1808 = vmatprep.subr.bf16.mxu0 0
        %1809 = vmatpush1.bf16.msra.mxu0 0
        %1810 = vmatprep.subr.bf16.mxu0 0
        %1811 = vmatpush1.bf16.msra.mxu0 0
        %1812 = vmatprep.subr.bf16.mxu0 0
        %1813 = vmatpush1.bf16.msra.mxu0 0
        %1814 = vmatprep.subr.bf16.mxu0 0
        %1815 = vmatpush1.bf16.msra.mxu0 0
        %1816 = vmatprep.subr.bf16.mxu0 0
        %1817 = vmatpush1.bf16.msra.mxu0 0
        %1818 = vmatprep.subr.bf16.mxu0 0
        %1819 = vmatpush1.bf16.msra.mxu0 0
        %1820 = vmatprep.subr.bf16.mxu0 0
        %1821 = vmatpush1.bf16.msra.mxu0 0
        %1822 = vmatprep.subr.bf16.mxu0 0
        %1823 = vmatpush1.bf16.msra.mxu0 0
        %1824 = vmatprep.subr.bf16.mxu0 0
        %1825 = vmatpush1.bf16.msra.mxu0 0
        %1826 = vmatprep.subr.bf16.mxu0 0
        %1827 = vmatpush1.bf16.msra.mxu0 0
        %1828 = vmatprep.mubr.bf16.mxu0 0
        %1829 = vmatmul.mubr.bf16.gmra.mrb[0].mxu0 %v1791
        %v1830 = vpop.f32.mrb[0].mxu0
        %v1831 = vadd.f32 0.0, %v1830
        %v1832 = vpop.f32.mrb[0].mxu0
        %v1833 = vpop.f32.mrb[0].mxu0
        %v1834 = vadd.f32 0.0, %v1833
        %v1835 = vpop.f32.mrb[0].mxu0
        %1836 = vmatprep.mubr.bf16.mxu0 0
        %1837 = vmatmul.mubr.bf16.gmra.mrb[0].mxu0 %v1794
        %v1838 = vpop.f32.mrb[0].mxu0
        %v1839 = vadd.f32 0.0, %v1838
        %v1840 = vpop.f32.mrb[0].mxu0
        %v1841 = vpop.f32.mrb[0].mxu0
        %v1842 = vadd.f32 0.0, %v1841
        %v1843 = vpop.f32.mrb[0].mxu0
        %1844 = vdwg.mxu0
        %v1845 = vadd.f32 %v1747, %v1831
        %v1846 = vadd.f32 %v1748, %v1834
        %v1847 = vadd.f32 %v1749, %v1839
        %v1848 = vadd.f32 %v1750, %v1842
        %v1849 = vld [vmem:[%s1652 + $0x2] sm:$0xff]
        %v1850 = vld [vmem:[%s1652 + $0xa] sm:$0xff]
        %v1851 = vld [vmem:[%s1652 + $0x12] sm:$0xff]
        %v1852 = vld [vmem:[%s1652 + $0x1a] sm:$0x7]
        %v1853 = vpack.c.bf16 %v1850, %v1849
        %v1854 = vpack.c.bf16 %v1852, %v1851
        %s1855 = scalar_lea.vmem %s1, 544
        %v1856 = vld [vmem:[%s1855] sm:$0xf]
        %v1857 = vld [vmem:[%s1855 + $0x4] sm:$0xf]
        %v1858 = vld [vmem:[%s1855 + $0x8] sm:$0xf]
        %v1859 = vld [vmem:[%s1855 + $0xc] sm:$0xf]
        %v1860 = vld [vmem:[%s1855 + $0x10] sm:$0xf]
        %v1861 = vld [vmem:[%s1855 + $0x14] sm:$0xf]
        %v1862 = vld [vmem:[%s1855 + $0x18] sm:$0xf]
        %v1863 = vld [vmem:[%s1855 + $0x1c] sm:$0xf]
        %v1872 = vunpack.c.l.b16 %v1856
        %v1873 = vunpack.c.l.b16 %v1857
        %v1874 = vunpack.c.l.b16 %v1858
        %v1875 = vunpack.c.l.b16 %v1859
        %v1876 = vunpack.c.l.b16 %v1860
        %v1877 = vunpack.c.l.b16 %v1861
        %v1878 = vunpack.c.l.b16 %v1862
        %v1879 = vunpack.c.l.b16 %v1863
        %v1880 = vpack.c.b16 %v1873, %v1872
        %v1881 = vpack.c.b16 %v1875, %v1874
        %v1882 = vpack.c.b16 %v1877, %v1876
        %v1883 = vpack.c.b16 %v1879, %v1878
        %v1889 = vsel %vm235, %v1853, 0
        %v1892 = vsel %vm235, %v1854, 0
        %1894 = vmatprep.subr.bf16.mxu0 0
        %1895 = vmatpush1.bf16.msra.mxu0 %v1880
        %1896 = vmatprep.subr.bf16.mxu0 0
        %1897 = vmatpush1.bf16.msra.mxu0 %v1881
        %1898 = vmatprep.subr.bf16.mxu0 0
        %1899 = vmatpush1.bf16.msra.mxu0 %v1882
        %1900 = vmatprep.subr.bf16.mxu0 0
        %1901 = vmatpush1.bf16.msra.mxu0 %v1883
        %1902 = vmatprep.subr.bf16.mxu0 0
        %1903 = vmatpush1.bf16.msra.mxu0 0
        %1904 = vmatprep.subr.bf16.mxu0 0
        %1905 = vmatpush1.bf16.msra.mxu0 0
        %1906 = vmatprep.subr.bf16.mxu0 0
        %1907 = vmatpush1.bf16.msra.mxu0 0
        %1908 = vmatprep.subr.bf16.mxu0 0
        %1909 = vmatpush1.bf16.msra.mxu0 0
        %1910 = vmatprep.subr.bf16.mxu0 0
        %1911 = vmatpush1.bf16.msra.mxu0 0
        %1912 = vmatprep.subr.bf16.mxu0 0
        %1913 = vmatpush1.bf16.msra.mxu0 0
        %1914 = vmatprep.subr.bf16.mxu0 0
        %1915 = vmatpush1.bf16.msra.mxu0 0
        %1916 = vmatprep.subr.bf16.mxu0 0
        %1917 = vmatpush1.bf16.msra.mxu0 0
        %1918 = vmatprep.subr.bf16.mxu0 0
        %1919 = vmatpush1.bf16.msra.mxu0 0
        %1920 = vmatprep.subr.bf16.mxu0 0
        %1921 = vmatpush1.bf16.msra.mxu0 0
        %1922 = vmatprep.subr.bf16.mxu0 0
        %1923 = vmatpush1.bf16.msra.mxu0 0
        %1924 = vmatprep.subr.bf16.mxu0 0
        %1925 = vmatpush1.bf16.msra.mxu0 0
        %1926 = vmatprep.mubr.bf16.mxu0 0
        %1927 = vmatmul.mubr.bf16.gmra.mrb[0].mxu0 %v1889
        %v1928 = vpop.f32.mrb[0].mxu0
        %v1929 = vadd.f32 0.0, %v1928
        %v1930 = vpop.f32.mrb[0].mxu0
        %v1931 = vpop.f32.mrb[0].mxu0
        %v1932 = vadd.f32 0.0, %v1931
        %v1933 = vpop.f32.mrb[0].mxu0
        %1934 = vmatprep.mubr.bf16.mxu0 0
        %1935 = vmatmul.mubr.bf16.gmra.mrb[0].mxu0 %v1892
        %v1936 = vpop.f32.mrb[0].mxu0
        %v1937 = vadd.f32 0.0, %v1936
        %v1938 = vpop.f32.mrb[0].mxu0
        %v1939 = vpop.f32.mrb[0].mxu0
        %v1940 = vadd.f32 0.0, %v1939
        %v1941 = vpop.f32.mrb[0].mxu0
        %1942 = vdwg.mxu0
        %v1943 = vadd.f32 %v1845, %v1929
        %v1944 = vadd.f32 %v1846, %v1932
        %v1945 = vadd.f32 %v1847, %v1937
        %v1946 = vadd.f32 %v1848, %v1940
        %v1947 = vld [vmem:[%s1652 + $0x3] sm:$0xff]
        %v1948 = vld [vmem:[%s1652 + $0xb] sm:$0xff]
        %v1949 = vld [vmem:[%s1652 + $0x13] sm:$0xff]
        %v1950 = vld [vmem:[%s1652 + $0x1b] sm:$0x7]
        %v1951 = vpack.c.bf16 %v1948, %v1947
        %v1952 = vpack.c.bf16 %v1950, %v1949
        %s1953 = scalar_lea.vmem %s1, 576
        %v1954 = vld [vmem:[%s1953] sm:$0xf]
        %v1955 = vld [vmem:[%s1953 + $0x4] sm:$0xf]
        %v1956 = vld [vmem:[%s1953 + $0x8] sm:$0xf]
        %v1957 = vld [vmem:[%s1953 + $0xc] sm:$0xf]
        %v1958 = vld [vmem:[%s1953 + $0x10] sm:$0xf]
        %v1959 = vld [vmem:[%s1953 + $0x14] sm:$0xf]
        %v1960 = vld [vmem:[%s1953 + $0x18] sm:$0xf]
        %v1961 = vld [vmem:[%s1953 + $0x1c] sm:$0xf]
        %v1970 = vunpack.c.l.b16 %v1954
        %v1971 = vunpack.c.l.b16 %v1955
        %v1972 = vunpack.c.l.b16 %v1956
        %v1973 = vunpack.c.l.b16 %v1957
        %v1974 = vunpack.c.l.b16 %v1958
        %v1975 = vunpack.c.l.b16 %v1959
        %v1976 = vunpack.c.l.b16 %v1960
        %v1977 = vunpack.c.l.b16 %v1961
        %v1978 = vpack.c.b16 %v1971, %v1970
        %v1979 = vpack.c.b16 %v1973, %v1972
        %v1980 = vpack.c.b16 %v1975, %v1974
        %v1981 = vpack.c.b16 %v1977, %v1976
        %v1987 = vsel %vm235, %v1951, 0
        %v1990 = vsel %vm235, %v1952, 0
        %1992 = vmatprep.subr.bf16.mxu0 0
        %1993 = vmatpush1.bf16.msra.mxu0 %v1978
        %1994 = vmatprep.subr.bf16.mxu0 0
        %1995 = vmatpush1.bf16.msra.mxu0 %v1979
        %1996 = vmatprep.subr.bf16.mxu0 0
        %1997 = vmatpush1.bf16.msra.mxu0 %v1980
        %1998 = vmatprep.subr.bf16.mxu0 0
        %1999 = vmatpush1.bf16.msra.mxu0 %v1981
        %2000 = vmatprep.subr.bf16.mxu0 0
        %2001 = vmatpush1.bf16.msra.mxu0 0
        %2002 = vmatprep.subr.bf16.mxu0 0
        %2003 = vmatpush1.bf16.msra.mxu0 0
        %2004 = vmatprep.subr.bf16.mxu0 0
        %2005 = vmatpush1.bf16.msra.mxu0 0
        %2006 = vmatprep.subr.bf16.mxu0 0
        %2007 = vmatpush1.bf16.msra.mxu0 0
        %2008 = vmatprep.subr.bf16.mxu0 0
        %2009 = vmatpush1.bf16.msra.mxu0 0
        %2010 = vmatprep.subr.bf16.mxu0 0
        %2011 = vmatpush1.bf16.msra.mxu0 0
        %2012 = vmatprep.subr.bf16.mxu0 0
        %2013 = vmatpush1.bf16.msra.mxu0 0
        %2014 = vmatprep.subr.bf16.mxu0 0
        %2015 = vmatpush1.bf16.msra.mxu0 0
        %2016 = vmatprep.subr.bf16.mxu0 0
        %2017 = vmatpush1.bf16.msra.mxu0 0
        %2018 = vmatprep.subr.bf16.mxu0 0
        %2019 = vmatpush1.bf16.msra.mxu0 0
        %2020 = vmatprep.subr.bf16.mxu0 0
        %2021 = vmatpush1.bf16.msra.mxu0 0
        %2022 = vmatprep.subr.bf16.mxu0 0
        %2023 = vmatpush1.bf16.msra.mxu0 0
        %2024 = vmatprep.mubr.bf16.mxu0 0
        %2025 = vmatmul.mubr.bf16.gmra.mrb[0].mxu0 %v1987
        %v2026 = vpop.f32.mrb[0].mxu0
        %v2027 = vadd.f32 0.0, %v2026
        %v2028 = vpop.f32.mrb[0].mxu0
        %v2029 = vpop.f32.mrb[0].mxu0
        %v2030 = vadd.f32 0.0, %v2029
        %v2031 = vpop.f32.mrb[0].mxu0
        %2032 = vmatprep.mubr.bf16.mxu0 0
        %2033 = vmatmul.mubr.bf16.gmra.mrb[0].mxu0 %v1990
        %v2034 = vpop.f32.mrb[0].mxu0
        %v2035 = vadd.f32 0.0, %v2034
        %v2036 = vpop.f32.mrb[0].mxu0
        %v2037 = vpop.f32.mrb[0].mxu0
        %v2038 = vadd.f32 0.0, %v2037
        %v2039 = vpop.f32.mrb[0].mxu0
        %2040 = vdwg.mxu0
        %v2041 = vadd.f32 %v1943, %v2027
        %v2042 = vadd.f32 %v1944, %v2030
        %v2043 = vadd.f32 %v1945, %v2035
        %v2044 = vadd.f32 %v1946, %v2038
        %v2045 = vld [vmem:[%s1652 + $0x4] sm:$0xff]
        %v2046 = vld [vmem:[%s1652 + $0xc] sm:$0xff]
        %v2047 = vld [vmem:[%s1652 + $0x14] sm:$0xff]
        %v2048 = vld [vmem:[%s1652 + $0x1c] sm:$0x7]
        %v2049 = vpack.c.bf16 %v2046, %v2045
        %v2050 = vpack.c.bf16 %v2048, %v2047
        %s2051 = scalar_lea.vmem %s1, 608
        %v2052 = vld [vmem:[%s2051] sm:$0xf]
        %v2053 = vld [vmem:[%s2051 + $0x4] sm:$0xf]
        %v2054 = vld [vmem:[%s2051 + $0x8] sm:$0xf]
        %v2055 = vld [vmem:[%s2051 + $0xc] sm:$0xf]
        %v2056 = vld [vmem:[%s2051 + $0x10] sm:$0xf]
        %v2057 = vld [vmem:[%s2051 + $0x14] sm:$0xf]
        %v2058 = vld [vmem:[%s2051 + $0x18] sm:$0xf]
        %v2059 = vld [vmem:[%s2051 + $0x1c] sm:$0xf]
        %v2068 = vunpack.c.l.b16 %v2052
        %v2069 = vunpack.c.l.b16 %v2053
        %v2070 = vunpack.c.l.b16 %v2054
        %v2071 = vunpack.c.l.b16 %v2055
        %v2072 = vunpack.c.l.b16 %v2056
        %v2073 = vunpack.c.l.b16 %v2057
        %v2074 = vunpack.c.l.b16 %v2058
        %v2075 = vunpack.c.l.b16 %v2059
        %v2076 = vpack.c.b16 %v2069, %v2068
        %v2077 = vpack.c.b16 %v2071, %v2070
        %v2078 = vpack.c.b16 %v2073, %v2072
        %v2079 = vpack.c.b16 %v2075, %v2074
        %v2085 = vsel %vm235, %v2049, 0
        %v2088 = vsel %vm235, %v2050, 0
        %2090 = vmatprep.subr.bf16.mxu0 0
        %2091 = vmatpush1.bf16.msra.mxu0 %v2076
        %2092 = vmatprep.subr.bf16.mxu0 0
        %2093 = vmatpush1.bf16.msra.mxu0 %v2077
        %2094 = vmatprep.subr.bf16.mxu0 0
        %2095 = vmatpush1.bf16.msra.mxu0 %v2078
        %2096 = vmatprep.subr.bf16.mxu0 0
        %2097 = vmatpush1.bf16.msra.mxu0 %v2079
        %2098 = vmatprep.subr.bf16.mxu0 0
        %2099 = vmatpush1.bf16.msra.mxu0 0
        %2100 = vmatprep.subr.bf16.mxu0 0
        %2101 = vmatpush1.bf16.msra.mxu0 0
        %2102 = vmatprep.subr.bf16.mxu0 0
        %2103 = vmatpush1.bf16.msra.mxu0 0
        %2104 = vmatprep.subr.bf16.mxu0 0
        %2105 = vmatpush1.bf16.msra.mxu0 0
        %2106 = vmatprep.subr.bf16.mxu0 0
        %2107 = vmatpush1.bf16.msra.mxu0 0
        %2108 = vmatprep.subr.bf16.mxu0 0
        %2109 = vmatpush1.bf16.msra.mxu0 0
        %2110 = vmatprep.subr.bf16.mxu0 0
        %2111 = vmatpush1.bf16.msra.mxu0 0
        %2112 = vmatprep.subr.bf16.mxu0 0
        %2113 = vmatpush1.bf16.msra.mxu0 0
        %2114 = vmatprep.subr.bf16.mxu0 0
        %2115 = vmatpush1.bf16.msra.mxu0 0
        %2116 = vmatprep.subr.bf16.mxu0 0
        %2117 = vmatpush1.bf16.msra.mxu0 0
        %2118 = vmatprep.subr.bf16.mxu0 0
        %2119 = vmatpush1.bf16.msra.mxu0 0
        %2120 = vmatprep.subr.bf16.mxu0 0
        %2121 = vmatpush1.bf16.msra.mxu0 0
        %2122 = vmatprep.mubr.bf16.mxu0 0
        %2123 = vmatmul.mubr.bf16.gmra.mrb[0].mxu0 %v2085
        %v2124 = vpop.f32.mrb[0].mxu0
        %v2125 = vadd.f32 0.0, %v2124
        %v2126 = vpop.f32.mrb[0].mxu0
        %v2127 = vpop.f32.mrb[0].mxu0
        %v2128 = vadd.f32 0.0, %v2127
        %v2129 = vpop.f32.mrb[0].mxu0
        %2130 = vmatprep.mubr.bf16.mxu0 0
        %2131 = vmatmul.mubr.bf16.gmra.mrb[0].mxu0 %v2088
        %v2132 = vpop.f32.mrb[0].mxu0
        %v2133 = vadd.f32 0.0, %v2132
        %v2134 = vpop.f32.mrb[0].mxu0
        %v2135 = vpop.f32.mrb[0].mxu0
        %v2136 = vadd.f32 0.0, %v2135
        %v2137 = vpop.f32.mrb[0].mxu0
        %2138 = vdwg.mxu0
        %v2139 = vadd.f32 %v2041, %v2125
        %v2140 = vadd.f32 %v2042, %v2128
        %v2141 = vadd.f32 %v2043, %v2133
        %v2142 = vadd.f32 %v2044, %v2136
        %s2143 = sadd.s32 %s179, 4
        %s2144 = smul.u32 %s2143, 32
        %s2145 = scalar_lea.vmem %s165, %s2144
        %v2146 = vld [vmem:[%s2145] sm:$0xff]
        %v2147 = vld [vmem:[%s2145 + $0x8] sm:$0xff]
        %v2148 = vld [vmem:[%s2145 + $0x10] sm:$0xff]
        %v2149 = vld [vmem:[%s2145 + $0x18] sm:$0x7]
        %v2150 = vpack.c.bf16 %v2147, %v2146
        %v2151 = vpack.c.bf16 %v2149, %v2148
        %s2152 = scalar_lea.vmem %s1, 640
        %v2153 = vld [vmem:[%s2152] sm:$0xf]
        %v2154 = vld [vmem:[%s2152 + $0x4] sm:$0xf]
        %v2155 = vld [vmem:[%s2152 + $0x8] sm:$0xf]
        %v2156 = vld [vmem:[%s2152 + $0xc] sm:$0xf]
        %v2157 = vld [vmem:[%s2152 + $0x10] sm:$0xf]
        %v2158 = vld [vmem:[%s2152 + $0x14] sm:$0xf]
        %v2159 = vld [vmem:[%s2152 + $0x18] sm:$0xf]
        %v2160 = vld [vmem:[%s2152 + $0x1c] sm:$0xf]
        %v2169 = vunpack.c.l.b16 %v2153
        %v2170 = vunpack.c.l.b16 %v2154
        %v2171 = vunpack.c.l.b16 %v2155
        %v2172 = vunpack.c.l.b16 %v2156
        %v2173 = vunpack.c.l.b16 %v2157
        %v2174 = vunpack.c.l.b16 %v2158
        %v2175 = vunpack.c.l.b16 %v2159
        %v2176 = vunpack.c.l.b16 %v2160
        %v2177 = vpack.c.b16 %v2170, %v2169
        %v2178 = vpack.c.b16 %v2172, %v2171
        %v2179 = vpack.c.b16 %v2174, %v2173
        %v2180 = vpack.c.b16 %v2176, %v2175
        %v2186 = vsel %vm235, %v2150, 0
        %v2189 = vsel %vm235, %v2151, 0
        %2191 = vmatprep.subr.bf16.mxu0 0
        %2192 = vmatpush1.bf16.msra.mxu0 %v2177
        %2193 = vmatprep.subr.bf16.mxu0 0
        %2194 = vmatpush1.bf16.msra.mxu0 %v2178
        %2195 = vmatprep.subr.bf16.mxu0 0
        %2196 = vmatpush1.bf16.msra.mxu0 %v2179
        %2197 = vmatprep.subr.bf16.mxu0 0
        %2198 = vmatpush1.bf16.msra.mxu0 %v2180
        %2199 = vmatprep.subr.bf16.mxu0 0
        %2200 = vmatpush1.bf16.msra.mxu0 0
        %2201 = vmatprep.subr.bf16.mxu0 0
        %2202 = vmatpush1.bf16.msra.mxu0 0
        %2203 = vmatprep.subr.bf16.mxu0 0
        %2204 = vmatpush1.bf16.msra.mxu0 0
        %2205 = vmatprep.subr.bf16.mxu0 0
        %2206 = vmatpush1.bf16.msra.mxu0 0
        %2207 = vmatprep.subr.bf16.mxu0 0
        %2208 = vmatpush1.bf16.msra.mxu0 0
        %2209 = vmatprep.subr.bf16.mxu0 0
        %2210 = vmatpush1.bf16.msra.mxu0 0
        %2211 = vmatprep.subr.bf16.mxu0 0
        %2212 = vmatpush1.bf16.msra.mxu0 0
        %2213 = vmatprep.subr.bf16.mxu0 0
        %2214 = vmatpush1.bf16.msra.mxu0 0
        %2215 = vmatprep.subr.bf16.mxu0 0
        %2216 = vmatpush1.bf16.msra.mxu0 0
        %2217 = vmatprep.subr.bf16.mxu0 0
        %2218 = vmatpush1.bf16.msra.mxu0 0
        %2219 = vmatprep.subr.bf16.mxu0 0
        %2220 = vmatpush1.bf16.msra.mxu0 0
        %2221 = vmatprep.subr.bf16.mxu0 0
        %2222 = vmatpush1.bf16.msra.mxu0 0
        %2223 = vmatprep.mubr.bf16.mxu0 0
        %2224 = vmatmul.mubr.bf16.gmra.mrb[0].mxu0 %v2186
        %v2225 = vpop.f32.mrb[0].mxu0
        %v2226 = vadd.f32 0.0, %v2225
        %v2227 = vpop.f32.mrb[0].mxu0
        %v2228 = vpop.f32.mrb[0].mxu0
        %v2229 = vadd.f32 0.0, %v2228
        %v2230 = vpop.f32.mrb[0].mxu0
        %2231 = vmatprep.mubr.bf16.mxu0 0
        %2232 = vmatmul.mubr.bf16.gmra.mrb[0].mxu0 %v2189
        %v2233 = vpop.f32.mrb[0].mxu0
        %v2234 = vadd.f32 0.0, %v2233
        %v2235 = vpop.f32.mrb[0].mxu0
        %v2236 = vpop.f32.mrb[0].mxu0
        %v2237 = vadd.f32 0.0, %v2236
        %v2238 = vpop.f32.mrb[0].mxu0
        %2239 = vdwg.mxu0
        %v2240 = vadd.f32 %v2139, %v2226
        %v2241 = vadd.f32 %v2140, %v2229
        %v2242 = vadd.f32 %v2141, %v2234
        %v2243 = vadd.f32 %v2142, %v2237
        %v2244 = vld [vmem:[%s2145 + $0x1] sm:$0xff]
        %v2245 = vld [vmem:[%s2145 + $0x9] sm:$0xff]
        %v2246 = vld [vmem:[%s2145 + $0x11] sm:$0xff]
        %v2247 = vld [vmem:[%s2145 + $0x19] sm:$0x7]
        %v2248 = vpack.c.bf16 %v2245, %v2244
        %v2249 = vpack.c.bf16 %v2247, %v2246
        %s2250 = scalar_lea.vmem %s1, 672
        %v2251 = vld [vmem:[%s2250] sm:$0xf]
        %v2252 = vld [vmem:[%s2250 + $0x4] sm:$0xf]
        %v2253 = vld [vmem:[%s2250 + $0x8] sm:$0xf]
        %v2254 = vld [vmem:[%s2250 + $0xc] sm:$0xf]
        %v2255 = vld [vmem:[%s2250 + $0x10] sm:$0xf]
        %v2256 = vld [vmem:[%s2250 + $0x14] sm:$0xf]
        %v2257 = vld [vmem:[%s2250 + $0x18] sm:$0xf]
        %v2258 = vld [vmem:[%s2250 + $0x1c] sm:$0xf]
        %v2267 = vunpack.c.l.b16 %v2251
        %v2268 = vunpack.c.l.b16 %v2252
        %v2269 = vunpack.c.l.b16 %v2253
        %v2270 = vunpack.c.l.b16 %v2254
        %v2271 = vunpack.c.l.b16 %v2255
        %v2272 = vunpack.c.l.b16 %v2256
        %v2273 = vunpack.c.l.b16 %v2257
        %v2274 = vunpack.c.l.b16 %v2258
        %v2275 = vpack.c.b16 %v2268, %v2267
        %v2276 = vpack.c.b16 %v2270, %v2269
        %v2277 = vpack.c.b16 %v2272, %v2271
        %v2278 = vpack.c.b16 %v2274, %v2273
        %v2284 = vsel %vm235, %v2248, 0
        %v2287 = vsel %vm235, %v2249, 0
        %2289 = vmatprep.subr.bf16.mxu0 0
        %2290 = vmatpush1.bf16.msra.mxu0 %v2275
        %2291 = vmatprep.subr.bf16.mxu0 0
        %2292 = vmatpush1.bf16.msra.mxu0 %v2276
        %2293 = vmatprep.subr.bf16.mxu0 0
        %2294 = vmatpush1.bf16.msra.mxu0 %v2277
        %2295 = vmatprep.subr.bf16.mxu0 0
        %2296 = vmatpush1.bf16.msra.mxu0 %v2278
        %2297 = vmatprep.subr.bf16.mxu0 0
        %2298 = vmatpush1.bf16.msra.mxu0 0
        %2299 = vmatprep.subr.bf16.mxu0 0
        %2300 = vmatpush1.bf16.msra.mxu0 0
        %2301 = vmatprep.subr.bf16.mxu0 0
        %2302 = vmatpush1.bf16.msra.mxu0 0
        %2303 = vmatprep.subr.bf16.mxu0 0
        %2304 = vmatpush1.bf16.msra.mxu0 0
        %2305 = vmatprep.subr.bf16.mxu0 0
        %2306 = vmatpush1.bf16.msra.mxu0 0
        %2307 = vmatprep.subr.bf16.mxu0 0
        %2308 = vmatpush1.bf16.msra.mxu0 0
        %2309 = vmatprep.subr.bf16.mxu0 0
        %2310 = vmatpush1.bf16.msra.mxu0 0
        %2311 = vmatprep.subr.bf16.mxu0 0
        %2312 = vmatpush1.bf16.msra.mxu0 0
        %2313 = vmatprep.subr.bf16.mxu0 0
        %2314 = vmatpush1.bf16.msra.mxu0 0
        %2315 = vmatprep.subr.bf16.mxu0 0
        %2316 = vmatpush1.bf16.msra.mxu0 0
        %2317 = vmatprep.subr.bf16.mxu0 0
        %2318 = vmatpush1.bf16.msra.mxu0 0
        %2319 = vmatprep.subr.bf16.mxu0 0
        %2320 = vmatpush1.bf16.msra.mxu0 0
        %2321 = vmatprep.mubr.bf16.mxu0 0
        %2322 = vmatmul.mubr.bf16.gmra.mrb[0].mxu0 %v2284
        %v2323 = vpop.f32.mrb[0].mxu0
        %v2324 = vadd.f32 0.0, %v2323
        %v2325 = vpop.f32.mrb[0].mxu0
        %v2326 = vpop.f32.mrb[0].mxu0
        %v2327 = vadd.f32 0.0, %v2326
        %v2328 = vpop.f32.mrb[0].mxu0
        %2329 = vmatprep.mubr.bf16.mxu0 0
        %2330 = vmatmul.mubr.bf16.gmra.mrb[0].mxu0 %v2287
        %v2331 = vpop.f32.mrb[0].mxu0
        %v2332 = vadd.f32 0.0, %v2331
        %v2333 = vpop.f32.mrb[0].mxu0
        %v2334 = vpop.f32.mrb[0].mxu0
        %v2335 = vadd.f32 0.0, %v2334
        %v2336 = vpop.f32.mrb[0].mxu0
        %2337 = vdwg.mxu0
        %v2338 = vadd.f32 %v2240, %v2324
        %v2339 = vadd.f32 %v2241, %v2327
        %v2340 = vadd.f32 %v2242, %v2332
        %v2341 = vadd.f32 %v2243, %v2335
        %v2342 = vld [vmem:[%s2145 + $0x2] sm:$0xff]
        %v2343 = vld [vmem:[%s2145 + $0xa] sm:$0xff]
        %v2344 = vld [vmem:[%s2145 + $0x12] sm:$0xff]
        %v2345 = vld [vmem:[%s2145 + $0x1a] sm:$0x7]
        %v2346 = vpack.c.bf16 %v2343, %v2342
        %v2347 = vpack.c.bf16 %v2345, %v2344
        %s2348 = scalar_lea.vmem %s1, 704
        %v2349 = vld [vmem:[%s2348] sm:$0xf]
        %v2350 = vld [vmem:[%s2348 + $0x4] sm:$0xf]
        %v2351 = vld [vmem:[%s2348 + $0x8] sm:$0xf]
        %v2352 = vld [vmem:[%s2348 + $0xc] sm:$0xf]
        %v2353 = vld [vmem:[%s2348 + $0x10] sm:$0xf]
        %v2354 = vld [vmem:[%s2348 + $0x14] sm:$0xf]
        %v2355 = vld [vmem:[%s2348 + $0x18] sm:$0xf]
        %v2356 = vld [vmem:[%s2348 + $0x1c] sm:$0xf]
        %v2365 = vunpack.c.l.b16 %v2349
        %v2366 = vunpack.c.l.b16 %v2350
        %v2367 = vunpack.c.l.b16 %v2351
        %v2368 = vunpack.c.l.b16 %v2352
        %v2369 = vunpack.c.l.b16 %v2353
        %v2370 = vunpack.c.l.b16 %v2354
        %v2371 = vunpack.c.l.b16 %v2355
        %v2372 = vunpack.c.l.b16 %v2356
        %v2373 = vpack.c.b16 %v2366, %v2365
        %v2374 = vpack.c.b16 %v2368, %v2367
        %v2375 = vpack.c.b16 %v2370, %v2369
        %v2376 = vpack.c.b16 %v2372, %v2371
        %v2382 = vsel %vm235, %v2346, 0
        %v2385 = vsel %vm235, %v2347, 0
        %2387 = vmatprep.subr.bf16.mxu0 0
        %2388 = vmatpush1.bf16.msra.mxu0 %v2373
        %2389 = vmatprep.subr.bf16.mxu0 0
        %2390 = vmatpush1.bf16.msra.mxu0 %v2374
        %2391 = vmatprep.subr.bf16.mxu0 0
        %2392 = vmatpush1.bf16.msra.mxu0 %v2375
        %2393 = vmatprep.subr.bf16.mxu0 0
        %2394 = vmatpush1.bf16.msra.mxu0 %v2376
        %2395 = vmatprep.subr.bf16.mxu0 0
        %2396 = vmatpush1.bf16.msra.mxu0 0
        %2397 = vmatprep.subr.bf16.mxu0 0
        %2398 = vmatpush1.bf16.msra.mxu0 0
        %2399 = vmatprep.subr.bf16.mxu0 0
        %2400 = vmatpush1.bf16.msra.mxu0 0
        %2401 = vmatprep.subr.bf16.mxu0 0
        %2402 = vmatpush1.bf16.msra.mxu0 0
        %2403 = vmatprep.subr.bf16.mxu0 0
        %2404 = vmatpush1.bf16.msra.mxu0 0
        %2405 = vmatprep.subr.bf16.mxu0 0
        %2406 = vmatpush1.bf16.msra.mxu0 0
        %2407 = vmatprep.subr.bf16.mxu0 0
        %2408 = vmatpush1.bf16.msra.mxu0 0
        %2409 = vmatprep.subr.bf16.mxu0 0
        %2410 = vmatpush1.bf16.msra.mxu0 0
        %2411 = vmatprep.subr.bf16.mxu0 0
        %2412 = vmatpush1.bf16.msra.mxu0 0
        %2413 = vmatprep.subr.bf16.mxu0 0
        %2414 = vmatpush1.bf16.msra.mxu0 0
        %2415 = vmatprep.subr.bf16.mxu0 0
        %2416 = vmatpush1.bf16.msra.mxu0 0
        %2417 = vmatprep.subr.bf16.mxu0 0
        %2418 = vmatpush1.bf16.msra.mxu0 0
        %2419 = vmatprep.mubr.bf16.mxu0 0
        %2420 = vmatmul.mubr.bf16.gmra.mrb[0].mxu0 %v2382
        %v2421 = vpop.f32.mrb[0].mxu0
        %v2422 = vadd.f32 0.0, %v2421
        %v2423 = vpop.f32.mrb[0].mxu0
        %v2424 = vpop.f32.mrb[0].mxu0
        %v2425 = vadd.f32 0.0, %v2424
        %v2426 = vpop.f32.mrb[0].mxu0
        %2427 = vmatprep.mubr.bf16.mxu0 0
        %2428 = vmatmul.mubr.bf16.gmra.mrb[0].mxu0 %v2385
        %v2429 = vpop.f32.mrb[0].mxu0
        %v2430 = vadd.f32 0.0, %v2429
        %v2431 = vpop.f32.mrb[0].mxu0
        %v2432 = vpop.f32.mrb[0].mxu0
        %v2433 = vadd.f32 0.0, %v2432
        %v2434 = vpop.f32.mrb[0].mxu0
        %2435 = vdwg.mxu0
        %v2436 = vadd.f32 %v2338, %v2422
        %v2437 = vadd.f32 %v2339, %v2425
        %v2438 = vadd.f32 %v2340, %v2430
        %v2439 = vadd.f32 %v2341, %v2433
        %v2440 = vld [vmem:[%s2145 + $0x3] sm:$0xff]
        %v2441 = vld [vmem:[%s2145 + $0xb] sm:$0xff]
        %v2442 = vld [vmem:[%s2145 + $0x13] sm:$0xff]
        %v2443 = vld [vmem:[%s2145 + $0x1b] sm:$0x7]
        %v2444 = vpack.c.bf16 %v2441, %v2440
        %v2445 = vpack.c.bf16 %v2443, %v2442
        %s2446 = scalar_lea.vmem %s1, 736
        %v2447 = vld [vmem:[%s2446] sm:$0xf]
        %v2448 = vld [vmem:[%s2446 + $0x4] sm:$0xf]
        %v2449 = vld [vmem:[%s2446 + $0x8] sm:$0xf]
        %v2450 = vld [vmem:[%s2446 + $0xc] sm:$0xf]
        %v2451 = vld [vmem:[%s2446 + $0x10] sm:$0xf]
        %v2452 = vld [vmem:[%s2446 + $0x14] sm:$0xf]
        %v2453 = vld [vmem:[%s2446 + $0x18] sm:$0xf]
        %v2454 = vld [vmem:[%s2446 + $0x1c] sm:$0xf]
        %v2463 = vunpack.c.l.b16 %v2447
        %v2464 = vunpack.c.l.b16 %v2448
        %v2465 = vunpack.c.l.b16 %v2449
        %v2466 = vunpack.c.l.b16 %v2450
        %v2467 = vunpack.c.l.b16 %v2451
        %v2468 = vunpack.c.l.b16 %v2452
        %v2469 = vunpack.c.l.b16 %v2453
        %v2470 = vunpack.c.l.b16 %v2454
        %v2471 = vpack.c.b16 %v2464, %v2463
        %v2472 = vpack.c.b16 %v2466, %v2465
        %v2473 = vpack.c.b16 %v2468, %v2467
        %v2474 = vpack.c.b16 %v2470, %v2469
        %v2480 = vsel %vm235, %v2444, 0
        %v2483 = vsel %vm235, %v2445, 0
        %2485 = vmatprep.subr.bf16.mxu0 0
        %2486 = vmatpush1.bf16.msra.mxu0 %v2471
        %2487 = vmatprep.subr.bf16.mxu0 0
        %2488 = vmatpush1.bf16.msra.mxu0 %v2472
        %2489 = vmatprep.subr.bf16.mxu0 0
        %2490 = vmatpush1.bf16.msra.mxu0 %v2473
        %2491 = vmatprep.subr.bf16.mxu0 0
        %2492 = vmatpush1.bf16.msra.mxu0 %v2474
        %2493 = vmatprep.subr.bf16.mxu0 0
        %2494 = vmatpush1.bf16.msra.mxu0 0
        %2495 = vmatprep.subr.bf16.mxu0 0
        %2496 = vmatpush1.bf16.msra.mxu0 0
        %2497 = vmatprep.subr.bf16.mxu0 0
        %2498 = vmatpush1.bf16.msra.mxu0 0
        %2499 = vmatprep.subr.bf16.mxu0 0
        %2500 = vmatpush1.bf16.msra.mxu0 0
        %2501 = vmatprep.subr.bf16.mxu0 0
        %2502 = vmatpush1.bf16.msra.mxu0 0
        %2503 = vmatprep.subr.bf16.mxu0 0
        %2504 = vmatpush1.bf16.msra.mxu0 0
        %2505 = vmatprep.subr.bf16.mxu0 0
        %2506 = vmatpush1.bf16.msra.mxu0 0
        %2507 = vmatprep.subr.bf16.mxu0 0
        %2508 = vmatpush1.bf16.msra.mxu0 0
        %2509 = vmatprep.subr.bf16.mxu0 0
        %2510 = vmatpush1.bf16.msra.mxu0 0
        %2511 = vmatprep.subr.bf16.mxu0 0
        %2512 = vmatpush1.bf16.msra.mxu0 0
        %2513 = vmatprep.subr.bf16.mxu0 0
        %2514 = vmatpush1.bf16.msra.mxu0 0
        %2515 = vmatprep.subr.bf16.mxu0 0
        %2516 = vmatpush1.bf16.msra.mxu0 0
        %2517 = vmatprep.mubr.bf16.mxu0 0
        %2518 = vmatmul.mubr.bf16.gmra.mrb[0].mxu0 %v2480
        %v2519 = vpop.f32.mrb[0].mxu0
        %v2520 = vadd.f32 0.0, %v2519
        %v2521 = vpop.f32.mrb[0].mxu0
        %v2522 = vpop.f32.mrb[0].mxu0
        %v2523 = vadd.f32 0.0, %v2522
        %v2524 = vpop.f32.mrb[0].mxu0
        %2525 = vmatprep.mubr.bf16.mxu0 0
        %2526 = vmatmul.mubr.bf16.gmra.mrb[0].mxu0 %v2483
        %v2527 = vpop.f32.mrb[0].mxu0
        %v2528 = vadd.f32 0.0, %v2527
        %v2529 = vpop.f32.mrb[0].mxu0
        %v2530 = vpop.f32.mrb[0].mxu0
        %v2531 = vadd.f32 0.0, %v2530
        %v2532 = vpop.f32.mrb[0].mxu0
        %2533 = vdwg.mxu0
        %v2534 = vadd.f32 %v2436, %v2520
        %v2535 = vadd.f32 %v2437, %v2523
        %v2536 = vadd.f32 %v2438, %v2528
        %v2537 = vadd.f32 %v2439, %v2531
        %v2538 = vld [vmem:[%s2145 + $0x4] sm:$0xff]
        %v2539 = vld [vmem:[%s2145 + $0xc] sm:$0xff]
        %v2540 = vld [vmem:[%s2145 + $0x14] sm:$0xff]
        %v2541 = vld [vmem:[%s2145 + $0x1c] sm:$0x7]
        %v2542 = vpack.c.bf16 %v2539, %v2538
        %v2543 = vpack.c.bf16 %v2541, %v2540
        %s2544 = scalar_lea.vmem %s1, 768
        %v2545 = vld [vmem:[%s2544] sm:$0xf]
        %v2546 = vld [vmem:[%s2544 + $0x4] sm:$0xf]
        %v2547 = vld [vmem:[%s2544 + $0x8] sm:$0xf]
        %v2548 = vld [vmem:[%s2544 + $0xc] sm:$0xf]
        %v2549 = vld [vmem:[%s2544 + $0x10] sm:$0xf]
        %v2550 = vld [vmem:[%s2544 + $0x14] sm:$0xf]
        %v2551 = vld [vmem:[%s2544 + $0x18] sm:$0xf]
        %v2552 = vld [vmem:[%s2544 + $0x1c] sm:$0xf]
        %v2561 = vunpack.c.l.b16 %v2545
        %v2562 = vunpack.c.l.b16 %v2546
        %v2563 = vunpack.c.l.b16 %v2547
        %v2564 = vunpack.c.l.b16 %v2548
        %v2565 = vunpack.c.l.b16 %v2549
        %v2566 = vunpack.c.l.b16 %v2550
        %v2567 = vunpack.c.l.b16 %v2551
        %v2568 = vunpack.c.l.b16 %v2552
        %v2569 = vpack.c.b16 %v2562, %v2561
        %v2570 = vpack.c.b16 %v2564, %v2563
        %v2571 = vpack.c.b16 %v2566, %v2565
        %v2572 = vpack.c.b16 %v2568, %v2567
        %v2578 = vsel %vm235, %v2542, 0
        %v2581 = vsel %vm235, %v2543, 0
        %2583 = vmatprep.subr.bf16.mxu0 0
        %2584 = vmatpush1.bf16.msra.mxu0 %v2569
        %2585 = vmatprep.subr.bf16.mxu0 0
        %2586 = vmatpush1.bf16.msra.mxu0 %v2570
        %2587 = vmatprep.subr.bf16.mxu0 0
        %2588 = vmatpush1.bf16.msra.mxu0 %v2571
        %2589 = vmatprep.subr.bf16.mxu0 0
        %2590 = vmatpush1.bf16.msra.mxu0 %v2572
        %2591 = vmatprep.subr.bf16.mxu0 0
        %2592 = vmatpush1.bf16.msra.mxu0 0
        %2593 = vmatprep.subr.bf16.mxu0 0
        %2594 = vmatpush1.bf16.msra.mxu0 0
        %2595 = vmatprep.subr.bf16.mxu0 0
        %2596 = vmatpush1.bf16.msra.mxu0 0
        %2597 = vmatprep.subr.bf16.mxu0 0
        %2598 = vmatpush1.bf16.msra.mxu0 0
        %2599 = vmatprep.subr.bf16.mxu0 0
        %2600 = vmatpush1.bf16.msra.mxu0 0
        %2601 = vmatprep.subr.bf16.mxu0 0
        %2602 = vmatpush1.bf16.msra.mxu0 0
        %2603 = vmatprep.subr.bf16.mxu0 0
        %2604 = vmatpush1.bf16.msra.mxu0 0
        %2605 = vmatprep.subr.bf16.mxu0 0
        %2606 = vmatpush1.bf16.msra.mxu0 0
        %2607 = vmatprep.subr.bf16.mxu0 0
        %2608 = vmatpush1.bf16.msra.mxu0 0
        %2609 = vmatprep.subr.bf16.mxu0 0
        %2610 = vmatpush1.bf16.msra.mxu0 0
        %2611 = vmatprep.subr.bf16.mxu0 0
        %2612 = vmatpush1.bf16.msra.mxu0 0
        %2613 = vmatprep.subr.bf16.mxu0 0
        %2614 = vmatpush1.bf16.msra.mxu0 0
        %2615 = vmatprep.mubr.bf16.mxu0 0
        %2616 = vmatmul.mubr.bf16.gmra.mrb[0].mxu0 %v2578
        %v2617 = vpop.f32.mrb[0].mxu0
        %v2618 = vadd.f32 0.0, %v2617
        %v2619 = vpop.f32.mrb[0].mxu0
        %v2620 = vpop.f32.mrb[0].mxu0
        %v2621 = vadd.f32 0.0, %v2620
        %v2622 = vpop.f32.mrb[0].mxu0
        %2623 = vmatprep.mubr.bf16.mxu0 0
        %2624 = vmatmul.mubr.bf16.gmra.mrb[0].mxu0 %v2581
        %v2625 = vpop.f32.mrb[0].mxu0
        %v2626 = vadd.f32 0.0, %v2625
        %v2627 = vpop.f32.mrb[0].mxu0
        %v2628 = vpop.f32.mrb[0].mxu0
        %v2629 = vadd.f32 0.0, %v2628
        %v2630 = vpop.f32.mrb[0].mxu0
        %2631 = vdwg.mxu0
        %v2632 = vadd.f32 %v2534, %v2618
        %v2633 = vadd.f32 %v2535, %v2621
        %v2634 = vadd.f32 %v2536, %v2626
        %v2635 = vadd.f32 %v2537, %v2629
        %v2637 = vlaneseq
        %v2638 = vshrl.u32 %v2637, 7
        %v2639 = vsub.s32 0, %v2638
        %v2640 = vrot.slane %v172, %v2639
        %v2642 = vadd.f32 %v2632, %v2640
        %v2643 = vadd.f32 %v2633, %v2640
        %v2644 = vadd.f32 %v2634, %v2640
        %v2645 = vadd.f32 %v2635, %v2640
        %v2646 = vmax.f32 %v2642, 0.0
        %v2647 = vmax.f32 %v2643, 0.0
        %v2648 = vmax.f32 %v2644, 0.0
        %v2649 = vmax.f32 %v2645, 0.0
        %2650 = vmatprep.subr.bf16.mxu0 0
        %2651 = vmatpush1.bf16.msra.mxu0 %v227
        %2652 = vmatprep.subr.bf16.mxu0 0
        %2653 = vmatpush1.bf16.msra.mxu0 %v228
        %2654 = vmatprep.subr.bf16.mxu0 0
        %2655 = vmatpush1.bf16.msra.mxu0 %v229
        %2656 = vmatprep.subr.bf16.mxu0 0
        %2657 = vmatpush1.bf16.msra.mxu0 %v230
        %2658 = vmatprep.subr.bf16.mxu0 0
        %2659 = vmatpush1.bf16.msra.mxu0 0
        %2660 = vmatprep.subr.bf16.mxu0 0
        %2661 = vmatpush1.bf16.msra.mxu0 0
        %2662 = vmatprep.subr.bf16.mxu0 0
        %2663 = vmatpush1.bf16.msra.mxu0 0
        %2664 = vmatprep.subr.bf16.mxu0 0
        %2665 = vmatpush1.bf16.msra.mxu0 0
        %2666 = vmatprep.subr.bf16.mxu0 0
        %2667 = vmatpush1.bf16.msra.mxu0 0
        %2668 = vmatprep.subr.bf16.mxu0 0
        %2669 = vmatpush1.bf16.msra.mxu0 0
        %2670 = vmatprep.subr.bf16.mxu0 0
        %2671 = vmatpush1.bf16.msra.mxu0 0
        %2672 = vmatprep.subr.bf16.mxu0 0
        %2673 = vmatpush1.bf16.msra.mxu0 0
        %2674 = vmatprep.subr.bf16.mxu0 0
        %2675 = vmatpush1.bf16.msra.mxu0 0
        %2676 = vmatprep.subr.bf16.mxu0 0
        %2677 = vmatpush1.bf16.msra.mxu0 0
        %2678 = vmatprep.subr.bf16.mxu0 0
        %2679 = vmatpush1.bf16.msra.mxu0 0
        %2680 = vmatprep.subr.bf16.mxu0 0
        %2681 = vmatpush1.bf16.msra.mxu0 0
        %2682 = vmatprep.mubr.bf16.mxu0 0
        %2683 = vmatmul.mubr.bf16.gmra.mrb[0].mxu0 %v805
        %v2684 = vpop.f32.mrb[0].mxu0
        %v2685 = vadd.f32 0.0, %v2684
        %v2686 = vpop.f32.mrb[0].mxu0
        %v2687 = vpop.f32.mrb[0].mxu0
        %v2688 = vadd.f32 0.0, %v2687
        %v2689 = vpop.f32.mrb[0].mxu0
        %2690 = vmatprep.mubr.bf16.mxu0 0
        %2691 = vmatmul.mubr.bf16.gmra.mrb[0].mxu0 %v808
        %v2692 = vpop.f32.mrb[0].mxu0
        %v2693 = vadd.f32 0.0, %v2692
        %v2694 = vpop.f32.mrb[0].mxu0
        %v2695 = vpop.f32.mrb[0].mxu0
        %v2696 = vadd.f32 0.0, %v2695
        %v2697 = vpop.f32.mrb[0].mxu0
        %2698 = vdwg.mxu0
        %2699 = vmatprep.subr.bf16.mxu0 0
        %2700 = vmatpush1.bf16.msra.mxu0 %v307
        %2701 = vmatprep.subr.bf16.mxu0 0
        %2702 = vmatpush1.bf16.msra.mxu0 %v308
        %2703 = vmatprep.subr.bf16.mxu0 0
        %2704 = vmatpush1.bf16.msra.mxu0 %v309
        %2705 = vmatprep.subr.bf16.mxu0 0
        %2706 = vmatpush1.bf16.msra.mxu0 %v310
        %2707 = vmatprep.subr.bf16.mxu0 0
        %2708 = vmatpush1.bf16.msra.mxu0 0
        %2709 = vmatprep.subr.bf16.mxu0 0
        %2710 = vmatpush1.bf16.msra.mxu0 0
        %2711 = vmatprep.subr.bf16.mxu0 0
        %2712 = vmatpush1.bf16.msra.mxu0 0
        %2713 = vmatprep.subr.bf16.mxu0 0
        %2714 = vmatpush1.bf16.msra.mxu0 0
        %2715 = vmatprep.subr.bf16.mxu0 0
        %2716 = vmatpush1.bf16.msra.mxu0 0
        %2717 = vmatprep.subr.bf16.mxu0 0
        %2718 = vmatpush1.bf16.msra.mxu0 0
        %2719 = vmatprep.subr.bf16.mxu0 0
        %2720 = vmatpush1.bf16.msra.mxu0 0
        %2721 = vmatprep.subr.bf16.mxu0 0
        %2722 = vmatpush1.bf16.msra.mxu0 0
        %2723 = vmatprep.subr.bf16.mxu0 0
        %2724 = vmatpush1.bf16.msra.mxu0 0
        %2725 = vmatprep.subr.bf16.mxu0 0
        %2726 = vmatpush1.bf16.msra.mxu0 0
        %2727 = vmatprep.subr.bf16.mxu0 0
        %2728 = vmatpush1.bf16.msra.mxu0 0
        %2729 = vmatprep.subr.bf16.mxu0 0
        %2730 = vmatpush1.bf16.msra.mxu0 0
        %2731 = vmatprep.mubr.bf16.mxu0 0
        %2732 = vmatmul.mubr.bf16.gmra.mrb[0].mxu0 %v707
        %v2733 = vpop.f32.mrb[0].mxu0
        %v2734 = vadd.f32 %v2685, %v2733
        %v2735 = vpop.f32.mrb[0].mxu0
        %v2736 = vpop.f32.mrb[0].mxu0
        %v2737 = vadd.f32 %v2688, %v2736
        %v2738 = vpop.f32.mrb[0].mxu0
        %2739 = vmatprep.mubr.bf16.mxu0 0
        %2740 = vmatmul.mubr.bf16.gmra.mrb[0].mxu0 %v710
        %v2741 = vpop.f32.mrb[0].mxu0
        %v2742 = vadd.f32 %v2693, %v2741
        %v2743 = vpop.f32.mrb[0].mxu0
        %v2744 = vpop.f32.mrb[0].mxu0
        %v2745 = vadd.f32 %v2696, %v2744
        %v2746 = vpop.f32.mrb[0].mxu0
        %2747 = vdwg.mxu0
        %2748 = vmatprep.subr.bf16.mxu0 0
        %2749 = vmatpush1.bf16.msra.mxu0 %v401
        %2750 = vmatprep.subr.bf16.mxu0 0
        %2751 = vmatpush1.bf16.msra.mxu0 %v402
        %2752 = vmatprep.subr.bf16.mxu0 0
        %2753 = vmatpush1.bf16.msra.mxu0 %v403
        %2754 = vmatprep.subr.bf16.mxu0 0
        %2755 = vmatpush1.bf16.msra.mxu0 %v404
        %2756 = vmatprep.subr.bf16.mxu0 0
        %2757 = vmatpush1.bf16.msra.mxu0 0
        %2758 = vmatprep.subr.bf16.mxu0 0
        %2759 = vmatpush1.bf16.msra.mxu0 0
        %2760 = vmatprep.subr.bf16.mxu0 0
        %2761 = vmatpush1.bf16.msra.mxu0 0
        %2762 = vmatprep.subr.bf16.mxu0 0
        %2763 = vmatpush1.bf16.msra.mxu0 0
        %2764 = vmatprep.subr.bf16.mxu0 0
        %2765 = vmatpush1.bf16.msra.mxu0 0
        %2766 = vmatprep.subr.bf16.mxu0 0
        %2767 = vmatpush1.bf16.msra.mxu0 0
        %2768 = vmatprep.subr.bf16.mxu0 0
        %2769 = vmatpush1.bf16.msra.mxu0 0
        %2770 = vmatprep.subr.bf16.mxu0 0
        %2771 = vmatpush1.bf16.msra.mxu0 0
        %2772 = vmatprep.subr.bf16.mxu0 0
        %2773 = vmatpush1.bf16.msra.mxu0 0
        %2774 = vmatprep.subr.bf16.mxu0 0
        %2775 = vmatpush1.bf16.msra.mxu0 0
        %2776 = vmatprep.subr.bf16.mxu0 0
        %2777 = vmatpush1.bf16.msra.mxu0 0
        %2778 = vmatprep.subr.bf16.mxu0 0
        %2779 = vmatpush1.bf16.msra.mxu0 0
        %2780 = vmatprep.mubr.bf16.mxu0 0
        %2781 = vmatmul.mubr.bf16.gmra.mrb[0].mxu0 %v903
        %v2782 = vpop.f32.mrb[0].mxu0
        %v2783 = vadd.f32 0.0, %v2782
        %v2784 = vpop.f32.mrb[0].mxu0
        %v2785 = vpop.f32.mrb[0].mxu0
        %v2786 = vadd.f32 0.0, %v2785
        %v2787 = vpop.f32.mrb[0].mxu0
        %2788 = vmatprep.mubr.bf16.mxu0 0
        %2789 = vmatmul.mubr.bf16.gmra.mrb[0].mxu0 %v906
        %v2790 = vpop.f32.mrb[0].mxu0
        %v2791 = vadd.f32 0.0, %v2790
        %v2792 = vpop.f32.mrb[0].mxu0
        %v2793 = vpop.f32.mrb[0].mxu0
        %v2794 = vadd.f32 0.0, %v2793
        %v2795 = vpop.f32.mrb[0].mxu0
        %2796 = vdwg.mxu0
        %v2797 = vadd.f32 %v2734, %v2783
        %v2798 = vadd.f32 %v2737, %v2786
        %v2799 = vadd.f32 %v2742, %v2791
        %v2800 = vadd.f32 %v2745, %v2794
        %2801 = vmatprep.subr.bf16.mxu0 0
        %2802 = vmatpush1.bf16.msra.mxu0 %v499
        %2803 = vmatprep.subr.bf16.mxu0 0
        %2804 = vmatpush1.bf16.msra.mxu0 %v500
        %2805 = vmatprep.subr.bf16.mxu0 0
        %2806 = vmatpush1.bf16.msra.mxu0 %v501
        %2807 = vmatprep.subr.bf16.mxu0 0
        %2808 = vmatpush1.bf16.msra.mxu0 %v502
        %2809 = vmatprep.subr.bf16.mxu0 0
        %2810 = vmatpush1.bf16.msra.mxu0 0
        %2811 = vmatprep.subr.bf16.mxu0 0
        %2812 = vmatpush1.bf16.msra.mxu0 0
        %2813 = vmatprep.subr.bf16.mxu0 0
        %2814 = vmatpush1.bf16.msra.mxu0 0
        %2815 = vmatprep.subr.bf16.mxu0 0
        %2816 = vmatpush1.bf16.msra.mxu0 0
        %2817 = vmatprep.subr.bf16.mxu0 0
        %2818 = vmatpush1.bf16.msra.mxu0 0
        %2819 = vmatprep.subr.bf16.mxu0 0
        %2820 = vmatpush1.bf16.msra.mxu0 0
        %2821 = vmatprep.subr.bf16.mxu0 0
        %2822 = vmatpush1.bf16.msra.mxu0 0
        %2823 = vmatprep.subr.bf16.mxu0 0
        %2824 = vmatpush1.bf16.msra.mxu0 0
        %2825 = vmatprep.subr.bf16.mxu0 0
        %2826 = vmatpush1.bf16.msra.mxu0 0
        %2827 = vmatprep.subr.bf16.mxu0 0
        %2828 = vmatpush1.bf16.msra.mxu0 0
        %2829 = vmatprep.subr.bf16.mxu0 0
        %2830 = vmatpush1.bf16.msra.mxu0 0
        %2831 = vmatprep.subr.bf16.mxu0 0
        %2832 = vmatpush1.bf16.msra.mxu0 0
        %2833 = vmatprep.mubr.bf16.mxu0 0
        %2834 = vmatmul.mubr.bf16.gmra.mrb[0].mxu0 %v1001
        %v2835 = vpop.f32.mrb[0].mxu0
        %v2836 = vadd.f32 0.0, %v2835
        %v2837 = vpop.f32.mrb[0].mxu0
        %v2838 = vpop.f32.mrb[0].mxu0
        %v2839 = vadd.f32 0.0, %v2838
        %v2840 = vpop.f32.mrb[0].mxu0
        %2841 = vmatprep.mubr.bf16.mxu0 0
        %2842 = vmatmul.mubr.bf16.gmra.mrb[0].mxu0 %v1004
        %v2843 = vpop.f32.mrb[0].mxu0
        %v2844 = vadd.f32 0.0, %v2843
        %v2845 = vpop.f32.mrb[0].mxu0
        %v2846 = vpop.f32.mrb[0].mxu0
        %v2847 = vadd.f32 0.0, %v2846
        %v2848 = vpop.f32.mrb[0].mxu0
        %2849 = vdwg.mxu0
        %v2850 = vadd.f32 %v2797, %v2836
        %v2851 = vadd.f32 %v2798, %v2839
        %v2852 = vadd.f32 %v2799, %v2844
        %v2853 = vadd.f32 %v2800, %v2847
        %2854 = vmatprep.subr.bf16.mxu0 0
        %2855 = vmatpush1.bf16.msra.mxu0 %v597
        %2856 = vmatprep.subr.bf16.mxu0 0
        %2857 = vmatpush1.bf16.msra.mxu0 %v598
        %2858 = vmatprep.subr.bf16.mxu0 0
        %2859 = vmatpush1.bf16.msra.mxu0 %v599
        %2860 = vmatprep.subr.bf16.mxu0 0
        %2861 = vmatpush1.bf16.msra.mxu0 %v600
        %2862 = vmatprep.subr.bf16.mxu0 0
        %2863 = vmatpush1.bf16.msra.mxu0 0
        %2864 = vmatprep.subr.bf16.mxu0 0
        %2865 = vmatpush1.bf16.msra.mxu0 0
        %2866 = vmatprep.subr.bf16.mxu0 0
        %2867 = vmatpush1.bf16.msra.mxu0 0
        %2868 = vmatprep.subr.bf16.mxu0 0
        %2869 = vmatpush1.bf16.msra.mxu0 0
        %2870 = vmatprep.subr.bf16.mxu0 0
        %2871 = vmatpush1.bf16.msra.mxu0 0
        %2872 = vmatprep.subr.bf16.mxu0 0
        %2873 = vmatpush1.bf16.msra.mxu0 0
        %2874 = vmatprep.subr.bf16.mxu0 0
        %2875 = vmatpush1.bf16.msra.mxu0 0
        %2876 = vmatprep.subr.bf16.mxu0 0
        %2877 = vmatpush1.bf16.msra.mxu0 0
        %2878 = vmatprep.subr.bf16.mxu0 0
        %2879 = vmatpush1.bf16.msra.mxu0 0
        %2880 = vmatprep.subr.bf16.mxu0 0
        %2881 = vmatpush1.bf16.msra.mxu0 0
        %2882 = vmatprep.subr.bf16.mxu0 0
        %2883 = vmatpush1.bf16.msra.mxu0 0
        %2884 = vmatprep.subr.bf16.mxu0 0
        %2885 = vmatpush1.bf16.msra.mxu0 0
        %2886 = vmatprep.mubr.bf16.mxu0 0
        %2887 = vmatmul.mubr.bf16.gmra.mrb[0].mxu0 %v1099
        %v2888 = vpop.f32.mrb[0].mxu0
        %v2889 = vadd.f32 0.0, %v2888
        %v2890 = vpop.f32.mrb[0].mxu0
        %v2891 = vpop.f32.mrb[0].mxu0
        %v2892 = vadd.f32 0.0, %v2891
        %v2893 = vpop.f32.mrb[0].mxu0
        %2894 = vmatprep.mubr.bf16.mxu0 0
        %2895 = vmatmul.mubr.bf16.gmra.mrb[0].mxu0 %v1102
        %v2896 = vpop.f32.mrb[0].mxu0
        %v2897 = vadd.f32 0.0, %v2896
        %v2898 = vpop.f32.mrb[0].mxu0
        %v2899 = vpop.f32.mrb[0].mxu0
        %v2900 = vadd.f32 0.0, %v2899
        %v2901 = vpop.f32.mrb[0].mxu0
        %2902 = vdwg.mxu0
        %v2903 = vadd.f32 %v2850, %v2889
        %v2904 = vadd.f32 %v2851, %v2892
        %v2905 = vadd.f32 %v2852, %v2897
        %v2906 = vadd.f32 %v2853, %v2900
        %2907 = vmatprep.subr.bf16.mxu0 0
        %2908 = vmatpush1.bf16.msra.mxu0 %v698
        %2909 = vmatprep.subr.bf16.mxu0 0
        %2910 = vmatpush1.bf16.msra.mxu0 %v699
        %2911 = vmatprep.subr.bf16.mxu0 0
        %2912 = vmatpush1.bf16.msra.mxu0 %v700
        %2913 = vmatprep.subr.bf16.mxu0 0
        %2914 = vmatpush1.bf16.msra.mxu0 %v701
        %2915 = vmatprep.subr.bf16.mxu0 0
        %2916 = vmatpush1.bf16.msra.mxu0 0
        %2917 = vmatprep.subr.bf16.mxu0 0
        %2918 = vmatpush1.bf16.msra.mxu0 0
        %2919 = vmatprep.subr.bf16.mxu0 0
        %2920 = vmatpush1.bf16.msra.mxu0 0
        %2921 = vmatprep.subr.bf16.mxu0 0
        %2922 = vmatpush1.bf16.msra.mxu0 0
        %2923 = vmatprep.subr.bf16.mxu0 0
        %2924 = vmatpush1.bf16.msra.mxu0 0
        %2925 = vmatprep.subr.bf16.mxu0 0
        %2926 = vmatpush1.bf16.msra.mxu0 0
        %2927 = vmatprep.subr.bf16.mxu0 0
        %2928 = vmatpush1.bf16.msra.mxu0 0
        %2929 = vmatprep.subr.bf16.mxu0 0
        %2930 = vmatpush1.bf16.msra.mxu0 0
        %2931 = vmatprep.subr.bf16.mxu0 0
        %2932 = vmatpush1.bf16.msra.mxu0 0
        %2933 = vmatprep.subr.bf16.mxu0 0
        %2934 = vmatpush1.bf16.msra.mxu0 0
        %2935 = vmatprep.subr.bf16.mxu0 0
        %2936 = vmatpush1.bf16.msra.mxu0 0
        %2937 = vmatprep.subr.bf16.mxu0 0
        %2938 = vmatpush1.bf16.msra.mxu0 0
        %2939 = vmatprep.mubr.bf16.mxu0 0
        %2940 = vmatmul.mubr.bf16.gmra.mrb[0].mxu0 %v1200
        %v2941 = vpop.f32.mrb[0].mxu0
        %v2942 = vadd.f32 0.0, %v2941
        %v2943 = vpop.f32.mrb[0].mxu0
        %v2944 = vpop.f32.mrb[0].mxu0
        %v2945 = vadd.f32 0.0, %v2944
        %v2946 = vpop.f32.mrb[0].mxu0
        %2947 = vmatprep.mubr.bf16.mxu0 0
        %2948 = vmatmul.mubr.bf16.gmra.mrb[0].mxu0 %v1203
        %v2949 = vpop.f32.mrb[0].mxu0
        %v2950 = vadd.f32 0.0, %v2949
        %v2951 = vpop.f32.mrb[0].mxu0
        %v2952 = vpop.f32.mrb[0].mxu0
        %v2953 = vadd.f32 0.0, %v2952
        %v2954 = vpop.f32.mrb[0].mxu0
        %2955 = vdwg.mxu0
        %v2956 = vadd.f32 %v2903, %v2942
        %v2957 = vadd.f32 %v2904, %v2945
        %v2958 = vadd.f32 %v2905, %v2950
        %v2959 = vadd.f32 %v2906, %v2953
        %2960 = vmatprep.subr.bf16.mxu0 0
        %2961 = vmatpush1.bf16.msra.mxu0 %v796
        %2962 = vmatprep.subr.bf16.mxu0 0
        %2963 = vmatpush1.bf16.msra.mxu0 %v797
        %2964 = vmatprep.subr.bf16.mxu0 0
        %2965 = vmatpush1.bf16.msra.mxu0 %v798
        %2966 = vmatprep.subr.bf16.mxu0 0
        %2967 = vmatpush1.bf16.msra.mxu0 %v799
        %2968 = vmatprep.subr.bf16.mxu0 0
        %2969 = vmatpush1.bf16.msra.mxu0 0
        %2970 = vmatprep.subr.bf16.mxu0 0
        %2971 = vmatpush1.bf16.msra.mxu0 0
        %2972 = vmatprep.subr.bf16.mxu0 0
        %2973 = vmatpush1.bf16.msra.mxu0 0
        %2974 = vmatprep.subr.bf16.mxu0 0
        %2975 = vmatpush1.bf16.msra.mxu0 0
        %2976 = vmatprep.subr.bf16.mxu0 0
        %2977 = vmatpush1.bf16.msra.mxu0 0
        %2978 = vmatprep.subr.bf16.mxu0 0
        %2979 = vmatpush1.bf16.msra.mxu0 0
        %2980 = vmatprep.subr.bf16.mxu0 0
        %2981 = vmatpush1.bf16.msra.mxu0 0
        %2982 = vmatprep.subr.bf16.mxu0 0
        %2983 = vmatpush1.bf16.msra.mxu0 0
        %2984 = vmatprep.subr.bf16.mxu0 0
        %2985 = vmatpush1.bf16.msra.mxu0 0
        %2986 = vmatprep.subr.bf16.mxu0 0
        %2987 = vmatpush1.bf16.msra.mxu0 0
        %2988 = vmatprep.subr.bf16.mxu0 0
        %2989 = vmatpush1.bf16.msra.mxu0 0
        %2990 = vmatprep.subr.bf16.mxu0 0
        %2991 = vmatpush1.bf16.msra.mxu0 0
        %2992 = vmatprep.mubr.bf16.mxu0 0
        %2993 = vmatmul.mubr.bf16.gmra.mrb[0].mxu0 %v1298
        %v2994 = vpop.f32.mrb[0].mxu0
        %v2995 = vadd.f32 0.0, %v2994
        %v2996 = vpop.f32.mrb[0].mxu0
        %v2997 = vpop.f32.mrb[0].mxu0
        %v2998 = vadd.f32 0.0, %v2997
        %v2999 = vpop.f32.mrb[0].mxu0
        %3000 = vmatprep.mubr.bf16.mxu0 0
        %3001 = vmatmul.mubr.bf16.gmra.mrb[0].mxu0 %v1301
        %v3002 = vpop.f32.mrb[0].mxu0
        %v3003 = vadd.f32 0.0, %v3002
        %v3004 = vpop.f32.mrb[0].mxu0
        %v3005 = vpop.f32.mrb[0].mxu0
        %v3006 = vadd.f32 0.0, %v3005
        %v3007 = vpop.f32.mrb[0].mxu0
        %3008 = vdwg.mxu0
        %v3009 = vadd.f32 %v2956, %v2995
        %v3010 = vadd.f32 %v2957, %v2998
        %v3011 = vadd.f32 %v2958, %v3003
        %v3012 = vadd.f32 %v2959, %v3006
        %3013 = vmatprep.subr.bf16.mxu0 0
        %3014 = vmatpush1.bf16.msra.mxu0 %v894
        %3015 = vmatprep.subr.bf16.mxu0 0
        %3016 = vmatpush1.bf16.msra.mxu0 %v895
        %3017 = vmatprep.subr.bf16.mxu0 0
        %3018 = vmatpush1.bf16.msra.mxu0 %v896
        %3019 = vmatprep.subr.bf16.mxu0 0
        %3020 = vmatpush1.bf16.msra.mxu0 %v897
        %3021 = vmatprep.subr.bf16.mxu0 0
        %3022 = vmatpush1.bf16.msra.mxu0 0
        %3023 = vmatprep.subr.bf16.mxu0 0
        %3024 = vmatpush1.bf16.msra.mxu0 0
        %3025 = vmatprep.subr.bf16.mxu0 0
        %3026 = vmatpush1.bf16.msra.mxu0 0
        %3027 = vmatprep.subr.bf16.mxu0 0
        %3028 = vmatpush1.bf16.msra.mxu0 0
        %3029 = vmatprep.subr.bf16.mxu0 0
        %3030 = vmatpush1.bf16.msra.mxu0 0
        %3031 = vmatprep.subr.bf16.mxu0 0
        %3032 = vmatpush1.bf16.msra.mxu0 0
        %3033 = vmatprep.subr.bf16.mxu0 0
        %3034 = vmatpush1.bf16.msra.mxu0 0
        %3035 = vmatprep.subr.bf16.mxu0 0
        %3036 = vmatpush1.bf16.msra.mxu0 0
        %3037 = vmatprep.subr.bf16.mxu0 0
        %3038 = vmatpush1.bf16.msra.mxu0 0
        %3039 = vmatprep.subr.bf16.mxu0 0
        %3040 = vmatpush1.bf16.msra.mxu0 0
        %3041 = vmatprep.subr.bf16.mxu0 0
        %3042 = vmatpush1.bf16.msra.mxu0 0
        %3043 = vmatprep.subr.bf16.mxu0 0
        %3044 = vmatpush1.bf16.msra.mxu0 0
        %3045 = vmatprep.mubr.bf16.mxu0 0
        %3046 = vmatmul.mubr.bf16.gmra.mrb[0].mxu0 %v1396
        %v3047 = vpop.f32.mrb[0].mxu0
        %v3048 = vadd.f32 0.0, %v3047
        %v3049 = vpop.f32.mrb[0].mxu0
        %v3050 = vpop.f32.mrb[0].mxu0
        %v3051 = vadd.f32 0.0, %v3050
        %v3052 = vpop.f32.mrb[0].mxu0
        %3053 = vmatprep.mubr.bf16.mxu0 0
        %3054 = vmatmul.mubr.bf16.gmra.mrb[0].mxu0 %v1399
        %v3055 = vpop.f32.mrb[0].mxu0
        %v3056 = vadd.f32 0.0, %v3055
        %v3057 = vpop.f32.mrb[0].mxu0
        %v3058 = vpop.f32.mrb[0].mxu0
        %v3059 = vadd.f32 0.0, %v3058
        %v3060 = vpop.f32.mrb[0].mxu0
        %3061 = vdwg.mxu0
        %v3062 = vadd.f32 %v3009, %v3048
        %v3063 = vadd.f32 %v3010, %v3051
        %v3064 = vadd.f32 %v3011, %v3056
        %v3065 = vadd.f32 %v3012, %v3059
        %3066 = vmatprep.subr.bf16.mxu0 0
        %3067 = vmatpush1.bf16.msra.mxu0 %v992
        %3068 = vmatprep.subr.bf16.mxu0 0
        %3069 = vmatpush1.bf16.msra.mxu0 %v993
        %3070 = vmatprep.subr.bf16.mxu0 0
        %3071 = vmatpush1.bf16.msra.mxu0 %v994
        %3072 = vmatprep.subr.bf16.mxu0 0
        %3073 = vmatpush1.bf16.msra.mxu0 %v995
        %3074 = vmatprep.subr.bf16.mxu0 0
        %3075 = vmatpush1.bf16.msra.mxu0 0
        %3076 = vmatprep.subr.bf16.mxu0 0
        %3077 = vmatpush1.bf16.msra.mxu0 0
        %3078 = vmatprep.subr.bf16.mxu0 0
        %3079 = vmatpush1.bf16.msra.mxu0 0
        %3080 = vmatprep.subr.bf16.mxu0 0
        %3081 = vmatpush1.bf16.msra.mxu0 0
        %3082 = vmatprep.subr.bf16.mxu0 0
        %3083 = vmatpush1.bf16.msra.mxu0 0
        %3084 = vmatprep.subr.bf16.mxu0 0
        %3085 = vmatpush1.bf16.msra.mxu0 0
        %3086 = vmatprep.subr.bf16.mxu0 0
        %3087 = vmatpush1.bf16.msra.mxu0 0
        %3088 = vmatprep.subr.bf16.mxu0 0
        %3089 = vmatpush1.bf16.msra.mxu0 0
        %3090 = vmatprep.subr.bf16.mxu0 0
        %3091 = vmatpush1.bf16.msra.mxu0 0
        %3092 = vmatprep.subr.bf16.mxu0 0
        %3093 = vmatpush1.bf16.msra.mxu0 0
        %3094 = vmatprep.subr.bf16.mxu0 0
        %3095 = vmatpush1.bf16.msra.mxu0 0
        %3096 = vmatprep.subr.bf16.mxu0 0
        %3097 = vmatpush1.bf16.msra.mxu0 0
        %3098 = vmatprep.mubr.bf16.mxu0 0
        %3099 = vmatmul.mubr.bf16.gmra.mrb[0].mxu0 %v1494
        %v3100 = vpop.f32.mrb[0].mxu0
        %v3101 = vadd.f32 0.0, %v3100
        %v3102 = vpop.f32.mrb[0].mxu0
        %v3103 = vpop.f32.mrb[0].mxu0
        %v3104 = vadd.f32 0.0, %v3103
        %v3105 = vpop.f32.mrb[0].mxu0
        %3106 = vmatprep.mubr.bf16.mxu0 0
        %3107 = vmatmul.mubr.bf16.gmra.mrb[0].mxu0 %v1497
        %v3108 = vpop.f32.mrb[0].mxu0
        %v3109 = vadd.f32 0.0, %v3108
        %v3110 = vpop.f32.mrb[0].mxu0
        %v3111 = vpop.f32.mrb[0].mxu0
        %v3112 = vadd.f32 0.0, %v3111
        %v3113 = vpop.f32.mrb[0].mxu0
        %3114 = vdwg.mxu0
        %v3115 = vadd.f32 %v3062, %v3101
        %v3116 = vadd.f32 %v3063, %v3104
        %v3117 = vadd.f32 %v3064, %v3109
        %v3118 = vadd.f32 %v3065, %v3112
        %3119 = vmatprep.subr.bf16.mxu0 0
        %3120 = vmatpush1.bf16.msra.mxu0 %v1090
        %3121 = vmatprep.subr.bf16.mxu0 0
        %3122 = vmatpush1.bf16.msra.mxu0 %v1091
        %3123 = vmatprep.subr.bf16.mxu0 0
        %3124 = vmatpush1.bf16.msra.mxu0 %v1092
        %3125 = vmatprep.subr.bf16.mxu0 0
        %3126 = vmatpush1.bf16.msra.mxu0 %v1093
        %3127 = vmatprep.subr.bf16.mxu0 0
        %3128 = vmatpush1.bf16.msra.mxu0 0
        %3129 = vmatprep.subr.bf16.mxu0 0
        %3130 = vmatpush1.bf16.msra.mxu0 0
        %3131 = vmatprep.subr.bf16.mxu0 0
        %3132 = vmatpush1.bf16.msra.mxu0 0
        %3133 = vmatprep.subr.bf16.mxu0 0
        %3134 = vmatpush1.bf16.msra.mxu0 0
        %3135 = vmatprep.subr.bf16.mxu0 0
        %3136 = vmatpush1.bf16.msra.mxu0 0
        %3137 = vmatprep.subr.bf16.mxu0 0
        %3138 = vmatpush1.bf16.msra.mxu0 0
        %3139 = vmatprep.subr.bf16.mxu0 0
        %3140 = vmatpush1.bf16.msra.mxu0 0
        %3141 = vmatprep.subr.bf16.mxu0 0
        %3142 = vmatpush1.bf16.msra.mxu0 0
        %3143 = vmatprep.subr.bf16.mxu0 0
        %3144 = vmatpush1.bf16.msra.mxu0 0
        %3145 = vmatprep.subr.bf16.mxu0 0
        %3146 = vmatpush1.bf16.msra.mxu0 0
        %3147 = vmatprep.subr.bf16.mxu0 0
        %3148 = vmatpush1.bf16.msra.mxu0 0
        %3149 = vmatprep.subr.bf16.mxu0 0
        %3150 = vmatpush1.bf16.msra.mxu0 0
        %3151 = vmatprep.mubr.bf16.mxu0 0
        %3152 = vmatmul.mubr.bf16.gmra.mrb[0].mxu0 %v1592
        %v3153 = vpop.f32.mrb[0].mxu0
        %v3154 = vadd.f32 0.0, %v3153
        %v3155 = vpop.f32.mrb[0].mxu0
        %v3156 = vpop.f32.mrb[0].mxu0
        %v3157 = vadd.f32 0.0, %v3156
        %v3158 = vpop.f32.mrb[0].mxu0
        %3159 = vmatprep.mubr.bf16.mxu0 0
        %3160 = vmatmul.mubr.bf16.gmra.mrb[0].mxu0 %v1595
        %v3161 = vpop.f32.mrb[0].mxu0
        %v3162 = vadd.f32 0.0, %v3161
        %v3163 = vpop.f32.mrb[0].mxu0
        %v3164 = vpop.f32.mrb[0].mxu0
        %v3165 = vadd.f32 0.0, %v3164
        %v3166 = vpop.f32.mrb[0].mxu0
        %3167 = vdwg.mxu0
        %v3168 = vadd.f32 %v3115, %v3154
        %v3169 = vadd.f32 %v3116, %v3157
        %v3170 = vadd.f32 %v3117, %v3162
        %v3171 = vadd.f32 %v3118, %v3165
        %3172 = vmatprep.subr.bf16.mxu0 0
        %3173 = vmatpush1.bf16.msra.mxu0 %v1191
        %3174 = vmatprep.subr.bf16.mxu0 0
        %3175 = vmatpush1.bf16.msra.mxu0 %v1192
        %3176 = vmatprep.subr.bf16.mxu0 0
        %3177 = vmatpush1.bf16.msra.mxu0 %v1193
        %3178 = vmatprep.subr.bf16.mxu0 0
        %3179 = vmatpush1.bf16.msra.mxu0 %v1194
        %3180 = vmatprep.subr.bf16.mxu0 0
        %3181 = vmatpush1.bf16.msra.mxu0 0
        %3182 = vmatprep.subr.bf16.mxu0 0
        %3183 = vmatpush1.bf16.msra.mxu0 0
        %3184 = vmatprep.subr.bf16.mxu0 0
        %3185 = vmatpush1.bf16.msra.mxu0 0
        %3186 = vmatprep.subr.bf16.mxu0 0
        %3187 = vmatpush1.bf16.msra.mxu0 0
        %3188 = vmatprep.subr.bf16.mxu0 0
        %3189 = vmatpush1.bf16.msra.mxu0 0
        %3190 = vmatprep.subr.bf16.mxu0 0
        %3191 = vmatpush1.bf16.msra.mxu0 0
        %3192 = vmatprep.subr.bf16.mxu0 0
        %3193 = vmatpush1.bf16.msra.mxu0 0
        %3194 = vmatprep.subr.bf16.mxu0 0
        %3195 = vmatpush1.bf16.msra.mxu0 0
        %3196 = vmatprep.subr.bf16.mxu0 0
        %3197 = vmatpush1.bf16.msra.mxu0 0
        %3198 = vmatprep.subr.bf16.mxu0 0
        %3199 = vmatpush1.bf16.msra.mxu0 0
        %3200 = vmatprep.subr.bf16.mxu0 0
        %3201 = vmatpush1.bf16.msra.mxu0 0
        %3202 = vmatprep.subr.bf16.mxu0 0
        %3203 = vmatpush1.bf16.msra.mxu0 0
        %3204 = vmatprep.mubr.bf16.mxu0 0
        %3205 = vmatmul.mubr.bf16.gmra.mrb[0].mxu0 %v1693
        %v3206 = vpop.f32.mrb[0].mxu0
        %v3207 = vadd.f32 0.0, %v3206
        %v3208 = vpop.f32.mrb[0].mxu0
        %v3209 = vpop.f32.mrb[0].mxu0
        %v3210 = vadd.f32 0.0, %v3209
        %v3211 = vpop.f32.mrb[0].mxu0
        %3212 = vmatprep.mubr.bf16.mxu0 0
        %3213 = vmatmul.mubr.bf16.gmra.mrb[0].mxu0 %v1696
        %v3214 = vpop.f32.mrb[0].mxu0
        %v3215 = vadd.f32 0.0, %v3214
        %v3216 = vpop.f32.mrb[0].mxu0
        %v3217 = vpop.f32.mrb[0].mxu0
        %v3218 = vadd.f32 0.0, %v3217
        %v3219 = vpop.f32.mrb[0].mxu0
        %3220 = vdwg.mxu0
        %v3221 = vadd.f32 %v3168, %v3207
        %v3222 = vadd.f32 %v3169, %v3210
        %v3223 = vadd.f32 %v3170, %v3215
        %v3224 = vadd.f32 %v3171, %v3218
        %3225 = vmatprep.subr.bf16.mxu0 0
        %3226 = vmatpush1.bf16.msra.mxu0 %v1289
        %3227 = vmatprep.subr.bf16.mxu0 0
        %3228 = vmatpush1.bf16.msra.mxu0 %v1290
        %3229 = vmatprep.subr.bf16.mxu0 0
        %3230 = vmatpush1.bf16.msra.mxu0 %v1291
        %3231 = vmatprep.subr.bf16.mxu0 0
        %3232 = vmatpush1.bf16.msra.mxu0 %v1292
        %3233 = vmatprep.subr.bf16.mxu0 0
        %3234 = vmatpush1.bf16.msra.mxu0 0
        %3235 = vmatprep.subr.bf16.mxu0 0
        %3236 = vmatpush1.bf16.msra.mxu0 0
        %3237 = vmatprep.subr.bf16.mxu0 0
        %3238 = vmatpush1.bf16.msra.mxu0 0
        %3239 = vmatprep.subr.bf16.mxu0 0
        %3240 = vmatpush1.bf16.msra.mxu0 0
        %3241 = vmatprep.subr.bf16.mxu0 0
        %3242 = vmatpush1.bf16.msra.mxu0 0
        %3243 = vmatprep.subr.bf16.mxu0 0
        %3244 = vmatpush1.bf16.msra.mxu0 0
        %3245 = vmatprep.subr.bf16.mxu0 0
        %3246 = vmatpush1.bf16.msra.mxu0 0
        %3247 = vmatprep.subr.bf16.mxu0 0
        %3248 = vmatpush1.bf16.msra.mxu0 0
        %3249 = vmatprep.subr.bf16.mxu0 0
        %3250 = vmatpush1.bf16.msra.mxu0 0
        %3251 = vmatprep.subr.bf16.mxu0 0
        %3252 = vmatpush1.bf16.msra.mxu0 0
        %3253 = vmatprep.subr.bf16.mxu0 0
        %3254 = vmatpush1.bf16.msra.mxu0 0
        %3255 = vmatprep.subr.bf16.mxu0 0
        %3256 = vmatpush1.bf16.msra.mxu0 0
        %3257 = vmatprep.mubr.bf16.mxu0 0
        %3258 = vmatmul.mubr.bf16.gmra.mrb[0].mxu0 %v1791
        %v3259 = vpop.f32.mrb[0].mxu0
        %v3260 = vadd.f32 0.0, %v3259
        %v3261 = vpop.f32.mrb[0].mxu0
        %v3262 = vpop.f32.mrb[0].mxu0
        %v3263 = vadd.f32 0.0, %v3262
        %v3264 = vpop.f32.mrb[0].mxu0
        %3265 = vmatprep.mubr.bf16.mxu0 0
        %3266 = vmatmul.mubr.bf16.gmra.mrb[0].mxu0 %v1794
        %v3267 = vpop.f32.mrb[0].mxu0
        %v3268 = vadd.f32 0.0, %v3267
        %v3269 = vpop.f32.mrb[0].mxu0
        %v3270 = vpop.f32.mrb[0].mxu0
        %v3271 = vadd.f32 0.0, %v3270
        %v3272 = vpop.f32.mrb[0].mxu0
        %3273 = vdwg.mxu0
        %v3274 = vadd.f32 %v3221, %v3260
        %v3275 = vadd.f32 %v3222, %v3263
        %v3276 = vadd.f32 %v3223, %v3268
        %v3277 = vadd.f32 %v3224, %v3271
        %3278 = vmatprep.subr.bf16.mxu0 0
        %3279 = vmatpush1.bf16.msra.mxu0 %v1387
        %3280 = vmatprep.subr.bf16.mxu0 0
        %3281 = vmatpush1.bf16.msra.mxu0 %v1388
        %3282 = vmatprep.subr.bf16.mxu0 0
        %3283 = vmatpush1.bf16.msra.mxu0 %v1389
        %3284 = vmatprep.subr.bf16.mxu0 0
        %3285 = vmatpush1.bf16.msra.mxu0 %v1390
        %3286 = vmatprep.subr.bf16.mxu0 0
        %3287 = vmatpush1.bf16.msra.mxu0 0
        %3288 = vmatprep.subr.bf16.mxu0 0
        %3289 = vmatpush1.bf16.msra.mxu0 0
        %3290 = vmatprep.subr.bf16.mxu0 0
        %3291 = vmatpush1.bf16.msra.mxu0 0
        %3292 = vmatprep.subr.bf16.mxu0 0
        %3293 = vmatpush1.bf16.msra.mxu0 0
        %3294 = vmatprep.subr.bf16.mxu0 0
        %3295 = vmatpush1.bf16.msra.mxu0 0
        %3296 = vmatprep.subr.bf16.mxu0 0
        %3297 = vmatpush1.bf16.msra.mxu0 0
        %3298 = vmatprep.subr.bf16.mxu0 0
        %3299 = vmatpush1.bf16.msra.mxu0 0
        %3300 = vmatprep.subr.bf16.mxu0 0
        %3301 = vmatpush1.bf16.msra.mxu0 0
        %3302 = vmatprep.subr.bf16.mxu0 0
        %3303 = vmatpush1.bf16.msra.mxu0 0
        %3304 = vmatprep.subr.bf16.mxu0 0
        %3305 = vmatpush1.bf16.msra.mxu0 0
        %3306 = vmatprep.subr.bf16.mxu0 0
        %3307 = vmatpush1.bf16.msra.mxu0 0
        %3308 = vmatprep.subr.bf16.mxu0 0
        %3309 = vmatpush1.bf16.msra.mxu0 0
        %3310 = vmatprep.mubr.bf16.mxu0 0
        %3311 = vmatmul.mubr.bf16.gmra.mrb[0].mxu0 %v1889
        %v3312 = vpop.f32.mrb[0].mxu0
        %v3313 = vadd.f32 0.0, %v3312
        %v3314 = vpop.f32.mrb[0].mxu0
        %v3315 = vpop.f32.mrb[0].mxu0
        %v3316 = vadd.f32 0.0, %v3315
        %v3317 = vpop.f32.mrb[0].mxu0
        %3318 = vmatprep.mubr.bf16.mxu0 0
        %3319 = vmatmul.mubr.bf16.gmra.mrb[0].mxu0 %v1892
        %v3320 = vpop.f32.mrb[0].mxu0
        %v3321 = vadd.f32 0.0, %v3320
        %v3322 = vpop.f32.mrb[0].mxu0
        %v3323 = vpop.f32.mrb[0].mxu0
        %v3324 = vadd.f32 0.0, %v3323
        %v3325 = vpop.f32.mrb[0].mxu0
        %3326 = vdwg.mxu0
        %v3327 = vadd.f32 %v3274, %v3313
        %v3328 = vadd.f32 %v3275, %v3316
        %v3329 = vadd.f32 %v3276, %v3321
        %v3330 = vadd.f32 %v3277, %v3324
        %3331 = vmatprep.subr.bf16.mxu0 0
        %3332 = vmatpush1.bf16.msra.mxu0 %v1485
        %3333 = vmatprep.subr.bf16.mxu0 0
        %3334 = vmatpush1.bf16.msra.mxu0 %v1486
        %3335 = vmatprep.subr.bf16.mxu0 0
        %3336 = vmatpush1.bf16.msra.mxu0 %v1487
        %3337 = vmatprep.subr.bf16.mxu0 0
        %3338 = vmatpush1.bf16.msra.mxu0 %v1488
        %3339 = vmatprep.subr.bf16.mxu0 0
        %3340 = vmatpush1.bf16.msra.mxu0 0
        %3341 = vmatprep.subr.bf16.mxu0 0
        %3342 = vmatpush1.bf16.msra.mxu0 0
        %3343 = vmatprep.subr.bf16.mxu0 0
        %3344 = vmatpush1.bf16.msra.mxu0 0
        %3345 = vmatprep.subr.bf16.mxu0 0
        %3346 = vmatpush1.bf16.msra.mxu0 0
        %3347 = vmatprep.subr.bf16.mxu0 0
        %3348 = vmatpush1.bf16.msra.mxu0 0
        %3349 = vmatprep.subr.bf16.mxu0 0
        %3350 = vmatpush1.bf16.msra.mxu0 0
        %3351 = vmatprep.subr.bf16.mxu0 0
        %3352 = vmatpush1.bf16.msra.mxu0 0
        %3353 = vmatprep.subr.bf16.mxu0 0
        %3354 = vmatpush1.bf16.msra.mxu0 0
        %3355 = vmatprep.subr.bf16.mxu0 0
        %3356 = vmatpush1.bf16.msra.mxu0 0
        %3357 = vmatprep.subr.bf16.mxu0 0
        %3358 = vmatpush1.bf16.msra.mxu0 0
        %3359 = vmatprep.subr.bf16.mxu0 0
        %3360 = vmatpush1.bf16.msra.mxu0 0
        %3361 = vmatprep.subr.bf16.mxu0 0
        %3362 = vmatpush1.bf16.msra.mxu0 0
        %3363 = vmatprep.mubr.bf16.mxu0 0
        %3364 = vmatmul.mubr.bf16.gmra.mrb[0].mxu0 %v1987
        %v3365 = vpop.f32.mrb[0].mxu0
        %v3366 = vadd.f32 0.0, %v3365
        %v3367 = vpop.f32.mrb[0].mxu0
        %v3368 = vpop.f32.mrb[0].mxu0
        %v3369 = vadd.f32 0.0, %v3368
        %v3370 = vpop.f32.mrb[0].mxu0
        %3371 = vmatprep.mubr.bf16.mxu0 0
        %3372 = vmatmul.mubr.bf16.gmra.mrb[0].mxu0 %v1990
        %v3373 = vpop.f32.mrb[0].mxu0
        %v3374 = vadd.f32 0.0, %v3373
        %v3375 = vpop.f32.mrb[0].mxu0
        %v3376 = vpop.f32.mrb[0].mxu0
        %v3377 = vadd.f32 0.0, %v3376
        %v3378 = vpop.f32.mrb[0].mxu0
        %3379 = vdwg.mxu0
        %v3380 = vadd.f32 %v3327, %v3366
        %v3381 = vadd.f32 %v3328, %v3369
        %v3382 = vadd.f32 %v3329, %v3374
        %v3383 = vadd.f32 %v3330, %v3377
        %3384 = vmatprep.subr.bf16.mxu0 0
        %3385 = vmatpush1.bf16.msra.mxu0 %v1583
        %3386 = vmatprep.subr.bf16.mxu0 0
        %3387 = vmatpush1.bf16.msra.mxu0 %v1584
        %3388 = vmatprep.subr.bf16.mxu0 0
        %3389 = vmatpush1.bf16.msra.mxu0 %v1585
        %3390 = vmatprep.subr.bf16.mxu0 0
        %3391 = vmatpush1.bf16.msra.mxu0 %v1586
        %3392 = vmatprep.subr.bf16.mxu0 0
        %3393 = vmatpush1.bf16.msra.mxu0 0
        %3394 = vmatprep.subr.bf16.mxu0 0
        %3395 = vmatpush1.bf16.msra.mxu0 0
        %3396 = vmatprep.subr.bf16.mxu0 0
        %3397 = vmatpush1.bf16.msra.mxu0 0
        %3398 = vmatprep.subr.bf16.mxu0 0
        %3399 = vmatpush1.bf16.msra.mxu0 0
        %3400 = vmatprep.subr.bf16.mxu0 0
        %3401 = vmatpush1.bf16.msra.mxu0 0
        %3402 = vmatprep.subr.bf16.mxu0 0
        %3403 = vmatpush1.bf16.msra.mxu0 0
        %3404 = vmatprep.subr.bf16.mxu0 0
        %3405 = vmatpush1.bf16.msra.mxu0 0
        %3406 = vmatprep.subr.bf16.mxu0 0
        %3407 = vmatpush1.bf16.msra.mxu0 0
        %3408 = vmatprep.subr.bf16.mxu0 0
        %3409 = vmatpush1.bf16.msra.mxu0 0
        %3410 = vmatprep.subr.bf16.mxu0 0
        %3411 = vmatpush1.bf16.msra.mxu0 0
        %3412 = vmatprep.subr.bf16.mxu0 0
        %3413 = vmatpush1.bf16.msra.mxu0 0
        %3414 = vmatprep.subr.bf16.mxu0 0
        %3415 = vmatpush1.bf16.msra.mxu0 0
        %3416 = vmatprep.mubr.bf16.mxu0 0
        %3417 = vmatmul.mubr.bf16.gmra.mrb[0].mxu0 %v2085
        %v3418 = vpop.f32.mrb[0].mxu0
        %v3419 = vadd.f32 0.0, %v3418
        %v3420 = vpop.f32.mrb[0].mxu0
        %v3421 = vpop.f32.mrb[0].mxu0
        %v3422 = vadd.f32 0.0, %v3421
        %v3423 = vpop.f32.mrb[0].mxu0
        %3424 = vmatprep.mubr.bf16.mxu0 0
        %3425 = vmatmul.mubr.bf16.gmra.mrb[0].mxu0 %v2088
        %v3426 = vpop.f32.mrb[0].mxu0
        %v3427 = vadd.f32 0.0, %v3426
        %v3428 = vpop.f32.mrb[0].mxu0
        %v3429 = vpop.f32.mrb[0].mxu0
        %v3430 = vadd.f32 0.0, %v3429
        %v3431 = vpop.f32.mrb[0].mxu0
        %3432 = vdwg.mxu0
        %v3433 = vadd.f32 %v3380, %v3419
        %v3434 = vadd.f32 %v3381, %v3422
        %v3435 = vadd.f32 %v3382, %v3427
        %v3436 = vadd.f32 %v3383, %v3430
        %3437 = vmatprep.subr.bf16.mxu0 0
        %3438 = vmatpush1.bf16.msra.mxu0 %v1684
        %3439 = vmatprep.subr.bf16.mxu0 0
        %3440 = vmatpush1.bf16.msra.mxu0 %v1685
        %3441 = vmatprep.subr.bf16.mxu0 0
        %3442 = vmatpush1.bf16.msra.mxu0 %v1686
        %3443 = vmatprep.subr.bf16.mxu0 0
        %3444 = vmatpush1.bf16.msra.mxu0 %v1687
        %3445 = vmatprep.subr.bf16.mxu0 0
        %3446 = vmatpush1.bf16.msra.mxu0 0
        %3447 = vmatprep.subr.bf16.mxu0 0
        %3448 = vmatpush1.bf16.msra.mxu0 0
        %3449 = vmatprep.subr.bf16.mxu0 0
        %3450 = vmatpush1.bf16.msra.mxu0 0
        %3451 = vmatprep.subr.bf16.mxu0 0
        %3452 = vmatpush1.bf16.msra.mxu0 0
        %3453 = vmatprep.subr.bf16.mxu0 0
        %3454 = vmatpush1.bf16.msra.mxu0 0
        %3455 = vmatprep.subr.bf16.mxu0 0
        %3456 = vmatpush1.bf16.msra.mxu0 0
        %3457 = vmatprep.subr.bf16.mxu0 0
        %3458 = vmatpush1.bf16.msra.mxu0 0
        %3459 = vmatprep.subr.bf16.mxu0 0
        %3460 = vmatpush1.bf16.msra.mxu0 0
        %3461 = vmatprep.subr.bf16.mxu0 0
        %3462 = vmatpush1.bf16.msra.mxu0 0
        %3463 = vmatprep.subr.bf16.mxu0 0
        %3464 = vmatpush1.bf16.msra.mxu0 0
        %3465 = vmatprep.subr.bf16.mxu0 0
        %3466 = vmatpush1.bf16.msra.mxu0 0
        %3467 = vmatprep.subr.bf16.mxu0 0
        %3468 = vmatpush1.bf16.msra.mxu0 0
        %3469 = vmatprep.mubr.bf16.mxu0 0
        %3470 = vmatmul.mubr.bf16.gmra.mrb[0].mxu0 %v2186
        %v3471 = vpop.f32.mrb[0].mxu0
        %v3472 = vadd.f32 0.0, %v3471
        %v3473 = vpop.f32.mrb[0].mxu0
        %v3474 = vpop.f32.mrb[0].mxu0
        %v3475 = vadd.f32 0.0, %v3474
        %v3476 = vpop.f32.mrb[0].mxu0
        %3477 = vmatprep.mubr.bf16.mxu0 0
        %3478 = vmatmul.mubr.bf16.gmra.mrb[0].mxu0 %v2189
        %v3479 = vpop.f32.mrb[0].mxu0
        %v3480 = vadd.f32 0.0, %v3479
        %v3481 = vpop.f32.mrb[0].mxu0
        %v3482 = vpop.f32.mrb[0].mxu0
        %v3483 = vadd.f32 0.0, %v3482
        %v3484 = vpop.f32.mrb[0].mxu0
        %3485 = vdwg.mxu0
        %v3486 = vadd.f32 %v3433, %v3472
        %v3487 = vadd.f32 %v3434, %v3475
        %v3488 = vadd.f32 %v3435, %v3480
        %v3489 = vadd.f32 %v3436, %v3483
        %3490 = vmatprep.subr.bf16.mxu0 0
        %3491 = vmatpush1.bf16.msra.mxu0 %v1782
        %3492 = vmatprep.subr.bf16.mxu0 0
        %3493 = vmatpush1.bf16.msra.mxu0 %v1783
        %3494 = vmatprep.subr.bf16.mxu0 0
        %3495 = vmatpush1.bf16.msra.mxu0 %v1784
        %3496 = vmatprep.subr.bf16.mxu0 0
        %3497 = vmatpush1.bf16.msra.mxu0 %v1785
        %3498 = vmatprep.subr.bf16.mxu0 0
        %3499 = vmatpush1.bf16.msra.mxu0 0
        %3500 = vmatprep.subr.bf16.mxu0 0
        %3501 = vmatpush1.bf16.msra.mxu0 0
        %3502 = vmatprep.subr.bf16.mxu0 0
        %3503 = vmatpush1.bf16.msra.mxu0 0
        %3504 = vmatprep.subr.bf16.mxu0 0
        %3505 = vmatpush1.bf16.msra.mxu0 0
        %3506 = vmatprep.subr.bf16.mxu0 0
        %3507 = vmatpush1.bf16.msra.mxu0 0
        %3508 = vmatprep.subr.bf16.mxu0 0
        %3509 = vmatpush1.bf16.msra.mxu0 0
        %3510 = vmatprep.subr.bf16.mxu0 0
        %3511 = vmatpush1.bf16.msra.mxu0 0
        %3512 = vmatprep.subr.bf16.mxu0 0
        %3513 = vmatpush1.bf16.msra.mxu0 0
        %3514 = vmatprep.subr.bf16.mxu0 0
        %3515 = vmatpush1.bf16.msra.mxu0 0
        %3516 = vmatprep.subr.bf16.mxu0 0
        %3517 = vmatpush1.bf16.msra.mxu0 0
        %3518 = vmatprep.subr.bf16.mxu0 0
        %3519 = vmatpush1.bf16.msra.mxu0 0
        %3520 = vmatprep.subr.bf16.mxu0 0
        %3521 = vmatpush1.bf16.msra.mxu0 0
        %3522 = vmatprep.mubr.bf16.mxu0 0
        %3523 = vmatmul.mubr.bf16.gmra.mrb[0].mxu0 %v2284
        %v3524 = vpop.f32.mrb[0].mxu0
        %v3525 = vadd.f32 0.0, %v3524
        %v3526 = vpop.f32.mrb[0].mxu0
        %v3527 = vpop.f32.mrb[0].mxu0
        %v3528 = vadd.f32 0.0, %v3527
        %v3529 = vpop.f32.mrb[0].mxu0
        %3530 = vmatprep.mubr.bf16.mxu0 0
        %3531 = vmatmul.mubr.bf16.gmra.mrb[0].mxu0 %v2287
        %v3532 = vpop.f32.mrb[0].mxu0
        %v3533 = vadd.f32 0.0, %v3532
        %v3534 = vpop.f32.mrb[0].mxu0
        %v3535 = vpop.f32.mrb[0].mxu0
        %v3536 = vadd.f32 0.0, %v3535
        %v3537 = vpop.f32.mrb[0].mxu0
        %3538 = vdwg.mxu0
        %v3539 = vadd.f32 %v3486, %v3525
        %v3540 = vadd.f32 %v3487, %v3528
        %v3541 = vadd.f32 %v3488, %v3533
        %v3542 = vadd.f32 %v3489, %v3536
        %3543 = vmatprep.subr.bf16.mxu0 0
        %3544 = vmatpush1.bf16.msra.mxu0 %v1880
        %3545 = vmatprep.subr.bf16.mxu0 0
        %3546 = vmatpush1.bf16.msra.mxu0 %v1881
        %3547 = vmatprep.subr.bf16.mxu0 0
        %3548 = vmatpush1.bf16.msra.mxu0 %v1882
        %3549 = vmatprep.subr.bf16.mxu0 0
        %3550 = vmatpush1.bf16.msra.mxu0 %v1883
        %3551 = vmatprep.subr.bf16.mxu0 0
        %3552 = vmatpush1.bf16.msra.mxu0 0
        %3553 = vmatprep.subr.bf16.mxu0 0
        %3554 = vmatpush1.bf16.msra.mxu0 0
        %3555 = vmatprep.subr.bf16.mxu0 0
        %3556 = vmatpush1.bf16.msra.mxu0 0
        %3557 = vmatprep.subr.bf16.mxu0 0
        %3558 = vmatpush1.bf16.msra.mxu0 0
        %3559 = vmatprep.subr.bf16.mxu0 0
        %3560 = vmatpush1.bf16.msra.mxu0 0
        %3561 = vmatprep.subr.bf16.mxu0 0
        %3562 = vmatpush1.bf16.msra.mxu0 0
        %3563 = vmatprep.subr.bf16.mxu0 0
        %3564 = vmatpush1.bf16.msra.mxu0 0
        %3565 = vmatprep.subr.bf16.mxu0 0
        %3566 = vmatpush1.bf16.msra.mxu0 0
        %3567 = vmatprep.subr.bf16.mxu0 0
        %3568 = vmatpush1.bf16.msra.mxu0 0
        %3569 = vmatprep.subr.bf16.mxu0 0
        %3570 = vmatpush1.bf16.msra.mxu0 0
        %3571 = vmatprep.subr.bf16.mxu0 0
        %3572 = vmatpush1.bf16.msra.mxu0 0
        %3573 = vmatprep.subr.bf16.mxu0 0
        %3574 = vmatpush1.bf16.msra.mxu0 0
        %3575 = vmatprep.mubr.bf16.mxu0 0
        %3576 = vmatmul.mubr.bf16.gmra.mrb[0].mxu0 %v2382
        %v3577 = vpop.f32.mrb[0].mxu0
        %v3578 = vadd.f32 0.0, %v3577
        %v3579 = vpop.f32.mrb[0].mxu0
        %v3580 = vpop.f32.mrb[0].mxu0
        %v3581 = vadd.f32 0.0, %v3580
        %v3582 = vpop.f32.mrb[0].mxu0
        %3583 = vmatprep.mubr.bf16.mxu0 0
        %3584 = vmatmul.mubr.bf16.gmra.mrb[0].mxu0 %v2385
        %v3585 = vpop.f32.mrb[0].mxu0
        %v3586 = vadd.f32 0.0, %v3585
        %v3587 = vpop.f32.mrb[0].mxu0
        %v3588 = vpop.f32.mrb[0].mxu0
        %v3589 = vadd.f32 0.0, %v3588
        %v3590 = vpop.f32.mrb[0].mxu0
        %3591 = vdwg.mxu0
        %v3592 = vadd.f32 %v3539, %v3578
        %v3593 = vadd.f32 %v3540, %v3581
        %v3594 = vadd.f32 %v3541, %v3586
        %v3595 = vadd.f32 %v3542, %v3589
        %3596 = vmatprep.subr.bf16.mxu0 0
        %3597 = vmatpush1.bf16.msra.mxu0 %v1978
        %3598 = vmatprep.subr.bf16.mxu0 0
        %3599 = vmatpush1.bf16.msra.mxu0 %v1979
        %3600 = vmatprep.subr.bf16.mxu0 0
        %3601 = vmatpush1.bf16.msra.mxu0 %v1980
        %3602 = vmatprep.subr.bf16.mxu0 0
        %3603 = vmatpush1.bf16.msra.mxu0 %v1981
        %3604 = vmatprep.subr.bf16.mxu0 0
        %3605 = vmatpush1.bf16.msra.mxu0 0
        %3606 = vmatprep.subr.bf16.mxu0 0
        %3607 = vmatpush1.bf16.msra.mxu0 0
        %3608 = vmatprep.subr.bf16.mxu0 0
        %3609 = vmatpush1.bf16.msra.mxu0 0
        %3610 = vmatprep.subr.bf16.mxu0 0
        %3611 = vmatpush1.bf16.msra.mxu0 0
        %3612 = vmatprep.subr.bf16.mxu0 0
        %3613 = vmatpush1.bf16.msra.mxu0 0
        %3614 = vmatprep.subr.bf16.mxu0 0
        %3615 = vmatpush1.bf16.msra.mxu0 0
        %3616 = vmatprep.subr.bf16.mxu0 0
        %3617 = vmatpush1.bf16.msra.mxu0 0
        %3618 = vmatprep.subr.bf16.mxu0 0
        %3619 = vmatpush1.bf16.msra.mxu0 0
        %3620 = vmatprep.subr.bf16.mxu0 0
        %3621 = vmatpush1.bf16.msra.mxu0 0
        %3622 = vmatprep.subr.bf16.mxu0 0
        %3623 = vmatpush1.bf16.msra.mxu0 0
        %3624 = vmatprep.subr.bf16.mxu0 0
        %3625 = vmatpush1.bf16.msra.mxu0 0
        %3626 = vmatprep.subr.bf16.mxu0 0
        %3627 = vmatpush1.bf16.msra.mxu0 0
        %3628 = vmatprep.mubr.bf16.mxu0 0
        %3629 = vmatmul.mubr.bf16.gmra.mrb[0].mxu0 %v2480
        %v3630 = vpop.f32.mrb[0].mxu0
        %v3631 = vadd.f32 0.0, %v3630
        %v3632 = vpop.f32.mrb[0].mxu0
        %v3633 = vpop.f32.mrb[0].mxu0
        %v3634 = vadd.f32 0.0, %v3633
        %v3635 = vpop.f32.mrb[0].mxu0
        %3636 = vmatprep.mubr.bf16.mxu0 0
        %3637 = vmatmul.mubr.bf16.gmra.mrb[0].mxu0 %v2483
        %v3638 = vpop.f32.mrb[0].mxu0
        %v3639 = vadd.f32 0.0, %v3638
        %v3640 = vpop.f32.mrb[0].mxu0
        %v3641 = vpop.f32.mrb[0].mxu0
        %v3642 = vadd.f32 0.0, %v3641
        %v3643 = vpop.f32.mrb[0].mxu0
        %3644 = vdwg.mxu0
        %v3645 = vadd.f32 %v3592, %v3631
        %v3646 = vadd.f32 %v3593, %v3634
        %v3647 = vadd.f32 %v3594, %v3639
        %v3648 = vadd.f32 %v3595, %v3642
        %3649 = vmatprep.subr.bf16.mxu0 0
        %3650 = vmatpush1.bf16.msra.mxu0 %v2076
        %3651 = vmatprep.subr.bf16.mxu0 0
        %3652 = vmatpush1.bf16.msra.mxu0 %v2077
        %3653 = vmatprep.subr.bf16.mxu0 0
        %3654 = vmatpush1.bf16.msra.mxu0 %v2078
        %3655 = vmatprep.subr.bf16.mxu0 0
        %3656 = vmatpush1.bf16.msra.mxu0 %v2079
        %3657 = vmatprep.subr.bf16.mxu0 0
        %3658 = vmatpush1.bf16.msra.mxu0 0
        %3659 = vmatprep.subr.bf16.mxu0 0
        %3660 = vmatpush1.bf16.msra.mxu0 0
        %3661 = vmatprep.subr.bf16.mxu0 0
        %3662 = vmatpush1.bf16.msra.mxu0 0
        %3663 = vmatprep.subr.bf16.mxu0 0
        %3664 = vmatpush1.bf16.msra.mxu0 0
        %3665 = vmatprep.subr.bf16.mxu0 0
        %3666 = vmatpush1.bf16.msra.mxu0 0
        %3667 = vmatprep.subr.bf16.mxu0 0
        %3668 = vmatpush1.bf16.msra.mxu0 0
        %3669 = vmatprep.subr.bf16.mxu0 0
        %3670 = vmatpush1.bf16.msra.mxu0 0
        %3671 = vmatprep.subr.bf16.mxu0 0
        %3672 = vmatpush1.bf16.msra.mxu0 0
        %3673 = vmatprep.subr.bf16.mxu0 0
        %3674 = vmatpush1.bf16.msra.mxu0 0
        %3675 = vmatprep.subr.bf16.mxu0 0
        %3676 = vmatpush1.bf16.msra.mxu0 0
        %3677 = vmatprep.subr.bf16.mxu0 0
        %3678 = vmatpush1.bf16.msra.mxu0 0
        %3679 = vmatprep.subr.bf16.mxu0 0
        %3680 = vmatpush1.bf16.msra.mxu0 0
        %3681 = vmatprep.mubr.bf16.mxu0 0
        %3682 = vmatmul.mubr.bf16.gmra.mrb[0].mxu0 %v2578
        %v3683 = vpop.f32.mrb[0].mxu0
        %v3684 = vadd.f32 0.0, %v3683
        %v3685 = vpop.f32.mrb[0].mxu0
        %v3686 = vpop.f32.mrb[0].mxu0
        %v3687 = vadd.f32 0.0, %v3686
        %v3688 = vpop.f32.mrb[0].mxu0
        %3689 = vmatprep.mubr.bf16.mxu0 0
        %3690 = vmatmul.mubr.bf16.gmra.mrb[0].mxu0 %v2581
        %v3691 = vpop.f32.mrb[0].mxu0
        %v3692 = vadd.f32 0.0, %v3691
        %v3693 = vpop.f32.mrb[0].mxu0
        %v3694 = vpop.f32.mrb[0].mxu0
        %v3695 = vadd.f32 0.0, %v3694
        %v3696 = vpop.f32.mrb[0].mxu0
        %3697 = vdwg.mxu0
        %v3698 = vadd.f32 %v3645, %v3684
        %v3699 = vadd.f32 %v3646, %v3687
        %v3700 = vadd.f32 %v3647, %v3692
        %v3701 = vadd.f32 %v3648, %v3695
        %s3702 = sadd.s32 %s179, 5
        %s3703 = smul.u32 %s3702, 32
        %s3704 = scalar_lea.vmem %s165, %s3703
        %v3705 = vld [vmem:[%s3704] sm:$0xff]
        %v3706 = vld [vmem:[%s3704 + $0x8] sm:$0xff]
        %v3707 = vld [vmem:[%s3704 + $0x10] sm:$0xff]
        %v3708 = vld [vmem:[%s3704 + $0x18] sm:$0x7]
        %v3709 = vpack.c.bf16 %v3706, %v3705
        %v3710 = vpack.c.bf16 %v3708, %v3707
        %v3712 = vsel %vm235, %v3709, 0
        %v3715 = vsel %vm235, %v3710, 0
        %3717 = vmatprep.subr.bf16.mxu0 0
        %3718 = vmatpush1.bf16.msra.mxu0 %v2177
        %3719 = vmatprep.subr.bf16.mxu0 0
        %3720 = vmatpush1.bf16.msra.mxu0 %v2178
        %3721 = vmatprep.subr.bf16.mxu0 0
        %3722 = vmatpush1.bf16.msra.mxu0 %v2179
        %3723 = vmatprep.subr.bf16.mxu0 0
        %3724 = vmatpush1.bf16.msra.mxu0 %v2180
        %3725 = vmatprep.subr.bf16.mxu0 0
        %3726 = vmatpush1.bf16.msra.mxu0 0
        %3727 = vmatprep.subr.bf16.mxu0 0
        %3728 = vmatpush1.bf16.msra.mxu0 0
        %3729 = vmatprep.subr.bf16.mxu0 0
        %3730 = vmatpush1.bf16.msra.mxu0 0
        %3731 = vmatprep.subr.bf16.mxu0 0
        %3732 = vmatpush1.bf16.msra.mxu0 0
        %3733 = vmatprep.subr.bf16.mxu0 0
        %3734 = vmatpush1.bf16.msra.mxu0 0
        %3735 = vmatprep.subr.bf16.mxu0 0
        %3736 = vmatpush1.bf16.msra.mxu0 0
        %3737 = vmatprep.subr.bf16.mxu0 0
        %3738 = vmatpush1.bf16.msra.mxu0 0
        %3739 = vmatprep.subr.bf16.mxu0 0
        %3740 = vmatpush1.bf16.msra.mxu0 0
        %3741 = vmatprep.subr.bf16.mxu0 0
        %3742 = vmatpush1.bf16.msra.mxu0 0
        %3743 = vmatprep.subr.bf16.mxu0 0
        %3744 = vmatpush1.bf16.msra.mxu0 0
        %3745 = vmatprep.subr.bf16.mxu0 0
        %3746 = vmatpush1.bf16.msra.mxu0 0
        %3747 = vmatprep.subr.bf16.mxu0 0
        %3748 = vmatpush1.bf16.msra.mxu0 0
        %3749 = vmatprep.mubr.bf16.mxu0 0
        %3750 = vmatmul.mubr.bf16.gmra.mrb[0].mxu0 %v3712
        %v3751 = vpop.f32.mrb[0].mxu0
        %v3752 = vadd.f32 0.0, %v3751
        %v3753 = vpop.f32.mrb[0].mxu0
        %v3754 = vpop.f32.mrb[0].mxu0
        %v3755 = vadd.f32 0.0, %v3754
        %v3756 = vpop.f32.mrb[0].mxu0
        %3757 = vmatprep.mubr.bf16.mxu0 0
        %3758 = vmatmul.mubr.bf16.gmra.mrb[0].mxu0 %v3715
        %v3759 = vpop.f32.mrb[0].mxu0
        %v3760 = vadd.f32 0.0, %v3759
        %v3761 = vpop.f32.mrb[0].mxu0
        %v3762 = vpop.f32.mrb[0].mxu0
        %v3763 = vadd.f32 0.0, %v3762
        %v3764 = vpop.f32.mrb[0].mxu0
        %3765 = vdwg.mxu0
        %v3766 = vadd.f32 %v3698, %v3752
        %v3767 = vadd.f32 %v3699, %v3755
        %v3768 = vadd.f32 %v3700, %v3760
        %v3769 = vadd.f32 %v3701, %v3763
        %v3770 = vld [vmem:[%s3704 + $0x1] sm:$0xff]
        %v3771 = vld [vmem:[%s3704 + $0x9] sm:$0xff]
        %v3772 = vld [vmem:[%s3704 + $0x11] sm:$0xff]
        %v3773 = vld [vmem:[%s3704 + $0x19] sm:$0x7]
        %v3774 = vpack.c.bf16 %v3771, %v3770
        %v3775 = vpack.c.bf16 %v3773, %v3772
        %v3777 = vsel %vm235, %v3774, 0
        %v3780 = vsel %vm235, %v3775, 0
        %3782 = vmatprep.subr.bf16.mxu0 0
        %3783 = vmatpush1.bf16.msra.mxu0 %v2275
        %3784 = vmatprep.subr.bf16.mxu0 0
        %3785 = vmatpush1.bf16.msra.mxu0 %v2276
        %3786 = vmatprep.subr.bf16.mxu0 0
        %3787 = vmatpush1.bf16.msra.mxu0 %v2277
        %3788 = vmatprep.subr.bf16.mxu0 0
        %3789 = vmatpush1.bf16.msra.mxu0 %v2278
        %3790 = vmatprep.subr.bf16.mxu0 0
        %3791 = vmatpush1.bf16.msra.mxu0 0
        %3792 = vmatprep.subr.bf16.mxu0 0
        %3793 = vmatpush1.bf16.msra.mxu0 0
        %3794 = vmatprep.subr.bf16.mxu0 0
        %3795 = vmatpush1.bf16.msra.mxu0 0
        %3796 = vmatprep.subr.bf16.mxu0 0
        %3797 = vmatpush1.bf16.msra.mxu0 0
        %3798 = vmatprep.subr.bf16.mxu0 0
        %3799 = vmatpush1.bf16.msra.mxu0 0
        %3800 = vmatprep.subr.bf16.mxu0 0
        %3801 = vmatpush1.bf16.msra.mxu0 0
        %3802 = vmatprep.subr.bf16.mxu0 0
        %3803 = vmatpush1.bf16.msra.mxu0 0
        %3804 = vmatprep.subr.bf16.mxu0 0
        %3805 = vmatpush1.bf16.msra.mxu0 0
        %3806 = vmatprep.subr.bf16.mxu0 0
        %3807 = vmatpush1.bf16.msra.mxu0 0
        %3808 = vmatprep.subr.bf16.mxu0 0
        %3809 = vmatpush1.bf16.msra.mxu0 0
        %3810 = vmatprep.subr.bf16.mxu0 0
        %3811 = vmatpush1.bf16.msra.mxu0 0
        %3812 = vmatprep.subr.bf16.mxu0 0
        %3813 = vmatpush1.bf16.msra.mxu0 0
        %3814 = vmatprep.mubr.bf16.mxu0 0
        %3815 = vmatmul.mubr.bf16.gmra.mrb[0].mxu0 %v3777
        %v3816 = vpop.f32.mrb[0].mxu0
        %v3817 = vadd.f32 0.0, %v3816
        %v3818 = vpop.f32.mrb[0].mxu0
        %v3819 = vpop.f32.mrb[0].mxu0
        %v3820 = vadd.f32 0.0, %v3819
        %v3821 = vpop.f32.mrb[0].mxu0
        %3822 = vmatprep.mubr.bf16.mxu0 0
        %3823 = vmatmul.mubr.bf16.gmra.mrb[0].mxu0 %v3780
        %v3824 = vpop.f32.mrb[0].mxu0
        %v3825 = vadd.f32 0.0, %v3824
        %v3826 = vpop.f32.mrb[0].mxu0
        %v3827 = vpop.f32.mrb[0].mxu0
        %v3828 = vadd.f32 0.0, %v3827
        %v3829 = vpop.f32.mrb[0].mxu0
        %3830 = vdwg.mxu0
        %v3831 = vadd.f32 %v3766, %v3817
        %v3832 = vadd.f32 %v3767, %v3820
        %v3833 = vadd.f32 %v3768, %v3825
        %v3834 = vadd.f32 %v3769, %v3828
        %v3835 = vld [vmem:[%s3704 + $0x2] sm:$0xff]
        %v3836 = vld [vmem:[%s3704 + $0xa] sm:$0xff]
        %v3837 = vld [vmem:[%s3704 + $0x12] sm:$0xff]
        %v3838 = vld [vmem:[%s3704 + $0x1a] sm:$0x7]
        %v3839 = vpack.c.bf16 %v3836, %v3835
        %v3840 = vpack.c.bf16 %v3838, %v3837
        %v3842 = vsel %vm235, %v3839, 0
        %v3845 = vsel %vm235, %v3840, 0
        %3847 = vmatprep.subr.bf16.mxu0 0
        %3848 = vmatpush1.bf16.msra.mxu0 %v2373
        %3849 = vmatprep.subr.bf16.mxu0 0
        %3850 = vmatpush1.bf16.msra.mxu0 %v2374
        %3851 = vmatprep.subr.bf16.mxu0 0
        %3852 = vmatpush1.bf16.msra.mxu0 %v2375
        %3853 = vmatprep.subr.bf16.mxu0 0
        %3854 = vmatpush1.bf16.msra.mxu0 %v2376
        %3855 = vmatprep.subr.bf16.mxu0 0
        %3856 = vmatpush1.bf16.msra.mxu0 0
        %3857 = vmatprep.subr.bf16.mxu0 0
        %3858 = vmatpush1.bf16.msra.mxu0 0
        %3859 = vmatprep.subr.bf16.mxu0 0
        %3860 = vmatpush1.bf16.msra.mxu0 0
        %3861 = vmatprep.subr.bf16.mxu0 0
        %3862 = vmatpush1.bf16.msra.mxu0 0
        %3863 = vmatprep.subr.bf16.mxu0 0
        %3864 = vmatpush1.bf16.msra.mxu0 0
        %3865 = vmatprep.subr.bf16.mxu0 0
        %3866 = vmatpush1.bf16.msra.mxu0 0
        %3867 = vmatprep.subr.bf16.mxu0 0
        %3868 = vmatpush1.bf16.msra.mxu0 0
        %3869 = vmatprep.subr.bf16.mxu0 0
        %3870 = vmatpush1.bf16.msra.mxu0 0
        %3871 = vmatprep.subr.bf16.mxu0 0
        %3872 = vmatpush1.bf16.msra.mxu0 0
        %3873 = vmatprep.subr.bf16.mxu0 0
        %3874 = vmatpush1.bf16.msra.mxu0 0
        %3875 = vmatprep.subr.bf16.mxu0 0
        %3876 = vmatpush1.bf16.msra.mxu0 0
        %3877 = vmatprep.subr.bf16.mxu0 0
        %3878 = vmatpush1.bf16.msra.mxu0 0
        %3879 = vmatprep.mubr.bf16.mxu0 0
        %3880 = vmatmul.mubr.bf16.gmra.mrb[0].mxu0 %v3842
        %v3881 = vpop.f32.mrb[0].mxu0
        %v3882 = vadd.f32 0.0, %v3881
        %v3883 = vpop.f32.mrb[0].mxu0
        %v3884 = vpop.f32.mrb[0].mxu0
        %v3885 = vadd.f32 0.0, %v3884
        %v3886 = vpop.f32.mrb[0].mxu0
        %3887 = vmatprep.mubr.bf16.mxu0 0
        %3888 = vmatmul.mubr.bf16.gmra.mrb[0].mxu0 %v3845
        %v3889 = vpop.f32.mrb[0].mxu0
        %v3890 = vadd.f32 0.0, %v3889
        %v3891 = vpop.f32.mrb[0].mxu0
        %v3892 = vpop.f32.mrb[0].mxu0
        %v3893 = vadd.f32 0.0, %v3892
        %v3894 = vpop.f32.mrb[0].mxu0
        %3895 = vdwg.mxu0
        %v3896 = vadd.f32 %v3831, %v3882
        %v3897 = vadd.f32 %v3832, %v3885
        %v3898 = vadd.f32 %v3833, %v3890
        %v3899 = vadd.f32 %v3834, %v3893
        %v3900 = vld [vmem:[%s3704 + $0x3] sm:$0xff]
        %v3901 = vld [vmem:[%s3704 + $0xb] sm:$0xff]
        %v3902 = vld [vmem:[%s3704 + $0x13] sm:$0xff]
        %v3903 = vld [vmem:[%s3704 + $0x1b] sm:$0x7]
        %v3904 = vpack.c.bf16 %v3901, %v3900
        %v3905 = vpack.c.bf16 %v3903, %v3902
        %v3907 = vsel %vm235, %v3904, 0
        %v3910 = vsel %vm235, %v3905, 0
        %3912 = vmatprep.subr.bf16.mxu0 0
        %3913 = vmatpush1.bf16.msra.mxu0 %v2471
        %3914 = vmatprep.subr.bf16.mxu0 0
        %3915 = vmatpush1.bf16.msra.mxu0 %v2472
        %3916 = vmatprep.subr.bf16.mxu0 0
        %3917 = vmatpush1.bf16.msra.mxu0 %v2473
        %3918 = vmatprep.subr.bf16.mxu0 0
        %3919 = vmatpush1.bf16.msra.mxu0 %v2474
        %3920 = vmatprep.subr.bf16.mxu0 0
        %3921 = vmatpush1.bf16.msra.mxu0 0
        %3922 = vmatprep.subr.bf16.mxu0 0
        %3923 = vmatpush1.bf16.msra.mxu0 0
        %3924 = vmatprep.subr.bf16.mxu0 0
        %3925 = vmatpush1.bf16.msra.mxu0 0
        %3926 = vmatprep.subr.bf16.mxu0 0
        %3927 = vmatpush1.bf16.msra.mxu0 0
        %3928 = vmatprep.subr.bf16.mxu0 0
        %3929 = vmatpush1.bf16.msra.mxu0 0
        %3930 = vmatprep.subr.bf16.mxu0 0
        %3931 = vmatpush1.bf16.msra.mxu0 0
        %3932 = vmatprep.subr.bf16.mxu0 0
        %3933 = vmatpush1.bf16.msra.mxu0 0
        %3934 = vmatprep.subr.bf16.mxu0 0
        %3935 = vmatpush1.bf16.msra.mxu0 0
        %3936 = vmatprep.subr.bf16.mxu0 0
        %3937 = vmatpush1.bf16.msra.mxu0 0
        %3938 = vmatprep.subr.bf16.mxu0 0
        %3939 = vmatpush1.bf16.msra.mxu0 0
        %3940 = vmatprep.subr.bf16.mxu0 0
        %3941 = vmatpush1.bf16.msra.mxu0 0
        %3942 = vmatprep.subr.bf16.mxu0 0
        %3943 = vmatpush1.bf16.msra.mxu0 0
        %3944 = vmatprep.mubr.bf16.mxu0 0
        %3945 = vmatmul.mubr.bf16.gmra.mrb[0].mxu0 %v3907
        %v3946 = vpop.f32.mrb[0].mxu0
        %v3947 = vadd.f32 0.0, %v3946
        %v3948 = vpop.f32.mrb[0].mxu0
        %v3949 = vpop.f32.mrb[0].mxu0
        %v3950 = vadd.f32 0.0, %v3949
        %v3951 = vpop.f32.mrb[0].mxu0
        %3952 = vmatprep.mubr.bf16.mxu0 0
        %3953 = vmatmul.mubr.bf16.gmra.mrb[0].mxu0 %v3910
        %v3954 = vpop.f32.mrb[0].mxu0
        %v3955 = vadd.f32 0.0, %v3954
        %v3956 = vpop.f32.mrb[0].mxu0
        %v3957 = vpop.f32.mrb[0].mxu0
        %v3958 = vadd.f32 0.0, %v3957
        %v3959 = vpop.f32.mrb[0].mxu0
        %3960 = vdwg.mxu0
        %v3961 = vadd.f32 %v3896, %v3947
        %v3962 = vadd.f32 %v3897, %v3950
        %v3963 = vadd.f32 %v3898, %v3955
        %v3964 = vadd.f32 %v3899, %v3958
        %v3965 = vld [vmem:[%s3704 + $0x4] sm:$0xff]
        %v3966 = vld [vmem:[%s3704 + $0xc] sm:$0xff]
        %v3967 = vld [vmem:[%s3704 + $0x14] sm:$0xff]
        %v3968 = vld [vmem:[%s3704 + $0x1c] sm:$0x7]
        %v3969 = vpack.c.bf16 %v3966, %v3965
        %v3970 = vpack.c.bf16 %v3968, %v3967
        %v3972 = vsel %vm235, %v3969, 0
        %v3975 = vsel %vm235, %v3970, 0
        %3977 = vmatprep.subr.bf16.mxu0 0
        %3978 = vmatpush1.bf16.msra.mxu0 %v2569
        %3979 = vmatprep.subr.bf16.mxu0 0
        %3980 = vmatpush1.bf16.msra.mxu0 %v2570
        %3981 = vmatprep.subr.bf16.mxu0 0
        %3982 = vmatpush1.bf16.msra.mxu0 %v2571
        %3983 = vmatprep.subr.bf16.mxu0 0
        %3984 = vmatpush1.bf16.msra.mxu0 %v2572
        %3985 = vmatprep.subr.bf16.mxu0 0
        %3986 = vmatpush1.bf16.msra.mxu0 0
        %3987 = vmatprep.subr.bf16.mxu0 0
        %3988 = vmatpush1.bf16.msra.mxu0 0
        %3989 = vmatprep.subr.bf16.mxu0 0
        %3990 = vmatpush1.bf16.msra.mxu0 0
        %3991 = vmatprep.subr.bf16.mxu0 0
        %3992 = vmatpush1.bf16.msra.mxu0 0
        %3993 = vmatprep.subr.bf16.mxu0 0
        %3994 = vmatpush1.bf16.msra.mxu0 0
        %3995 = vmatprep.subr.bf16.mxu0 0
        %3996 = vmatpush1.bf16.msra.mxu0 0
        %3997 = vmatprep.subr.bf16.mxu0 0
        %3998 = vmatpush1.bf16.msra.mxu0 0
        %3999 = vmatprep.subr.bf16.mxu0 0
        %4000 = vmatpush1.bf16.msra.mxu0 0
        %4001 = vmatprep.subr.bf16.mxu0 0
        %4002 = vmatpush1.bf16.msra.mxu0 0
        %4003 = vmatprep.subr.bf16.mxu0 0
        %4004 = vmatpush1.bf16.msra.mxu0 0
        %4005 = vmatprep.subr.bf16.mxu0 0
        %4006 = vmatpush1.bf16.msra.mxu0 0
        %4007 = vmatprep.subr.bf16.mxu0 0
        %4008 = vmatpush1.bf16.msra.mxu0 0
        %4009 = vmatprep.mubr.bf16.mxu0 0
        %4010 = vmatmul.mubr.bf16.gmra.mrb[0].mxu0 %v3972
        %v4011 = vpop.f32.mrb[0].mxu0
        %v4012 = vadd.f32 0.0, %v4011
        %v4013 = vpop.f32.mrb[0].mxu0
        %v4014 = vpop.f32.mrb[0].mxu0
        %v4015 = vadd.f32 0.0, %v4014
        %v4016 = vpop.f32.mrb[0].mxu0
        %4017 = vmatprep.mubr.bf16.mxu0 0
        %4018 = vmatmul.mubr.bf16.gmra.mrb[0].mxu0 %v3975
        %v4019 = vpop.f32.mrb[0].mxu0
        %v4020 = vadd.f32 0.0, %v4019
        %v4021 = vpop.f32.mrb[0].mxu0
        %v4022 = vpop.f32.mrb[0].mxu0
        %v4023 = vadd.f32 0.0, %v4022
        %v4024 = vpop.f32.mrb[0].mxu0
        %4025 = vdwg.mxu0
        %v4026 = vadd.f32 %v3961, %v4012
        %v4027 = vadd.f32 %v3962, %v4015
        %v4028 = vadd.f32 %v3963, %v4020
        %v4029 = vadd.f32 %v3964, %v4023
        %v4030 = vadd.f32 %v4026, %v2640
        %v4031 = vadd.f32 %v4027, %v2640
        %v4032 = vadd.f32 %v4028, %v2640
        %v4033 = vadd.f32 %v4029, %v2640
        %v4034 = vmax.f32 %v4030, 0.0
        %v4035 = vmax.f32 %v4031, 0.0
        %v4036 = vmax.f32 %v4032, 0.0
        %v4037 = vmax.f32 %v4033, 0.0
        %v4038 = vmax.f32 %v2646, %v4034
        %v4039 = vmax.f32 %v2647, %v4035
        %v4040 = vmax.f32 %v2648, %v4036
        %v4041 = vmax.f32 %v2649, %v4037
        %vm4042 = vcmask 130048
        %4043 = vst.msk [vmem:[#allocation2] sm:$0xff] %vm4042, %v4038
        %4044 = vst.msk [vmem:[#allocation2 + $0x8] sm:$0xff] %vm4042, %v4039
        %4045 = vst.msk [vmem:[#allocation2 + $0x10] sm:$0xff] %vm4042, %v4040
        %vm4046 = vcmask 124928
        %4047 = vst.msk [vmem:[#allocation2 + $0x18] sm:$0x7] %vm4046, %v4041
        %v4048 = vld [vmem:[#allocation2] ss:$2 sm:$0xff]
        %s4049 = scalar_lea.vmem [#allocation2], 16
        %v4050 = vld [vmem:[%s4049] ss:$2 sm:$0x1f]
        %s4051 = scalar_lea.vmem [#allocation2], 1
        %v4052 = vld [vmem:[%s4051] ss:$2 sm:$0xff]
        %s4053 = scalar_lea.vmem [#allocation2], 17
        %v4054 = vld [vmem:[%s4053] ss:$2 sm:$0x1f]
        %v4055 = vmax.f32 %v4048, %v4052
        %v4056 = vmax.f32 %v4050, %v4054
        %s4057 = smul.u32 %s174, 16
        %s4058 = scalar_lea.vmem %s170, %s4057
        %4059 = vst.msk [vmem:[%s4058] sm:$0xff] %vm4042, %v4055
        %vm4060 = vcmask 126976
        %4061 = vst.msk [vmem:[%s4058 + $0x8] sm:$0x1f] %vm4060, %v4056
      $region37: #{net_forward.4} parent=31 // loop_footer
        %s178 = sadd.s32 1, %s174
      $region38: #{net_forward.4} parent=31 // loop_footer_branch
        %173 = sbr.rel target = $region34
      $region39: #{net_forward.4} parent=31 // loop_exit
        _
      %p4062 = scmp.lt.s32.totalorder %s14, 1
      %s4063 = scalar_select %p4062, %s14, 1
      %s4064 = smul.addr %s4063, 26
      %s4065 = smul.addr %s4064, 8
      %s4066 = scalar_lea.vmem %s3, %s4065
      // Predicated region
      $region40: #{net_forward.4} parent=31 // pred_check
        %p4067 = pneg %p100
      $region41: #{net_forward.4} parent=31 // pred_check_branch
        %4069 = sbr.rel (%p4067) target = $region43
      $region42: #{net_forward.4} parent=31 // pred_region
        _
      $region43: #{net_forward.4} parent=31 // pred_fallthru
        _
    $region32: #{net_forward.4} parent=5 // pred_fallthru
      _
    %p4070 = scmp.le.s32.totalorder 2, %s9
    // Predicated region
    $region44: #{net_forward.4} parent=5 // pred_check
      %p4071 = pneg %p4070
    $region45: #{net_forward.4} parent=5 // pred_check_branch
      %4073 = sbr.rel (%p4071) target = $region47
    $region46: #{net_forward.4} parent=5 // pred_region
      %s4074 = ssub.s32 %s9, 2
      // Predicated region
      $region48: #{net_forward.4} parent=46 // pred_check
        %p4075 = pneg %p106
      $region49: #{net_forward.4} parent=46 // pred_check_branch
        %4077 = sbr.rel (%p4075) target = $region51
      $region50: #{net_forward.4} parent=46 // pred_region
        %p4078 = scmp.lt.s32.totalorder %s15, 1
        %s4079 = scalar_select %p4078, %s15, 1
        %s4080 = smul.addr %s4079, 26
        %s4081 = smul.addr %s4080, 8
        %s4082 = scalar_lea.vmem %s3, %s4081
      $region51: #{net_forward.4} parent=46 // pred_fallthru
        _
    $region47: #{net_forward.4} parent=5 // pred_fallthru
      _
  $region6: #{net_forward.4} parent=0 // loop_footer
    %s13 = sadd.s32 1, %s9
  $region7: #{net_forward.4} parent=0 // loop_footer_branch
    %8 = sbr.rel target = $region3
  $region8: #{net_forward.4} parent=0 // loop_exit
    _

</llo_original>
